<compile_context>
chip_gen: v7x
topology: tpu7x:2x2x1
jax: 0.10.0
libtpu: 0.0.40
codegen_flags: <defaults>
</compile_context>

<pallas_src>
import functools

import numpy as np

import jax
import jax.numpy as jnp
from jax import lax
from jax.experimental import pallas as pl
from jax.experimental.pallas import tpu as pltpu

BN_EPS = 1e-5
KERNEL = 10
STRIDE = 3
PAD = 3
SAMPLES = 630                      # one ACNN chunk: 44100 // 70
CHANNELS = (2, 16, 32, 64, 128, 256)
N_LAYERS = len(CHANNELS) - 1


def _conv_out_len(length):
    return (length + 2 * PAD - KERNEL) // STRIDE + 1


def _length_schedule(length):
    lens = [length]
    for _ in range(N_LAYERS):
        lens.append(_conv_out_len(lens[-1]))
    return lens                    # 630 -> 209 -> 69 -> 22 -> 7 -> 2


# --------------------------------------------------------------------------- #
# Fused kernel: 5 x (Conv1d + BatchNorm1d) + AvgPool1d(2) + squeeze
# --------------------------------------------------------------------------- #
def _acnn_fused_kernel(xcol1_ref, *refs):
    """xcol1_ref: (B*L1, K*C0) bf16 layer-1 im2col patches (built in wrapper).

    refs = layer 1: (w, gamma, beta); layers 2..5: (sel, w, gamma, beta);
           then out_ref (B, 256) f32.
    Weights are (K*Cin, Cout) bf16; gamma/beta are (1, Cout) f32; sel is the
    (L_out, 3*(L_out-1)+1) bf16 {0,1} stride-3 row-selection matrix.
    Conv biases are omitted: they cancel exactly in train-mode BatchNorm.
    """
    out_ref = refs[-1]
    prefs = refs[:-1]
    batch = out_ref.shape[0]

    def batchnorm(y, g_ref, beta_ref):
        # nn.BatchNorm1d train-mode forward: biased batch stats over (batch*len).
        # Single pass: var = E[y^2] - E[y]^2 (f32, clamped against fp rounding).
        inv_n = 1.0 / float(y.shape[0])
        mean = jnp.sum(y, axis=0, keepdims=True) * inv_n
        var = jnp.maximum(
            jnp.sum(y * y, axis=0, keepdims=True) * inv_n - mean * mean, 0.0)
        scale = g_ref[...] * lax.rsqrt(var + BN_EPS)
        shift = beta_ref[...] - mean * scale
        return y * scale + shift

    # ---- Layer 1: patches are already lane-dense, batch stacked along M. ----
    y = jnp.dot(xcol1_ref[...], prefs[0][...],
                preferred_element_type=jnp.float32)           # (B*209, 16) f32
    y = batchnorm(y, prefs[1], prefs[2])
    l_in = y.shape[0] // batch

    # ---- Layers 2..5: in-kernel im2col + one weight matmul + fused BN. ------
    for layer in range(1, N_LAYERS):
        sel_ref, w_ref, g_ref, beta_ref = prefs[4 * layer - 1: 4 * layer + 3]
        l_out, l_sel = sel_ref.shape
        kc_in, c_out = w_ref.shape
        c_in = kc_in // KERNEL
        l_ext = l_sel + KERNEL - 1                 # padded length actually read
        pad_back = l_ext - PAD - l_in

        sel = sel_ref[...]                         # (l_out, l_sel) bf16 {0,1}
        cols = []
        for b in range(batch):
            h_b = y[b * l_in:(b + 1) * l_in, :]    # (l_in, c_in) f32
            pieces = [jnp.zeros((PAD, c_in), jnp.float32), h_b]
            if pad_back > 0:
                pieces.append(jnp.zeros((pad_back, c_in), jnp.float32))
            x_ext = jnp.concatenate(pieces, axis=0)            # (l_ext, c_in)
            # K contiguous tap views concatenated on the lane axis; the stride-3
            # down-sample (and the implicit zero padding) is handled by the
            # selection matmul on the MXU -- no strided/gather loads needed.
            taps = [x_ext[k:k + l_sel, :] for k in range(KERNEL)]
            x_stack = jnp.concatenate(taps, axis=1).astype(jnp.bfloat16)
            cols.append(jnp.dot(sel, x_stack,
                                preferred_element_type=jnp.float32))
        # Batch stacked along M -> one weight matmul; BN batch stats come from
        # the same (batch*length, c_out) reduction.
        x_col = jnp.concatenate(cols, axis=0).astype(jnp.bfloat16)
        y = jnp.dot(x_col, w_ref[...], preferred_element_type=jnp.float32)
        y = batchnorm(y, g_ref, beta_ref)          # (B*l_out, c_out) f32
        l_in = l_out

    # ---- AvgPool1d(2) over the final length-2 axis + squeeze -> (B, 256). ---
    pooled = [(y[2 * b:2 * b + 1, :] + y[2 * b + 1:2 * b + 2, :]) * 0.5
              for b in range(batch)]
    out_ref[...] = jnp.concatenate(pooled, axis=0)


# --------------------------------------------------------------------------- #
# Host-side constants / parameters / wrapper
# --------------------------------------------------------------------------- #
@functools.lru_cache(maxsize=None)
def _selection_matrices(length):
    """Stride-3 row-selection matrices for conv layers 2..5 (host precompute)."""
    lens = _length_schedule(length)
    mats = []
    for i in range(1, N_LAYERS):
        l_out = lens[i + 1]
        l_sel = STRIDE * (l_out - 1) + 1
        s = np.zeros((l_out, l_sel), np.float32)
        s[np.arange(l_out), STRIDE * np.arange(l_out)] = 1.0
        mats.append(s)
    return tuple(mats)


def _layer1_im2col(x):
    """Raw (B, 2, L) waveform -> (B*L1, K*2) bf16 im2col patches.

    Pure layout plumbing (strided gather of receptive fields) done by XLA in
    the jitted wrapper so the kernel's first matmul operand is lane-dense.
    """
    b, c_in, length = x.shape
    l_out = _conv_out_len(length)
    l_sel = STRIDE * (l_out - 1) + 1
    l_ext = l_sel + KERNEL - 1
    x_pad = jnp.pad(x, ((0, 0), (0, 0), (PAD, l_ext - PAD - length)))
    taps = [x_pad[:, :, k:k + l_sel:STRIDE] for k in range(KERNEL)]  # (B,C0,L1)
    patches = jnp.stack(taps, axis=1)                                # (B,K,C0,L1)
    patches = jnp.transpose(patches, (0, 3, 1, 2))                   # (B,L1,K,C0)
    return patches.reshape(b * l_out, KERNEL * c_in).astype(jnp.bfloat16)


def init_params(key):
    """Conv/BN parameters; conv weights pre-packed ONCE into (K*Cin, Cout) bf16."""
    keys = jax.random.split(key, 2 * N_LAYERS)
    layers = []
    for i in range(N_LAYERS):
        c_in, c_out = CHANNELS[i], CHANNELS[i + 1]
        w = jax.random.normal(keys[2 * i], (c_out, c_in, KERNEL), jnp.float32)
        w = w / jnp.sqrt(float(c_in * KERNEL))
        b = 0.01 * jax.random.normal(keys[2 * i + 1], (c_out,), jnp.float32)
        w_col = jnp.transpose(w, (2, 1, 0)).reshape(KERNEL * c_in, c_out)
        layers.append({
            # PyTorch Conv1d layout (Cout, Cin, K) -> im2col layout (K*Cin, Cout).
            "w_col": w_col.astype(jnp.bfloat16),
            # Kept for parity with nn.Conv1d(bias=True) but unused: the bias
            # cancels exactly under train-mode BatchNorm.
            "bias": b,
            "gamma": jnp.ones((1, c_out), jnp.float32),      # BatchNorm1d defaults
            "beta": jnp.zeros((1, c_out), jnp.float32),
        })
    return layers


@jax.jit
def acnn_forward(params, x):
    """ACNN.forward: x (B, 2, L) raw-waveform chunk -> (B, 256) representations."""
    b, c_in, length = x.shape
    assert c_in == CHANNELS[0]
    lens = _length_schedule(length)
    assert lens[-1] == 2, (
        f"AvgPool1d(2) + squeeze expects final conv length 2, got {lens[-1]}")

    xcol1 = _layer1_im2col(x)
    sel = _selection_matrices(length)

    flat = [params[0]["w_col"], params[0]["gamma"], params[0]["beta"]]
    for i in range(1, N_LAYERS):
        flat.extend([jnp.asarray(sel[i - 1], jnp.bfloat16),
                     params[i]["w_col"], params[i]["gamma"], params[i]["beta"]])

    return pl.pallas_call(
        _acnn_fused_kernel,
        out_shape=jax.ShapeDtypeStruct((b, CHANNELS[-1]), jnp.float32),
        # Whole arrays live in VMEM; the real footprint is a few MiB (bf16
        # weights ~0.9 MiB + im2col temporaries), so 16 MiB leaves ample
        # headroom without reserving half the chip's scoped VMEM.
        compiler_params=pltpu.CompilerParams(vmem_limit_bytes=16 * 1024 * 1024),
    )(xcol1, *flat)


if __name__ == "__main__":
    key = jax.random.PRNGKey(0)
    k_x, k_p = jax.random.split(key)
    # One 1/70-second stereo chunk per batch element (ACNN.pre_process layout):
    # (batch=2, channels=2, length=44100 // 70 = 630).
    x = 0.1 * jax.random.normal(k_x, (2, CHANNELS[0], SAMPLES), jnp.float32)
    params = init_params(k_p)
    reps = acnn_forward(params, x)
    jax.block_until_ready(reps)
    assert reps.shape == (2, CHANNELS[-1]), reps.shape
    assert bool(jnp.all(jnp.isfinite(reps))), "non-finite output"
    print("KERNEL_OK")
</pallas_src>

<mosaic_0001>
module attributes {stable_mosaic.version = 11 : i64} {
  func.func @_acnn_fused_kernel(%arg0: memref<418x20xbf16, #tpu.memory_space<vmem>>, %arg1: memref<20x16xbf16, #tpu.memory_space<vmem>>, %arg2: memref<1x16xf32, #tpu.memory_space<vmem>>, %arg3: memref<1x16xf32, #tpu.memory_space<vmem>>, %arg4: memref<69x205xbf16, #tpu.memory_space<vmem>>, %arg5: memref<160x32xbf16, #tpu.memory_space<vmem>>, %arg6: memref<1x32xf32, #tpu.memory_space<vmem>>, %arg7: memref<1x32xf32, #tpu.memory_space<vmem>>, %arg8: memref<22x64xbf16, #tpu.memory_space<vmem>>, %arg9: memref<320x64xbf16, #tpu.memory_space<vmem>>, %arg10: memref<1x64xf32, #tpu.memory_space<vmem>>, %arg11: memref<1x64xf32, #tpu.memory_space<vmem>>, %arg12: memref<7x19xbf16, #tpu.memory_space<vmem>>, %arg13: memref<640x128xbf16, #tpu.memory_space<vmem>>, %arg14: memref<1x128xf32, #tpu.memory_space<vmem>>, %arg15: memref<1x128xf32, #tpu.memory_space<vmem>>, %arg16: memref<2x4xbf16, #tpu.memory_space<vmem>>, %arg17: memref<1280x256xbf16, #tpu.memory_space<vmem>>, %arg18: memref<1x256xf32, #tpu.memory_space<vmem>>, %arg19: memref<1x256xf32, #tpu.memory_space<vmem>>, %arg20: memref<2x256xf32, #tpu.memory_space<vmem>>) attributes {dimension_semantics = [], scalar_prefetch = 0 : i64, scratch_operands = 0 : i64, tpu.core_type = #tpu.core_type<tc>} {
    %c0 = arith.constant 0 : index
    %c0_0 = arith.constant 0 : index
    %0 = vector.load %arg0[%c0, %c0_0] : memref<418x20xbf16, #tpu.memory_space<vmem>>, vector<418x20xbf16>
    %c0_1 = arith.constant 0 : index
    %c0_2 = arith.constant 0 : index
    %1 = vector.load %arg1[%c0_1, %c0_2] : memref<20x16xbf16, #tpu.memory_space<vmem>>, vector<20x16xbf16>
    %cst = arith.constant dense<0.000000e+00> : vector<418x16xf32>
    %2 = tpu.matmul %0, %1, %cst {dimension_numbers = #tpu.dot_dimension_numbers<[1], [0], [0], [1], [0, 0, 1, 1], [], []>} : vector<418x20xbf16>, vector<20x16xbf16>, vector<418x16xf32> -> vector<418x16xf32>
    %cst_3 = arith.constant dense<0.000000e+00> : vector<16xf32>
    %3 = vector.multi_reduction <add>, %2, %cst_3 [0] : vector<418x16xf32> to vector<16xf32>
    %4 = vector.shape_cast %3 : vector<16xf32> to vector<1x16xf32>
    %cst_4 = arith.constant 0.00239234441 : f32
    %5 = vector.broadcast %cst_4 : f32 to vector<1x16xf32>
    %6 = arith.mulf %4, %5 : vector<1x16xf32>
    %7 = arith.mulf %2, %2 : vector<418x16xf32>
    %cst_5 = arith.constant dense<0.000000e+00> : vector<16xf32>
    %8 = vector.multi_reduction <add>, %7, %cst_5 [0] : vector<418x16xf32> to vector<16xf32>
    %9 = vector.shape_cast %8 : vector<16xf32> to vector<1x16xf32>
    %cst_6 = arith.constant 0.00239234441 : f32
    %10 = vector.broadcast %cst_6 : f32 to vector<1x16xf32>
    %11 = arith.mulf %9, %10 : vector<1x16xf32>
    %12 = arith.mulf %6, %6 : vector<1x16xf32>
    %13 = arith.subf %11, %12 : vector<1x16xf32>
    %cst_7 = arith.constant 0.000000e+00 : f32
    %14 = vector.broadcast %cst_7 : f32 to vector<1x16xf32>
    %15 = arith.maximumf %13, %14 : vector<1x16xf32>
    %c0_8 = arith.constant 0 : index
    %c0_9 = arith.constant 0 : index
    %16 = vector.load %arg2[%c0_8, %c0_9] : memref<1x16xf32, #tpu.memory_space<vmem>>, vector<1x16xf32>
    %cst_10 = arith.constant 9.99999974E-6 : f32
    %17 = vector.broadcast %cst_10 : f32 to vector<1x16xf32>
    %18 = arith.addf %15, %17 : vector<1x16xf32>
    %19 = math.rsqrt %18 : vector<1x16xf32>
    %20 = arith.mulf %16, %19 : vector<1x16xf32>
    %c0_11 = arith.constant 0 : index
    %c0_12 = arith.constant 0 : index
    %21 = vector.load %arg3[%c0_11, %c0_12] : memref<1x16xf32, #tpu.memory_space<vmem>>, vector<1x16xf32>
    %22 = arith.mulf %6, %20 : vector<1x16xf32>
    %23 = arith.subf %21, %22 : vector<1x16xf32>
    %24 = vector.broadcast %20 : vector<1x16xf32> to vector<418x16xf32>
    %25 = arith.mulf %2, %24 : vector<418x16xf32>
    %26 = vector.broadcast %23 : vector<1x16xf32> to vector<418x16xf32>
    %27 = arith.addf %25, %26 : vector<418x16xf32>
    %c0_13 = arith.constant 0 : index
    %c0_14 = arith.constant 0 : index
    %28 = vector.load %arg4[%c0_13, %c0_14] : memref<69x205xbf16, #tpu.memory_space<vmem>>, vector<69x205xbf16>
    %29 = vector.extract_strided_slice %27 {offsets = [0, 0], sizes = [209, 16], strides = [1, 1]} : vector<418x16xf32> to vector<209x16xf32>
    %cst_15 = arith.constant 0.000000e+00 : f32
    %30 = vector.broadcast %cst_15 : f32 to vector<3x16xf32>
    %cst_16 = arith.constant 0.000000e+00 : f32
    %31 = vector.broadcast %cst_16 : f32 to vector<2x16xf32>
    %32 = tpu.concatenate %30, %29, %31 in 0 : vector<3x16xf32>, vector<209x16xf32>, vector<2x16xf32> -> vector<214x16xf32>
    %33 = vector.extract_strided_slice %32 {offsets = [0, 0], sizes = [205, 16], strides = [1, 1]} : vector<214x16xf32> to vector<205x16xf32>
    %34 = vector.extract_strided_slice %32 {offsets = [1, 0], sizes = [205, 16], strides = [1, 1]} : vector<214x16xf32> to vector<205x16xf32>
    %35 = vector.extract_strided_slice %32 {offsets = [2, 0], sizes = [205, 16], strides = [1, 1]} : vector<214x16xf32> to vector<205x16xf32>
    %36 = vector.extract_strided_slice %32 {offsets = [3, 0], sizes = [205, 16], strides = [1, 1]} : vector<214x16xf32> to vector<205x16xf32>
    %37 = vector.extract_strided_slice %32 {offsets = [4, 0], sizes = [205, 16], strides = [1, 1]} : vector<214x16xf32> to vector<205x16xf32>
    %38 = vector.extract_strided_slice %32 {offsets = [5, 0], sizes = [205, 16], strides = [1, 1]} : vector<214x16xf32> to vector<205x16xf32>
    %39 = vector.extract_strided_slice %32 {offsets = [6, 0], sizes = [205, 16], strides = [1, 1]} : vector<214x16xf32> to vector<205x16xf32>
    %40 = vector.extract_strided_slice %32 {offsets = [7, 0], sizes = [205, 16], strides = [1, 1]} : vector<214x16xf32> to vector<205x16xf32>
    %41 = vector.extract_strided_slice %32 {offsets = [8, 0], sizes = [205, 16], strides = [1, 1]} : vector<214x16xf32> to vector<205x16xf32>
    %42 = vector.extract_strided_slice %32 {offsets = [9, 0], sizes = [205, 16], strides = [1, 1]} : vector<214x16xf32> to vector<205x16xf32>
    %43 = tpu.concatenate %33, %34, %35, %36, %37, %38, %39, %40, %41, %42 in 1 : vector<205x16xf32>, vector<205x16xf32>, vector<205x16xf32>, vector<205x16xf32>, vector<205x16xf32>, vector<205x16xf32>, vector<205x16xf32>, vector<205x16xf32>, vector<205x16xf32>, vector<205x16xf32> -> vector<205x160xf32>
    %44 = arith.truncf %43 : vector<205x160xf32> to vector<205x160xbf16>
    %cst_17 = arith.constant dense<0.000000e+00> : vector<69x160xf32>
    %45 = tpu.matmul %28, %44, %cst_17 {dimension_numbers = #tpu.dot_dimension_numbers<[1], [0], [0], [1], [0, 0, 1, 1], [], []>} : vector<69x205xbf16>, vector<205x160xbf16>, vector<69x160xf32> -> vector<69x160xf32>
    %46 = vector.extract_strided_slice %27 {offsets = [209, 0], sizes = [209, 16], strides = [1, 1]} : vector<418x16xf32> to vector<209x16xf32>
    %cst_18 = arith.constant 0.000000e+00 : f32
    %47 = vector.broadcast %cst_18 : f32 to vector<3x16xf32>
    %cst_19 = arith.constant 0.000000e+00 : f32
    %48 = vector.broadcast %cst_19 : f32 to vector<2x16xf32>
    %49 = tpu.concatenate %47, %46, %48 in 0 : vector<3x16xf32>, vector<209x16xf32>, vector<2x16xf32> -> vector<214x16xf32>
    %50 = vector.extract_strided_slice %49 {offsets = [0, 0], sizes = [205, 16], strides = [1, 1]} : vector<214x16xf32> to vector<205x16xf32>
    %51 = vector.extract_strided_slice %49 {offsets = [1, 0], sizes = [205, 16], strides = [1, 1]} : vector<214x16xf32> to vector<205x16xf32>
    %52 = vector.extract_strided_slice %49 {offsets = [2, 0], sizes = [205, 16], strides = [1, 1]} : vector<214x16xf32> to vector<205x16xf32>
    %53 = vector.extract_strided_slice %49 {offsets = [3, 0], sizes = [205, 16], strides = [1, 1]} : vector<214x16xf32> to vector<205x16xf32>
    %54 = vector.extract_strided_slice %49 {offsets = [4, 0], sizes = [205, 16], strides = [1, 1]} : vector<214x16xf32> to vector<205x16xf32>
    %55 = vector.extract_strided_slice %49 {offsets = [5, 0], sizes = [205, 16], strides = [1, 1]} : vector<214x16xf32> to vector<205x16xf32>
    %56 = vector.extract_strided_slice %49 {offsets = [6, 0], sizes = [205, 16], strides = [1, 1]} : vector<214x16xf32> to vector<205x16xf32>
    %57 = vector.extract_strided_slice %49 {offsets = [7, 0], sizes = [205, 16], strides = [1, 1]} : vector<214x16xf32> to vector<205x16xf32>
    %58 = vector.extract_strided_slice %49 {offsets = [8, 0], sizes = [205, 16], strides = [1, 1]} : vector<214x16xf32> to vector<205x16xf32>
    %59 = vector.extract_strided_slice %49 {offsets = [9, 0], sizes = [205, 16], strides = [1, 1]} : vector<214x16xf32> to vector<205x16xf32>
    %60 = tpu.concatenate %50, %51, %52, %53, %54, %55, %56, %57, %58, %59 in 1 : vector<205x16xf32>, vector<205x16xf32>, vector<205x16xf32>, vector<205x16xf32>, vector<205x16xf32>, vector<205x16xf32>, vector<205x16xf32>, vector<205x16xf32>, vector<205x16xf32>, vector<205x16xf32> -> vector<205x160xf32>
    %61 = arith.truncf %60 : vector<205x160xf32> to vector<205x160xbf16>
    %cst_20 = arith.constant dense<0.000000e+00> : vector<69x160xf32>
    %62 = tpu.matmul %28, %61, %cst_20 {dimension_numbers = #tpu.dot_dimension_numbers<[1], [0], [0], [1], [0, 0, 1, 1], [], []>} : vector<69x205xbf16>, vector<205x160xbf16>, vector<69x160xf32> -> vector<69x160xf32>
    %63 = tpu.concatenate %45, %62 in 0 : vector<69x160xf32>, vector<69x160xf32> -> vector<138x160xf32>
    %64 = arith.truncf %63 : vector<138x160xf32> to vector<138x160xbf16>
    %c0_21 = arith.constant 0 : index
    %c0_22 = arith.constant 0 : index
    %65 = vector.load %arg5[%c0_21, %c0_22] : memref<160x32xbf16, #tpu.memory_space<vmem>>, vector<160x32xbf16>
    %cst_23 = arith.constant dense<0.000000e+00> : vector<138x32xf32>
    %66 = tpu.matmul %64, %65, %cst_23 {dimension_numbers = #tpu.dot_dimension_numbers<[1], [0], [0], [1], [0, 0, 1, 1], [], []>} : vector<138x160xbf16>, vector<160x32xbf16>, vector<138x32xf32> -> vector<138x32xf32>
    %cst_24 = arith.constant dense<0.000000e+00> : vector<32xf32>
    %67 = vector.multi_reduction <add>, %66, %cst_24 [0] : vector<138x32xf32> to vector<32xf32>
    %68 = vector.shape_cast %67 : vector<32xf32> to vector<1x32xf32>
    %cst_25 = arith.constant 0.00724637694 : f32
    %69 = vector.broadcast %cst_25 : f32 to vector<1x32xf32>
    %70 = arith.mulf %68, %69 : vector<1x32xf32>
    %71 = arith.mulf %66, %66 : vector<138x32xf32>
    %cst_26 = arith.constant dense<0.000000e+00> : vector<32xf32>
    %72 = vector.multi_reduction <add>, %71, %cst_26 [0] : vector<138x32xf32> to vector<32xf32>
    %73 = vector.shape_cast %72 : vector<32xf32> to vector<1x32xf32>
    %cst_27 = arith.constant 0.00724637694 : f32
    %74 = vector.broadcast %cst_27 : f32 to vector<1x32xf32>
    %75 = arith.mulf %73, %74 : vector<1x32xf32>
    %76 = arith.mulf %70, %70 : vector<1x32xf32>
    %77 = arith.subf %75, %76 : vector<1x32xf32>
    %cst_28 = arith.constant 0.000000e+00 : f32
    %78 = vector.broadcast %cst_28 : f32 to vector<1x32xf32>
    %79 = arith.maximumf %77, %78 : vector<1x32xf32>
    %c0_29 = arith.constant 0 : index
    %c0_30 = arith.constant 0 : index
    %80 = vector.load %arg6[%c0_29, %c0_30] : memref<1x32xf32, #tpu.memory_space<vmem>>, vector<1x32xf32>
    %cst_31 = arith.constant 9.99999974E-6 : f32
    %81 = vector.broadcast %cst_31 : f32 to vector<1x32xf32>
    %82 = arith.addf %79, %81 : vector<1x32xf32>
    %83 = math.rsqrt %82 : vector<1x32xf32>
    %84 = arith.mulf %80, %83 : vector<1x32xf32>
    %c0_32 = arith.constant 0 : index
    %c0_33 = arith.constant 0 : index
    %85 = vector.load %arg7[%c0_32, %c0_33] : memref<1x32xf32, #tpu.memory_space<vmem>>, vector<1x32xf32>
    %86 = arith.mulf %70, %84 : vector<1x32xf32>
    %87 = arith.subf %85, %86 : vector<1x32xf32>
    %88 = vector.broadcast %84 : vector<1x32xf32> to vector<138x32xf32>
    %89 = arith.mulf %66, %88 : vector<138x32xf32>
    %90 = vector.broadcast %87 : vector<1x32xf32> to vector<138x32xf32>
    %91 = arith.addf %89, %90 : vector<138x32xf32>
    %c0_34 = arith.constant 0 : index
    %c0_35 = arith.constant 0 : index
    %92 = vector.load %arg8[%c0_34, %c0_35] : memref<22x64xbf16, #tpu.memory_space<vmem>>, vector<22x64xbf16>
    %93 = vector.extract_strided_slice %91 {offsets = [0, 0], sizes = [69, 32], strides = [1, 1]} : vector<138x32xf32> to vector<69x32xf32>
    %cst_36 = arith.constant 0.000000e+00 : f32
    %94 = vector.broadcast %cst_36 : f32 to vector<3x32xf32>
    %cst_37 = arith.constant 0.000000e+00 : f32
    %95 = vector.broadcast %cst_37 : f32 to vector<1x32xf32>
    %96 = tpu.concatenate %94, %93, %95 in 0 : vector<3x32xf32>, vector<69x32xf32>, vector<1x32xf32> -> vector<73x32xf32>
    %97 = vector.extract_strided_slice %96 {offsets = [0, 0], sizes = [64, 32], strides = [1, 1]} : vector<73x32xf32> to vector<64x32xf32>
    %98 = vector.extract_strided_slice %96 {offsets = [1, 0], sizes = [64, 32], strides = [1, 1]} : vector<73x32xf32> to vector<64x32xf32>
    %99 = vector.extract_strided_slice %96 {offsets = [2, 0], sizes = [64, 32], strides = [1, 1]} : vector<73x32xf32> to vector<64x32xf32>
    %100 = vector.extract_strided_slice %96 {offsets = [3, 0], sizes = [64, 32], strides = [1, 1]} : vector<73x32xf32> to vector<64x32xf32>
    %101 = vector.extract_strided_slice %96 {offsets = [4, 0], sizes = [64, 32], strides = [1, 1]} : vector<73x32xf32> to vector<64x32xf32>
    %102 = vector.extract_strided_slice %96 {offsets = [5, 0], sizes = [64, 32], strides = [1, 1]} : vector<73x32xf32> to vector<64x32xf32>
    %103 = vector.extract_strided_slice %96 {offsets = [6, 0], sizes = [64, 32], strides = [1, 1]} : vector<73x32xf32> to vector<64x32xf32>
    %104 = vector.extract_strided_slice %96 {offsets = [7, 0], sizes = [64, 32], strides = [1, 1]} : vector<73x32xf32> to vector<64x32xf32>
    %105 = vector.extract_strided_slice %96 {offsets = [8, 0], sizes = [64, 32], strides = [1, 1]} : vector<73x32xf32> to vector<64x32xf32>
    %106 = vector.extract_strided_slice %96 {offsets = [9, 0], sizes = [64, 32], strides = [1, 1]} : vector<73x32xf32> to vector<64x32xf32>
    %107 = tpu.concatenate %97, %98, %99, %100, %101, %102, %103, %104, %105, %106 in 1 : vector<64x32xf32>, vector<64x32xf32>, vector<64x32xf32>, vector<64x32xf32>, vector<64x32xf32>, vector<64x32xf32>, vector<64x32xf32>, vector<64x32xf32>, vector<64x32xf32>, vector<64x32xf32> -> vector<64x320xf32>
    %108 = arith.truncf %107 : vector<64x320xf32> to vector<64x320xbf16>
    %cst_38 = arith.constant dense<0.000000e+00> : vector<22x320xf32>
    %109 = tpu.matmul %92, %108, %cst_38 {dimension_numbers = #tpu.dot_dimension_numbers<[1], [0], [0], [1], [0, 0, 1, 1], [], []>} : vector<22x64xbf16>, vector<64x320xbf16>, vector<22x320xf32> -> vector<22x320xf32>
    %110 = vector.extract_strided_slice %91 {offsets = [69, 0], sizes = [69, 32], strides = [1, 1]} : vector<138x32xf32> to vector<69x32xf32>
    %cst_39 = arith.constant 0.000000e+00 : f32
    %111 = vector.broadcast %cst_39 : f32 to vector<3x32xf32>
    %cst_40 = arith.constant 0.000000e+00 : f32
    %112 = vector.broadcast %cst_40 : f32 to vector<1x32xf32>
    %113 = tpu.concatenate %111, %110, %112 in 0 : vector<3x32xf32>, vector<69x32xf32>, vector<1x32xf32> -> vector<73x32xf32>
    %114 = vector.extract_strided_slice %113 {offsets = [0, 0], sizes = [64, 32], strides = [1, 1]} : vector<73x32xf32> to vector<64x32xf32>
    %115 = vector.extract_strided_slice %113 {offsets = [1, 0], sizes = [64, 32], strides = [1, 1]} : vector<73x32xf32> to vector<64x32xf32>
    %116 = vector.extract_strided_slice %113 {offsets = [2, 0], sizes = [64, 32], strides = [1, 1]} : vector<73x32xf32> to vector<64x32xf32>
    %117 = vector.extract_strided_slice %113 {offsets = [3, 0], sizes = [64, 32], strides = [1, 1]} : vector<73x32xf32> to vector<64x32xf32>
    %118 = vector.extract_strided_slice %113 {offsets = [4, 0], sizes = [64, 32], strides = [1, 1]} : vector<73x32xf32> to vector<64x32xf32>
    %119 = vector.extract_strided_slice %113 {offsets = [5, 0], sizes = [64, 32], strides = [1, 1]} : vector<73x32xf32> to vector<64x32xf32>
    %120 = vector.extract_strided_slice %113 {offsets = [6, 0], sizes = [64, 32], strides = [1, 1]} : vector<73x32xf32> to vector<64x32xf32>
    %121 = vector.extract_strided_slice %113 {offsets = [7, 0], sizes = [64, 32], strides = [1, 1]} : vector<73x32xf32> to vector<64x32xf32>
    %122 = vector.extract_strided_slice %113 {offsets = [8, 0], sizes = [64, 32], strides = [1, 1]} : vector<73x32xf32> to vector<64x32xf32>
    %123 = vector.extract_strided_slice %113 {offsets = [9, 0], sizes = [64, 32], strides = [1, 1]} : vector<73x32xf32> to vector<64x32xf32>
    %124 = tpu.concatenate %114, %115, %116, %117, %118, %119, %120, %121, %122, %123 in 1 : vector<64x32xf32>, vector<64x32xf32>, vector<64x32xf32>, vector<64x32xf32>, vector<64x32xf32>, vector<64x32xf32>, vector<64x32xf32>, vector<64x32xf32>, vector<64x32xf32>, vector<64x32xf32> -> vector<64x320xf32>
    %125 = arith.truncf %124 : vector<64x320xf32> to vector<64x320xbf16>
    %cst_41 = arith.constant dense<0.000000e+00> : vector<22x320xf32>
    %126 = tpu.matmul %92, %125, %cst_41 {dimension_numbers = #tpu.dot_dimension_numbers<[1], [0], [0], [1], [0, 0, 1, 1], [], []>} : vector<22x64xbf16>, vector<64x320xbf16>, vector<22x320xf32> -> vector<22x320xf32>
    %127 = tpu.concatenate %109, %126 in 0 : vector<22x320xf32>, vector<22x320xf32> -> vector<44x320xf32>
    %128 = arith.truncf %127 : vector<44x320xf32> to vector<44x320xbf16>
    %c0_42 = arith.constant 0 : index
    %c0_43 = arith.constant 0 : index
    %129 = vector.load %arg9[%c0_42, %c0_43] : memref<320x64xbf16, #tpu.memory_space<vmem>>, vector<320x64xbf16>
    %cst_44 = arith.constant dense<0.000000e+00> : vector<44x64xf32>
    %130 = tpu.matmul %128, %129, %cst_44 {dimension_numbers = #tpu.dot_dimension_numbers<[1], [0], [0], [1], [0, 0, 1, 1], [], []>} : vector<44x320xbf16>, vector<320x64xbf16>, vector<44x64xf32> -> vector<44x64xf32>
    %cst_45 = arith.constant dense<0.000000e+00> : vector<64xf32>
    %131 = vector.multi_reduction <add>, %130, %cst_45 [0] : vector<44x64xf32> to vector<64xf32>
    %132 = vector.shape_cast %131 : vector<64xf32> to vector<1x64xf32>
    %cst_46 = arith.constant 0.0227272734 : f32
    %133 = vector.broadcast %cst_46 : f32 to vector<1x64xf32>
    %134 = arith.mulf %132, %133 : vector<1x64xf32>
    %135 = arith.mulf %130, %130 : vector<44x64xf32>
    %cst_47 = arith.constant dense<0.000000e+00> : vector<64xf32>
    %136 = vector.multi_reduction <add>, %135, %cst_47 [0] : vector<44x64xf32> to vector<64xf32>
    %137 = vector.shape_cast %136 : vector<64xf32> to vector<1x64xf32>
    %cst_48 = arith.constant 0.0227272734 : f32
    %138 = vector.broadcast %cst_48 : f32 to vector<1x64xf32>
    %139 = arith.mulf %137, %138 : vector<1x64xf32>
    %140 = arith.mulf %134, %134 : vector<1x64xf32>
    %141 = arith.subf %139, %140 : vector<1x64xf32>
    %cst_49 = arith.constant 0.000000e+00 : f32
    %142 = vector.broadcast %cst_49 : f32 to vector<1x64xf32>
    %143 = arith.maximumf %141, %142 : vector<1x64xf32>
    %c0_50 = arith.constant 0 : index
    %c0_51 = arith.constant 0 : index
    %144 = vector.load %arg10[%c0_50, %c0_51] : memref<1x64xf32, #tpu.memory_space<vmem>>, vector<1x64xf32>
    %cst_52 = arith.constant 9.99999974E-6 : f32
    %145 = vector.broadcast %cst_52 : f32 to vector<1x64xf32>
    %146 = arith.addf %143, %145 : vector<1x64xf32>
    %147 = math.rsqrt %146 : vector<1x64xf32>
    %148 = arith.mulf %144, %147 : vector<1x64xf32>
    %c0_53 = arith.constant 0 : index
    %c0_54 = arith.constant 0 : index
    %149 = vector.load %arg11[%c0_53, %c0_54] : memref<1x64xf32, #tpu.memory_space<vmem>>, vector<1x64xf32>
    %150 = arith.mulf %134, %148 : vector<1x64xf32>
    %151 = arith.subf %149, %150 : vector<1x64xf32>
    %152 = vector.broadcast %148 : vector<1x64xf32> to vector<44x64xf32>
    %153 = arith.mulf %130, %152 : vector<44x64xf32>
    %154 = vector.broadcast %151 : vector<1x64xf32> to vector<44x64xf32>
    %155 = arith.addf %153, %154 : vector<44x64xf32>
    %c0_55 = arith.constant 0 : index
    %c0_56 = arith.constant 0 : index
    %156 = vector.load %arg12[%c0_55, %c0_56] : memref<7x19xbf16, #tpu.memory_space<vmem>>, vector<7x19xbf16>
    %157 = vector.extract_strided_slice %155 {offsets = [0, 0], sizes = [22, 64], strides = [1, 1]} : vector<44x64xf32> to vector<22x64xf32>
    %cst_57 = arith.constant 0.000000e+00 : f32
    %158 = vector.broadcast %cst_57 : f32 to vector<3x64xf32>
    %cst_58 = arith.constant 0.000000e+00 : f32
    %159 = vector.broadcast %cst_58 : f32 to vector<3x64xf32>
    %160 = tpu.concatenate %158, %157, %159 in 0 : vector<3x64xf32>, vector<22x64xf32>, vector<3x64xf32> -> vector<28x64xf32>
    %161 = vector.extract_strided_slice %160 {offsets = [0, 0], sizes = [19, 64], strides = [1, 1]} : vector<28x64xf32> to vector<19x64xf32>
    %162 = vector.extract_strided_slice %160 {offsets = [1, 0], sizes = [19, 64], strides = [1, 1]} : vector<28x64xf32> to vector<19x64xf32>
    %163 = vector.extract_strided_slice %160 {offsets = [2, 0], sizes = [19, 64], strides = [1, 1]} : vector<28x64xf32> to vector<19x64xf32>
    %164 = vector.extract_strided_slice %160 {offsets = [3, 0], sizes = [19, 64], strides = [1, 1]} : vector<28x64xf32> to vector<19x64xf32>
    %165 = vector.extract_strided_slice %160 {offsets = [4, 0], sizes = [19, 64], strides = [1, 1]} : vector<28x64xf32> to vector<19x64xf32>
    %166 = vector.extract_strided_slice %160 {offsets = [5, 0], sizes = [19, 64], strides = [1, 1]} : vector<28x64xf32> to vector<19x64xf32>
    %167 = vector.extract_strided_slice %160 {offsets = [6, 0], sizes = [19, 64], strides = [1, 1]} : vector<28x64xf32> to vector<19x64xf32>
    %168 = vector.extract_strided_slice %160 {offsets = [7, 0], sizes = [19, 64], strides = [1, 1]} : vector<28x64xf32> to vector<19x64xf32>
    %169 = vector.extract_strided_slice %160 {offsets = [8, 0], sizes = [19, 64], strides = [1, 1]} : vector<28x64xf32> to vector<19x64xf32>
    %170 = vector.extract_strided_slice %160 {offsets = [9, 0], sizes = [19, 64], strides = [1, 1]} : vector<28x64xf32> to vector<19x64xf32>
    %171 = tpu.concatenate %161, %162, %163, %164, %165, %166, %167, %168, %169, %170 in 1 : vector<19x64xf32>, vector<19x64xf32>, vector<19x64xf32>, vector<19x64xf32>, vector<19x64xf32>, vector<19x64xf32>, vector<19x64xf32>, vector<19x64xf32>, vector<19x64xf32>, vector<19x64xf32> -> vector<19x640xf32>
    %172 = arith.truncf %171 : vector<19x640xf32> to vector<19x640xbf16>
    %cst_59 = arith.constant dense<0.000000e+00> : vector<7x640xf32>
    %173 = tpu.matmul %156, %172, %cst_59 {dimension_numbers = #tpu.dot_dimension_numbers<[1], [0], [0], [1], [0, 0, 1, 1], [], []>} : vector<7x19xbf16>, vector<19x640xbf16>, vector<7x640xf32> -> vector<7x640xf32>
    %174 = vector.extract_strided_slice %155 {offsets = [22, 0], sizes = [22, 64], strides = [1, 1]} : vector<44x64xf32> to vector<22x64xf32>
    %cst_60 = arith.constant 0.000000e+00 : f32
    %175 = vector.broadcast %cst_60 : f32 to vector<3x64xf32>
    %cst_61 = arith.constant 0.000000e+00 : f32
    %176 = vector.broadcast %cst_61 : f32 to vector<3x64xf32>
    %177 = tpu.concatenate %175, %174, %176 in 0 : vector<3x64xf32>, vector<22x64xf32>, vector<3x64xf32> -> vector<28x64xf32>
    %178 = vector.extract_strided_slice %177 {offsets = [0, 0], sizes = [19, 64], strides = [1, 1]} : vector<28x64xf32> to vector<19x64xf32>
    %179 = vector.extract_strided_slice %177 {offsets = [1, 0], sizes = [19, 64], strides = [1, 1]} : vector<28x64xf32> to vector<19x64xf32>
    %180 = vector.extract_strided_slice %177 {offsets = [2, 0], sizes = [19, 64], strides = [1, 1]} : vector<28x64xf32> to vector<19x64xf32>
    %181 = vector.extract_strided_slice %177 {offsets = [3, 0], sizes = [19, 64], strides = [1, 1]} : vector<28x64xf32> to vector<19x64xf32>
    %182 = vector.extract_strided_slice %177 {offsets = [4, 0], sizes = [19, 64], strides = [1, 1]} : vector<28x64xf32> to vector<19x64xf32>
    %183 = vector.extract_strided_slice %177 {offsets = [5, 0], sizes = [19, 64], strides = [1, 1]} : vector<28x64xf32> to vector<19x64xf32>
    %184 = vector.extract_strided_slice %177 {offsets = [6, 0], sizes = [19, 64], strides = [1, 1]} : vector<28x64xf32> to vector<19x64xf32>
    %185 = vector.extract_strided_slice %177 {offsets = [7, 0], sizes = [19, 64], strides = [1, 1]} : vector<28x64xf32> to vector<19x64xf32>
    %186 = vector.extract_strided_slice %177 {offsets = [8, 0], sizes = [19, 64], strides = [1, 1]} : vector<28x64xf32> to vector<19x64xf32>
    %187 = vector.extract_strided_slice %177 {offsets = [9, 0], sizes = [19, 64], strides = [1, 1]} : vector<28x64xf32> to vector<19x64xf32>
    %188 = tpu.concatenate %178, %179, %180, %181, %182, %183, %184, %185, %186, %187 in 1 : vector<19x64xf32>, vector<19x64xf32>, vector<19x64xf32>, vector<19x64xf32>, vector<19x64xf32>, vector<19x64xf32>, vector<19x64xf32>, vector<19x64xf32>, vector<19x64xf32>, vector<19x64xf32> -> vector<19x640xf32>
    %189 = arith.truncf %188 : vector<19x640xf32> to vector<19x640xbf16>
    %cst_62 = arith.constant dense<0.000000e+00> : vector<7x640xf32>
    %190 = tpu.matmul %156, %189, %cst_62 {dimension_numbers = #tpu.dot_dimension_numbers<[1], [0], [0], [1], [0, 0, 1, 1], [], []>} : vector<7x19xbf16>, vector<19x640xbf16>, vector<7x640xf32> -> vector<7x640xf32>
    %191 = tpu.concatenate %173, %190 in 0 : vector<7x640xf32>, vector<7x640xf32> -> vector<14x640xf32>
    %192 = arith.truncf %191 : vector<14x640xf32> to vector<14x640xbf16>
    %c0_63 = arith.constant 0 : index
    %c0_64 = arith.constant 0 : index
    %193 = vector.load %arg13[%c0_63, %c0_64] : memref<640x128xbf16, #tpu.memory_space<vmem>>, vector<640x128xbf16>
    %cst_65 = arith.constant dense<0.000000e+00> : vector<14x128xf32>
    %194 = tpu.matmul %192, %193, %cst_65 {dimension_numbers = #tpu.dot_dimension_numbers<[1], [0], [0], [1], [0, 0, 1, 1], [], []>} : vector<14x640xbf16>, vector<640x128xbf16>, vector<14x128xf32> -> vector<14x128xf32>
    %cst_66 = arith.constant dense<0.000000e+00> : vector<128xf32>
    %195 = vector.multi_reduction <add>, %194, %cst_66 [0] : vector<14x128xf32> to vector<128xf32>
    %196 = vector.shape_cast %195 : vector<128xf32> to vector<1x128xf32>
    %cst_67 = arith.constant 0.0714285746 : f32
    %197 = vector.broadcast %cst_67 : f32 to vector<1x128xf32>
    %198 = arith.mulf %196, %197 : vector<1x128xf32>
    %199 = arith.mulf %194, %194 : vector<14x128xf32>
    %cst_68 = arith.constant dense<0.000000e+00> : vector<128xf32>
    %200 = vector.multi_reduction <add>, %199, %cst_68 [0] : vector<14x128xf32> to vector<128xf32>
    %201 = vector.shape_cast %200 : vector<128xf32> to vector<1x128xf32>
    %cst_69 = arith.constant 0.0714285746 : f32
    %202 = vector.broadcast %cst_69 : f32 to vector<1x128xf32>
    %203 = arith.mulf %201, %202 : vector<1x128xf32>
    %204 = arith.mulf %198, %198 : vector<1x128xf32>
    %205 = arith.subf %203, %204 : vector<1x128xf32>
    %cst_70 = arith.constant 0.000000e+00 : f32
    %206 = vector.broadcast %cst_70 : f32 to vector<1x128xf32>
    %207 = arith.maximumf %205, %206 : vector<1x128xf32>
    %c0_71 = arith.constant 0 : index
    %c0_72 = arith.constant 0 : index
    %208 = vector.load %arg14[%c0_71, %c0_72] : memref<1x128xf32, #tpu.memory_space<vmem>>, vector<1x128xf32>
    %cst_73 = arith.constant 9.99999974E-6 : f32
    %209 = vector.broadcast %cst_73 : f32 to vector<1x128xf32>
    %210 = arith.addf %207, %209 : vector<1x128xf32>
    %211 = math.rsqrt %210 : vector<1x128xf32>
    %212 = arith.mulf %208, %211 : vector<1x128xf32>
    %c0_74 = arith.constant 0 : index
    %c0_75 = arith.constant 0 : index
    %213 = vector.load %arg15[%c0_74, %c0_75] : memref<1x128xf32, #tpu.memory_space<vmem>>, vector<1x128xf32>
    %214 = arith.mulf %198, %212 : vector<1x128xf32>
    %215 = arith.subf %213, %214 : vector<1x128xf32>
    %216 = vector.broadcast %212 : vector<1x128xf32> to vector<14x128xf32>
    %217 = arith.mulf %194, %216 : vector<14x128xf32>
    %218 = vector.broadcast %215 : vector<1x128xf32> to vector<14x128xf32>
    %219 = arith.addf %217, %218 : vector<14x128xf32>
    %c0_76 = arith.constant 0 : index
    %c0_77 = arith.constant 0 : index
    %220 = vector.load %arg16[%c0_76, %c0_77] : memref<2x4xbf16, #tpu.memory_space<vmem>>, vector<2x4xbf16>
    %221 = vector.extract_strided_slice %219 {offsets = [0, 0], sizes = [7, 128], strides = [1, 1]} : vector<14x128xf32> to vector<7x128xf32>
    %cst_78 = arith.constant 0.000000e+00 : f32
    %222 = vector.broadcast %cst_78 : f32 to vector<3x128xf32>
    %cst_79 = arith.constant 0.000000e+00 : f32
    %223 = vector.broadcast %cst_79 : f32 to vector<3x128xf32>
    %224 = tpu.concatenate %222, %221, %223 in 0 : vector<3x128xf32>, vector<7x128xf32>, vector<3x128xf32> -> vector<13x128xf32>
    %225 = vector.extract_strided_slice %224 {offsets = [0, 0], sizes = [4, 128], strides = [1, 1]} : vector<13x128xf32> to vector<4x128xf32>
    %226 = vector.extract_strided_slice %224 {offsets = [1, 0], sizes = [4, 128], strides = [1, 1]} : vector<13x128xf32> to vector<4x128xf32>
    %227 = vector.extract_strided_slice %224 {offsets = [2, 0], sizes = [4, 128], strides = [1, 1]} : vector<13x128xf32> to vector<4x128xf32>
    %228 = vector.extract_strided_slice %224 {offsets = [3, 0], sizes = [4, 128], strides = [1, 1]} : vector<13x128xf32> to vector<4x128xf32>
    %229 = vector.extract_strided_slice %224 {offsets = [4, 0], sizes = [4, 128], strides = [1, 1]} : vector<13x128xf32> to vector<4x128xf32>
    %230 = vector.extract_strided_slice %224 {offsets = [5, 0], sizes = [4, 128], strides = [1, 1]} : vector<13x128xf32> to vector<4x128xf32>
    %231 = vector.extract_strided_slice %224 {offsets = [6, 0], sizes = [4, 128], strides = [1, 1]} : vector<13x128xf32> to vector<4x128xf32>
    %232 = vector.extract_strided_slice %224 {offsets = [7, 0], sizes = [4, 128], strides = [1, 1]} : vector<13x128xf32> to vector<4x128xf32>
    %233 = vector.extract_strided_slice %224 {offsets = [8, 0], sizes = [4, 128], strides = [1, 1]} : vector<13x128xf32> to vector<4x128xf32>
    %234 = vector.extract_strided_slice %224 {offsets = [9, 0], sizes = [4, 128], strides = [1, 1]} : vector<13x128xf32> to vector<4x128xf32>
    %235 = tpu.concatenate %225, %226, %227, %228, %229, %230, %231, %232, %233, %234 in 1 : vector<4x128xf32>, vector<4x128xf32>, vector<4x128xf32>, vector<4x128xf32>, vector<4x128xf32>, vector<4x128xf32>, vector<4x128xf32>, vector<4x128xf32>, vector<4x128xf32>, vector<4x128xf32> -> vector<4x1280xf32>
    %236 = arith.truncf %235 : vector<4x1280xf32> to vector<4x1280xbf16>
    %cst_80 = arith.constant dense<0.000000e+00> : vector<2x1280xf32>
    %237 = tpu.matmul %220, %236, %cst_80 {dimension_numbers = #tpu.dot_dimension_numbers<[1], [0], [0], [1], [0, 0, 1, 1], [], []>} : vector<2x4xbf16>, vector<4x1280xbf16>, vector<2x1280xf32> -> vector<2x1280xf32>
    %238 = vector.extract_strided_slice %219 {offsets = [7, 0], sizes = [7, 128], strides = [1, 1]} : vector<14x128xf32> to vector<7x128xf32>
    %cst_81 = arith.constant 0.000000e+00 : f32
    %239 = vector.broadcast %cst_81 : f32 to vector<3x128xf32>
    %cst_82 = arith.constant 0.000000e+00 : f32
    %240 = vector.broadcast %cst_82 : f32 to vector<3x128xf32>
    %241 = tpu.concatenate %239, %238, %240 in 0 : vector<3x128xf32>, vector<7x128xf32>, vector<3x128xf32> -> vector<13x128xf32>
    %242 = vector.extract_strided_slice %241 {offsets = [0, 0], sizes = [4, 128], strides = [1, 1]} : vector<13x128xf32> to vector<4x128xf32>
    %243 = vector.extract_strided_slice %241 {offsets = [1, 0], sizes = [4, 128], strides = [1, 1]} : vector<13x128xf32> to vector<4x128xf32>
    %244 = vector.extract_strided_slice %241 {offsets = [2, 0], sizes = [4, 128], strides = [1, 1]} : vector<13x128xf32> to vector<4x128xf32>
    %245 = vector.extract_strided_slice %241 {offsets = [3, 0], sizes = [4, 128], strides = [1, 1]} : vector<13x128xf32> to vector<4x128xf32>
    %246 = vector.extract_strided_slice %241 {offsets = [4, 0], sizes = [4, 128], strides = [1, 1]} : vector<13x128xf32> to vector<4x128xf32>
    %247 = vector.extract_strided_slice %241 {offsets = [5, 0], sizes = [4, 128], strides = [1, 1]} : vector<13x128xf32> to vector<4x128xf32>
    %248 = vector.extract_strided_slice %241 {offsets = [6, 0], sizes = [4, 128], strides = [1, 1]} : vector<13x128xf32> to vector<4x128xf32>
    %249 = vector.extract_strided_slice %241 {offsets = [7, 0], sizes = [4, 128], strides = [1, 1]} : vector<13x128xf32> to vector<4x128xf32>
    %250 = vector.extract_strided_slice %241 {offsets = [8, 0], sizes = [4, 128], strides = [1, 1]} : vector<13x128xf32> to vector<4x128xf32>
    %251 = vector.extract_strided_slice %241 {offsets = [9, 0], sizes = [4, 128], strides = [1, 1]} : vector<13x128xf32> to vector<4x128xf32>
    %252 = tpu.concatenate %242, %243, %244, %245, %246, %247, %248, %249, %250, %251 in 1 : vector<4x128xf32>, vector<4x128xf32>, vector<4x128xf32>, vector<4x128xf32>, vector<4x128xf32>, vector<4x128xf32>, vector<4x128xf32>, vector<4x128xf32>, vector<4x128xf32>, vector<4x128xf32> -> vector<4x1280xf32>
    %253 = arith.truncf %252 : vector<4x1280xf32> to vector<4x1280xbf16>
    %cst_83 = arith.constant dense<0.000000e+00> : vector<2x1280xf32>
    %254 = tpu.matmul %220, %253, %cst_83 {dimension_numbers = #tpu.dot_dimension_numbers<[1], [0], [0], [1], [0, 0, 1, 1], [], []>} : vector<2x4xbf16>, vector<4x1280xbf16>, vector<2x1280xf32> -> vector<2x1280xf32>
    %255 = tpu.concatenate %237, %254 in 0 : vector<2x1280xf32>, vector<2x1280xf32> -> vector<4x1280xf32>
    %256 = arith.truncf %255 : vector<4x1280xf32> to vector<4x1280xbf16>
    %c0_84 = arith.constant 0 : index
    %c0_85 = arith.constant 0 : index
    %257 = vector.load %arg17[%c0_84, %c0_85] : memref<1280x256xbf16, #tpu.memory_space<vmem>>, vector<1280x256xbf16>
    %cst_86 = arith.constant dense<0.000000e+00> : vector<4x256xf32>
    %258 = tpu.matmul %256, %257, %cst_86 {dimension_numbers = #tpu.dot_dimension_numbers<[1], [0], [0], [1], [0, 0, 1, 1], [], []>} : vector<4x1280xbf16>, vector<1280x256xbf16>, vector<4x256xf32> -> vector<4x256xf32>
    %cst_87 = arith.constant dense<0.000000e+00> : vector<256xf32>
    %259 = vector.multi_reduction <add>, %258, %cst_87 [0] : vector<4x256xf32> to vector<256xf32>
    %260 = vector.shape_cast %259 : vector<256xf32> to vector<1x256xf32>
    %cst_88 = arith.constant 2.500000e-01 : f32
    %261 = vector.broadcast %cst_88 : f32 to vector<1x256xf32>
    %262 = arith.mulf %260, %261 : vector<1x256xf32>
    %263 = arith.mulf %258, %258 : vector<4x256xf32>
    %cst_89 = arith.constant dense<0.000000e+00> : vector<256xf32>
    %264 = vector.multi_reduction <add>, %263, %cst_89 [0] : vector<4x256xf32> to vector<256xf32>
    %265 = vector.shape_cast %264 : vector<256xf32> to vector<1x256xf32>
    %cst_90 = arith.constant 2.500000e-01 : f32
    %266 = vector.broadcast %cst_90 : f32 to vector<1x256xf32>
    %267 = arith.mulf %265, %266 : vector<1x256xf32>
    %268 = arith.mulf %262, %262 : vector<1x256xf32>
    %269 = arith.subf %267, %268 : vector<1x256xf32>
    %cst_91 = arith.constant 0.000000e+00 : f32
    %270 = vector.broadcast %cst_91 : f32 to vector<1x256xf32>
    %271 = arith.maximumf %269, %270 : vector<1x256xf32>
    %c0_92 = arith.constant 0 : index
    %c0_93 = arith.constant 0 : index
    %272 = vector.load %arg18[%c0_92, %c0_93] : memref<1x256xf32, #tpu.memory_space<vmem>>, vector<1x256xf32>
    %cst_94 = arith.constant 9.99999974E-6 : f32
    %273 = vector.broadcast %cst_94 : f32 to vector<1x256xf32>
    %274 = arith.addf %271, %273 : vector<1x256xf32>
    %275 = math.rsqrt %274 : vector<1x256xf32>
    %276 = arith.mulf %272, %275 : vector<1x256xf32>
    %c0_95 = arith.constant 0 : index
    %c0_96 = arith.constant 0 : index
    %277 = vector.load %arg19[%c0_95, %c0_96] : memref<1x256xf32, #tpu.memory_space<vmem>>, vector<1x256xf32>
    %278 = arith.mulf %262, %276 : vector<1x256xf32>
    %279 = arith.subf %277, %278 : vector<1x256xf32>
    %280 = vector.broadcast %276 : vector<1x256xf32> to vector<4x256xf32>
    %281 = arith.mulf %258, %280 : vector<4x256xf32>
    %282 = vector.broadcast %279 : vector<1x256xf32> to vector<4x256xf32>
    %283 = arith.addf %281, %282 : vector<4x256xf32>
    %284 = vector.extract_strided_slice %283 {offsets = [0, 0], sizes = [1, 256], strides = [1, 1]} : vector<4x256xf32> to vector<1x256xf32>
    %285 = vector.extract_strided_slice %283 {offsets = [1, 0], sizes = [1, 256], strides = [1, 1]} : vector<4x256xf32> to vector<1x256xf32>
    %286 = arith.addf %284, %285 : vector<1x256xf32>
    %cst_97 = arith.constant 5.000000e-01 : f32
    %287 = vector.broadcast %cst_97 : f32 to vector<1x256xf32>
    %288 = arith.mulf %286, %287 : vector<1x256xf32>
    %289 = vector.extract_strided_slice %283 {offsets = [2, 0], sizes = [1, 256], strides = [1, 1]} : vector<4x256xf32> to vector<1x256xf32>
    %290 = vector.extract_strided_slice %283 {offsets = [3, 0], sizes = [1, 256], strides = [1, 1]} : vector<4x256xf32> to vector<1x256xf32>
    %291 = arith.addf %289, %290 : vector<1x256xf32>
    %cst_98 = arith.constant 5.000000e-01 : f32
    %292 = vector.broadcast %cst_98 : f32 to vector<1x256xf32>
    %293 = arith.mulf %291, %292 : vector<1x256xf32>
    %294 = tpu.concatenate %288, %293 in 0 : vector<1x256xf32>, vector<1x256xf32> -> vector<2x256xf32>
    %c0_99 = arith.constant 0 : index
    %c0_100 = arith.constant 0 : index
    %295 = vector.load %arg20[%c0_99, %c0_100] : memref<2x256xf32, #tpu.memory_space<vmem>>, vector<2x256xf32>
    tpu.vector_store %arg20[%c0_99, %c0_100], %294 {strides = array<i32>} : memref<2x256xf32, #tpu.memory_space<vmem>>, vector<2x256xf32>,
    return
  }
}

</mosaic_0001>

<llo_original>
// kernel: acnn_forward.1
$region0: #{acnn_forward.1}
  #allocation0 [shape = 'u32[]', space=smem, size = 0x4, offset = 0x4, fixed_abs, tag = 'smem constant byte address 0x4 - core index']
  #allocation1 [shape = 'u32[144,128]{1,0:T(1,128)}', space=vmem, size = 0x12000, scoped, tag = 'internal scratch']
  %s0 = inlined_call_operand.vmem [shape: bf16[418,20], index: 0, kind: input, shape index: {}]
  %s1 = inlined_call_operand.vmem [shape: bf16[20,16], index: 1, kind: input, shape index: {}]
  %s2 = inlined_call_operand.vmem [shape: f32[1,16], index: 2, kind: input, shape index: {}]
  %s3 = inlined_call_operand.vmem [shape: f32[1,16], index: 3, kind: input, shape index: {}]
  %s4 = inlined_call_operand.vmem [shape: bf16[69,205], index: 4, kind: input, shape index: {}]
  %s5 = inlined_call_operand.vmem [shape: bf16[160,32], index: 5, kind: input, shape index: {}]
  %s6 = inlined_call_operand.vmem [shape: f32[1,32], index: 6, kind: input, shape index: {}]
  %s7 = inlined_call_operand.vmem [shape: f32[1,32], index: 7, kind: input, shape index: {}]
  %s8 = inlined_call_operand.vmem [shape: bf16[22,64], index: 8, kind: input, shape index: {}]
  %s9 = inlined_call_operand.vmem [shape: bf16[320,64], index: 9, kind: input, shape index: {}]
  %s10 = inlined_call_operand.vmem [shape: f32[1,64], index: 10, kind: input, shape index: {}]
  %s11 = inlined_call_operand.vmem [shape: f32[1,64], index: 11, kind: input, shape index: {}]
  %s12 = inlined_call_operand.vmem [shape: bf16[7,19], index: 12, kind: input, shape index: {}]
  %s13 = inlined_call_operand.vmem [shape: bf16[640,128], index: 13, kind: input, shape index: {}]
  %s14 = inlined_call_operand.vmem [shape: f32[1,128], index: 14, kind: input, shape index: {}]
  %s15 = inlined_call_operand.vmem [shape: f32[1,128], index: 15, kind: input, shape index: {}]
  %s16 = inlined_call_operand.vmem [shape: bf16[2,4], index: 16, kind: input, shape index: {}]
  %s17 = inlined_call_operand.hbm [shape: bf16[1280,256], index: 17, kind: input, shape index: {}]
  %s18 = inlined_call_operand.vmem [shape: f32[1,256], index: 18, kind: input, shape index: {}]
  %s19 = inlined_call_operand.vmem [shape: f32[1,256], index: 19, kind: input, shape index: {}]
  %s20 = inlined_call_operand.hbm [shape: f32[2,256], index: 20, kind: output, shape index: {}]
  %s21 = sld [smem:[#allocation0]]
  $region94: #{acnn_forward.1} parent=0
    _
  %s23 = ssub.s32 1, %s21
  %s24 = scalar_select 0, %s23, %s21
  $region1: #{acnn_forward.1} parent=0
    #allocation2 [shape = 'u8[655360]{0}', space=vmem, size = 0xa0000, scoped, tag = 'input window, operand 17, single buffered']
    #allocation3 [shape = 's32[1]{0}', space=sflag, size = 0x4, scoped, tag = 'scoped memory for acnn_forward.1']
    #allocation4 [shape = 's32[1]{0}', space=sflag, size = 0x4, scoped, tag = 'scoped memory for acnn_forward.1']
    #allocation5 [shape = 'u8[2048]{0}', space=vmem, size = 0x800, scoped, tag = 'output window, operand 0, single buffered']
    %25 = vsyncpa [#allocation3], 0
    %26 = vsyncpa [#allocation4], 0
    // Predicated region
    $region2: #{acnn_forward.1} parent=1 // pred_check
      _
    $region3: #{acnn_forward.1} parent=1 // pred_check_branch
      %28 = sbr.rel (0) target = $region5
    $region4: #{acnn_forward.1} parent=1 // pred_region
      _
    $region5: #{acnn_forward.1} parent=1 // pred_fallthru
      _
    // Predicated region
    $region6: #{acnn_forward.1} parent=1 // pred_check
      _
    $region7: #{acnn_forward.1} parent=1 // pred_check_branch
      %30 = sbr.rel (0) target = $region9
    $region8: #{acnn_forward.1} parent=1 // pred_region
      _
    $region9: #{acnn_forward.1} parent=1 // pred_fallthru
      _
    // Predicated region
    $region10: #{acnn_forward.1} parent=1 // pred_check
      _
    $region11: #{acnn_forward.1} parent=1 // pred_check_branch
      %32 = sbr.rel (0) target = $region13
    $region12: #{acnn_forward.1} parent=1 // pred_region
      _
    $region13: #{acnn_forward.1} parent=1 // pred_fallthru
      _
    // Predicated region
    $region14: #{acnn_forward.1} parent=1 // pred_check
      _
    $region15: #{acnn_forward.1} parent=1 // pred_check_branch
      %34 = sbr.rel (0) target = $region17
    $region16: #{acnn_forward.1} parent=1 // pred_region
      _
    $region17: #{acnn_forward.1} parent=1 // pred_fallthru
      _
    // Predicated region
    $region18: #{acnn_forward.1} parent=1 // pred_check
      _
    $region19: #{acnn_forward.1} parent=1 // pred_check_branch
      %36 = sbr.rel (0) target = $region21
    $region20: #{acnn_forward.1} parent=1 // pred_region
      _
    $region21: #{acnn_forward.1} parent=1 // pred_fallthru
      _
    // Predicated region
    $region22: #{acnn_forward.1} parent=1 // pred_check
      _
    $region23: #{acnn_forward.1} parent=1 // pred_check_branch
      %38 = sbr.rel (0) target = $region25
    $region24: #{acnn_forward.1} parent=1 // pred_region
      _
    $region25: #{acnn_forward.1} parent=1 // pred_fallthru
      _
    // Predicated region
    $region26: #{acnn_forward.1} parent=1 // pred_check
      _
    $region27: #{acnn_forward.1} parent=1 // pred_check_branch
      %40 = sbr.rel (0) target = $region29
    $region28: #{acnn_forward.1} parent=1 // pred_region
      _
    $region29: #{acnn_forward.1} parent=1 // pred_fallthru
      _
    // Predicated region
    $region30: #{acnn_forward.1} parent=1 // pred_check
      _
    $region31: #{acnn_forward.1} parent=1 // pred_check_branch
      %42 = sbr.rel (0) target = $region33
    $region32: #{acnn_forward.1} parent=1 // pred_region
      _
    $region33: #{acnn_forward.1} parent=1 // pred_fallthru
      _
    // Predicated region
    $region34: #{acnn_forward.1} parent=1 // pred_check
      _
    $region35: #{acnn_forward.1} parent=1 // pred_check_branch
      %44 = sbr.rel (0) target = $region37
    $region36: #{acnn_forward.1} parent=1 // pred_region
      _
    $region37: #{acnn_forward.1} parent=1 // pred_fallthru
      _
    // Predicated region
    $region38: #{acnn_forward.1} parent=1 // pred_check
      _
    $region39: #{acnn_forward.1} parent=1 // pred_check_branch
      %46 = sbr.rel (0) target = $region41
    $region40: #{acnn_forward.1} parent=1 // pred_region
      _
    $region41: #{acnn_forward.1} parent=1 // pred_fallthru
      _
    // Predicated region
    $region42: #{acnn_forward.1} parent=1 // pred_check
      _
    $region43: #{acnn_forward.1} parent=1 // pred_check_branch
      %48 = sbr.rel (0) target = $region45
    $region44: #{acnn_forward.1} parent=1 // pred_region
      _
    $region45: #{acnn_forward.1} parent=1 // pred_fallthru
      _
    // Predicated region
    $region46: #{acnn_forward.1} parent=1 // pred_check
      _
    $region47: #{acnn_forward.1} parent=1 // pred_check_branch
      %50 = sbr.rel (0) target = $region49
    $region48: #{acnn_forward.1} parent=1 // pred_region
      _
    $region49: #{acnn_forward.1} parent=1 // pred_fallthru
      _
    // Predicated region
    $region50: #{acnn_forward.1} parent=1 // pred_check
      _
    $region51: #{acnn_forward.1} parent=1 // pred_check_branch
      %52 = sbr.rel (0) target = $region53
    $region52: #{acnn_forward.1} parent=1 // pred_region
      _
    $region53: #{acnn_forward.1} parent=1 // pred_fallthru
      _
    // Predicated region
    $region54: #{acnn_forward.1} parent=1 // pred_check
      _
    $region55: #{acnn_forward.1} parent=1 // pred_check_branch
      %54 = sbr.rel (0) target = $region57
    $region56: #{acnn_forward.1} parent=1 // pred_region
      _
    $region57: #{acnn_forward.1} parent=1 // pred_fallthru
      _
    // Predicated region
    $region58: #{acnn_forward.1} parent=1 // pred_check
      _
    $region59: #{acnn_forward.1} parent=1 // pred_check_branch
      %56 = sbr.rel (0) target = $region61
    $region60: #{acnn_forward.1} parent=1 // pred_region
      _
    $region61: #{acnn_forward.1} parent=1 // pred_fallthru
      _
    // Predicated region
    $region62: #{acnn_forward.1} parent=1 // pred_check
      _
    $region63: #{acnn_forward.1} parent=1 // pred_check_branch
      %58 = sbr.rel (0) target = $region65
    $region64: #{acnn_forward.1} parent=1 // pred_region
      _
    $region65: #{acnn_forward.1} parent=1 // pred_fallthru
      _
    // Predicated region
    $region66: #{acnn_forward.1} parent=1 // pred_check
      _
    $region67: #{acnn_forward.1} parent=1 // pred_check_branch
      %60 = sbr.rel (0) target = $region69
    $region68: #{acnn_forward.1} parent=1 // pred_region
      _
    $region69: #{acnn_forward.1} parent=1 // pred_fallthru
      _
    // Predicated region
    $region70: #{acnn_forward.1} parent=1 // pred_check
      _
    $region71: #{acnn_forward.1} parent=1 // pred_check_branch
      %62 = sbr.rel (0) target = $region73
    $region72: #{acnn_forward.1} parent=1 // pred_region
      %s64 = ssub.s32 20480, 20480
      %65 = vsyncadd [#allocation3], %s64
      %s66 = sshll.u32 [#allocation2], 4
      %s67 = int_to_ptr.vmem [resolvable:$true] %s66
      %72 = dma.hbm_to_vmem [thread:$0]  %s17, 20480, %s67, [#allocation3], 128, 128, 8
    $region73: #{acnn_forward.1} parent=1 // pred_fallthru
      _
    // Predicated region
    $region74: #{acnn_forward.1} parent=1 // pred_check
      _
    $region75: #{acnn_forward.1} parent=1 // pred_check_branch
      %74 = sbr.rel (0) target = $region77
    $region76: #{acnn_forward.1} parent=1 // pred_region
      _
    $region77: #{acnn_forward.1} parent=1 // pred_fallthru
      _
    // Predicated region
    $region78: #{acnn_forward.1} parent=1 // pred_check
      _
    $region79: #{acnn_forward.1} parent=1 // pred_check_branch
      %76 = sbr.rel (0) target = $region81
    $region80: #{acnn_forward.1} parent=1 // pred_region
      _
    $region81: #{acnn_forward.1} parent=1 // pred_fallthru
      _
    // Predicated region
    $region82: #{acnn_forward.1} parent=1 // pred_check
      _
    $region83: #{acnn_forward.1} parent=1 // pred_check_branch
      %78 = sbr.rel (0) target = $region85
    $region84: #{acnn_forward.1} parent=1 // pred_region
      %79 = dma.done [#allocation3], 20480
    $region85: #{acnn_forward.1} parent=1 // pred_fallthru
      _
    %v81 = vld [vmem:[%s0] sm:$0xf]
    %v82 = vld [vmem:[%s0 + $0x4] sm:$0xf]
    %v83 = vld [vmem:[%s0 + $0x8] sm:$0xf]
    %v84 = vld [vmem:[%s0 + $0xc] sm:$0xf]
    %v85 = vld [vmem:[%s0 + $0x10] sm:$0xf]
    %v86 = vld [vmem:[%s0 + $0x14] sm:$0xf]
    %v87 = vld [vmem:[%s0 + $0x18] sm:$0xf]
    %v88 = vld [vmem:[%s0 + $0x1c] sm:$0xf]
    %v89 = vld [vmem:[%s0 + $0x20] sm:$0xf]
    %v90 = vld [vmem:[%s0 + $0x24] sm:$0xf]
    %v91 = vld [vmem:[%s0 + $0x28] sm:$0xf]
    %v92 = vld [vmem:[%s0 + $0x2c] sm:$0xf]
    %v93 = vld [vmem:[%s0 + $0x30] sm:$0xf]
    %v94 = vld [vmem:[%s0 + $0x34] sm:$0xf]
    %v95 = vld [vmem:[%s0 + $0x38] sm:$0xf]
    %v96 = vld [vmem:[%s0 + $0x3c] sm:$0xf]
    %v97 = vld [vmem:[%s0 + $0x40] sm:$0xf]
    %v98 = vld [vmem:[%s0 + $0x44] sm:$0xf]
    %v99 = vld [vmem:[%s0 + $0x48] sm:$0xf]
    %v100 = vld [vmem:[%s0 + $0x4c] sm:$0xf]
    %v101 = vld [vmem:[%s0 + $0x50] sm:$0xf]
    %v102 = vld [vmem:[%s0 + $0x54] sm:$0xf]
    %v103 = vld [vmem:[%s0 + $0x58] sm:$0xf]
    %v104 = vld [vmem:[%s0 + $0x5c] sm:$0xf]
    %v105 = vld [vmem:[%s0 + $0x60] sm:$0xf]
    %v106 = vld [vmem:[%s0 + $0x64] sm:$0xf]
    %v107 = vld [vmem:[%s0 + $0x68] sm:$0xf]
    %v108 = vld [vmem:[%s0 + $0x6c] sm:$0xf]
    %v109 = vld [vmem:[%s0 + $0x70] sm:$0xf]
    %v110 = vld [vmem:[%s0 + $0x74] sm:$0xf]
    %v111 = vld [vmem:[%s0 + $0x78] sm:$0xf]
    %v112 = vld [vmem:[%s0 + $0x7c] sm:$0xf]
    %v113 = vld [vmem:[%s0 + $0x80] sm:$0xf]
    %v114 = vld [vmem:[%s0 + $0x84] sm:$0xf]
    %v115 = vld [vmem:[%s0 + $0x88] sm:$0xf]
    %v116 = vld [vmem:[%s0 + $0x8c] sm:$0xf]
    %v117 = vld [vmem:[%s0 + $0x90] sm:$0xf]
    %v118 = vld [vmem:[%s0 + $0x94] sm:$0xf]
    %v119 = vld [vmem:[%s0 + $0x98] sm:$0xf]
    %v120 = vld [vmem:[%s0 + $0x9c] sm:$0xf]
    %v121 = vld [vmem:[%s0 + $0xa0] sm:$0xf]
    %v122 = vld [vmem:[%s0 + $0xa4] sm:$0xf]
    %v123 = vld [vmem:[%s0 + $0xa8] sm:$0xf]
    %v124 = vld [vmem:[%s0 + $0xac] sm:$0xf]
    %v125 = vld [vmem:[%s0 + $0xb0] sm:$0xf]
    %v126 = vld [vmem:[%s0 + $0xb4] sm:$0xf]
    %v127 = vld [vmem:[%s0 + $0xb8] sm:$0xf]
    %v128 = vld [vmem:[%s0 + $0xbc] sm:$0xf]
    %v129 = vld [vmem:[%s0 + $0xc0] sm:$0xf]
    %v130 = vld [vmem:[%s0 + $0xc4] sm:$0xf]
    %v131 = vld [vmem:[%s0 + $0xc8] sm:$0xf]
    %v132 = vld [vmem:[%s0 + $0xcc] sm:$0xf]
    %v133 = vld [vmem:[%s0 + $0xd0] sm:$0x1]
    %v134 = vld [vmem:[%s1] sm:$0xf]
    %v135 = vld [vmem:[%s1 + $0x4] sm:$0xf]
    %v136 = vld [vmem:[%s1 + $0x8] sm:$0x3]
    %v190 = vunpack.c.l.b16 %v81
    %v191 = vunpack.c.l.b16 %v82
    %v192 = vunpack.c.l.b16 %v83
    %v193 = vunpack.c.l.b16 %v84
    %v194 = vunpack.c.l.b16 %v85
    %v195 = vunpack.c.l.b16 %v86
    %v196 = vunpack.c.l.b16 %v87
    %v197 = vunpack.c.l.b16 %v88
    %v198 = vunpack.c.l.b16 %v89
    %v199 = vunpack.c.l.b16 %v90
    %v200 = vunpack.c.l.b16 %v91
    %v201 = vunpack.c.l.b16 %v92
    %v202 = vunpack.c.l.b16 %v93
    %v203 = vunpack.c.l.b16 %v94
    %v204 = vunpack.c.l.b16 %v95
    %v205 = vunpack.c.l.b16 %v96
    %v206 = vunpack.c.l.b16 %v97
    %v207 = vunpack.c.l.b16 %v98
    %v208 = vunpack.c.l.b16 %v99
    %v209 = vunpack.c.l.b16 %v100
    %v210 = vunpack.c.l.b16 %v101
    %v211 = vunpack.c.l.b16 %v102
    %v212 = vunpack.c.l.b16 %v103
    %v213 = vunpack.c.l.b16 %v104
    %v214 = vunpack.c.l.b16 %v105
    %v215 = vunpack.c.l.b16 %v106
    %v216 = vunpack.c.l.b16 %v107
    %v217 = vunpack.c.l.b16 %v108
    %v218 = vunpack.c.l.b16 %v109
    %v219 = vunpack.c.l.b16 %v110
    %v220 = vunpack.c.l.b16 %v111
    %v221 = vunpack.c.l.b16 %v112
    %v222 = vunpack.c.l.b16 %v113
    %v223 = vunpack.c.l.b16 %v114
    %v224 = vunpack.c.l.b16 %v115
    %v225 = vunpack.c.l.b16 %v116
    %v226 = vunpack.c.l.b16 %v117
    %v227 = vunpack.c.l.b16 %v118
    %v228 = vunpack.c.l.b16 %v119
    %v229 = vunpack.c.l.b16 %v120
    %v230 = vunpack.c.l.b16 %v121
    %v231 = vunpack.c.l.b16 %v122
    %v232 = vunpack.c.l.b16 %v123
    %v233 = vunpack.c.l.b16 %v124
    %v234 = vunpack.c.l.b16 %v125
    %v235 = vunpack.c.l.b16 %v126
    %v236 = vunpack.c.l.b16 %v127
    %v237 = vunpack.c.l.b16 %v128
    %v238 = vunpack.c.l.b16 %v129
    %v239 = vunpack.c.l.b16 %v130
    %v240 = vunpack.c.l.b16 %v131
    %v241 = vunpack.c.l.b16 %v132
    %v242 = vunpack.c.l.b16 %v133
    %v243 = vpack.c.b16 %v191, %v190
    %v244 = vpack.c.b16 %v193, %v192
    %v245 = vpack.c.b16 %v195, %v194
    %v246 = vpack.c.b16 %v197, %v196
    %v247 = vpack.c.b16 %v199, %v198
    %v248 = vpack.c.b16 %v201, %v200
    %v249 = vpack.c.b16 %v203, %v202
    %v250 = vpack.c.b16 %v205, %v204
    %v251 = vpack.c.b16 %v207, %v206
    %v252 = vpack.c.b16 %v209, %v208
    %v253 = vpack.c.b16 %v211, %v210
    %v254 = vpack.c.b16 %v213, %v212
    %v255 = vpack.c.b16 %v215, %v214
    %v256 = vpack.c.b16 %v217, %v216
    %v257 = vpack.c.b16 %v219, %v218
    %v258 = vpack.c.b16 %v221, %v220
    %v259 = vpack.c.b16 %v223, %v222
    %v260 = vpack.c.b16 %v225, %v224
    %v261 = vpack.c.b16 %v227, %v226
    %v262 = vpack.c.b16 %v229, %v228
    %v263 = vpack.c.b16 %v231, %v230
    %v264 = vpack.c.b16 %v233, %v232
    %v265 = vpack.c.b16 %v235, %v234
    %v266 = vpack.c.b16 %v237, %v236
    %v267 = vpack.c.b16 %v239, %v238
    %v268 = vpack.c.b16 %v241, %v240
    %v269 = vpack.c.b16 %v242, %v242
    %v273 = vunpack.c.l.b16 %v134
    %v274 = vunpack.c.l.b16 %v135
    %v275 = vunpack.c.l.b16 %v136
    %v276 = vpack.c.b16 %v274, %v273
    %v277 = vpack.c.b16 %v275, %v275
    %vm279 = vcmask 162816
    %v281 = vsel %vm279, %v243, 0
    %v284 = vsel %vm279, %v244, 0
    %v287 = vsel %vm279, %v245, 0
    %v290 = vsel %vm279, %v246, 0
    %v293 = vsel %vm279, %v247, 0
    %v296 = vsel %vm279, %v248, 0
    %v299 = vsel %vm279, %v249, 0
    %v302 = vsel %vm279, %v250, 0
    %v305 = vsel %vm279, %v251, 0
    %v308 = vsel %vm279, %v252, 0
    %v311 = vsel %vm279, %v253, 0
    %v314 = vsel %vm279, %v254, 0
    %v317 = vsel %vm279, %v255, 0
    %v320 = vsel %vm279, %v256, 0
    %v323 = vsel %vm279, %v257, 0
    %v326 = vsel %vm279, %v258, 0
    %v329 = vsel %vm279, %v259, 0
    %v332 = vsel %vm279, %v260, 0
    %v335 = vsel %vm279, %v261, 0
    %v338 = vsel %vm279, %v262, 0
    %v341 = vsel %vm279, %v263, 0
    %v344 = vsel %vm279, %v264, 0
    %v347 = vsel %vm279, %v265, 0
    %v350 = vsel %vm279, %v266, 0
    %v353 = vsel %vm279, %v267, 0
    %v356 = vsel %vm279, %v268, 0
    %v359 = vsel %vm279, %v269, 0
    %vm361 = vcmask 1041408
    %v363 = vsel %vm361, %v277, 0
    %365 = vmatprep.subr.bf16.mxu0 0
    %366 = vmatpush1.bf16.msra.mxu0 %v276
    %367 = vmatprep.subr.bf16.mxu0 0
    %368 = vmatpush1.bf16.msra.mxu0 %v363
    %369 = vmatprep.subr.bf16.mxu0 0
    %370 = vmatpush1.bf16.msra.mxu0 0
    %371 = vmatprep.subr.bf16.mxu0 0
    %372 = vmatpush1.bf16.msra.mxu0 0
    %373 = vmatprep.subr.bf16.mxu0 0
    %374 = vmatpush1.bf16.msra.mxu0 0
    %375 = vmatprep.subr.bf16.mxu0 0
    %376 = vmatpush1.bf16.msra.mxu0 0
    %377 = vmatprep.subr.bf16.mxu0 0
    %378 = vmatpush1.bf16.msra.mxu0 0
    %379 = vmatprep.subr.bf16.mxu0 0
    %380 = vmatpush1.bf16.msra.mxu0 0
    %381 = vmatprep.subr.bf16.mxu0 0
    %382 = vmatpush1.bf16.msra.mxu0 0
    %383 = vmatprep.subr.bf16.mxu0 0
    %384 = vmatpush1.bf16.msra.mxu0 0
    %385 = vmatprep.subr.bf16.mxu0 0
    %386 = vmatpush1.bf16.msra.mxu0 0
    %387 = vmatprep.subr.bf16.mxu0 0
    %388 = vmatpush1.bf16.msra.mxu0 0
    %389 = vmatprep.subr.bf16.mxu0 0
    %390 = vmatpush1.bf16.msra.mxu0 0
    %391 = vmatprep.subr.bf16.mxu0 0
    %392 = vmatpush1.bf16.msra.mxu0 0
    %393 = vmatprep.subr.bf16.mxu0 0
    %394 = vmatpush1.bf16.msra.mxu0 0
    %395 = vmatprep.subr.bf16.mxu0 0
    %396 = vmatpush1.bf16.msra.mxu0 0
    %397 = vmatprep.mubr.bf16.mxu0 0
    %398 = vmatmul.mubr.bf16.gmra.mrb[0].mxu0 %v281
    %v399 = vpop.f32.mrb[0].mxu0
    %v400 = vadd.f32 0.0, %v399
    %v401 = vpop.f32.mrb[0].mxu0
    %v402 = vpop.f32.mrb[0].mxu0
    %v403 = vadd.f32 0.0, %v402
    %v404 = vpop.f32.mrb[0].mxu0
    %405 = vmatprep.mubr.bf16.mxu0 0
    %406 = vmatmul.mubr.bf16.gmra.mrb[0].mxu0 %v284
    %v407 = vpop.f32.mrb[0].mxu0
    %v408 = vadd.f32 0.0, %v407
    %v409 = vpop.f32.mrb[0].mxu0
    %v410 = vpop.f32.mrb[0].mxu0
    %v411 = vadd.f32 0.0, %v410
    %v412 = vpop.f32.mrb[0].mxu0
    %413 = vmatprep.mubr.bf16.mxu0 0
    %414 = vmatmul.mubr.bf16.gmra.mrb[0].mxu0 %v287
    %v415 = vpop.f32.mrb[0].mxu0
    %v416 = vadd.f32 0.0, %v415
    %v417 = vpop.f32.mrb[0].mxu0
    %v418 = vpop.f32.mrb[0].mxu0
    %v419 = vadd.f32 0.0, %v418
    %v420 = vpop.f32.mrb[0].mxu0
    %421 = vmatprep.mubr.bf16.mxu0 0
    %422 = vmatmul.mubr.bf16.gmra.mrb[0].mxu0 %v290
    %v423 = vpop.f32.mrb[0].mxu0
    %v424 = vadd.f32 0.0, %v423
    %v425 = vpop.f32.mrb[0].mxu0
    %v426 = vpop.f32.mrb[0].mxu0
    %v427 = vadd.f32 0.0, %v426
    %v428 = vpop.f32.mrb[0].mxu0
    %429 = vmatprep.mubr.bf16.mxu0 0
    %430 = vmatmul.mubr.bf16.gmra.mrb[0].mxu0 %v293
    %v431 = vpop.f32.mrb[0].mxu0
    %v432 = vadd.f32 0.0, %v431
    %v433 = vpop.f32.mrb[0].mxu0
    %v434 = vpop.f32.mrb[0].mxu0
    %v435 = vadd.f32 0.0, %v434
    %v436 = vpop.f32.mrb[0].mxu0
    %437 = vmatprep.mubr.bf16.mxu0 0
    %438 = vmatmul.mubr.bf16.gmra.mrb[0].mxu0 %v296
    %v439 = vpop.f32.mrb[0].mxu0
    %v440 = vadd.f32 0.0, %v439
    %v441 = vpop.f32.mrb[0].mxu0
    %v442 = vpop.f32.mrb[0].mxu0
    %v443 = vadd.f32 0.0, %v442
    %v444 = vpop.f32.mrb[0].mxu0
    %445 = vmatprep.mubr.bf16.mxu0 0
    %446 = vmatmul.mubr.bf16.gmra.mrb[0].mxu0 %v299
    %v447 = vpop.f32.mrb[0].mxu0
    %v448 = vadd.f32 0.0, %v447
    %v449 = vpop.f32.mrb[0].mxu0
    %v450 = vpop.f32.mrb[0].mxu0
    %v451 = vadd.f32 0.0, %v450
    %v452 = vpop.f32.mrb[0].mxu0
    %453 = vmatprep.mubr.bf16.mxu0 0
    %454 = vmatmul.mubr.bf16.gmra.mrb[0].mxu0 %v302
    %v455 = vpop.f32.mrb[0].mxu0
    %v456 = vadd.f32 0.0, %v455
    %v457 = vpop.f32.mrb[0].mxu0
    %v458 = vpop.f32.mrb[0].mxu0
    %v459 = vadd.f32 0.0, %v458
    %v460 = vpop.f32.mrb[0].mxu0
    %461 = vmatprep.mubr.bf16.mxu0 0
    %462 = vmatmul.mubr.bf16.gmra.mrb[0].mxu0 %v305
    %v463 = vpop.f32.mrb[0].mxu0
    %v464 = vadd.f32 0.0, %v463
    %v465 = vpop.f32.mrb[0].mxu0
    %v466 = vpop.f32.mrb[0].mxu0
    %v467 = vadd.f32 0.0, %v466
    %v468 = vpop.f32.mrb[0].mxu0
    %469 = vmatprep.mubr.bf16.mxu0 0
    %470 = vmatmul.mubr.bf16.gmra.mrb[0].mxu0 %v308
    %v471 = vpop.f32.mrb[0].mxu0
    %v472 = vadd.f32 0.0, %v471
    %v473 = vpop.f32.mrb[0].mxu0
    %v474 = vpop.f32.mrb[0].mxu0
    %v475 = vadd.f32 0.0, %v474
    %v476 = vpop.f32.mrb[0].mxu0
    %477 = vmatprep.mubr.bf16.mxu0 0
    %478 = vmatmul.mubr.bf16.gmra.mrb[0].mxu0 %v311
    %v479 = vpop.f32.mrb[0].mxu0
    %v480 = vadd.f32 0.0, %v479
    %v481 = vpop.f32.mrb[0].mxu0
    %v482 = vpop.f32.mrb[0].mxu0
    %v483 = vadd.f32 0.0, %v482
    %v484 = vpop.f32.mrb[0].mxu0
    %485 = vmatprep.mubr.bf16.mxu0 0
    %486 = vmatmul.mubr.bf16.gmra.mrb[0].mxu0 %v314
    %v487 = vpop.f32.mrb[0].mxu0
    %v488 = vadd.f32 0.0, %v487
    %v489 = vpop.f32.mrb[0].mxu0
    %v490 = vpop.f32.mrb[0].mxu0
    %v491 = vadd.f32 0.0, %v490
    %v492 = vpop.f32.mrb[0].mxu0
    %493 = vmatprep.mubr.bf16.mxu0 0
    %494 = vmatmul.mubr.bf16.gmra.mrb[0].mxu0 %v317
    %v495 = vpop.f32.mrb[0].mxu0
    %v496 = vadd.f32 0.0, %v495
    %v497 = vpop.f32.mrb[0].mxu0
    %v498 = vpop.f32.mrb[0].mxu0
    %v499 = vadd.f32 0.0, %v498
    %v500 = vpop.f32.mrb[0].mxu0
    %501 = vmatprep.mubr.bf16.mxu0 0
    %502 = vmatmul.mubr.bf16.gmra.mrb[0].mxu0 %v320
    %v503 = vpop.f32.mrb[0].mxu0
    %v504 = vadd.f32 0.0, %v503
    %v505 = vpop.f32.mrb[0].mxu0
    %v506 = vpop.f32.mrb[0].mxu0
    %v507 = vadd.f32 0.0, %v506
    %v508 = vpop.f32.mrb[0].mxu0
    %509 = vmatprep.mubr.bf16.mxu0 0
    %510 = vmatmul.mubr.bf16.gmra.mrb[0].mxu0 %v323
    %v511 = vpop.f32.mrb[0].mxu0
    %v512 = vadd.f32 0.0, %v511
    %v513 = vpop.f32.mrb[0].mxu0
    %v514 = vpop.f32.mrb[0].mxu0
    %v515 = vadd.f32 0.0, %v514
    %v516 = vpop.f32.mrb[0].mxu0
    %517 = vmatprep.mubr.bf16.mxu0 0
    %518 = vmatmul.mubr.bf16.gmra.mrb[0].mxu0 %v326
    %v519 = vpop.f32.mrb[0].mxu0
    %v520 = vadd.f32 0.0, %v519
    %v521 = vpop.f32.mrb[0].mxu0
    %v522 = vpop.f32.mrb[0].mxu0
    %v523 = vadd.f32 0.0, %v522
    %v524 = vpop.f32.mrb[0].mxu0
    %525 = vmatprep.mubr.bf16.mxu0 0
    %526 = vmatmul.mubr.bf16.gmra.mrb[0].mxu0 %v329
    %v527 = vpop.f32.mrb[0].mxu0
    %v528 = vadd.f32 0.0, %v527
    %v529 = vpop.f32.mrb[0].mxu0
    %v530 = vpop.f32.mrb[0].mxu0
    %v531 = vadd.f32 0.0, %v530
    %v532 = vpop.f32.mrb[0].mxu0
    %533 = vmatprep.mubr.bf16.mxu0 0
    %534 = vmatmul.mubr.bf16.gmra.mrb[0].mxu0 %v332
    %v535 = vpop.f32.mrb[0].mxu0
    %v536 = vadd.f32 0.0, %v535
    %v537 = vpop.f32.mrb[0].mxu0
    %v538 = vpop.f32.mrb[0].mxu0
    %v539 = vadd.f32 0.0, %v538
    %v540 = vpop.f32.mrb[0].mxu0
    %541 = vmatprep.mubr.bf16.mxu0 0
    %542 = vmatmul.mubr.bf16.gmra.mrb[0].mxu0 %v335
    %v543 = vpop.f32.mrb[0].mxu0
    %v544 = vadd.f32 0.0, %v543
    %v545 = vpop.f32.mrb[0].mxu0
    %v546 = vpop.f32.mrb[0].mxu0
    %v547 = vadd.f32 0.0, %v546
    %v548 = vpop.f32.mrb[0].mxu0
    %549 = vmatprep.mubr.bf16.mxu0 0
    %550 = vmatmul.mubr.bf16.gmra.mrb[0].mxu0 %v338
    %v551 = vpop.f32.mrb[0].mxu0
    %v552 = vadd.f32 0.0, %v551
    %v553 = vpop.f32.mrb[0].mxu0
    %v554 = vpop.f32.mrb[0].mxu0
    %v555 = vadd.f32 0.0, %v554
    %v556 = vpop.f32.mrb[0].mxu0
    %557 = vmatprep.mubr.bf16.mxu0 0
    %558 = vmatmul.mubr.bf16.gmra.mrb[0].mxu0 %v341
    %v559 = vpop.f32.mrb[0].mxu0
    %v560 = vadd.f32 0.0, %v559
    %v561 = vpop.f32.mrb[0].mxu0
    %v562 = vpop.f32.mrb[0].mxu0
    %v563 = vadd.f32 0.0, %v562
    %v564 = vpop.f32.mrb[0].mxu0
    %565 = vmatprep.mubr.bf16.mxu0 0
    %566 = vmatmul.mubr.bf16.gmra.mrb[0].mxu0 %v344
    %v567 = vpop.f32.mrb[0].mxu0
    %v568 = vadd.f32 0.0, %v567
    %v569 = vpop.f32.mrb[0].mxu0
    %v570 = vpop.f32.mrb[0].mxu0
    %v571 = vadd.f32 0.0, %v570
    %v572 = vpop.f32.mrb[0].mxu0
    %573 = vmatprep.mubr.bf16.mxu0 0
    %574 = vmatmul.mubr.bf16.gmra.mrb[0].mxu0 %v347
    %v575 = vpop.f32.mrb[0].mxu0
    %v576 = vadd.f32 0.0, %v575
    %v577 = vpop.f32.mrb[0].mxu0
    %v578 = vpop.f32.mrb[0].mxu0
    %v579 = vadd.f32 0.0, %v578
    %v580 = vpop.f32.mrb[0].mxu0
    %581 = vmatprep.mubr.bf16.mxu0 0
    %582 = vmatmul.mubr.bf16.gmra.mrb[0].mxu0 %v350
    %v583 = vpop.f32.mrb[0].mxu0
    %v584 = vadd.f32 0.0, %v583
    %v585 = vpop.f32.mrb[0].mxu0
    %v586 = vpop.f32.mrb[0].mxu0
    %v587 = vadd.f32 0.0, %v586
    %v588 = vpop.f32.mrb[0].mxu0
    %589 = vmatprep.mubr.bf16.mxu0 0
    %590 = vmatmul.mubr.bf16.gmra.mrb[0].mxu0 %v353
    %v591 = vpop.f32.mrb[0].mxu0
    %v592 = vadd.f32 0.0, %v591
    %v593 = vpop.f32.mrb[0].mxu0
    %v594 = vpop.f32.mrb[0].mxu0
    %v595 = vadd.f32 0.0, %v594
    %v596 = vpop.f32.mrb[0].mxu0
    %597 = vmatprep.mubr.bf16.mxu0 0
    %598 = vmatmul.mubr.bf16.gmra.mrb[0].mxu0 %v356
    %v599 = vpop.f32.mrb[0].mxu0
    %v600 = vadd.f32 0.0, %v599
    %v601 = vpop.f32.mrb[0].mxu0
    %v602 = vpop.f32.mrb[0].mxu0
    %v603 = vadd.f32 0.0, %v602
    %v604 = vpop.f32.mrb[0].mxu0
    %605 = vmatprep.mubr.bf16.mxu0 0
    %606 = vmatmul.mubr.bf16.gmra.mrb[0].mxu0 %v359
    %v607 = vpop.f32.mrb[0].mxu0
    %v608 = vadd.f32 0.0, %v607
    %v609 = vpop.f32.mrb[0].mxu0
    %v610 = vpop.f32.mrb[0].mxu0
    %v611 = vpop.f32.mrb[0].mxu0
    %612 = vdwg.mxu0
    %vm613 = vcmask 130048
    %v614 = vsel %vm613, %v400, 0.0
    %v615 = vsel %vm613, %v403, 0.0
    %v616 = vadd.f32 %v614, %v615
    %v617 = vsel %vm613, %v408, 0.0
    %v618 = vadd.f32 %v616, %v617
    %v619 = vsel %vm613, %v411, 0.0
    %v620 = vadd.f32 %v618, %v619
    %v621 = vsel %vm613, %v416, 0.0
    %v622 = vadd.f32 %v620, %v621
    %v623 = vsel %vm613, %v419, 0.0
    %v624 = vadd.f32 %v622, %v623
    %v625 = vsel %vm613, %v424, 0.0
    %v626 = vadd.f32 %v624, %v625
    %v627 = vsel %vm613, %v427, 0.0
    %v628 = vadd.f32 %v626, %v627
    %v629 = vsel %vm613, %v432, 0.0
    %v630 = vadd.f32 %v628, %v629
    %v631 = vsel %vm613, %v435, 0.0
    %v632 = vadd.f32 %v630, %v631
    %v633 = vsel %vm613, %v440, 0.0
    %v634 = vadd.f32 %v632, %v633
    %v635 = vsel %vm613, %v443, 0.0
    %v636 = vadd.f32 %v634, %v635
    %v637 = vsel %vm613, %v448, 0.0
    %v638 = vadd.f32 %v636, %v637
    %v639 = vsel %vm613, %v451, 0.0
    %v640 = vadd.f32 %v638, %v639
    %v641 = vsel %vm613, %v456, 0.0
    %v642 = vadd.f32 %v640, %v641
    %v643 = vsel %vm613, %v459, 0.0
    %v644 = vadd.f32 %v642, %v643
    %v645 = vsel %vm613, %v464, 0.0
    %v646 = vadd.f32 %v644, %v645
    %v647 = vsel %vm613, %v467, 0.0
    %v648 = vadd.f32 %v646, %v647
    %v649 = vsel %vm613, %v472, 0.0
    %v650 = vadd.f32 %v648, %v649
    %v651 = vsel %vm613, %v475, 0.0
    %v652 = vadd.f32 %v650, %v651
    %v653 = vsel %vm613, %v480, 0.0
    %v654 = vadd.f32 %v652, %v653
    %v655 = vsel %vm613, %v483, 0.0
    %v656 = vadd.f32 %v654, %v655
    %v657 = vsel %vm613, %v488, 0.0
    %v658 = vadd.f32 %v656, %v657
    %v659 = vsel %vm613, %v491, 0.0
    %v660 = vadd.f32 %v658, %v659
    %v661 = vsel %vm613, %v496, 0.0
    %v662 = vadd.f32 %v660, %v661
    %v663 = vsel %vm613, %v499, 0.0
    %v664 = vadd.f32 %v662, %v663
    %v665 = vsel %vm613, %v504, 0.0
    %v666 = vadd.f32 %v664, %v665
    %v667 = vsel %vm613, %v507, 0.0
    %v668 = vadd.f32 %v666, %v667
    %v669 = vsel %vm613, %v512, 0.0
    %v670 = vadd.f32 %v668, %v669
    %v671 = vsel %vm613, %v515, 0.0
    %v672 = vadd.f32 %v670, %v671
    %v673 = vsel %vm613, %v520, 0.0
    %v674 = vadd.f32 %v672, %v673
    %v675 = vsel %vm613, %v523, 0.0
    %v676 = vadd.f32 %v674, %v675
    %v677 = vsel %vm613, %v528, 0.0
    %v678 = vadd.f32 %v676, %v677
    %v679 = vsel %vm613, %v531, 0.0
    %v680 = vadd.f32 %v678, %v679
    %v681 = vsel %vm613, %v536, 0.0
    %v682 = vadd.f32 %v680, %v681
    %v683 = vsel %vm613, %v539, 0.0
    %v684 = vadd.f32 %v682, %v683
    %v685 = vsel %vm613, %v544, 0.0
    %v686 = vadd.f32 %v684, %v685
    %v687 = vsel %vm613, %v547, 0.0
    %v688 = vadd.f32 %v686, %v687
    %v689 = vsel %vm613, %v552, 0.0
    %v690 = vadd.f32 %v688, %v689
    %v691 = vsel %vm613, %v555, 0.0
    %v692 = vadd.f32 %v690, %v691
    %v693 = vsel %vm613, %v560, 0.0
    %v694 = vadd.f32 %v692, %v693
    %v695 = vsel %vm613, %v563, 0.0
    %v696 = vadd.f32 %v694, %v695
    %v697 = vsel %vm613, %v568, 0.0
    %v698 = vadd.f32 %v696, %v697
    %v699 = vsel %vm613, %v571, 0.0
    %v700 = vadd.f32 %v698, %v699
    %v701 = vsel %vm613, %v576, 0.0
    %v702 = vadd.f32 %v700, %v701
    %v703 = vsel %vm613, %v579, 0.0
    %v704 = vadd.f32 %v702, %v703
    %v705 = vsel %vm613, %v584, 0.0
    %v706 = vadd.f32 %v704, %v705
    %v707 = vsel %vm613, %v587, 0.0
    %v708 = vadd.f32 %v706, %v707
    %v709 = vsel %vm613, %v592, 0.0
    %v710 = vadd.f32 %v708, %v709
    %v711 = vsel %vm613, %v595, 0.0
    %v712 = vadd.f32 %v710, %v711
    %v713 = vsel %vm613, %v600, 0.0
    %v714 = vadd.f32 %v712, %v713
    %v715 = vsel %vm613, %v603, 0.0
    %v716 = vadd.f32 %v714, %v715
    %vm717 = vcmask 123904
    %v718 = vsel %vm717, %v608, 0.0
    %v719 = vadd.f32 %v716, %v718
    %v720 = vrot.slane %v719, 4
    %v721 = vadd.f32 %v719, %v720
    %v722 = vrot.slane %v721, 2
    %v723 = vadd.f32 %v721, %v722
    %v724 = vrot.slane %v723, 1
    %v725 = vadd.f32 %v723, %v724
    %v726 = vmul.f32 %v725, 0.0023923444
    %v727 = vmul.f32 %v400, %v400
    %v728 = vmul.f32 %v403, %v403
    %v729 = vmul.f32 %v408, %v408
    %v730 = vmul.f32 %v411, %v411
    %v731 = vmul.f32 %v416, %v416
    %v732 = vmul.f32 %v419, %v419
    %v733 = vmul.f32 %v424, %v424
    %v734 = vmul.f32 %v427, %v427
    %v735 = vmul.f32 %v432, %v432
    %v736 = vmul.f32 %v435, %v435
    %v737 = vmul.f32 %v440, %v440
    %v738 = vmul.f32 %v443, %v443
    %v739 = vmul.f32 %v448, %v448
    %v740 = vmul.f32 %v451, %v451
    %v741 = vmul.f32 %v456, %v456
    %v742 = vmul.f32 %v459, %v459
    %v743 = vmul.f32 %v464, %v464
    %v744 = vmul.f32 %v467, %v467
    %v745 = vmul.f32 %v472, %v472
    %v746 = vmul.f32 %v475, %v475
    %v747 = vmul.f32 %v480, %v480
    %v748 = vmul.f32 %v483, %v483
    %v749 = vmul.f32 %v488, %v488
    %v750 = vmul.f32 %v491, %v491
    %v751 = vmul.f32 %v496, %v496
    %v752 = vmul.f32 %v499, %v499
    %v753 = vmul.f32 %v504, %v504
    %v754 = vmul.f32 %v507, %v507
    %v755 = vmul.f32 %v512, %v512
    %v756 = vmul.f32 %v515, %v515
    %v757 = vmul.f32 %v520, %v520
    %v758 = vmul.f32 %v523, %v523
    %v759 = vmul.f32 %v528, %v528
    %v760 = vmul.f32 %v531, %v531
    %v761 = vmul.f32 %v536, %v536
    %v762 = vmul.f32 %v539, %v539
    %v763 = vmul.f32 %v544, %v544
    %v764 = vmul.f32 %v547, %v547
    %v765 = vmul.f32 %v552, %v552
    %v766 = vmul.f32 %v555, %v555
    %v767 = vmul.f32 %v560, %v560
    %v768 = vmul.f32 %v563, %v563
    %v769 = vmul.f32 %v568, %v568
    %v770 = vmul.f32 %v571, %v571
    %v771 = vmul.f32 %v576, %v576
    %v772 = vmul.f32 %v579, %v579
    %v773 = vmul.f32 %v584, %v584
    %v774 = vmul.f32 %v587, %v587
    %v775 = vmul.f32 %v592, %v592
    %v776 = vmul.f32 %v595, %v595
    %v777 = vmul.f32 %v600, %v600
    %v778 = vmul.f32 %v603, %v603
    %v779 = vmul.f32 %v608, %v608
    %v780 = vsel %vm613, %v727, 0.0
    %v781 = vsel %vm613, %v728, 0.0
    %v782 = vadd.f32 %v780, %v781
    %v783 = vsel %vm613, %v729, 0.0
    %v784 = vadd.f32 %v782, %v783
    %v785 = vsel %vm613, %v730, 0.0
    %v786 = vadd.f32 %v784, %v785
    %v787 = vsel %vm613, %v731, 0.0
    %v788 = vadd.f32 %v786, %v787
    %v789 = vsel %vm613, %v732, 0.0
    %v790 = vadd.f32 %v788, %v789
    %v791 = vsel %vm613, %v733, 0.0
    %v792 = vadd.f32 %v790, %v791
    %v793 = vsel %vm613, %v734, 0.0
    %v794 = vadd.f32 %v792, %v793
    %v795 = vsel %vm613, %v735, 0.0
    %v796 = vadd.f32 %v794, %v795
    %v797 = vsel %vm613, %v736, 0.0
    %v798 = vadd.f32 %v796, %v797
    %v799 = vsel %vm613, %v737, 0.0
    %v800 = vadd.f32 %v798, %v799
    %v801 = vsel %vm613, %v738, 0.0
    %v802 = vadd.f32 %v800, %v801
    %v803 = vsel %vm613, %v739, 0.0
    %v804 = vadd.f32 %v802, %v803
    %v805 = vsel %vm613, %v740, 0.0
    %v806 = vadd.f32 %v804, %v805
    %v807 = vsel %vm613, %v741, 0.0
    %v808 = vadd.f32 %v806, %v807
    %v809 = vsel %vm613, %v742, 0.0
    %v810 = vadd.f32 %v808, %v809
    %v811 = vsel %vm613, %v743, 0.0
    %v812 = vadd.f32 %v810, %v811
    %v813 = vsel %vm613, %v744, 0.0
    %v814 = vadd.f32 %v812, %v813
    %v815 = vsel %vm613, %v745, 0.0
    %v816 = vadd.f32 %v814, %v815
    %v817 = vsel %vm613, %v746, 0.0
    %v818 = vadd.f32 %v816, %v817
    %v819 = vsel %vm613, %v747, 0.0
    %v820 = vadd.f32 %v818, %v819
    %v821 = vsel %vm613, %v748, 0.0
    %v822 = vadd.f32 %v820, %v821
    %v823 = vsel %vm613, %v749, 0.0
    %v824 = vadd.f32 %v822, %v823
    %v825 = vsel %vm613, %v750, 0.0
    %v826 = vadd.f32 %v824, %v825
    %v827 = vsel %vm613, %v751, 0.0
    %v828 = vadd.f32 %v826, %v827
    %v829 = vsel %vm613, %v752, 0.0
    %v830 = vadd.f32 %v828, %v829
    %v831 = vsel %vm613, %v753, 0.0
    %v832 = vadd.f32 %v830, %v831
    %v833 = vsel %vm613, %v754, 0.0
    %v834 = vadd.f32 %v832, %v833
    %v835 = vsel %vm613, %v755, 0.0
    %v836 = vadd.f32 %v834, %v835
    %v837 = vsel %vm613, %v756, 0.0
    %v838 = vadd.f32 %v836, %v837
    %v839 = vsel %vm613, %v757, 0.0
    %v840 = vadd.f32 %v838, %v839
    %v841 = vsel %vm613, %v758, 0.0
    %v842 = vadd.f32 %v840, %v841
    %v843 = vsel %vm613, %v759, 0.0
    %v844 = vadd.f32 %v842, %v843
    %v845 = vsel %vm613, %v760, 0.0
    %v846 = vadd.f32 %v844, %v845
    %v847 = vsel %vm613, %v761, 0.0
    %v848 = vadd.f32 %v846, %v847
    %v849 = vsel %vm613, %v762, 0.0
    %v850 = vadd.f32 %v848, %v849
    %v851 = vsel %vm613, %v763, 0.0
    %v852 = vadd.f32 %v850, %v851
    %v853 = vsel %vm613, %v764, 0.0
    %v854 = vadd.f32 %v852, %v853
    %v855 = vsel %vm613, %v765, 0.0
    %v856 = vadd.f32 %v854, %v855
    %v857 = vsel %vm613, %v766, 0.0
    %v858 = vadd.f32 %v856, %v857
    %v859 = vsel %vm613, %v767, 0.0
    %v860 = vadd.f32 %v858, %v859
    %v861 = vsel %vm613, %v768, 0.0
    %v862 = vadd.f32 %v860, %v861
    %v863 = vsel %vm613, %v769, 0.0
    %v864 = vadd.f32 %v862, %v863
    %v865 = vsel %vm613, %v770, 0.0
    %v866 = vadd.f32 %v864, %v865
    %v867 = vsel %vm613, %v771, 0.0
    %v868 = vadd.f32 %v866, %v867
    %v869 = vsel %vm613, %v772, 0.0
    %v870 = vadd.f32 %v868, %v869
    %v871 = vsel %vm613, %v773, 0.0
    %v872 = vadd.f32 %v870, %v871
    %v873 = vsel %vm613, %v774, 0.0
    %v874 = vadd.f32 %v872, %v873
    %v875 = vsel %vm613, %v775, 0.0
    %v876 = vadd.f32 %v874, %v875
    %v877 = vsel %vm613, %v776, 0.0
    %v878 = vadd.f32 %v876, %v877
    %v879 = vsel %vm613, %v777, 0.0
    %v880 = vadd.f32 %v878, %v879
    %v881 = vsel %vm613, %v778, 0.0
    %v882 = vadd.f32 %v880, %v881
    %v883 = vsel %vm717, %v779, 0.0
    %v884 = vadd.f32 %v882, %v883
    %v885 = vrot.slane %v884, 4
    %v886 = vadd.f32 %v884, %v885
    %v887 = vrot.slane %v886, 2
    %v888 = vadd.f32 %v886, %v887
    %v889 = vrot.slane %v888, 1
    %v890 = vadd.f32 %v888, %v889
    %v891 = vmul.f32 %v890, 0.0023923444
    %v892 = vmul.f32 %v726, %v726
    %v893 = vsub.f32 %v891, %v892
    %v894 = vmax.f32 %v893, 0.0
    %v895 = vld [vmem:[%s2] sm:$0x1]
    %v896 = vadd.f32 %v894, 1e-05
    %v897 = vrsqrt.pop %v896
    %v898 = vmul.f32 %v895, %v897
    %v899 = vld [vmem:[%s3] sm:$0x1]
    %v900 = vmul.f32 %v726, %v898
    %v901 = vsub.f32 %v899, %v900
    %v903 = vlaneseq
    %v904 = vshrl.u32 %v903, 7
    %v905 = vsub.s32 0, %v904
    %v906 = vrot.slane %v898, %v905
    %v908 = vmul.f32 %v400, %v906
    %v909 = vmul.f32 %v403, %v906
    %v910 = vmul.f32 %v408, %v906
    %v911 = vmul.f32 %v411, %v906
    %v912 = vmul.f32 %v416, %v906
    %v913 = vmul.f32 %v419, %v906
    %v914 = vmul.f32 %v424, %v906
    %v915 = vmul.f32 %v427, %v906
    %v916 = vmul.f32 %v432, %v906
    %v917 = vmul.f32 %v435, %v906
    %v918 = vmul.f32 %v440, %v906
    %v919 = vmul.f32 %v443, %v906
    %v920 = vmul.f32 %v448, %v906
    %v921 = vmul.f32 %v451, %v906
    %v922 = vmul.f32 %v456, %v906
    %v923 = vmul.f32 %v459, %v906
    %v924 = vmul.f32 %v464, %v906
    %v925 = vmul.f32 %v467, %v906
    %v926 = vmul.f32 %v472, %v906
    %v927 = vmul.f32 %v475, %v906
    %v928 = vmul.f32 %v480, %v906
    %v929 = vmul.f32 %v483, %v906
    %v930 = vmul.f32 %v488, %v906
    %v931 = vmul.f32 %v491, %v906
    %v932 = vmul.f32 %v496, %v906
    %v933 = vmul.f32 %v499, %v906
    %v934 = vmul.f32 %v504, %v906
    %v935 = vmul.f32 %v507, %v906
    %v936 = vmul.f32 %v512, %v906
    %v937 = vmul.f32 %v515, %v906
    %v938 = vmul.f32 %v520, %v906
    %v939 = vmul.f32 %v523, %v906
    %v940 = vmul.f32 %v528, %v906
    %v941 = vmul.f32 %v531, %v906
    %v942 = vmul.f32 %v536, %v906
    %v943 = vmul.f32 %v539, %v906
    %v944 = vmul.f32 %v544, %v906
    %v945 = vmul.f32 %v547, %v906
    %v946 = vmul.f32 %v552, %v906
    %v947 = vmul.f32 %v555, %v906
    %v948 = vmul.f32 %v560, %v906
    %v949 = vmul.f32 %v563, %v906
    %v950 = vmul.f32 %v568, %v906
    %v951 = vmul.f32 %v571, %v906
    %v952 = vmul.f32 %v576, %v906
    %v953 = vmul.f32 %v579, %v906
    %v954 = vmul.f32 %v584, %v906
    %v955 = vmul.f32 %v587, %v906
    %v956 = vmul.f32 %v592, %v906
    %v957 = vmul.f32 %v595, %v906
    %v958 = vmul.f32 %v600, %v906
    %v959 = vmul.f32 %v603, %v906
    %v960 = vmul.f32 %v608, %v906
    %v962 = vlaneseq
    %v963 = vshrl.u32 %v962, 7
    %v964 = vsub.s32 0, %v963
    %v965 = vrot.slane %v901, %v964
    %v967 = vadd.f32 %v908, %v965
    %v968 = vadd.f32 %v909, %v965
    %v969 = vadd.f32 %v910, %v965
    %v970 = vadd.f32 %v911, %v965
    %v971 = vadd.f32 %v912, %v965
    %v972 = vadd.f32 %v913, %v965
    %v973 = vadd.f32 %v914, %v965
    %v974 = vadd.f32 %v915, %v965
    %v975 = vadd.f32 %v916, %v965
    %v976 = vadd.f32 %v917, %v965
    %v977 = vadd.f32 %v918, %v965
    %v978 = vadd.f32 %v919, %v965
    %v979 = vadd.f32 %v920, %v965
    %v980 = vadd.f32 %v921, %v965
    %v981 = vadd.f32 %v922, %v965
    %v982 = vadd.f32 %v923, %v965
    %v983 = vadd.f32 %v924, %v965
    %v984 = vadd.f32 %v925, %v965
    %v985 = vadd.f32 %v926, %v965
    %v986 = vadd.f32 %v927, %v965
    %v987 = vadd.f32 %v928, %v965
    %v988 = vadd.f32 %v929, %v965
    %v989 = vadd.f32 %v930, %v965
    %v990 = vadd.f32 %v931, %v965
    %v991 = vadd.f32 %v932, %v965
    %v992 = vadd.f32 %v933, %v965
    %v993 = vadd.f32 %v934, %v965
    %v994 = vadd.f32 %v935, %v965
    %v995 = vadd.f32 %v936, %v965
    %v996 = vadd.f32 %v937, %v965
    %v997 = vadd.f32 %v938, %v965
    %v998 = vadd.f32 %v939, %v965
    %v999 = vadd.f32 %v940, %v965
    %v1000 = vadd.f32 %v941, %v965
    %v1001 = vadd.f32 %v942, %v965
    %v1002 = vadd.f32 %v943, %v965
    %v1003 = vadd.f32 %v944, %v965
    %v1004 = vadd.f32 %v945, %v965
    %v1005 = vadd.f32 %v946, %v965
    %v1006 = vadd.f32 %v947, %v965
    %v1007 = vadd.f32 %v948, %v965
    %v1008 = vadd.f32 %v949, %v965
    %v1009 = vadd.f32 %v950, %v965
    %v1010 = vadd.f32 %v951, %v965
    %v1011 = vadd.f32 %v952, %v965
    %v1012 = vadd.f32 %v953, %v965
    %v1013 = vadd.f32 %v954, %v965
    %v1014 = vadd.f32 %v955, %v965
    %v1015 = vadd.f32 %v956, %v965
    %v1016 = vadd.f32 %v957, %v965
    %v1017 = vadd.f32 %v958, %v965
    %v1018 = vadd.f32 %v959, %v965
    %v1019 = vadd.f32 %v960, %v965
    %v1020 = vld [vmem:[%s4] sm:$0xff]
    %v1021 = vld [vmem:[%s4 + $0x8] sm:$0xff]
    %v1022 = vld [vmem:[%s4 + $0x10] sm:$0xff]
    %v1023 = vld [vmem:[%s4 + $0x18] sm:$0xff]
    %v1024 = vld [vmem:[%s4 + $0x20] sm:$0xff]
    %v1025 = vld [vmem:[%s4 + $0x28] sm:$0xff]
    %v1026 = vld [vmem:[%s4 + $0x30] sm:$0xff]
    %v1027 = vld [vmem:[%s4 + $0x38] sm:$0xff]
    %v1028 = vld [vmem:[%s4 + $0x40] sm:$0x77]
    %vm1056 = vcmask 1042432
    %v1057 = vrot.slane %v967, 5
    %v1058 = vrot.slane %v968, 5
    %v1059 = vsel %vm1056, %v1057, %v1058
    %v1060 = vrot.slane %v969, 5
    %v1061 = vsel %vm1056, %v1058, %v1060
    %v1062 = vrot.slane %v970, 5
    %v1063 = vsel %vm1056, %v1060, %v1062
    %v1064 = vrot.slane %v971, 5
    %v1065 = vsel %vm1056, %v1062, %v1064
    %v1066 = vrot.slane %v972, 5
    %v1067 = vsel %vm1056, %v1064, %v1066
    %v1068 = vrot.slane %v973, 5
    %v1069 = vsel %vm1056, %v1066, %v1068
    %v1070 = vrot.slane %v974, 5
    %v1071 = vsel %vm1056, %v1068, %v1070
    %v1072 = vrot.slane %v975, 5
    %v1073 = vsel %vm1056, %v1070, %v1072
    %v1074 = vrot.slane %v976, 5
    %v1075 = vsel %vm1056, %v1072, %v1074
    %v1076 = vrot.slane %v977, 5
    %v1077 = vsel %vm1056, %v1074, %v1076
    %v1078 = vrot.slane %v978, 5
    %v1079 = vsel %vm1056, %v1076, %v1078
    %v1080 = vrot.slane %v979, 5
    %v1081 = vsel %vm1056, %v1078, %v1080
    %v1082 = vrot.slane %v980, 5
    %v1083 = vsel %vm1056, %v1080, %v1082
    %v1084 = vrot.slane %v981, 5
    %v1085 = vsel %vm1056, %v1082, %v1084
    %v1086 = vrot.slane %v982, 5
    %v1087 = vsel %vm1056, %v1084, %v1086
    %v1088 = vrot.slane %v983, 5
    %v1089 = vsel %vm1056, %v1086, %v1088
    %v1090 = vrot.slane %v984, 5
    %v1091 = vsel %vm1056, %v1088, %v1090
    %v1092 = vrot.slane %v985, 5
    %v1093 = vsel %vm1056, %v1090, %v1092
    %v1094 = vrot.slane %v986, 5
    %v1095 = vsel %vm1056, %v1092, %v1094
    %v1096 = vrot.slane %v987, 5
    %v1097 = vsel %vm1056, %v1094, %v1096
    %v1098 = vrot.slane %v988, 5
    %v1099 = vsel %vm1056, %v1096, %v1098
    %v1100 = vrot.slane %v989, 5
    %v1101 = vsel %vm1056, %v1098, %v1100
    %v1102 = vrot.slane %v990, 5
    %v1103 = vsel %vm1056, %v1100, %v1102
    %v1104 = vrot.slane %v991, 5
    %v1105 = vsel %vm1056, %v1102, %v1104
    %v1106 = vrot.slane %v992, 5
    %v1107 = vsel %vm1056, %v1104, %v1106
    %v1108 = vrot.slane %v993, 5
    %v1109 = vsel %vm1056, %v1106, %v1108
    %v1137 = vsel %vm1056, 0.0, %v1057
    %vm1138 = vcmask 1043456
    %v1139 = vsel %vm1138, %v1109, 0.0
    %vm1141 = vcmask 1046528
    %v1142 = vrot.slane %v1137, 1
    %v1143 = vrot.slane %v1059, 1
    %v1144 = vsel %vm1141, %v1142, %v1143
    %v1145 = vrot.slane %v1061, 1
    %v1146 = vsel %vm1141, %v1143, %v1145
    %v1147 = vrot.slane %v1063, 1
    %v1148 = vsel %vm1141, %v1145, %v1147
    %v1149 = vrot.slane %v1065, 1
    %v1150 = vsel %vm1141, %v1147, %v1149
    %v1151 = vrot.slane %v1067, 1
    %v1152 = vsel %vm1141, %v1149, %v1151
    %v1153 = vrot.slane %v1069, 1
    %v1154 = vsel %vm1141, %v1151, %v1153
    %v1155 = vrot.slane %v1071, 1
    %v1156 = vsel %vm1141, %v1153, %v1155
    %v1157 = vrot.slane %v1073, 1
    %v1158 = vsel %vm1141, %v1155, %v1157
    %v1159 = vrot.slane %v1075, 1
    %v1160 = vsel %vm1141, %v1157, %v1159
    %v1161 = vrot.slane %v1077, 1
    %v1162 = vsel %vm1141, %v1159, %v1161
    %v1163 = vrot.slane %v1079, 1
    %v1164 = vsel %vm1141, %v1161, %v1163
    %v1165 = vrot.slane %v1081, 1
    %v1166 = vsel %vm1141, %v1163, %v1165
    %v1167 = vrot.slane %v1083, 1
    %v1168 = vsel %vm1141, %v1165, %v1167
    %v1169 = vrot.slane %v1085, 1
    %v1170 = vsel %vm1141, %v1167, %v1169
    %v1171 = vrot.slane %v1087, 1
    %v1172 = vsel %vm1141, %v1169, %v1171
    %v1173 = vrot.slane %v1089, 1
    %v1174 = vsel %vm1141, %v1171, %v1173
    %v1175 = vrot.slane %v1091, 1
    %v1176 = vsel %vm1141, %v1173, %v1175
    %v1177 = vrot.slane %v1093, 1
    %v1178 = vsel %vm1141, %v1175, %v1177
    %v1179 = vrot.slane %v1095, 1
    %v1180 = vsel %vm1141, %v1177, %v1179
    %v1181 = vrot.slane %v1097, 1
    %v1182 = vsel %vm1141, %v1179, %v1181
    %v1183 = vrot.slane %v1099, 1
    %v1184 = vsel %vm1141, %v1181, %v1183
    %v1185 = vrot.slane %v1101, 1
    %v1186 = vsel %vm1141, %v1183, %v1185
    %v1187 = vrot.slane %v1103, 1
    %v1188 = vsel %vm1141, %v1185, %v1187
    %v1189 = vrot.slane %v1105, 1
    %v1190 = vsel %vm1141, %v1187, %v1189
    %v1191 = vrot.slane %v1107, 1
    %v1192 = vsel %vm1141, %v1189, %v1191
    %1193 = vrot.lane.b32.xlu0 %v1144, 16
    %v1194 = vpop.permute.xlu0 %1193
    %1195 = vrot.lane.b32.xlu0 %v1146, 16
    %v1196 = vpop.permute.xlu0 %1195
    %1197 = vrot.lane.b32.xlu0 %v1148, 16
    %v1198 = vpop.permute.xlu0 %1197
    %1199 = vrot.lane.b32.xlu0 %v1150, 16
    %v1200 = vpop.permute.xlu0 %1199
    %1201 = vrot.lane.b32.xlu0 %v1152, 16
    %v1202 = vpop.permute.xlu0 %1201
    %1203 = vrot.lane.b32.xlu0 %v1154, 16
    %v1204 = vpop.permute.xlu0 %1203
    %1205 = vrot.lane.b32.xlu0 %v1156, 16
    %v1206 = vpop.permute.xlu0 %1205
    %1207 = vrot.lane.b32.xlu0 %v1158, 16
    %v1208 = vpop.permute.xlu0 %1207
    %1209 = vrot.lane.b32.xlu0 %v1160, 16
    %v1210 = vpop.permute.xlu0 %1209
    %1211 = vrot.lane.b32.xlu0 %v1162, 16
    %v1212 = vpop.permute.xlu0 %1211
    %1213 = vrot.lane.b32.xlu0 %v1164, 16
    %v1214 = vpop.permute.xlu0 %1213
    %1215 = vrot.lane.b32.xlu0 %v1166, 16
    %v1216 = vpop.permute.xlu0 %1215
    %1217 = vrot.lane.b32.xlu0 %v1168, 16
    %v1218 = vpop.permute.xlu0 %1217
    %1219 = vrot.lane.b32.xlu0 %v1170, 16
    %v1220 = vpop.permute.xlu0 %1219
    %1221 = vrot.lane.b32.xlu0 %v1172, 16
    %v1222 = vpop.permute.xlu0 %1221
    %1223 = vrot.lane.b32.xlu0 %v1174, 16
    %v1224 = vpop.permute.xlu0 %1223
    %1225 = vrot.lane.b32.xlu0 %v1176, 16
    %v1226 = vpop.permute.xlu0 %1225
    %1227 = vrot.lane.b32.xlu0 %v1178, 16
    %v1228 = vpop.permute.xlu0 %1227
    %1229 = vrot.lane.b32.xlu0 %v1180, 16
    %v1230 = vpop.permute.xlu0 %1229
    %1231 = vrot.lane.b32.xlu0 %v1182, 16
    %v1232 = vpop.permute.xlu0 %1231
    %1233 = vrot.lane.b32.xlu0 %v1184, 16
    %v1234 = vpop.permute.xlu0 %1233
    %1235 = vrot.lane.b32.xlu0 %v1186, 16
    %v1236 = vpop.permute.xlu0 %1235
    %1237 = vrot.lane.b32.xlu0 %v1188, 16
    %v1238 = vpop.permute.xlu0 %1237
    %1239 = vrot.lane.b32.xlu0 %v1190, 16
    %v1240 = vpop.permute.xlu0 %1239
    %1241 = vrot.lane.b32.xlu0 %v1192, 16
    %v1242 = vpop.permute.xlu0 %1241
    %1243 = vrot.lane.b32.xlu0 %v1191, 16
    %v1244 = vpop.permute.xlu0 %1243
    %vm1271 = vcmask 1045504
    %v1272 = vrot.slane %v1137, 2
    %v1273 = vrot.slane %v1059, 2
    %v1274 = vsel %vm1271, %v1272, %v1273
    %v1275 = vrot.slane %v1061, 2
    %v1276 = vsel %vm1271, %v1273, %v1275
    %v1277 = vrot.slane %v1063, 2
    %v1278 = vsel %vm1271, %v1275, %v1277
    %v1279 = vrot.slane %v1065, 2
    %v1280 = vsel %vm1271, %v1277, %v1279
    %v1281 = vrot.slane %v1067, 2
    %v1282 = vsel %vm1271, %v1279, %v1281
    %v1283 = vrot.slane %v1069, 2
    %v1284 = vsel %vm1271, %v1281, %v1283
    %v1285 = vrot.slane %v1071, 2
    %v1286 = vsel %vm1271, %v1283, %v1285
    %v1287 = vrot.slane %v1073, 2
    %v1288 = vsel %vm1271, %v1285, %v1287
    %v1289 = vrot.slane %v1075, 2
    %v1290 = vsel %vm1271, %v1287, %v1289
    %v1291 = vrot.slane %v1077, 2
    %v1292 = vsel %vm1271, %v1289, %v1291
    %v1293 = vrot.slane %v1079, 2
    %v1294 = vsel %vm1271, %v1291, %v1293
    %v1295 = vrot.slane %v1081, 2
    %v1296 = vsel %vm1271, %v1293, %v1295
    %v1297 = vrot.slane %v1083, 2
    %v1298 = vsel %vm1271, %v1295, %v1297
    %v1299 = vrot.slane %v1085, 2
    %v1300 = vsel %vm1271, %v1297, %v1299
    %v1301 = vrot.slane %v1087, 2
    %v1302 = vsel %vm1271, %v1299, %v1301
    %v1303 = vrot.slane %v1089, 2
    %v1304 = vsel %vm1271, %v1301, %v1303
    %v1305 = vrot.slane %v1091, 2
    %v1306 = vsel %vm1271, %v1303, %v1305
    %v1307 = vrot.slane %v1093, 2
    %v1308 = vsel %vm1271, %v1305, %v1307
    %v1309 = vrot.slane %v1095, 2
    %v1310 = vsel %vm1271, %v1307, %v1309
    %v1311 = vrot.slane %v1097, 2
    %v1312 = vsel %vm1271, %v1309, %v1311
    %v1313 = vrot.slane %v1099, 2
    %v1314 = vsel %vm1271, %v1311, %v1313
    %v1315 = vrot.slane %v1101, 2
    %v1316 = vsel %vm1271, %v1313, %v1315
    %v1317 = vrot.slane %v1103, 2
    %v1318 = vsel %vm1271, %v1315, %v1317
    %v1319 = vrot.slane %v1105, 2
    %v1320 = vsel %vm1271, %v1317, %v1319
    %v1321 = vrot.slane %v1107, 2
    %v1322 = vsel %vm1271, %v1319, %v1321
    %1323 = vrot.lane.b32.xlu0 %v1274, 32
    %v1324 = vpop.permute.xlu0 %1323
    %1325 = vrot.lane.b32.xlu0 %v1276, 32
    %v1326 = vpop.permute.xlu0 %1325
    %1327 = vrot.lane.b32.xlu0 %v1278, 32
    %v1328 = vpop.permute.xlu0 %1327
    %1329 = vrot.lane.b32.xlu0 %v1280, 32
    %v1330 = vpop.permute.xlu0 %1329
    %1331 = vrot.lane.b32.xlu0 %v1282, 32
    %v1332 = vpop.permute.xlu0 %1331
    %1333 = vrot.lane.b32.xlu0 %v1284, 32
    %v1334 = vpop.permute.xlu0 %1333
    %1335 = vrot.lane.b32.xlu0 %v1286, 32
    %v1336 = vpop.permute.xlu0 %1335
    %1337 = vrot.lane.b32.xlu0 %v1288, 32
    %v1338 = vpop.permute.xlu0 %1337
    %1339 = vrot.lane.b32.xlu0 %v1290, 32
    %v1340 = vpop.permute.xlu0 %1339
    %1341 = vrot.lane.b32.xlu0 %v1292, 32
    %v1342 = vpop.permute.xlu0 %1341
    %1343 = vrot.lane.b32.xlu0 %v1294, 32
    %v1344 = vpop.permute.xlu0 %1343
    %1345 = vrot.lane.b32.xlu0 %v1296, 32
    %v1346 = vpop.permute.xlu0 %1345
    %1347 = vrot.lane.b32.xlu0 %v1298, 32
    %v1348 = vpop.permute.xlu0 %1347
    %1349 = vrot.lane.b32.xlu0 %v1300, 32
    %v1350 = vpop.permute.xlu0 %1349
    %1351 = vrot.lane.b32.xlu0 %v1302, 32
    %v1352 = vpop.permute.xlu0 %1351
    %1353 = vrot.lane.b32.xlu0 %v1304, 32
    %v1354 = vpop.permute.xlu0 %1353
    %1355 = vrot.lane.b32.xlu0 %v1306, 32
    %v1356 = vpop.permute.xlu0 %1355
    %1357 = vrot.lane.b32.xlu0 %v1308, 32
    %v1358 = vpop.permute.xlu0 %1357
    %1359 = vrot.lane.b32.xlu0 %v1310, 32
    %v1360 = vpop.permute.xlu0 %1359
    %1361 = vrot.lane.b32.xlu0 %v1312, 32
    %v1362 = vpop.permute.xlu0 %1361
    %1363 = vrot.lane.b32.xlu0 %v1314, 32
    %v1364 = vpop.permute.xlu0 %1363
    %1365 = vrot.lane.b32.xlu0 %v1316, 32
    %v1366 = vpop.permute.xlu0 %1365
    %1367 = vrot.lane.b32.xlu0 %v1318, 32
    %v1368 = vpop.permute.xlu0 %1367
    %1369 = vrot.lane.b32.xlu0 %v1320, 32
    %v1370 = vpop.permute.xlu0 %1369
    %1371 = vrot.lane.b32.xlu0 %v1322, 32
    %v1372 = vpop.permute.xlu0 %1371
    %1373 = vrot.lane.b32.xlu0 %v1321, 32
    %v1374 = vpop.permute.xlu0 %1373
    %vm1401 = vcmask 1044480
    %v1402 = vrot.slane %v1137, 3
    %v1403 = vrot.slane %v1059, 3
    %v1404 = vsel %vm1401, %v1402, %v1403
    %v1405 = vrot.slane %v1061, 3
    %v1406 = vsel %vm1401, %v1403, %v1405
    %v1407 = vrot.slane %v1063, 3
    %v1408 = vsel %vm1401, %v1405, %v1407
    %v1409 = vrot.slane %v1065, 3
    %v1410 = vsel %vm1401, %v1407, %v1409
    %v1411 = vrot.slane %v1067, 3
    %v1412 = vsel %vm1401, %v1409, %v1411
    %v1413 = vrot.slane %v1069, 3
    %v1414 = vsel %vm1401, %v1411, %v1413
    %v1415 = vrot.slane %v1071, 3
    %v1416 = vsel %vm1401, %v1413, %v1415
    %v1417 = vrot.slane %v1073, 3
    %v1418 = vsel %vm1401, %v1415, %v1417
    %v1419 = vrot.slane %v1075, 3
    %v1420 = vsel %vm1401, %v1417, %v1419
    %v1421 = vrot.slane %v1077, 3
    %v1422 = vsel %vm1401, %v1419, %v1421
    %v1423 = vrot.slane %v1079, 3
    %v1424 = vsel %vm1401, %v1421, %v1423
    %v1425 = vrot.slane %v1081, 3
    %v1426 = vsel %vm1401, %v1423, %v1425
    %v1427 = vrot.slane %v1083, 3
    %v1428 = vsel %vm1401, %v1425, %v1427
    %v1429 = vrot.slane %v1085, 3
    %v1430 = vsel %vm1401, %v1427, %v1429
    %v1431 = vrot.slane %v1087, 3
    %v1432 = vsel %vm1401, %v1429, %v1431
    %v1433 = vrot.slane %v1089, 3
    %v1434 = vsel %vm1401, %v1431, %v1433
    %v1435 = vrot.slane %v1091, 3
    %v1436 = vsel %vm1401, %v1433, %v1435
    %v1437 = vrot.slane %v1093, 3
    %v1438 = vsel %vm1401, %v1435, %v1437
    %v1439 = vrot.slane %v1095, 3
    %v1440 = vsel %vm1401, %v1437, %v1439
    %v1441 = vrot.slane %v1097, 3
    %v1442 = vsel %vm1401, %v1439, %v1441
    %v1443 = vrot.slane %v1099, 3
    %v1444 = vsel %vm1401, %v1441, %v1443
    %v1445 = vrot.slane %v1101, 3
    %v1446 = vsel %vm1401, %v1443, %v1445
    %v1447 = vrot.slane %v1103, 3
    %v1448 = vsel %vm1401, %v1445, %v1447
    %v1449 = vrot.slane %v1105, 3
    %v1450 = vsel %vm1401, %v1447, %v1449
    %v1451 = vrot.slane %v1107, 3
    %v1452 = vsel %vm1401, %v1449, %v1451
    %1453 = vrot.lane.b32.xlu0 %v1404, 48
    %v1454 = vpop.permute.xlu0 %1453
    %1455 = vrot.lane.b32.xlu0 %v1406, 48
    %v1456 = vpop.permute.xlu0 %1455
    %1457 = vrot.lane.b32.xlu0 %v1408, 48
    %v1458 = vpop.permute.xlu0 %1457
    %1459 = vrot.lane.b32.xlu0 %v1410, 48
    %v1460 = vpop.permute.xlu0 %1459
    %1461 = vrot.lane.b32.xlu0 %v1412, 48
    %v1462 = vpop.permute.xlu0 %1461
    %1463 = vrot.lane.b32.xlu0 %v1414, 48
    %v1464 = vpop.permute.xlu0 %1463
    %1465 = vrot.lane.b32.xlu0 %v1416, 48
    %v1466 = vpop.permute.xlu0 %1465
    %1467 = vrot.lane.b32.xlu0 %v1418, 48
    %v1468 = vpop.permute.xlu0 %1467
    %1469 = vrot.lane.b32.xlu0 %v1420, 48
    %v1470 = vpop.permute.xlu0 %1469
    %1471 = vrot.lane.b32.xlu0 %v1422, 48
    %v1472 = vpop.permute.xlu0 %1471
    %1473 = vrot.lane.b32.xlu0 %v1424, 48
    %v1474 = vpop.permute.xlu0 %1473
    %1475 = vrot.lane.b32.xlu0 %v1426, 48
    %v1476 = vpop.permute.xlu0 %1475
    %1477 = vrot.lane.b32.xlu0 %v1428, 48
    %v1478 = vpop.permute.xlu0 %1477
    %1479 = vrot.lane.b32.xlu0 %v1430, 48
    %v1480 = vpop.permute.xlu0 %1479
    %1481 = vrot.lane.b32.xlu0 %v1432, 48
    %v1482 = vpop.permute.xlu0 %1481
    %1483 = vrot.lane.b32.xlu0 %v1434, 48
    %v1484 = vpop.permute.xlu0 %1483
    %1485 = vrot.lane.b32.xlu0 %v1436, 48
    %v1486 = vpop.permute.xlu0 %1485
    %1487 = vrot.lane.b32.xlu0 %v1438, 48
    %v1488 = vpop.permute.xlu0 %1487
    %1489 = vrot.lane.b32.xlu0 %v1440, 48
    %v1490 = vpop.permute.xlu0 %1489
    %1491 = vrot.lane.b32.xlu0 %v1442, 48
    %v1492 = vpop.permute.xlu0 %1491
    %1493 = vrot.lane.b32.xlu0 %v1444, 48
    %v1494 = vpop.permute.xlu0 %1493
    %1495 = vrot.lane.b32.xlu0 %v1446, 48
    %v1496 = vpop.permute.xlu0 %1495
    %1497 = vrot.lane.b32.xlu0 %v1448, 48
    %v1498 = vpop.permute.xlu0 %1497
    %1499 = vrot.lane.b32.xlu0 %v1450, 48
    %v1500 = vpop.permute.xlu0 %1499
    %1501 = vrot.lane.b32.xlu0 %v1452, 48
    %v1502 = vpop.permute.xlu0 %1501
    %1503 = vrot.lane.b32.xlu0 %v1451, 48
    %v1504 = vpop.permute.xlu0 %1503
    %v1532 = vrot.slane %v1137, 4
    %v1533 = vrot.slane %v1059, 4
    %v1534 = vsel %vm1138, %v1532, %v1533
    %v1535 = vrot.slane %v1061, 4
    %v1536 = vsel %vm1138, %v1533, %v1535
    %v1537 = vrot.slane %v1063, 4
    %v1538 = vsel %vm1138, %v1535, %v1537
    %v1539 = vrot.slane %v1065, 4
    %v1540 = vsel %vm1138, %v1537, %v1539
    %v1541 = vrot.slane %v1067, 4
    %v1542 = vsel %vm1138, %v1539, %v1541
    %v1543 = vrot.slane %v1069, 4
    %v1544 = vsel %vm1138, %v1541, %v1543
    %v1545 = vrot.slane %v1071, 4
    %v1546 = vsel %vm1138, %v1543, %v1545
    %v1547 = vrot.slane %v1073, 4
    %v1548 = vsel %vm1138, %v1545, %v1547
    %v1549 = vrot.slane %v1075, 4
    %v1550 = vsel %vm1138, %v1547, %v1549
    %v1551 = vrot.slane %v1077, 4
    %v1552 = vsel %vm1138, %v1549, %v1551
    %v1553 = vrot.slane %v1079, 4
    %v1554 = vsel %vm1138, %v1551, %v1553
    %v1555 = vrot.slane %v1081, 4
    %v1556 = vsel %vm1138, %v1553, %v1555
    %v1557 = vrot.slane %v1083, 4
    %v1558 = vsel %vm1138, %v1555, %v1557
    %v1559 = vrot.slane %v1085, 4
    %v1560 = vsel %vm1138, %v1557, %v1559
    %v1561 = vrot.slane %v1087, 4
    %v1562 = vsel %vm1138, %v1559, %v1561
    %v1563 = vrot.slane %v1089, 4
    %v1564 = vsel %vm1138, %v1561, %v1563
    %v1565 = vrot.slane %v1091, 4
    %v1566 = vsel %vm1138, %v1563, %v1565
    %v1567 = vrot.slane %v1093, 4
    %v1568 = vsel %vm1138, %v1565, %v1567
    %v1569 = vrot.slane %v1095, 4
    %v1570 = vsel %vm1138, %v1567, %v1569
    %v1571 = vrot.slane %v1097, 4
    %v1572 = vsel %vm1138, %v1569, %v1571
    %v1573 = vrot.slane %v1099, 4
    %v1574 = vsel %vm1138, %v1571, %v1573
    %v1575 = vrot.slane %v1101, 4
    %v1576 = vsel %vm1138, %v1573, %v1575
    %v1577 = vrot.slane %v1103, 4
    %v1578 = vsel %vm1138, %v1575, %v1577
    %v1579 = vrot.slane %v1105, 4
    %v1580 = vsel %vm1138, %v1577, %v1579
    %v1581 = vrot.slane %v1107, 4
    %v1582 = vsel %vm1138, %v1579, %v1581
    %v1583 = vrot.slane %v1139, 4
    %v1584 = vsel %vm1138, %v1581, %v1583
    %1585 = vrot.lane.b32.xlu0 %v1534, 64
    %v1586 = vpop.permute.xlu0 %1585
    %1587 = vrot.lane.b32.xlu0 %v1536, 64
    %v1588 = vpop.permute.xlu0 %1587
    %1589 = vrot.lane.b32.xlu0 %v1538, 64
    %v1590 = vpop.permute.xlu0 %1589
    %1591 = vrot.lane.b32.xlu0 %v1540, 64
    %v1592 = vpop.permute.xlu0 %1591
    %1593 = vrot.lane.b32.xlu0 %v1542, 64
    %v1594 = vpop.permute.xlu0 %1593
    %1595 = vrot.lane.b32.xlu0 %v1544, 64
    %v1596 = vpop.permute.xlu0 %1595
    %1597 = vrot.lane.b32.xlu0 %v1546, 64
    %v1598 = vpop.permute.xlu0 %1597
    %1599 = vrot.lane.b32.xlu0 %v1548, 64
    %v1600 = vpop.permute.xlu0 %1599
    %1601 = vrot.lane.b32.xlu0 %v1550, 64
    %v1602 = vpop.permute.xlu0 %1601
    %1603 = vrot.lane.b32.xlu0 %v1552, 64
    %v1604 = vpop.permute.xlu0 %1603
    %1605 = vrot.lane.b32.xlu0 %v1554, 64
    %v1606 = vpop.permute.xlu0 %1605
    %1607 = vrot.lane.b32.xlu0 %v1556, 64
    %v1608 = vpop.permute.xlu0 %1607
    %1609 = vrot.lane.b32.xlu0 %v1558, 64
    %v1610 = vpop.permute.xlu0 %1609
    %1611 = vrot.lane.b32.xlu0 %v1560, 64
    %v1612 = vpop.permute.xlu0 %1611
    %1613 = vrot.lane.b32.xlu0 %v1562, 64
    %v1614 = vpop.permute.xlu0 %1613
    %1615 = vrot.lane.b32.xlu0 %v1564, 64
    %v1616 = vpop.permute.xlu0 %1615
    %1617 = vrot.lane.b32.xlu0 %v1566, 64
    %v1618 = vpop.permute.xlu0 %1617
    %1619 = vrot.lane.b32.xlu0 %v1568, 64
    %v1620 = vpop.permute.xlu0 %1619
    %1621 = vrot.lane.b32.xlu0 %v1570, 64
    %v1622 = vpop.permute.xlu0 %1621
    %1623 = vrot.lane.b32.xlu0 %v1572, 64
    %v1624 = vpop.permute.xlu0 %1623
    %1625 = vrot.lane.b32.xlu0 %v1574, 64
    %v1626 = vpop.permute.xlu0 %1625
    %1627 = vrot.lane.b32.xlu0 %v1576, 64
    %v1628 = vpop.permute.xlu0 %1627
    %1629 = vrot.lane.b32.xlu0 %v1578, 64
    %v1630 = vpop.permute.xlu0 %1629
    %1631 = vrot.lane.b32.xlu0 %v1580, 64
    %v1632 = vpop.permute.xlu0 %1631
    %1633 = vrot.lane.b32.xlu0 %v1582, 64
    %v1634 = vpop.permute.xlu0 %1633
    %1635 = vrot.lane.b32.xlu0 %v1584, 64
    %v1636 = vpop.permute.xlu0 %1635
    %v1663 = vrot.slane %v1137, 5
    %v1664 = vrot.slane %v1059, 5
    %v1665 = vsel %vm1056, %v1663, %v1664
    %v1666 = vrot.slane %v1061, 5
    %v1667 = vsel %vm1056, %v1664, %v1666
    %v1668 = vrot.slane %v1063, 5
    %v1669 = vsel %vm1056, %v1666, %v1668
    %v1670 = vrot.slane %v1065, 5
    %v1671 = vsel %vm1056, %v1668, %v1670
    %v1672 = vrot.slane %v1067, 5
    %v1673 = vsel %vm1056, %v1670, %v1672
    %v1674 = vrot.slane %v1069, 5
    %v1675 = vsel %vm1056, %v1672, %v1674
    %v1676 = vrot.slane %v1071, 5
    %v1677 = vsel %vm1056, %v1674, %v1676
    %v1678 = vrot.slane %v1073, 5
    %v1679 = vsel %vm1056, %v1676, %v1678
    %v1680 = vrot.slane %v1075, 5
    %v1681 = vsel %vm1056, %v1678, %v1680
    %v1682 = vrot.slane %v1077, 5
    %v1683 = vsel %vm1056, %v1680, %v1682
    %v1684 = vrot.slane %v1079, 5
    %v1685 = vsel %vm1056, %v1682, %v1684
    %v1686 = vrot.slane %v1081, 5
    %v1687 = vsel %vm1056, %v1684, %v1686
    %v1688 = vrot.slane %v1083, 5
    %v1689 = vsel %vm1056, %v1686, %v1688
    %v1690 = vrot.slane %v1085, 5
    %v1691 = vsel %vm1056, %v1688, %v1690
    %v1692 = vrot.slane %v1087, 5
    %v1693 = vsel %vm1056, %v1690, %v1692
    %v1694 = vrot.slane %v1089, 5
    %v1695 = vsel %vm1056, %v1692, %v1694
    %v1696 = vrot.slane %v1091, 5
    %v1697 = vsel %vm1056, %v1694, %v1696
    %v1698 = vrot.slane %v1093, 5
    %v1699 = vsel %vm1056, %v1696, %v1698
    %v1700 = vrot.slane %v1095, 5
    %v1701 = vsel %vm1056, %v1698, %v1700
    %v1702 = vrot.slane %v1097, 5
    %v1703 = vsel %vm1056, %v1700, %v1702
    %v1704 = vrot.slane %v1099, 5
    %v1705 = vsel %vm1056, %v1702, %v1704
    %v1706 = vrot.slane %v1101, 5
    %v1707 = vsel %vm1056, %v1704, %v1706
    %v1708 = vrot.slane %v1103, 5
    %v1709 = vsel %vm1056, %v1706, %v1708
    %v1710 = vrot.slane %v1105, 5
    %v1711 = vsel %vm1056, %v1708, %v1710
    %v1712 = vrot.slane %v1107, 5
    %v1713 = vsel %vm1056, %v1710, %v1712
    %v1714 = vrot.slane %v1139, 5
    %v1715 = vsel %vm1056, %v1712, %v1714
    %1716 = vrot.lane.b32.xlu0 %v1665, 80
    %v1717 = vpop.permute.xlu0 %1716
    %1718 = vrot.lane.b32.xlu0 %v1667, 80
    %v1719 = vpop.permute.xlu0 %1718
    %1720 = vrot.lane.b32.xlu0 %v1669, 80
    %v1721 = vpop.permute.xlu0 %1720
    %1722 = vrot.lane.b32.xlu0 %v1671, 80
    %v1723 = vpop.permute.xlu0 %1722
    %1724 = vrot.lane.b32.xlu0 %v1673, 80
    %v1725 = vpop.permute.xlu0 %1724
    %1726 = vrot.lane.b32.xlu0 %v1675, 80
    %v1727 = vpop.permute.xlu0 %1726
    %1728 = vrot.lane.b32.xlu0 %v1677, 80
    %v1729 = vpop.permute.xlu0 %1728
    %1730 = vrot.lane.b32.xlu0 %v1679, 80
    %v1731 = vpop.permute.xlu0 %1730
    %1732 = vrot.lane.b32.xlu0 %v1681, 80
    %v1733 = vpop.permute.xlu0 %1732
    %1734 = vrot.lane.b32.xlu0 %v1683, 80
    %v1735 = vpop.permute.xlu0 %1734
    %1736 = vrot.lane.b32.xlu0 %v1685, 80
    %v1737 = vpop.permute.xlu0 %1736
    %1738 = vrot.lane.b32.xlu0 %v1687, 80
    %v1739 = vpop.permute.xlu0 %1738
    %1740 = vrot.lane.b32.xlu0 %v1689, 80
    %v1741 = vpop.permute.xlu0 %1740
    %1742 = vrot.lane.b32.xlu0 %v1691, 80
    %v1743 = vpop.permute.xlu0 %1742
    %1744 = vrot.lane.b32.xlu0 %v1693, 80
    %v1745 = vpop.permute.xlu0 %1744
    %1746 = vrot.lane.b32.xlu0 %v1695, 80
    %v1747 = vpop.permute.xlu0 %1746
    %1748 = vrot.lane.b32.xlu0 %v1697, 80
    %v1749 = vpop.permute.xlu0 %1748
    %1750 = vrot.lane.b32.xlu0 %v1699, 80
    %v1751 = vpop.permute.xlu0 %1750
    %1752 = vrot.lane.b32.xlu0 %v1701, 80
    %v1753 = vpop.permute.xlu0 %1752
    %1754 = vrot.lane.b32.xlu0 %v1703, 80
    %v1755 = vpop.permute.xlu0 %1754
    %1756 = vrot.lane.b32.xlu0 %v1705, 80
    %v1757 = vpop.permute.xlu0 %1756
    %1758 = vrot.lane.b32.xlu0 %v1707, 80
    %v1759 = vpop.permute.xlu0 %1758
    %1760 = vrot.lane.b32.xlu0 %v1709, 80
    %v1761 = vpop.permute.xlu0 %1760
    %1762 = vrot.lane.b32.xlu0 %v1711, 80
    %v1763 = vpop.permute.xlu0 %1762
    %1764 = vrot.lane.b32.xlu0 %v1713, 80
    %v1765 = vpop.permute.xlu0 %1764
    %1766 = vrot.lane.b32.xlu0 %v1715, 80
    %v1767 = vpop.permute.xlu0 %1766
    %v1794 = vrot.slane %v1137, 6
    %v1795 = vrot.slane %v1059, 6
    %v1796 = vsel %vm361, %v1794, %v1795
    %v1797 = vrot.slane %v1061, 6
    %v1798 = vsel %vm361, %v1795, %v1797
    %v1799 = vrot.slane %v1063, 6
    %v1800 = vsel %vm361, %v1797, %v1799
    %v1801 = vrot.slane %v1065, 6
    %v1802 = vsel %vm361, %v1799, %v1801
    %v1803 = vrot.slane %v1067, 6
    %v1804 = vsel %vm361, %v1801, %v1803
    %v1805 = vrot.slane %v1069, 6
    %v1806 = vsel %vm361, %v1803, %v1805
    %v1807 = vrot.slane %v1071, 6
    %v1808 = vsel %vm361, %v1805, %v1807
    %v1809 = vrot.slane %v1073, 6
    %v1810 = vsel %vm361, %v1807, %v1809
    %v1811 = vrot.slane %v1075, 6
    %v1812 = vsel %vm361, %v1809, %v1811
    %v1813 = vrot.slane %v1077, 6
    %v1814 = vsel %vm361, %v1811, %v1813
    %v1815 = vrot.slane %v1079, 6
    %v1816 = vsel %vm361, %v1813, %v1815
    %v1817 = vrot.slane %v1081, 6
    %v1818 = vsel %vm361, %v1815, %v1817
    %v1819 = vrot.slane %v1083, 6
    %v1820 = vsel %vm361, %v1817, %v1819
    %v1821 = vrot.slane %v1085, 6
    %v1822 = vsel %vm361, %v1819, %v1821
    %v1823 = vrot.slane %v1087, 6
    %v1824 = vsel %vm361, %v1821, %v1823
    %v1825 = vrot.slane %v1089, 6
    %v1826 = vsel %vm361, %v1823, %v1825
    %v1827 = vrot.slane %v1091, 6
    %v1828 = vsel %vm361, %v1825, %v1827
    %v1829 = vrot.slane %v1093, 6
    %v1830 = vsel %vm361, %v1827, %v1829
    %v1831 = vrot.slane %v1095, 6
    %v1832 = vsel %vm361, %v1829, %v1831
    %v1833 = vrot.slane %v1097, 6
    %v1834 = vsel %vm361, %v1831, %v1833
    %v1835 = vrot.slane %v1099, 6
    %v1836 = vsel %vm361, %v1833, %v1835
    %v1837 = vrot.slane %v1101, 6
    %v1838 = vsel %vm361, %v1835, %v1837
    %v1839 = vrot.slane %v1103, 6
    %v1840 = vsel %vm361, %v1837, %v1839
    %v1841 = vrot.slane %v1105, 6
    %v1842 = vsel %vm361, %v1839, %v1841
    %v1843 = vrot.slane %v1107, 6
    %v1844 = vsel %vm361, %v1841, %v1843
    %v1845 = vrot.slane %v1139, 6
    %v1846 = vsel %vm361, %v1843, %v1845
    %1847 = vrot.lane.b32.xlu0 %v1796, 96
    %v1848 = vpop.permute.xlu0 %1847
    %1849 = vrot.lane.b32.xlu0 %v1798, 96
    %v1850 = vpop.permute.xlu0 %1849
    %1851 = vrot.lane.b32.xlu0 %v1800, 96
    %v1852 = vpop.permute.xlu0 %1851
    %1853 = vrot.lane.b32.xlu0 %v1802, 96
    %v1854 = vpop.permute.xlu0 %1853
    %1855 = vrot.lane.b32.xlu0 %v1804, 96
    %v1856 = vpop.permute.xlu0 %1855
    %1857 = vrot.lane.b32.xlu0 %v1806, 96
    %v1858 = vpop.permute.xlu0 %1857
    %1859 = vrot.lane.b32.xlu0 %v1808, 96
    %v1860 = vpop.permute.xlu0 %1859
    %1861 = vrot.lane.b32.xlu0 %v1810, 96
    %v1862 = vpop.permute.xlu0 %1861
    %1863 = vrot.lane.b32.xlu0 %v1812, 96
    %v1864 = vpop.permute.xlu0 %1863
    %1865 = vrot.lane.b32.xlu0 %v1814, 96
    %v1866 = vpop.permute.xlu0 %1865
    %1867 = vrot.lane.b32.xlu0 %v1816, 96
    %v1868 = vpop.permute.xlu0 %1867
    %1869 = vrot.lane.b32.xlu0 %v1818, 96
    %v1870 = vpop.permute.xlu0 %1869
    %1871 = vrot.lane.b32.xlu0 %v1820, 96
    %v1872 = vpop.permute.xlu0 %1871
    %1873 = vrot.lane.b32.xlu0 %v1822, 96
    %v1874 = vpop.permute.xlu0 %1873
    %1875 = vrot.lane.b32.xlu0 %v1824, 96
    %v1876 = vpop.permute.xlu0 %1875
    %1877 = vrot.lane.b32.xlu0 %v1826, 96
    %v1878 = vpop.permute.xlu0 %1877
    %1879 = vrot.lane.b32.xlu0 %v1828, 96
    %v1880 = vpop.permute.xlu0 %1879
    %1881 = vrot.lane.b32.xlu0 %v1830, 96
    %v1882 = vpop.permute.xlu0 %1881
    %1883 = vrot.lane.b32.xlu0 %v1832, 96
    %v1884 = vpop.permute.xlu0 %1883
    %1885 = vrot.lane.b32.xlu0 %v1834, 96
    %v1886 = vpop.permute.xlu0 %1885
    %1887 = vrot.lane.b32.xlu0 %v1836, 96
    %v1888 = vpop.permute.xlu0 %1887
    %1889 = vrot.lane.b32.xlu0 %v1838, 96
    %v1890 = vpop.permute.xlu0 %1889
    %1891 = vrot.lane.b32.xlu0 %v1840, 96
    %v1892 = vpop.permute.xlu0 %1891
    %1893 = vrot.lane.b32.xlu0 %v1842, 96
    %v1894 = vpop.permute.xlu0 %1893
    %1895 = vrot.lane.b32.xlu0 %v1844, 96
    %v1896 = vpop.permute.xlu0 %1895
    %1897 = vrot.lane.b32.xlu0 %v1846, 96
    %v1898 = vpop.permute.xlu0 %1897
    %vm1925 = vcmask 1040384
    %v1926 = vrot.slane %v1137, 7
    %v1927 = vrot.slane %v1059, 7
    %v1928 = vsel %vm1925, %v1926, %v1927
    %v1929 = vrot.slane %v1061, 7
    %v1930 = vsel %vm1925, %v1927, %v1929
    %v1931 = vrot.slane %v1063, 7
    %v1932 = vsel %vm1925, %v1929, %v1931
    %v1933 = vrot.slane %v1065, 7
    %v1934 = vsel %vm1925, %v1931, %v1933
    %v1935 = vrot.slane %v1067, 7
    %v1936 = vsel %vm1925, %v1933, %v1935
    %v1937 = vrot.slane %v1069, 7
    %v1938 = vsel %vm1925, %v1935, %v1937
    %v1939 = vrot.slane %v1071, 7
    %v1940 = vsel %vm1925, %v1937, %v1939
    %v1941 = vrot.slane %v1073, 7
    %v1942 = vsel %vm1925, %v1939, %v1941
    %v1943 = vrot.slane %v1075, 7
    %v1944 = vsel %vm1925, %v1941, %v1943
    %v1945 = vrot.slane %v1077, 7
    %v1946 = vsel %vm1925, %v1943, %v1945
    %v1947 = vrot.slane %v1079, 7
    %v1948 = vsel %vm1925, %v1945, %v1947
    %v1949 = vrot.slane %v1081, 7
    %v1950 = vsel %vm1925, %v1947, %v1949
    %v1951 = vrot.slane %v1083, 7
    %v1952 = vsel %vm1925, %v1949, %v1951
    %v1953 = vrot.slane %v1085, 7
    %v1954 = vsel %vm1925, %v1951, %v1953
    %v1955 = vrot.slane %v1087, 7
    %v1956 = vsel %vm1925, %v1953, %v1955
    %v1957 = vrot.slane %v1089, 7
    %v1958 = vsel %vm1925, %v1955, %v1957
    %v1959 = vrot.slane %v1091, 7
    %v1960 = vsel %vm1925, %v1957, %v1959
    %v1961 = vrot.slane %v1093, 7
    %v1962 = vsel %vm1925, %v1959, %v1961
    %v1963 = vrot.slane %v1095, 7
    %v1964 = vsel %vm1925, %v1961, %v1963
    %v1965 = vrot.slane %v1097, 7
    %v1966 = vsel %vm1925, %v1963, %v1965
    %v1967 = vrot.slane %v1099, 7
    %v1968 = vsel %vm1925, %v1965, %v1967
    %v1969 = vrot.slane %v1101, 7
    %v1970 = vsel %vm1925, %v1967, %v1969
    %v1971 = vrot.slane %v1103, 7
    %v1972 = vsel %vm1925, %v1969, %v1971
    %v1973 = vrot.slane %v1105, 7
    %v1974 = vsel %vm1925, %v1971, %v1973
    %v1975 = vrot.slane %v1107, 7
    %v1976 = vsel %vm1925, %v1973, %v1975
    %v1977 = vrot.slane %v1139, 7
    %v1978 = vsel %vm1925, %v1975, %v1977
    %1979 = vrot.lane.b32.xlu0 %v1928, 112
    %v1980 = vpop.permute.xlu0 %1979
    %1981 = vrot.lane.b32.xlu0 %v1930, 112
    %v1982 = vpop.permute.xlu0 %1981
    %1983 = vrot.lane.b32.xlu0 %v1932, 112
    %v1984 = vpop.permute.xlu0 %1983
    %1985 = vrot.lane.b32.xlu0 %v1934, 112
    %v1986 = vpop.permute.xlu0 %1985
    %1987 = vrot.lane.b32.xlu0 %v1936, 112
    %v1988 = vpop.permute.xlu0 %1987
    %1989 = vrot.lane.b32.xlu0 %v1938, 112
    %v1990 = vpop.permute.xlu0 %1989
    %1991 = vrot.lane.b32.xlu0 %v1940, 112
    %v1992 = vpop.permute.xlu0 %1991
    %1993 = vrot.lane.b32.xlu0 %v1942, 112
    %v1994 = vpop.permute.xlu0 %1993
    %1995 = vrot.lane.b32.xlu0 %v1944, 112
    %v1996 = vpop.permute.xlu0 %1995
    %1997 = vrot.lane.b32.xlu0 %v1946, 112
    %v1998 = vpop.permute.xlu0 %1997
    %1999 = vrot.lane.b32.xlu0 %v1948, 112
    %v2000 = vpop.permute.xlu0 %1999
    %2001 = vrot.lane.b32.xlu0 %v1950, 112
    %v2002 = vpop.permute.xlu0 %2001
    %2003 = vrot.lane.b32.xlu0 %v1952, 112
    %v2004 = vpop.permute.xlu0 %2003
    %2005 = vrot.lane.b32.xlu0 %v1954, 112
    %v2006 = vpop.permute.xlu0 %2005
    %2007 = vrot.lane.b32.xlu0 %v1956, 112
    %v2008 = vpop.permute.xlu0 %2007
    %2009 = vrot.lane.b32.xlu0 %v1958, 112
    %v2010 = vpop.permute.xlu0 %2009
    %2011 = vrot.lane.b32.xlu0 %v1960, 112
    %v2012 = vpop.permute.xlu0 %2011
    %2013 = vrot.lane.b32.xlu0 %v1962, 112
    %v2014 = vpop.permute.xlu0 %2013
    %2015 = vrot.lane.b32.xlu0 %v1964, 112
    %v2016 = vpop.permute.xlu0 %2015
    %2017 = vrot.lane.b32.xlu0 %v1966, 112
    %v2018 = vpop.permute.xlu0 %2017
    %2019 = vrot.lane.b32.xlu0 %v1968, 112
    %v2020 = vpop.permute.xlu0 %2019
    %2021 = vrot.lane.b32.xlu0 %v1970, 112
    %v2022 = vpop.permute.xlu0 %2021
    %2023 = vrot.lane.b32.xlu0 %v1972, 112
    %v2024 = vpop.permute.xlu0 %2023
    %2025 = vrot.lane.b32.xlu0 %v1974, 112
    %v2026 = vpop.permute.xlu0 %2025
    %2027 = vrot.lane.b32.xlu0 %v1976, 112
    %v2028 = vpop.permute.xlu0 %2027
    %2029 = vrot.lane.b32.xlu0 %v1978, 112
    %v2030 = vpop.permute.xlu0 %2029
    %v2057 = vrot.slane %v1139, 1
    %v2058 = vsel %vm1141, %v1191, %v2057
    %2059 = vrot.lane.b32.xlu0 %v2058, 16
    %v2060 = vpop.permute.xlu0 %2059
    %2061 = vrot.lane.b32.xlu0 %v2057, 16
    %v2062 = vpop.permute.xlu0 %2061
    %v2065 = vsel %vm613, %v1137, %v1194
    %v2066 = vsel %vm613, %v1059, %v1196
    %v2067 = vsel %vm613, %v1061, %v1198
    %v2068 = vsel %vm613, %v1063, %v1200
    %v2069 = vsel %vm613, %v1065, %v1202
    %v2070 = vsel %vm613, %v1067, %v1204
    %v2071 = vsel %vm613, %v1069, %v1206
    %v2072 = vsel %vm613, %v1071, %v1208
    %v2073 = vsel %vm613, %v1073, %v1210
    %v2074 = vsel %vm613, %v1075, %v1212
    %v2075 = vsel %vm613, %v1077, %v1214
    %v2076 = vsel %vm613, %v1079, %v1216
    %v2077 = vsel %vm613, %v1081, %v1218
    %v2078 = vsel %vm613, %v1083, %v1220
    %v2079 = vsel %vm613, %v1085, %v1222
    %v2080 = vsel %vm613, %v1087, %v1224
    %v2081 = vsel %vm613, %v1089, %v1226
    %v2082 = vsel %vm613, %v1091, %v1228
    %v2083 = vsel %vm613, %v1093, %v1230
    %v2084 = vsel %vm613, %v1095, %v1232
    %v2085 = vsel %vm613, %v1097, %v1234
    %v2086 = vsel %vm613, %v1099, %v1236
    %v2087 = vsel %vm613, %v1101, %v1238
    %v2088 = vsel %vm613, %v1103, %v1240
    %v2089 = vsel %vm613, %v1105, %v1242
    %v2090 = vsel %vm613, %v1107, %v1244
    %vm2091 = vcmask 261120
    %v2092 = vsel %vm2091, %v2065, %v1324
    %v2093 = vsel %vm2091, %v2066, %v1326
    %v2094 = vsel %vm2091, %v2067, %v1328
    %v2095 = vsel %vm2091, %v2068, %v1330
    %v2096 = vsel %vm2091, %v2069, %v1332
    %v2097 = vsel %vm2091, %v2070, %v1334
    %v2098 = vsel %vm2091, %v2071, %v1336
    %v2099 = vsel %vm2091, %v2072, %v1338
    %v2100 = vsel %vm2091, %v2073, %v1340
    %v2101 = vsel %vm2091, %v2074, %v1342
    %v2102 = vsel %vm2091, %v2075, %v1344
    %v2103 = vsel %vm2091, %v2076, %v1346
    %v2104 = vsel %vm2091, %v2077, %v1348
    %v2105 = vsel %vm2091, %v2078, %v1350
    %v2106 = vsel %vm2091, %v2079, %v1352
    %v2107 = vsel %vm2091, %v2080, %v1354
    %v2108 = vsel %vm2091, %v2081, %v1356
    %v2109 = vsel %vm2091, %v2082, %v1358
    %v2110 = vsel %vm2091, %v2083, %v1360
    %v2111 = vsel %vm2091, %v2084, %v1362
    %v2112 = vsel %vm2091, %v2085, %v1364
    %v2113 = vsel %vm2091, %v2086, %v1366
    %v2114 = vsel %vm2091, %v2087, %v1368
    %v2115 = vsel %vm2091, %v2088, %v1370
    %v2116 = vsel %vm2091, %v2089, %v1372
    %v2117 = vsel %vm2091, %v2090, %v1374
    %vm2118 = vcmask 392192
    %v2119 = vsel %vm2118, %v2092, %v1454
    %v2120 = vsel %vm2118, %v2093, %v1456
    %v2121 = vsel %vm2118, %v2094, %v1458
    %v2122 = vsel %vm2118, %v2095, %v1460
    %v2123 = vsel %vm2118, %v2096, %v1462
    %v2124 = vsel %vm2118, %v2097, %v1464
    %v2125 = vsel %vm2118, %v2098, %v1466
    %v2126 = vsel %vm2118, %v2099, %v1468
    %v2127 = vsel %vm2118, %v2100, %v1470
    %v2128 = vsel %vm2118, %v2101, %v1472
    %v2129 = vsel %vm2118, %v2102, %v1474
    %v2130 = vsel %vm2118, %v2103, %v1476
    %v2131 = vsel %vm2118, %v2104, %v1478
    %v2132 = vsel %vm2118, %v2105, %v1480
    %v2133 = vsel %vm2118, %v2106, %v1482
    %v2134 = vsel %vm2118, %v2107, %v1484
    %v2135 = vsel %vm2118, %v2108, %v1486
    %v2136 = vsel %vm2118, %v2109, %v1488
    %v2137 = vsel %vm2118, %v2110, %v1490
    %v2138 = vsel %vm2118, %v2111, %v1492
    %v2139 = vsel %vm2118, %v2112, %v1494
    %v2140 = vsel %vm2118, %v2113, %v1496
    %v2141 = vsel %vm2118, %v2114, %v1498
    %v2142 = vsel %vm2118, %v2115, %v1500
    %v2143 = vsel %vm2118, %v2116, %v1502
    %v2144 = vsel %vm2118, %v2117, %v1504
    %vm2145 = vcmask 523264
    %v2146 = vsel %vm2145, %v2119, %v1586
    %v2147 = vsel %vm2145, %v2120, %v1588
    %v2148 = vsel %vm2145, %v2121, %v1590
    %v2149 = vsel %vm2145, %v2122, %v1592
    %v2150 = vsel %vm2145, %v2123, %v1594
    %v2151 = vsel %vm2145, %v2124, %v1596
    %v2152 = vsel %vm2145, %v2125, %v1598
    %v2153 = vsel %vm2145, %v2126, %v1600
    %v2154 = vsel %vm2145, %v2127, %v1602
    %v2155 = vsel %vm2145, %v2128, %v1604
    %v2156 = vsel %vm2145, %v2129, %v1606
    %v2157 = vsel %vm2145, %v2130, %v1608
    %v2158 = vsel %vm2145, %v2131, %v1610
    %v2159 = vsel %vm2145, %v2132, %v1612
    %v2160 = vsel %vm2145, %v2133, %v1614
    %v2161 = vsel %vm2145, %v2134, %v1616
    %v2162 = vsel %vm2145, %v2135, %v1618
    %v2163 = vsel %vm2145, %v2136, %v1620
    %v2164 = vsel %vm2145, %v2137, %v1622
    %v2165 = vsel %vm2145, %v2138, %v1624
    %v2166 = vsel %vm2145, %v2139, %v1626
    %v2167 = vsel %vm2145, %v2140, %v1628
    %v2168 = vsel %vm2145, %v2141, %v1630
    %v2169 = vsel %vm2145, %v2142, %v1632
    %v2170 = vsel %vm2145, %v2143, %v1634
    %v2171 = vsel %vm2145, %v2144, %v1636
    %vm2172 = vcmask 654336
    %v2173 = vsel %vm2172, %v2146, %v1717
    %v2174 = vsel %vm2172, %v2147, %v1719
    %v2175 = vsel %vm2172, %v2148, %v1721
    %v2176 = vsel %vm2172, %v2149, %v1723
    %v2177 = vsel %vm2172, %v2150, %v1725
    %v2178 = vsel %vm2172, %v2151, %v1727
    %v2179 = vsel %vm2172, %v2152, %v1729
    %v2180 = vsel %vm2172, %v2153, %v1731
    %v2181 = vsel %vm2172, %v2154, %v1733
    %v2182 = vsel %vm2172, %v2155, %v1735
    %v2183 = vsel %vm2172, %v2156, %v1737
    %v2184 = vsel %vm2172, %v2157, %v1739
    %v2185 = vsel %vm2172, %v2158, %v1741
    %v2186 = vsel %vm2172, %v2159, %v1743
    %v2187 = vsel %vm2172, %v2160, %v1745
    %v2188 = vsel %vm2172, %v2161, %v1747
    %v2189 = vsel %vm2172, %v2162, %v1749
    %v2190 = vsel %vm2172, %v2163, %v1751
    %v2191 = vsel %vm2172, %v2164, %v1753
    %v2192 = vsel %vm2172, %v2165, %v1755
    %v2193 = vsel %vm2172, %v2166, %v1757
    %v2194 = vsel %vm2172, %v2167, %v1759
    %v2195 = vsel %vm2172, %v2168, %v1761
    %v2196 = vsel %vm2172, %v2169, %v1763
    %v2197 = vsel %vm2172, %v2170, %v1765
    %v2198 = vsel %vm2172, %v2171, %v1767
    %vm2199 = vcmask 785408
    %v2200 = vsel %vm2199, %v2173, %v1848
    %v2201 = vsel %vm2199, %v2174, %v1850
    %v2202 = vsel %vm2199, %v2175, %v1852
    %v2203 = vsel %vm2199, %v2176, %v1854
    %v2204 = vsel %vm2199, %v2177, %v1856
    %v2205 = vsel %vm2199, %v2178, %v1858
    %v2206 = vsel %vm2199, %v2179, %v1860
    %v2207 = vsel %vm2199, %v2180, %v1862
    %v2208 = vsel %vm2199, %v2181, %v1864
    %v2209 = vsel %vm2199, %v2182, %v1866
    %v2210 = vsel %vm2199, %v2183, %v1868
    %v2211 = vsel %vm2199, %v2184, %v1870
    %v2212 = vsel %vm2199, %v2185, %v1872
    %v2213 = vsel %vm2199, %v2186, %v1874
    %v2214 = vsel %vm2199, %v2187, %v1876
    %v2215 = vsel %vm2199, %v2188, %v1878
    %v2216 = vsel %vm2199, %v2189, %v1880
    %v2217 = vsel %vm2199, %v2190, %v1882
    %v2218 = vsel %vm2199, %v2191, %v1884
    %v2219 = vsel %vm2199, %v2192, %v1886
    %v2220 = vsel %vm2199, %v2193, %v1888
    %v2221 = vsel %vm2199, %v2194, %v1890
    %v2222 = vsel %vm2199, %v2195, %v1892
    %v2223 = vsel %vm2199, %v2196, %v1894
    %v2224 = vsel %vm2199, %v2197, %v1896
    %v2225 = vsel %vm2199, %v2198, %v1898
    %vm2226 = vcmask 916480
    %v2227 = vsel %vm2226, %v2200, %v1980
    %v2228 = vsel %vm2226, %v2201, %v1982
    %v2229 = vsel %vm2226, %v2202, %v1984
    %v2230 = vsel %vm2226, %v2203, %v1986
    %v2231 = vsel %vm2226, %v2204, %v1988
    %v2232 = vsel %vm2226, %v2205, %v1990
    %v2233 = vsel %vm2226, %v2206, %v1992
    %v2234 = vsel %vm2226, %v2207, %v1994
    %v2235 = vsel %vm2226, %v2208, %v1996
    %v2236 = vsel %vm2226, %v2209, %v1998
    %v2237 = vsel %vm2226, %v2210, %v2000
    %v2238 = vsel %vm2226, %v2211, %v2002
    %v2239 = vsel %vm2226, %v2212, %v2004
    %v2240 = vsel %vm2226, %v2213, %v2006
    %v2241 = vsel %vm2226, %v2214, %v2008
    %v2242 = vsel %vm2226, %v2215, %v2010
    %v2243 = vsel %vm2226, %v2216, %v2012
    %v2244 = vsel %vm2226, %v2217, %v2014
    %v2245 = vsel %vm2226, %v2218, %v2016
    %v2246 = vsel %vm2226, %v2219, %v2018
    %v2247 = vsel %vm2226, %v2220, %v2020
    %v2248 = vsel %vm2226, %v2221, %v2022
    %v2249 = vsel %vm2226, %v2222, %v2024
    %v2250 = vsel %vm2226, %v2223, %v2026
    %v2251 = vsel %vm2226, %v2224, %v2028
    %v2252 = vsel %vm2226, %v2225, %v2030
    %v2253 = vsel %vm613, %v1107, %v2060
    %v2254 = vsel %vm613, %v1139, %v2062
    %v2255 = vpack.c.bf16 %v2228, %v2227
    %v2256 = vpack.c.bf16 %v2067, %v2066
    %v2257 = vpack.c.bf16 %v2230, %v2229
    %v2258 = vpack.c.bf16 %v2069, %v2068
    %v2259 = vpack.c.bf16 %v2232, %v2231
    %v2260 = vpack.c.bf16 %v2071, %v2070
    %v2261 = vpack.c.bf16 %v2234, %v2233
    %v2262 = vpack.c.bf16 %v2073, %v2072
    %v2263 = vpack.c.bf16 %v2236, %v2235
    %v2264 = vpack.c.bf16 %v2075, %v2074
    %v2265 = vpack.c.bf16 %v2238, %v2237
    %v2266 = vpack.c.bf16 %v2077, %v2076
    %v2267 = vpack.c.bf16 %v2240, %v2239
    %v2268 = vpack.c.bf16 %v2079, %v2078
    %v2269 = vpack.c.bf16 %v2242, %v2241
    %v2270 = vpack.c.bf16 %v2081, %v2080
    %v2271 = vpack.c.bf16 %v2244, %v2243
    %v2272 = vpack.c.bf16 %v2083, %v2082
    %v2273 = vpack.c.bf16 %v2246, %v2245
    %v2274 = vpack.c.bf16 %v2085, %v2084
    %v2275 = vpack.c.bf16 %v2248, %v2247
    %v2276 = vpack.c.bf16 %v2087, %v2086
    %v2277 = vpack.c.bf16 %v2250, %v2249
    %v2278 = vpack.c.bf16 %v2089, %v2088
    %v2279 = vpack.c.bf16 %v2252, %v2251
    %v2280 = vpack.c.bf16 %v2254, %v2253
    %v2290 = vunpack.c.l.b16 %v1020
    %v2291 = vunpack.c.h.b16 %v1020
    %v2292 = vunpack.c.l.b16 %v1021
    %v2293 = vunpack.c.h.b16 %v1021
    %v2294 = vunpack.c.l.b16 %v1022
    %v2295 = vunpack.c.h.b16 %v1022
    %v2296 = vunpack.c.l.b16 %v1023
    %v2297 = vunpack.c.h.b16 %v1023
    %v2298 = vunpack.c.l.b16 %v1024
    %v2299 = vunpack.c.h.b16 %v1024
    %v2300 = vunpack.c.l.b16 %v1025
    %v2301 = vunpack.c.h.b16 %v1025
    %v2302 = vunpack.c.l.b16 %v1026
    %v2303 = vunpack.c.h.b16 %v1026
    %v2304 = vunpack.c.l.b16 %v1027
    %v2305 = vunpack.c.h.b16 %v1027
    %v2306 = vunpack.c.l.b16 %v1028
    %v2307 = vunpack.c.h.b16 %v1028
    %v2308 = vpack.c.b16 %v2292, %v2290
    %v2309 = vpack.c.b16 %v2293, %v2291
    %v2310 = vpack.c.b16 %v2296, %v2294
    %v2311 = vpack.c.b16 %v2297, %v2295
    %v2312 = vpack.c.b16 %v2300, %v2298
    %v2313 = vpack.c.b16 %v2301, %v2299
    %v2314 = vpack.c.b16 %v2304, %v2302
    %v2315 = vpack.c.b16 %v2305, %v2303
    %v2316 = vpack.c.b16 %v2306, %v2306
    %v2317 = vpack.c.b16 %v2307, %v2307
    %vm2323 = vcmask 629760
    %v2325 = vsel %vm2323, %v2309, 0
    %v2328 = vsel %vm2323, %v2311, 0
    %v2331 = vsel %vm2323, %v2313, 0
    %v2334 = vsel %vm2323, %v2315, 0
    %v2337 = vsel %vm2323, %v2317, 0
    %v2339 = vsel %vm1271, 4294967295, 65535
    %v2340 = vsel %vm1141, %v2339, 0
    %v2342 = vand.u32 %v2279, %v2340
    %v2345 = vand.u32 %v2280, %v2340
    %2347 = vmatprep.subr.bf16.mxu0 %v2256
    %2348 = vmatpush1.bf16.msra.mxu0 %v2255
    %2349 = vmatprep.subr.bf16.mxu0 %v2258
    %2350 = vmatpush1.bf16.msra.mxu0 %v2257
    %2351 = vmatprep.subr.bf16.mxu0 %v2260
    %2352 = vmatpush1.bf16.msra.mxu0 %v2259
    %2353 = vmatprep.subr.bf16.mxu0 %v2262
    %2354 = vmatpush1.bf16.msra.mxu0 %v2261
    %2355 = vmatprep.subr.bf16.mxu0 %v2264
    %2356 = vmatpush1.bf16.msra.mxu0 %v2263
    %2357 = vmatprep.subr.bf16.mxu0 %v2266
    %2358 = vmatpush1.bf16.msra.mxu0 %v2265
    %2359 = vmatprep.subr.bf16.mxu0 %v2268
    %2360 = vmatpush1.bf16.msra.mxu0 %v2267
    %2361 = vmatprep.subr.bf16.mxu0 %v2270
    %2362 = vmatpush1.bf16.msra.mxu0 %v2269
    %2363 = vmatprep.subr.bf16.mxu0 %v2272
    %2364 = vmatpush1.bf16.msra.mxu0 %v2271
    %2365 = vmatprep.subr.bf16.mxu0 %v2274
    %2366 = vmatpush1.bf16.msra.mxu0 %v2273
    %2367 = vmatprep.subr.bf16.mxu0 %v2276
    %2368 = vmatpush1.bf16.msra.mxu0 %v2275
    %2369 = vmatprep.subr.bf16.mxu0 %v2278
    %2370 = vmatpush1.bf16.msra.mxu0 %v2277
    %2371 = vmatprep.subr.bf16.mxu0 %v2345
    %2372 = vmatpush1.bf16.msra.mxu0 %v2342
    %2373 = vmatprep.subr.bf16.mxu0 0
    %2374 = vmatpush1.bf16.msra.mxu0 0
    %2375 = vmatprep.subr.bf16.mxu0 0
    %2376 = vmatpush1.bf16.msra.mxu0 0
    %2377 = vmatprep.subr.bf16.mxu0 0
    %2378 = vmatpush1.bf16.msra.mxu0 0
    %2379 = vmatprep.mubr.bf16.mxu0 %v2325
    %2380 = vmatmul.mubr.bf16.gmra.mrb[0].mxu0 %v2308
    %v2381 = vpop.f32.mrb[0].mxu0
    %v2382 = vadd.f32 0.0, %v2381
    %v2383 = vpop.f32.mrb[0].mxu0
    %v2384 = vadd.f32 0.0, %v2383
    %v2385 = vpop.f32.mrb[0].mxu0
    %v2386 = vadd.f32 0.0, %v2385
    %v2387 = vpop.f32.mrb[0].mxu0
    %v2388 = vadd.f32 0.0, %v2387
    %2389 = vmatprep.mubr.bf16.mxu0 %v2328
    %2390 = vmatmul.mubr.bf16.gmra.mrb[0].mxu0 %v2310
    %v2391 = vpop.f32.mrb[0].mxu0
    %v2392 = vadd.f32 0.0, %v2391
    %v2393 = vpop.f32.mrb[0].mxu0
    %v2394 = vadd.f32 0.0, %v2393
    %v2395 = vpop.f32.mrb[0].mxu0
    %v2396 = vadd.f32 0.0, %v2395
    %v2397 = vpop.f32.mrb[0].mxu0
    %v2398 = vadd.f32 0.0, %v2397
    %2399 = vmatprep.mubr.bf16.mxu0 %v2331
    %2400 = vmatmul.mubr.bf16.gmra.mrb[0].mxu0 %v2312
    %v2401 = vpop.f32.mrb[0].mxu0
    %v2402 = vadd.f32 0.0, %v2401
    %v2403 = vpop.f32.mrb[0].mxu0
    %v2404 = vadd.f32 0.0, %v2403
    %v2405 = vpop.f32.mrb[0].mxu0
    %v2406 = vadd.f32 0.0, %v2405
    %v2407 = vpop.f32.mrb[0].mxu0
    %v2408 = vadd.f32 0.0, %v2407
    %2409 = vmatprep.mubr.bf16.mxu0 %v2334
    %2410 = vmatmul.mubr.bf16.gmra.mrb[0].mxu0 %v2314
    %v2411 = vpop.f32.mrb[0].mxu0
    %v2412 = vadd.f32 0.0, %v2411
    %v2413 = vpop.f32.mrb[0].mxu0
    %v2414 = vadd.f32 0.0, %v2413
    %v2415 = vpop.f32.mrb[0].mxu0
    %v2416 = vadd.f32 0.0, %v2415
    %v2417 = vpop.f32.mrb[0].mxu0
    %v2418 = vadd.f32 0.0, %v2417
    %2419 = vmatprep.mubr.bf16.mxu0 %v2337
    %2420 = vmatmul.mubr.bf16.gmra.mrb[0].mxu0 %v2316
    %v2421 = vpop.f32.mrb[0].mxu0
    %v2422 = vadd.f32 0.0, %v2421
    %v2423 = vpop.f32.mrb[0].mxu0
    %v2424 = vadd.f32 0.0, %v2423
    %v2425 = vpop.f32.mrb[0].mxu0
    %v2426 = vpop.f32.mrb[0].mxu0
    %2427 = vdwg.mxu0
    %v2454 = vrot.slane %v993, 6
    %v2455 = vrot.slane %v994, 6
    %v2456 = vsel %vm361, %v2454, %v2455
    %v2457 = vrot.slane %v995, 6
    %v2458 = vsel %vm361, %v2455, %v2457
    %v2459 = vrot.slane %v996, 6
    %v2460 = vsel %vm361, %v2457, %v2459
    %v2461 = vrot.slane %v997, 6
    %v2462 = vsel %vm361, %v2459, %v2461
    %v2463 = vrot.slane %v998, 6
    %v2464 = vsel %vm361, %v2461, %v2463
    %v2465 = vrot.slane %v999, 6
    %v2466 = vsel %vm361, %v2463, %v2465
    %v2467 = vrot.slane %v1000, 6
    %v2468 = vsel %vm361, %v2465, %v2467
    %v2469 = vrot.slane %v1001, 6
    %v2470 = vsel %vm361, %v2467, %v2469
    %v2471 = vrot.slane %v1002, 6
    %v2472 = vsel %vm361, %v2469, %v2471
    %v2473 = vrot.slane %v1003, 6
    %v2474 = vsel %vm361, %v2471, %v2473
    %v2475 = vrot.slane %v1004, 6
    %v2476 = vsel %vm361, %v2473, %v2475
    %v2477 = vrot.slane %v1005, 6
    %v2478 = vsel %vm361, %v2475, %v2477
    %v2479 = vrot.slane %v1006, 6
    %v2480 = vsel %vm361, %v2477, %v2479
    %v2481 = vrot.slane %v1007, 6
    %v2482 = vsel %vm361, %v2479, %v2481
    %v2483 = vrot.slane %v1008, 6
    %v2484 = vsel %vm361, %v2481, %v2483
    %v2485 = vrot.slane %v1009, 6
    %v2486 = vsel %vm361, %v2483, %v2485
    %v2487 = vrot.slane %v1010, 6
    %v2488 = vsel %vm361, %v2485, %v2487
    %v2489 = vrot.slane %v1011, 6
    %v2490 = vsel %vm361, %v2487, %v2489
    %v2491 = vrot.slane %v1012, 6
    %v2492 = vsel %vm361, %v2489, %v2491
    %v2493 = vrot.slane %v1013, 6
    %v2494 = vsel %vm361, %v2491, %v2493
    %v2495 = vrot.slane %v1014, 6
    %v2496 = vsel %vm361, %v2493, %v2495
    %v2497 = vrot.slane %v1015, 6
    %v2498 = vsel %vm361, %v2495, %v2497
    %v2499 = vrot.slane %v1016, 6
    %v2500 = vsel %vm361, %v2497, %v2499
    %v2501 = vrot.slane %v1017, 6
    %v2502 = vsel %vm361, %v2499, %v2501
    %v2503 = vrot.slane %v1018, 6
    %v2504 = vsel %vm361, %v2501, %v2503
    %v2505 = vrot.slane %v1019, 6
    %v2506 = vsel %vm361, %v2503, %v2505
    %v2534 = vsel %vm1056, 0.0, %v2454
    %v2535 = vsel %vm1138, %v2506, 0.0
    %v2537 = vrot.slane %v2534, 1
    %v2538 = vrot.slane %v2456, 1
    %v2539 = vsel %vm1141, %v2537, %v2538
    %v2540 = vrot.slane %v2458, 1
    %v2541 = vsel %vm1141, %v2538, %v2540
    %v2542 = vrot.slane %v2460, 1
    %v2543 = vsel %vm1141, %v2540, %v2542
    %v2544 = vrot.slane %v2462, 1
    %v2545 = vsel %vm1141, %v2542, %v2544
    %v2546 = vrot.slane %v2464, 1
    %v2547 = vsel %vm1141, %v2544, %v2546
    %v2548 = vrot.slane %v2466, 1
    %v2549 = vsel %vm1141, %v2546, %v2548
    %v2550 = vrot.slane %v2468, 1
    %v2551 = vsel %vm1141, %v2548, %v2550
    %v2552 = vrot.slane %v2470, 1
    %v2553 = vsel %vm1141, %v2550, %v2552
    %v2554 = vrot.slane %v2472, 1
    %v2555 = vsel %vm1141, %v2552, %v2554
    %v2556 = vrot.slane %v2474, 1
    %v2557 = vsel %vm1141, %v2554, %v2556
    %v2558 = vrot.slane %v2476, 1
    %v2559 = vsel %vm1141, %v2556, %v2558
    %v2560 = vrot.slane %v2478, 1
    %v2561 = vsel %vm1141, %v2558, %v2560
    %v2562 = vrot.slane %v2480, 1
    %v2563 = vsel %vm1141, %v2560, %v2562
    %v2564 = vrot.slane %v2482, 1
    %v2565 = vsel %vm1141, %v2562, %v2564
    %v2566 = vrot.slane %v2484, 1
    %v2567 = vsel %vm1141, %v2564, %v2566
    %v2568 = vrot.slane %v2486, 1
    %v2569 = vsel %vm1141, %v2566, %v2568
    %v2570 = vrot.slane %v2488, 1
    %v2571 = vsel %vm1141, %v2568, %v2570
    %v2572 = vrot.slane %v2490, 1
    %v2573 = vsel %vm1141, %v2570, %v2572
    %v2574 = vrot.slane %v2492, 1
    %v2575 = vsel %vm1141, %v2572, %v2574
    %v2576 = vrot.slane %v2494, 1
    %v2577 = vsel %vm1141, %v2574, %v2576
    %v2578 = vrot.slane %v2496, 1
    %v2579 = vsel %vm1141, %v2576, %v2578
    %v2580 = vrot.slane %v2498, 1
    %v2581 = vsel %vm1141, %v2578, %v2580
    %v2582 = vrot.slane %v2500, 1
    %v2583 = vsel %vm1141, %v2580, %v2582
    %v2584 = vrot.slane %v2502, 1
    %v2585 = vsel %vm1141, %v2582, %v2584
    %v2586 = vrot.slane %v2504, 1
    %v2587 = vsel %vm1141, %v2584, %v2586
    %2588 = vrot.lane.b32.xlu0 %v2539, 16
    %v2589 = vpop.permute.xlu0 %2588
    %2590 = vrot.lane.b32.xlu0 %v2541, 16
    %v2591 = vpop.permute.xlu0 %2590
    %2592 = vrot.lane.b32.xlu0 %v2543, 16
    %v2593 = vpop.permute.xlu0 %2592
    %2594 = vrot.lane.b32.xlu0 %v2545, 16
    %v2595 = vpop.permute.xlu0 %2594
    %2596 = vrot.lane.b32.xlu0 %v2547, 16
    %v2597 = vpop.permute.xlu0 %2596
    %2598 = vrot.lane.b32.xlu0 %v2549, 16
    %v2599 = vpop.permute.xlu0 %2598
    %2600 = vrot.lane.b32.xlu0 %v2551, 16
    %v2601 = vpop.permute.xlu0 %2600
    %2602 = vrot.lane.b32.xlu0 %v2553, 16
    %v2603 = vpop.permute.xlu0 %2602
    %2604 = vrot.lane.b32.xlu0 %v2555, 16
    %v2605 = vpop.permute.xlu0 %2604
    %2606 = vrot.lane.b32.xlu0 %v2557, 16
    %v2607 = vpop.permute.xlu0 %2606
    %2608 = vrot.lane.b32.xlu0 %v2559, 16
    %v2609 = vpop.permute.xlu0 %2608
    %2610 = vrot.lane.b32.xlu0 %v2561, 16
    %v2611 = vpop.permute.xlu0 %2610
    %2612 = vrot.lane.b32.xlu0 %v2563, 16
    %v2613 = vpop.permute.xlu0 %2612
    %2614 = vrot.lane.b32.xlu0 %v2565, 16
    %v2615 = vpop.permute.xlu0 %2614
    %2616 = vrot.lane.b32.xlu0 %v2567, 16
    %v2617 = vpop.permute.xlu0 %2616
    %2618 = vrot.lane.b32.xlu0 %v2569, 16
    %v2619 = vpop.permute.xlu0 %2618
    %2620 = vrot.lane.b32.xlu0 %v2571, 16
    %v2621 = vpop.permute.xlu0 %2620
    %2622 = vrot.lane.b32.xlu0 %v2573, 16
    %v2623 = vpop.permute.xlu0 %2622
    %2624 = vrot.lane.b32.xlu0 %v2575, 16
    %v2625 = vpop.permute.xlu0 %2624
    %2626 = vrot.lane.b32.xlu0 %v2577, 16
    %v2627 = vpop.permute.xlu0 %2626
    %2628 = vrot.lane.b32.xlu0 %v2579, 16
    %v2629 = vpop.permute.xlu0 %2628
    %2630 = vrot.lane.b32.xlu0 %v2581, 16
    %v2631 = vpop.permute.xlu0 %2630
    %2632 = vrot.lane.b32.xlu0 %v2583, 16
    %v2633 = vpop.permute.xlu0 %2632
    %2634 = vrot.lane.b32.xlu0 %v2585, 16
    %v2635 = vpop.permute.xlu0 %2634
    %2636 = vrot.lane.b32.xlu0 %v2587, 16
    %v2637 = vpop.permute.xlu0 %2636
    %2638 = vrot.lane.b32.xlu0 %v2586, 16
    %v2639 = vpop.permute.xlu0 %2638
    %v2666 = vrot.slane %v2534, 2
    %v2667 = vrot.slane %v2456, 2
    %v2668 = vsel %vm1271, %v2666, %v2667
    %v2669 = vrot.slane %v2458, 2
    %v2670 = vsel %vm1271, %v2667, %v2669
    %v2671 = vrot.slane %v2460, 2
    %v2672 = vsel %vm1271, %v2669, %v2671
    %v2673 = vrot.slane %v2462, 2
    %v2674 = vsel %vm1271, %v2671, %v2673
    %v2675 = vrot.slane %v2464, 2
    %v2676 = vsel %vm1271, %v2673, %v2675
    %v2677 = vrot.slane %v2466, 2
    %v2678 = vsel %vm1271, %v2675, %v2677
    %v2679 = vrot.slane %v2468, 2
    %v2680 = vsel %vm1271, %v2677, %v2679
    %v2681 = vrot.slane %v2470, 2
    %v2682 = vsel %vm1271, %v2679, %v2681
    %v2683 = vrot.slane %v2472, 2
    %v2684 = vsel %vm1271, %v2681, %v2683
    %v2685 = vrot.slane %v2474, 2
    %v2686 = vsel %vm1271, %v2683, %v2685
    %v2687 = vrot.slane %v2476, 2
    %v2688 = vsel %vm1271, %v2685, %v2687
    %v2689 = vrot.slane %v2478, 2
    %v2690 = vsel %vm1271, %v2687, %v2689
    %v2691 = vrot.slane %v2480, 2
    %v2692 = vsel %vm1271, %v2689, %v2691
    %v2693 = vrot.slane %v2482, 2
    %v2694 = vsel %vm1271, %v2691, %v2693
    %v2695 = vrot.slane %v2484, 2
    %v2696 = vsel %vm1271, %v2693, %v2695
    %v2697 = vrot.slane %v2486, 2
    %v2698 = vsel %vm1271, %v2695, %v2697
    %v2699 = vrot.slane %v2488, 2
    %v2700 = vsel %vm1271, %v2697, %v2699
    %v2701 = vrot.slane %v2490, 2
    %v2702 = vsel %vm1271, %v2699, %v2701
    %v2703 = vrot.slane %v2492, 2
    %v2704 = vsel %vm1271, %v2701, %v2703
    %v2705 = vrot.slane %v2494, 2
    %v2706 = vsel %vm1271, %v2703, %v2705
    %v2707 = vrot.slane %v2496, 2
    %v2708 = vsel %vm1271, %v2705, %v2707
    %v2709 = vrot.slane %v2498, 2
    %v2710 = vsel %vm1271, %v2707, %v2709
    %v2711 = vrot.slane %v2500, 2
    %v2712 = vsel %vm1271, %v2709, %v2711
    %v2713 = vrot.slane %v2502, 2
    %v2714 = vsel %vm1271, %v2711, %v2713
    %v2715 = vrot.slane %v2504, 2
    %v2716 = vsel %vm1271, %v2713, %v2715
    %2717 = vrot.lane.b32.xlu0 %v2668, 32
    %v2718 = vpop.permute.xlu0 %2717
    %2719 = vrot.lane.b32.xlu0 %v2670, 32
    %v2720 = vpop.permute.xlu0 %2719
    %2721 = vrot.lane.b32.xlu0 %v2672, 32
    %v2722 = vpop.permute.xlu0 %2721
    %2723 = vrot.lane.b32.xlu0 %v2674, 32
    %v2724 = vpop.permute.xlu0 %2723
    %2725 = vrot.lane.b32.xlu0 %v2676, 32
    %v2726 = vpop.permute.xlu0 %2725
    %2727 = vrot.lane.b32.xlu0 %v2678, 32
    %v2728 = vpop.permute.xlu0 %2727
    %2729 = vrot.lane.b32.xlu0 %v2680, 32
    %v2730 = vpop.permute.xlu0 %2729
    %2731 = vrot.lane.b32.xlu0 %v2682, 32
    %v2732 = vpop.permute.xlu0 %2731
    %2733 = vrot.lane.b32.xlu0 %v2684, 32
    %v2734 = vpop.permute.xlu0 %2733
    %2735 = vrot.lane.b32.xlu0 %v2686, 32
    %v2736 = vpop.permute.xlu0 %2735
    %2737 = vrot.lane.b32.xlu0 %v2688, 32
    %v2738 = vpop.permute.xlu0 %2737
    %2739 = vrot.lane.b32.xlu0 %v2690, 32
    %v2740 = vpop.permute.xlu0 %2739
    %2741 = vrot.lane.b32.xlu0 %v2692, 32
    %v2742 = vpop.permute.xlu0 %2741
    %2743 = vrot.lane.b32.xlu0 %v2694, 32
    %v2744 = vpop.permute.xlu0 %2743
    %2745 = vrot.lane.b32.xlu0 %v2696, 32
    %v2746 = vpop.permute.xlu0 %2745
    %2747 = vrot.lane.b32.xlu0 %v2698, 32
    %v2748 = vpop.permute.xlu0 %2747
    %2749 = vrot.lane.b32.xlu0 %v2700, 32
    %v2750 = vpop.permute.xlu0 %2749
    %2751 = vrot.lane.b32.xlu0 %v2702, 32
    %v2752 = vpop.permute.xlu0 %2751
    %2753 = vrot.lane.b32.xlu0 %v2704, 32
    %v2754 = vpop.permute.xlu0 %2753
    %2755 = vrot.lane.b32.xlu0 %v2706, 32
    %v2756 = vpop.permute.xlu0 %2755
    %2757 = vrot.lane.b32.xlu0 %v2708, 32
    %v2758 = vpop.permute.xlu0 %2757
    %2759 = vrot.lane.b32.xlu0 %v2710, 32
    %v2760 = vpop.permute.xlu0 %2759
    %2761 = vrot.lane.b32.xlu0 %v2712, 32
    %v2762 = vpop.permute.xlu0 %2761
    %2763 = vrot.lane.b32.xlu0 %v2714, 32
    %v2764 = vpop.permute.xlu0 %2763
    %2765 = vrot.lane.b32.xlu0 %v2716, 32
    %v2766 = vpop.permute.xlu0 %2765
    %2767 = vrot.lane.b32.xlu0 %v2715, 32
    %v2768 = vpop.permute.xlu0 %2767
    %v2795 = vrot.slane %v2534, 3
    %v2796 = vrot.slane %v2456, 3
    %v2797 = vsel %vm1401, %v2795, %v2796
    %v2798 = vrot.slane %v2458, 3
    %v2799 = vsel %vm1401, %v2796, %v2798
    %v2800 = vrot.slane %v2460, 3
    %v2801 = vsel %vm1401, %v2798, %v2800
    %v2802 = vrot.slane %v2462, 3
    %v2803 = vsel %vm1401, %v2800, %v2802
    %v2804 = vrot.slane %v2464, 3
    %v2805 = vsel %vm1401, %v2802, %v2804
    %v2806 = vrot.slane %v2466, 3
    %v2807 = vsel %vm1401, %v2804, %v2806
    %v2808 = vrot.slane %v2468, 3
    %v2809 = vsel %vm1401, %v2806, %v2808
    %v2810 = vrot.slane %v2470, 3
    %v2811 = vsel %vm1401, %v2808, %v2810
    %v2812 = vrot.slane %v2472, 3
    %v2813 = vsel %vm1401, %v2810, %v2812
    %v2814 = vrot.slane %v2474, 3
    %v2815 = vsel %vm1401, %v2812, %v2814
    %v2816 = vrot.slane %v2476, 3
    %v2817 = vsel %vm1401, %v2814, %v2816
    %v2818 = vrot.slane %v2478, 3
    %v2819 = vsel %vm1401, %v2816, %v2818
    %v2820 = vrot.slane %v2480, 3
    %v2821 = vsel %vm1401, %v2818, %v2820
    %v2822 = vrot.slane %v2482, 3
    %v2823 = vsel %vm1401, %v2820, %v2822
    %v2824 = vrot.slane %v2484, 3
    %v2825 = vsel %vm1401, %v2822, %v2824
    %v2826 = vrot.slane %v2486, 3
    %v2827 = vsel %vm1401, %v2824, %v2826
    %v2828 = vrot.slane %v2488, 3
    %v2829 = vsel %vm1401, %v2826, %v2828
    %v2830 = vrot.slane %v2490, 3
    %v2831 = vsel %vm1401, %v2828, %v2830
    %v2832 = vrot.slane %v2492, 3
    %v2833 = vsel %vm1401, %v2830, %v2832
    %v2834 = vrot.slane %v2494, 3
    %v2835 = vsel %vm1401, %v2832, %v2834
    %v2836 = vrot.slane %v2496, 3
    %v2837 = vsel %vm1401, %v2834, %v2836
    %v2838 = vrot.slane %v2498, 3
    %v2839 = vsel %vm1401, %v2836, %v2838
    %v2840 = vrot.slane %v2500, 3
    %v2841 = vsel %vm1401, %v2838, %v2840
    %v2842 = vrot.slane %v2502, 3
    %v2843 = vsel %vm1401, %v2840, %v2842
    %v2844 = vrot.slane %v2504, 3
    %v2845 = vsel %vm1401, %v2842, %v2844
    %2846 = vrot.lane.b32.xlu0 %v2797, 48
    %v2847 = vpop.permute.xlu0 %2846
    %2848 = vrot.lane.b32.xlu0 %v2799, 48
    %v2849 = vpop.permute.xlu0 %2848
    %2850 = vrot.lane.b32.xlu0 %v2801, 48
    %v2851 = vpop.permute.xlu0 %2850
    %2852 = vrot.lane.b32.xlu0 %v2803, 48
    %v2853 = vpop.permute.xlu0 %2852
    %2854 = vrot.lane.b32.xlu0 %v2805, 48
    %v2855 = vpop.permute.xlu0 %2854
    %2856 = vrot.lane.b32.xlu0 %v2807, 48
    %v2857 = vpop.permute.xlu0 %2856
    %2858 = vrot.lane.b32.xlu0 %v2809, 48
    %v2859 = vpop.permute.xlu0 %2858
    %2860 = vrot.lane.b32.xlu0 %v2811, 48
    %v2861 = vpop.permute.xlu0 %2860
    %2862 = vrot.lane.b32.xlu0 %v2813, 48
    %v2863 = vpop.permute.xlu0 %2862
    %2864 = vrot.lane.b32.xlu0 %v2815, 48
    %v2865 = vpop.permute.xlu0 %2864
    %2866 = vrot.lane.b32.xlu0 %v2817, 48
    %v2867 = vpop.permute.xlu0 %2866
    %2868 = vrot.lane.b32.xlu0 %v2819, 48
    %v2869 = vpop.permute.xlu0 %2868
    %2870 = vrot.lane.b32.xlu0 %v2821, 48
    %v2871 = vpop.permute.xlu0 %2870
    %2872 = vrot.lane.b32.xlu0 %v2823, 48
    %v2873 = vpop.permute.xlu0 %2872
    %2874 = vrot.lane.b32.xlu0 %v2825, 48
    %v2875 = vpop.permute.xlu0 %2874
    %2876 = vrot.lane.b32.xlu0 %v2827, 48
    %v2877 = vpop.permute.xlu0 %2876
    %2878 = vrot.lane.b32.xlu0 %v2829, 48
    %v2879 = vpop.permute.xlu0 %2878
    %2880 = vrot.lane.b32.xlu0 %v2831, 48
    %v2881 = vpop.permute.xlu0 %2880
    %2882 = vrot.lane.b32.xlu0 %v2833, 48
    %v2883 = vpop.permute.xlu0 %2882
    %2884 = vrot.lane.b32.xlu0 %v2835, 48
    %v2885 = vpop.permute.xlu0 %2884
    %2886 = vrot.lane.b32.xlu0 %v2837, 48
    %v2887 = vpop.permute.xlu0 %2886
    %2888 = vrot.lane.b32.xlu0 %v2839, 48
    %v2889 = vpop.permute.xlu0 %2888
    %2890 = vrot.lane.b32.xlu0 %v2841, 48
    %v2891 = vpop.permute.xlu0 %2890
    %2892 = vrot.lane.b32.xlu0 %v2843, 48
    %v2893 = vpop.permute.xlu0 %2892
    %2894 = vrot.lane.b32.xlu0 %v2845, 48
    %v2895 = vpop.permute.xlu0 %2894
    %2896 = vrot.lane.b32.xlu0 %v2844, 48
    %v2897 = vpop.permute.xlu0 %2896
    %v2925 = vrot.slane %v2534, 4
    %v2926 = vrot.slane %v2456, 4
    %v2927 = vsel %vm1138, %v2925, %v2926
    %v2928 = vrot.slane %v2458, 4
    %v2929 = vsel %vm1138, %v2926, %v2928
    %v2930 = vrot.slane %v2460, 4
    %v2931 = vsel %vm1138, %v2928, %v2930
    %v2932 = vrot.slane %v2462, 4
    %v2933 = vsel %vm1138, %v2930, %v2932
    %v2934 = vrot.slane %v2464, 4
    %v2935 = vsel %vm1138, %v2932, %v2934
    %v2936 = vrot.slane %v2466, 4
    %v2937 = vsel %vm1138, %v2934, %v2936
    %v2938 = vrot.slane %v2468, 4
    %v2939 = vsel %vm1138, %v2936, %v2938
    %v2940 = vrot.slane %v2470, 4
    %v2941 = vsel %vm1138, %v2938, %v2940
    %v2942 = vrot.slane %v2472, 4
    %v2943 = vsel %vm1138, %v2940, %v2942
    %v2944 = vrot.slane %v2474, 4
    %v2945 = vsel %vm1138, %v2942, %v2944
    %v2946 = vrot.slane %v2476, 4
    %v2947 = vsel %vm1138, %v2944, %v2946
    %v2948 = vrot.slane %v2478, 4
    %v2949 = vsel %vm1138, %v2946, %v2948
    %v2950 = vrot.slane %v2480, 4
    %v2951 = vsel %vm1138, %v2948, %v2950
    %v2952 = vrot.slane %v2482, 4
    %v2953 = vsel %vm1138, %v2950, %v2952
    %v2954 = vrot.slane %v2484, 4
    %v2955 = vsel %vm1138, %v2952, %v2954
    %v2956 = vrot.slane %v2486, 4
    %v2957 = vsel %vm1138, %v2954, %v2956
    %v2958 = vrot.slane %v2488, 4
    %v2959 = vsel %vm1138, %v2956, %v2958
    %v2960 = vrot.slane %v2490, 4
    %v2961 = vsel %vm1138, %v2958, %v2960
    %v2962 = vrot.slane %v2492, 4
    %v2963 = vsel %vm1138, %v2960, %v2962
    %v2964 = vrot.slane %v2494, 4
    %v2965 = vsel %vm1138, %v2962, %v2964
    %v2966 = vrot.slane %v2496, 4
    %v2967 = vsel %vm1138, %v2964, %v2966
    %v2968 = vrot.slane %v2498, 4
    %v2969 = vsel %vm1138, %v2966, %v2968
    %v2970 = vrot.slane %v2500, 4
    %v2971 = vsel %vm1138, %v2968, %v2970
    %v2972 = vrot.slane %v2502, 4
    %v2973 = vsel %vm1138, %v2970, %v2972
    %v2974 = vrot.slane %v2504, 4
    %v2975 = vsel %vm1138, %v2972, %v2974
    %v2976 = vrot.slane %v2535, 4
    %v2977 = vsel %vm1138, %v2974, %v2976
    %2978 = vrot.lane.b32.xlu0 %v2927, 64
    %v2979 = vpop.permute.xlu0 %2978
    %2980 = vrot.lane.b32.xlu0 %v2929, 64
    %v2981 = vpop.permute.xlu0 %2980
    %2982 = vrot.lane.b32.xlu0 %v2931, 64
    %v2983 = vpop.permute.xlu0 %2982
    %2984 = vrot.lane.b32.xlu0 %v2933, 64
    %v2985 = vpop.permute.xlu0 %2984
    %2986 = vrot.lane.b32.xlu0 %v2935, 64
    %v2987 = vpop.permute.xlu0 %2986
    %2988 = vrot.lane.b32.xlu0 %v2937, 64
    %v2989 = vpop.permute.xlu0 %2988
    %2990 = vrot.lane.b32.xlu0 %v2939, 64
    %v2991 = vpop.permute.xlu0 %2990
    %2992 = vrot.lane.b32.xlu0 %v2941, 64
    %v2993 = vpop.permute.xlu0 %2992
    %2994 = vrot.lane.b32.xlu0 %v2943, 64
    %v2995 = vpop.permute.xlu0 %2994
    %2996 = vrot.lane.b32.xlu0 %v2945, 64
    %v2997 = vpop.permute.xlu0 %2996
    %2998 = vrot.lane.b32.xlu0 %v2947, 64
    %v2999 = vpop.permute.xlu0 %2998
    %3000 = vrot.lane.b32.xlu0 %v2949, 64
    %v3001 = vpop.permute.xlu0 %3000
    %3002 = vrot.lane.b32.xlu0 %v2951, 64
    %v3003 = vpop.permute.xlu0 %3002
    %3004 = vrot.lane.b32.xlu0 %v2953, 64
    %v3005 = vpop.permute.xlu0 %3004
    %3006 = vrot.lane.b32.xlu0 %v2955, 64
    %v3007 = vpop.permute.xlu0 %3006
    %3008 = vrot.lane.b32.xlu0 %v2957, 64
    %v3009 = vpop.permute.xlu0 %3008
    %3010 = vrot.lane.b32.xlu0 %v2959, 64
    %v3011 = vpop.permute.xlu0 %3010
    %3012 = vrot.lane.b32.xlu0 %v2961, 64
    %v3013 = vpop.permute.xlu0 %3012
    %3014 = vrot.lane.b32.xlu0 %v2963, 64
    %v3015 = vpop.permute.xlu0 %3014
    %3016 = vrot.lane.b32.xlu0 %v2965, 64
    %v3017 = vpop.permute.xlu0 %3016
    %3018 = vrot.lane.b32.xlu0 %v2967, 64
    %v3019 = vpop.permute.xlu0 %3018
    %3020 = vrot.lane.b32.xlu0 %v2969, 64
    %v3021 = vpop.permute.xlu0 %3020
    %3022 = vrot.lane.b32.xlu0 %v2971, 64
    %v3023 = vpop.permute.xlu0 %3022
    %3024 = vrot.lane.b32.xlu0 %v2973, 64
    %v3025 = vpop.permute.xlu0 %3024
    %3026 = vrot.lane.b32.xlu0 %v2975, 64
    %v3027 = vpop.permute.xlu0 %3026
    %3028 = vrot.lane.b32.xlu0 %v2977, 64
    %v3029 = vpop.permute.xlu0 %3028
    %v3056 = vrot.slane %v2534, 5
    %v3057 = vrot.slane %v2456, 5
    %v3058 = vsel %vm1056, %v3056, %v3057
    %v3059 = vrot.slane %v2458, 5
    %v3060 = vsel %vm1056, %v3057, %v3059
    %v3061 = vrot.slane %v2460, 5
    %v3062 = vsel %vm1056, %v3059, %v3061
    %v3063 = vrot.slane %v2462, 5
    %v3064 = vsel %vm1056, %v3061, %v3063
    %v3065 = vrot.slane %v2464, 5
    %v3066 = vsel %vm1056, %v3063, %v3065
    %v3067 = vrot.slane %v2466, 5
    %v3068 = vsel %vm1056, %v3065, %v3067
    %v3069 = vrot.slane %v2468, 5
    %v3070 = vsel %vm1056, %v3067, %v3069
    %v3071 = vrot.slane %v2470, 5
    %v3072 = vsel %vm1056, %v3069, %v3071
    %v3073 = vrot.slane %v2472, 5
    %v3074 = vsel %vm1056, %v3071, %v3073
    %v3075 = vrot.slane %v2474, 5
    %v3076 = vsel %vm1056, %v3073, %v3075
    %v3077 = vrot.slane %v2476, 5
    %v3078 = vsel %vm1056, %v3075, %v3077
    %v3079 = vrot.slane %v2478, 5
    %v3080 = vsel %vm1056, %v3077, %v3079
    %v3081 = vrot.slane %v2480, 5
    %v3082 = vsel %vm1056, %v3079, %v3081
    %v3083 = vrot.slane %v2482, 5
    %v3084 = vsel %vm1056, %v3081, %v3083
    %v3085 = vrot.slane %v2484, 5
    %v3086 = vsel %vm1056, %v3083, %v3085
    %v3087 = vrot.slane %v2486, 5
    %v3088 = vsel %vm1056, %v3085, %v3087
    %v3089 = vrot.slane %v2488, 5
    %v3090 = vsel %vm1056, %v3087, %v3089
    %v3091 = vrot.slane %v2490, 5
    %v3092 = vsel %vm1056, %v3089, %v3091
    %v3093 = vrot.slane %v2492, 5
    %v3094 = vsel %vm1056, %v3091, %v3093
    %v3095 = vrot.slane %v2494, 5
    %v3096 = vsel %vm1056, %v3093, %v3095
    %v3097 = vrot.slane %v2496, 5
    %v3098 = vsel %vm1056, %v3095, %v3097
    %v3099 = vrot.slane %v2498, 5
    %v3100 = vsel %vm1056, %v3097, %v3099
    %v3101 = vrot.slane %v2500, 5
    %v3102 = vsel %vm1056, %v3099, %v3101
    %v3103 = vrot.slane %v2502, 5
    %v3104 = vsel %vm1056, %v3101, %v3103
    %v3105 = vrot.slane %v2504, 5
    %v3106 = vsel %vm1056, %v3103, %v3105
    %v3107 = vrot.slane %v2535, 5
    %v3108 = vsel %vm1056, %v3105, %v3107
    %3109 = vrot.lane.b32.xlu0 %v3058, 80
    %v3110 = vpop.permute.xlu0 %3109
    %3111 = vrot.lane.b32.xlu0 %v3060, 80
    %v3112 = vpop.permute.xlu0 %3111
    %3113 = vrot.lane.b32.xlu0 %v3062, 80
    %v3114 = vpop.permute.xlu0 %3113
    %3115 = vrot.lane.b32.xlu0 %v3064, 80
    %v3116 = vpop.permute.xlu0 %3115
    %3117 = vrot.lane.b32.xlu0 %v3066, 80
    %v3118 = vpop.permute.xlu0 %3117
    %3119 = vrot.lane.b32.xlu0 %v3068, 80
    %v3120 = vpop.permute.xlu0 %3119
    %3121 = vrot.lane.b32.xlu0 %v3070, 80
    %v3122 = vpop.permute.xlu0 %3121
    %3123 = vrot.lane.b32.xlu0 %v3072, 80
    %v3124 = vpop.permute.xlu0 %3123
    %3125 = vrot.lane.b32.xlu0 %v3074, 80
    %v3126 = vpop.permute.xlu0 %3125
    %3127 = vrot.lane.b32.xlu0 %v3076, 80
    %v3128 = vpop.permute.xlu0 %3127
    %3129 = vrot.lane.b32.xlu0 %v3078, 80
    %v3130 = vpop.permute.xlu0 %3129
    %3131 = vrot.lane.b32.xlu0 %v3080, 80
    %v3132 = vpop.permute.xlu0 %3131
    %3133 = vrot.lane.b32.xlu0 %v3082, 80
    %v3134 = vpop.permute.xlu0 %3133
    %3135 = vrot.lane.b32.xlu0 %v3084, 80
    %v3136 = vpop.permute.xlu0 %3135
    %3137 = vrot.lane.b32.xlu0 %v3086, 80
    %v3138 = vpop.permute.xlu0 %3137
    %3139 = vrot.lane.b32.xlu0 %v3088, 80
    %v3140 = vpop.permute.xlu0 %3139
    %3141 = vrot.lane.b32.xlu0 %v3090, 80
    %v3142 = vpop.permute.xlu0 %3141
    %3143 = vrot.lane.b32.xlu0 %v3092, 80
    %v3144 = vpop.permute.xlu0 %3143
    %3145 = vrot.lane.b32.xlu0 %v3094, 80
    %v3146 = vpop.permute.xlu0 %3145
    %3147 = vrot.lane.b32.xlu0 %v3096, 80
    %v3148 = vpop.permute.xlu0 %3147
    %3149 = vrot.lane.b32.xlu0 %v3098, 80
    %v3150 = vpop.permute.xlu0 %3149
    %3151 = vrot.lane.b32.xlu0 %v3100, 80
    %v3152 = vpop.permute.xlu0 %3151
    %3153 = vrot.lane.b32.xlu0 %v3102, 80
    %v3154 = vpop.permute.xlu0 %3153
    %3155 = vrot.lane.b32.xlu0 %v3104, 80
    %v3156 = vpop.permute.xlu0 %3155
    %3157 = vrot.lane.b32.xlu0 %v3106, 80
    %v3158 = vpop.permute.xlu0 %3157
    %3159 = vrot.lane.b32.xlu0 %v3108, 80
    %v3160 = vpop.permute.xlu0 %3159
    %v3187 = vrot.slane %v2534, 6
    %v3188 = vrot.slane %v2456, 6
    %v3189 = vsel %vm361, %v3187, %v3188
    %v3190 = vrot.slane %v2458, 6
    %v3191 = vsel %vm361, %v3188, %v3190
    %v3192 = vrot.slane %v2460, 6
    %v3193 = vsel %vm361, %v3190, %v3192
    %v3194 = vrot.slane %v2462, 6
    %v3195 = vsel %vm361, %v3192, %v3194
    %v3196 = vrot.slane %v2464, 6
    %v3197 = vsel %vm361, %v3194, %v3196
    %v3198 = vrot.slane %v2466, 6
    %v3199 = vsel %vm361, %v3196, %v3198
    %v3200 = vrot.slane %v2468, 6
    %v3201 = vsel %vm361, %v3198, %v3200
    %v3202 = vrot.slane %v2470, 6
    %v3203 = vsel %vm361, %v3200, %v3202
    %v3204 = vrot.slane %v2472, 6
    %v3205 = vsel %vm361, %v3202, %v3204
    %v3206 = vrot.slane %v2474, 6
    %v3207 = vsel %vm361, %v3204, %v3206
    %v3208 = vrot.slane %v2476, 6
    %v3209 = vsel %vm361, %v3206, %v3208
    %v3210 = vrot.slane %v2478, 6
    %v3211 = vsel %vm361, %v3208, %v3210
    %v3212 = vrot.slane %v2480, 6
    %v3213 = vsel %vm361, %v3210, %v3212
    %v3214 = vrot.slane %v2482, 6
    %v3215 = vsel %vm361, %v3212, %v3214
    %v3216 = vrot.slane %v2484, 6
    %v3217 = vsel %vm361, %v3214, %v3216
    %v3218 = vrot.slane %v2486, 6
    %v3219 = vsel %vm361, %v3216, %v3218
    %v3220 = vrot.slane %v2488, 6
    %v3221 = vsel %vm361, %v3218, %v3220
    %v3222 = vrot.slane %v2490, 6
    %v3223 = vsel %vm361, %v3220, %v3222
    %v3224 = vrot.slane %v2492, 6
    %v3225 = vsel %vm361, %v3222, %v3224
    %v3226 = vrot.slane %v2494, 6
    %v3227 = vsel %vm361, %v3224, %v3226
    %v3228 = vrot.slane %v2496, 6
    %v3229 = vsel %vm361, %v3226, %v3228
    %v3230 = vrot.slane %v2498, 6
    %v3231 = vsel %vm361, %v3228, %v3230
    %v3232 = vrot.slane %v2500, 6
    %v3233 = vsel %vm361, %v3230, %v3232
    %v3234 = vrot.slane %v2502, 6
    %v3235 = vsel %vm361, %v3232, %v3234
    %v3236 = vrot.slane %v2504, 6
    %v3237 = vsel %vm361, %v3234, %v3236
    %v3238 = vrot.slane %v2535, 6
    %v3239 = vsel %vm361, %v3236, %v3238
    %3240 = vrot.lane.b32.xlu0 %v3189, 96
    %v3241 = vpop.permute.xlu0 %3240
    %3242 = vrot.lane.b32.xlu0 %v3191, 96
    %v3243 = vpop.permute.xlu0 %3242
    %3244 = vrot.lane.b32.xlu0 %v3193, 96
    %v3245 = vpop.permute.xlu0 %3244
    %3246 = vrot.lane.b32.xlu0 %v3195, 96
    %v3247 = vpop.permute.xlu0 %3246
    %3248 = vrot.lane.b32.xlu0 %v3197, 96
    %v3249 = vpop.permute.xlu0 %3248
    %3250 = vrot.lane.b32.xlu0 %v3199, 96
    %v3251 = vpop.permute.xlu0 %3250
    %3252 = vrot.lane.b32.xlu0 %v3201, 96
    %v3253 = vpop.permute.xlu0 %3252
    %3254 = vrot.lane.b32.xlu0 %v3203, 96
    %v3255 = vpop.permute.xlu0 %3254
    %3256 = vrot.lane.b32.xlu0 %v3205, 96
    %v3257 = vpop.permute.xlu0 %3256
    %3258 = vrot.lane.b32.xlu0 %v3207, 96
    %v3259 = vpop.permute.xlu0 %3258
    %3260 = vrot.lane.b32.xlu0 %v3209, 96
    %v3261 = vpop.permute.xlu0 %3260
    %3262 = vrot.lane.b32.xlu0 %v3211, 96
    %v3263 = vpop.permute.xlu0 %3262
    %3264 = vrot.lane.b32.xlu0 %v3213, 96
    %v3265 = vpop.permute.xlu0 %3264
    %3266 = vrot.lane.b32.xlu0 %v3215, 96
    %v3267 = vpop.permute.xlu0 %3266
    %3268 = vrot.lane.b32.xlu0 %v3217, 96
    %v3269 = vpop.permute.xlu0 %3268
    %3270 = vrot.lane.b32.xlu0 %v3219, 96
    %v3271 = vpop.permute.xlu0 %3270
    %3272 = vrot.lane.b32.xlu0 %v3221, 96
    %v3273 = vpop.permute.xlu0 %3272
    %3274 = vrot.lane.b32.xlu0 %v3223, 96
    %v3275 = vpop.permute.xlu0 %3274
    %3276 = vrot.lane.b32.xlu0 %v3225, 96
    %v3277 = vpop.permute.xlu0 %3276
    %3278 = vrot.lane.b32.xlu0 %v3227, 96
    %v3279 = vpop.permute.xlu0 %3278
    %3280 = vrot.lane.b32.xlu0 %v3229, 96
    %v3281 = vpop.permute.xlu0 %3280
    %3282 = vrot.lane.b32.xlu0 %v3231, 96
    %v3283 = vpop.permute.xlu0 %3282
    %3284 = vrot.lane.b32.xlu0 %v3233, 96
    %v3285 = vpop.permute.xlu0 %3284
    %3286 = vrot.lane.b32.xlu0 %v3235, 96
    %v3287 = vpop.permute.xlu0 %3286
    %3288 = vrot.lane.b32.xlu0 %v3237, 96
    %v3289 = vpop.permute.xlu0 %3288
    %3290 = vrot.lane.b32.xlu0 %v3239, 96
    %v3291 = vpop.permute.xlu0 %3290
    %v3318 = vrot.slane %v2534, 7
    %v3319 = vrot.slane %v2456, 7
    %v3320 = vsel %vm1925, %v3318, %v3319
    %v3321 = vrot.slane %v2458, 7
    %v3322 = vsel %vm1925, %v3319, %v3321
    %v3323 = vrot.slane %v2460, 7
    %v3324 = vsel %vm1925, %v3321, %v3323
    %v3325 = vrot.slane %v2462, 7
    %v3326 = vsel %vm1925, %v3323, %v3325
    %v3327 = vrot.slane %v2464, 7
    %v3328 = vsel %vm1925, %v3325, %v3327
    %v3329 = vrot.slane %v2466, 7
    %v3330 = vsel %vm1925, %v3327, %v3329
    %v3331 = vrot.slane %v2468, 7
    %v3332 = vsel %vm1925, %v3329, %v3331
    %v3333 = vrot.slane %v2470, 7
    %v3334 = vsel %vm1925, %v3331, %v3333
    %v3335 = vrot.slane %v2472, 7
    %v3336 = vsel %vm1925, %v3333, %v3335
    %v3337 = vrot.slane %v2474, 7
    %v3338 = vsel %vm1925, %v3335, %v3337
    %v3339 = vrot.slane %v2476, 7
    %v3340 = vsel %vm1925, %v3337, %v3339
    %v3341 = vrot.slane %v2478, 7
    %v3342 = vsel %vm1925, %v3339, %v3341
    %v3343 = vrot.slane %v2480, 7
    %v3344 = vsel %vm1925, %v3341, %v3343
    %v3345 = vrot.slane %v2482, 7
    %v3346 = vsel %vm1925, %v3343, %v3345
    %v3347 = vrot.slane %v2484, 7
    %v3348 = vsel %vm1925, %v3345, %v3347
    %v3349 = vrot.slane %v2486, 7
    %v3350 = vsel %vm1925, %v3347, %v3349
    %v3351 = vrot.slane %v2488, 7
    %v3352 = vsel %vm1925, %v3349, %v3351
    %v3353 = vrot.slane %v2490, 7
    %v3354 = vsel %vm1925, %v3351, %v3353
    %v3355 = vrot.slane %v2492, 7
    %v3356 = vsel %vm1925, %v3353, %v3355
    %v3357 = vrot.slane %v2494, 7
    %v3358 = vsel %vm1925, %v3355, %v3357
    %v3359 = vrot.slane %v2496, 7
    %v3360 = vsel %vm1925, %v3357, %v3359
    %v3361 = vrot.slane %v2498, 7
    %v3362 = vsel %vm1925, %v3359, %v3361
    %v3363 = vrot.slane %v2500, 7
    %v3364 = vsel %vm1925, %v3361, %v3363
    %v3365 = vrot.slane %v2502, 7
    %v3366 = vsel %vm1925, %v3363, %v3365
    %v3367 = vrot.slane %v2504, 7
    %v3368 = vsel %vm1925, %v3365, %v3367
    %v3369 = vrot.slane %v2535, 7
    %v3370 = vsel %vm1925, %v3367, %v3369
    %3371 = vrot.lane.b32.xlu0 %v3320, 112
    %v3372 = vpop.permute.xlu0 %3371
    %3373 = vrot.lane.b32.xlu0 %v3322, 112
    %v3374 = vpop.permute.xlu0 %3373
    %3375 = vrot.lane.b32.xlu0 %v3324, 112
    %v3376 = vpop.permute.xlu0 %3375
    %3377 = vrot.lane.b32.xlu0 %v3326, 112
    %v3378 = vpop.permute.xlu0 %3377
    %3379 = vrot.lane.b32.xlu0 %v3328, 112
    %v3380 = vpop.permute.xlu0 %3379
    %3381 = vrot.lane.b32.xlu0 %v3330, 112
    %v3382 = vpop.permute.xlu0 %3381
    %3383 = vrot.lane.b32.xlu0 %v3332, 112
    %v3384 = vpop.permute.xlu0 %3383
    %3385 = vrot.lane.b32.xlu0 %v3334, 112
    %v3386 = vpop.permute.xlu0 %3385
    %3387 = vrot.lane.b32.xlu0 %v3336, 112
    %v3388 = vpop.permute.xlu0 %3387
    %3389 = vrot.lane.b32.xlu0 %v3338, 112
    %v3390 = vpop.permute.xlu0 %3389
    %3391 = vrot.lane.b32.xlu0 %v3340, 112
    %v3392 = vpop.permute.xlu0 %3391
    %3393 = vrot.lane.b32.xlu0 %v3342, 112
    %v3394 = vpop.permute.xlu0 %3393
    %3395 = vrot.lane.b32.xlu0 %v3344, 112
    %v3396 = vpop.permute.xlu0 %3395
    %3397 = vrot.lane.b32.xlu0 %v3346, 112
    %v3398 = vpop.permute.xlu0 %3397
    %3399 = vrot.lane.b32.xlu0 %v3348, 112
    %v3400 = vpop.permute.xlu0 %3399
    %3401 = vrot.lane.b32.xlu0 %v3350, 112
    %v3402 = vpop.permute.xlu0 %3401
    %3403 = vrot.lane.b32.xlu0 %v3352, 112
    %v3404 = vpop.permute.xlu0 %3403
    %3405 = vrot.lane.b32.xlu0 %v3354, 112
    %v3406 = vpop.permute.xlu0 %3405
    %3407 = vrot.lane.b32.xlu0 %v3356, 112
    %v3408 = vpop.permute.xlu0 %3407
    %3409 = vrot.lane.b32.xlu0 %v3358, 112
    %v3410 = vpop.permute.xlu0 %3409
    %3411 = vrot.lane.b32.xlu0 %v3360, 112
    %v3412 = vpop.permute.xlu0 %3411
    %3413 = vrot.lane.b32.xlu0 %v3362, 112
    %v3414 = vpop.permute.xlu0 %3413
    %3415 = vrot.lane.b32.xlu0 %v3364, 112
    %v3416 = vpop.permute.xlu0 %3415
    %3417 = vrot.lane.b32.xlu0 %v3366, 112
    %v3418 = vpop.permute.xlu0 %3417
    %3419 = vrot.lane.b32.xlu0 %v3368, 112
    %v3420 = vpop.permute.xlu0 %3419
    %3421 = vrot.lane.b32.xlu0 %v3370, 112
    %v3422 = vpop.permute.xlu0 %3421
    %v3449 = vrot.slane %v2535, 1
    %v3450 = vsel %vm1141, %v2586, %v3449
    %3451 = vrot.lane.b32.xlu0 %v3450, 16
    %v3452 = vpop.permute.xlu0 %3451
    %3453 = vrot.lane.b32.xlu0 %v3449, 16
    %v3454 = vpop.permute.xlu0 %3453
    %v3457 = vsel %vm613, %v2534, %v2589
    %v3458 = vsel %vm613, %v2456, %v2591
    %v3459 = vsel %vm613, %v2458, %v2593
    %v3460 = vsel %vm613, %v2460, %v2595
    %v3461 = vsel %vm613, %v2462, %v2597
    %v3462 = vsel %vm613, %v2464, %v2599
    %v3463 = vsel %vm613, %v2466, %v2601
    %v3464 = vsel %vm613, %v2468, %v2603
    %v3465 = vsel %vm613, %v2470, %v2605
    %v3466 = vsel %vm613, %v2472, %v2607
    %v3467 = vsel %vm613, %v2474, %v2609
    %v3468 = vsel %vm613, %v2476, %v2611
    %v3469 = vsel %vm613, %v2478, %v2613
    %v3470 = vsel %vm613, %v2480, %v2615
    %v3471 = vsel %vm613, %v2482, %v2617
    %v3472 = vsel %vm613, %v2484, %v2619
    %v3473 = vsel %vm613, %v2486, %v2621
    %v3474 = vsel %vm613, %v2488, %v2623
    %v3475 = vsel %vm613, %v2490, %v2625
    %v3476 = vsel %vm613, %v2492, %v2627
    %v3477 = vsel %vm613, %v2494, %v2629
    %v3478 = vsel %vm613, %v2496, %v2631
    %v3479 = vsel %vm613, %v2498, %v2633
    %v3480 = vsel %vm613, %v2500, %v2635
    %v3481 = vsel %vm613, %v2502, %v2637
    %v3482 = vsel %vm613, %v2504, %v2639
    %v3483 = vsel %vm2091, %v3457, %v2718
    %v3484 = vsel %vm2091, %v3458, %v2720
    %v3485 = vsel %vm2091, %v3459, %v2722
    %v3486 = vsel %vm2091, %v3460, %v2724
    %v3487 = vsel %vm2091, %v3461, %v2726
    %v3488 = vsel %vm2091, %v3462, %v2728
    %v3489 = vsel %vm2091, %v3463, %v2730
    %v3490 = vsel %vm2091, %v3464, %v2732
    %v3491 = vsel %vm2091, %v3465, %v2734
    %v3492 = vsel %vm2091, %v3466, %v2736
    %v3493 = vsel %vm2091, %v3467, %v2738
    %v3494 = vsel %vm2091, %v3468, %v2740
    %v3495 = vsel %vm2091, %v3469, %v2742
    %v3496 = vsel %vm2091, %v3470, %v2744
    %v3497 = vsel %vm2091, %v3471, %v2746
    %v3498 = vsel %vm2091, %v3472, %v2748
    %v3499 = vsel %vm2091, %v3473, %v2750
    %v3500 = vsel %vm2091, %v3474, %v2752
    %v3501 = vsel %vm2091, %v3475, %v2754
    %v3502 = vsel %vm2091, %v3476, %v2756
    %v3503 = vsel %vm2091, %v3477, %v2758
    %v3504 = vsel %vm2091, %v3478, %v2760
    %v3505 = vsel %vm2091, %v3479, %v2762
    %v3506 = vsel %vm2091, %v3480, %v2764
    %v3507 = vsel %vm2091, %v3481, %v2766
    %v3508 = vsel %vm2091, %v3482, %v2768
    %v3509 = vsel %vm2118, %v3483, %v2847
    %v3510 = vsel %vm2118, %v3484, %v2849
    %v3511 = vsel %vm2118, %v3485, %v2851
    %v3512 = vsel %vm2118, %v3486, %v2853
    %v3513 = vsel %vm2118, %v3487, %v2855
    %v3514 = vsel %vm2118, %v3488, %v2857
    %v3515 = vsel %vm2118, %v3489, %v2859
    %v3516 = vsel %vm2118, %v3490, %v2861
    %v3517 = vsel %vm2118, %v3491, %v2863
    %v3518 = vsel %vm2118, %v3492, %v2865
    %v3519 = vsel %vm2118, %v3493, %v2867
    %v3520 = vsel %vm2118, %v3494, %v2869
    %v3521 = vsel %vm2118, %v3495, %v2871
    %v3522 = vsel %vm2118, %v3496, %v2873
    %v3523 = vsel %vm2118, %v3497, %v2875
    %v3524 = vsel %vm2118, %v3498, %v2877
    %v3525 = vsel %vm2118, %v3499, %v2879
    %v3526 = vsel %vm2118, %v3500, %v2881
    %v3527 = vsel %vm2118, %v3501, %v2883
    %v3528 = vsel %vm2118, %v3502, %v2885
    %v3529 = vsel %vm2118, %v3503, %v2887
    %v3530 = vsel %vm2118, %v3504, %v2889
    %v3531 = vsel %vm2118, %v3505, %v2891
    %v3532 = vsel %vm2118, %v3506, %v2893
    %v3533 = vsel %vm2118, %v3507, %v2895
    %v3534 = vsel %vm2118, %v3508, %v2897
    %v3535 = vsel %vm2145, %v3509, %v2979
    %v3536 = vsel %vm2145, %v3510, %v2981
    %v3537 = vsel %vm2145, %v3511, %v2983
    %v3538 = vsel %vm2145, %v3512, %v2985
    %v3539 = vsel %vm2145, %v3513, %v2987
    %v3540 = vsel %vm2145, %v3514, %v2989
    %v3541 = vsel %vm2145, %v3515, %v2991
    %v3542 = vsel %vm2145, %v3516, %v2993
    %v3543 = vsel %vm2145, %v3517, %v2995
    %v3544 = vsel %vm2145, %v3518, %v2997
    %v3545 = vsel %vm2145, %v3519, %v2999
    %v3546 = vsel %vm2145, %v3520, %v3001
    %v3547 = vsel %vm2145, %v3521, %v3003
    %v3548 = vsel %vm2145, %v3522, %v3005
    %v3549 = vsel %vm2145, %v3523, %v3007
    %v3550 = vsel %vm2145, %v3524, %v3009
    %v3551 = vsel %vm2145, %v3525, %v3011
    %v3552 = vsel %vm2145, %v3526, %v3013
    %v3553 = vsel %vm2145, %v3527, %v3015
    %v3554 = vsel %vm2145, %v3528, %v3017
    %v3555 = vsel %vm2145, %v3529, %v3019
    %v3556 = vsel %vm2145, %v3530, %v3021
    %v3557 = vsel %vm2145, %v3531, %v3023
    %v3558 = vsel %vm2145, %v3532, %v3025
    %v3559 = vsel %vm2145, %v3533, %v3027
    %v3560 = vsel %vm2145, %v3534, %v3029
    %v3561 = vsel %vm2172, %v3535, %v3110
    %v3562 = vsel %vm2172, %v3536, %v3112
    %v3563 = vsel %vm2172, %v3537, %v3114
    %v3564 = vsel %vm2172, %v3538, %v3116
    %v3565 = vsel %vm2172, %v3539, %v3118
    %v3566 = vsel %vm2172, %v3540, %v3120
    %v3567 = vsel %vm2172, %v3541, %v3122
    %v3568 = vsel %vm2172, %v3542, %v3124
    %v3569 = vsel %vm2172, %v3543, %v3126
    %v3570 = vsel %vm2172, %v3544, %v3128
    %v3571 = vsel %vm2172, %v3545, %v3130
    %v3572 = vsel %vm2172, %v3546, %v3132
    %v3573 = vsel %vm2172, %v3547, %v3134
    %v3574 = vsel %vm2172, %v3548, %v3136
    %v3575 = vsel %vm2172, %v3549, %v3138
    %v3576 = vsel %vm2172, %v3550, %v3140
    %v3577 = vsel %vm2172, %v3551, %v3142
    %v3578 = vsel %vm2172, %v3552, %v3144
    %v3579 = vsel %vm2172, %v3553, %v3146
    %v3580 = vsel %vm2172, %v3554, %v3148
    %v3581 = vsel %vm2172, %v3555, %v3150
    %v3582 = vsel %vm2172, %v3556, %v3152
    %v3583 = vsel %vm2172, %v3557, %v3154
    %v3584 = vsel %vm2172, %v3558, %v3156
    %v3585 = vsel %vm2172, %v3559, %v3158
    %v3586 = vsel %vm2172, %v3560, %v3160
    %v3587 = vsel %vm2199, %v3561, %v3241
    %v3588 = vsel %vm2199, %v3562, %v3243
    %v3589 = vsel %vm2199, %v3563, %v3245
    %v3590 = vsel %vm2199, %v3564, %v3247
    %v3591 = vsel %vm2199, %v3565, %v3249
    %v3592 = vsel %vm2199, %v3566, %v3251
    %v3593 = vsel %vm2199, %v3567, %v3253
    %v3594 = vsel %vm2199, %v3568, %v3255
    %v3595 = vsel %vm2199, %v3569, %v3257
    %v3596 = vsel %vm2199, %v3570, %v3259
    %v3597 = vsel %vm2199, %v3571, %v3261
    %v3598 = vsel %vm2199, %v3572, %v3263
    %v3599 = vsel %vm2199, %v3573, %v3265
    %v3600 = vsel %vm2199, %v3574, %v3267
    %v3601 = vsel %vm2199, %v3575, %v3269
    %v3602 = vsel %vm2199, %v3576, %v3271
    %v3603 = vsel %vm2199, %v3577, %v3273
    %v3604 = vsel %vm2199, %v3578, %v3275
    %v3605 = vsel %vm2199, %v3579, %v3277
    %v3606 = vsel %vm2199, %v3580, %v3279
    %v3607 = vsel %vm2199, %v3581, %v3281
    %v3608 = vsel %vm2199, %v3582, %v3283
    %v3609 = vsel %vm2199, %v3583, %v3285
    %v3610 = vsel %vm2199, %v3584, %v3287
    %v3611 = vsel %vm2199, %v3585, %v3289
    %v3612 = vsel %vm2199, %v3586, %v3291
    %v3613 = vsel %vm2226, %v3587, %v3372
    %v3614 = vsel %vm2226, %v3588, %v3374
    %v3615 = vsel %vm2226, %v3589, %v3376
    %v3616 = vsel %vm2226, %v3590, %v3378
    %v3617 = vsel %vm2226, %v3591, %v3380
    %v3618 = vsel %vm2226, %v3592, %v3382
    %v3619 = vsel %vm2226, %v3593, %v3384
    %v3620 = vsel %vm2226, %v3594, %v3386
    %v3621 = vsel %vm2226, %v3595, %v3388
    %v3622 = vsel %vm2226, %v3596, %v3390
    %v3623 = vsel %vm2226, %v3597, %v3392
    %v3624 = vsel %vm2226, %v3598, %v3394
    %v3625 = vsel %vm2226, %v3599, %v3396
    %v3626 = vsel %vm2226, %v3600, %v3398
    %v3627 = vsel %vm2226, %v3601, %v3400
    %v3628 = vsel %vm2226, %v3602, %v3402
    %v3629 = vsel %vm2226, %v3603, %v3404
    %v3630 = vsel %vm2226, %v3604, %v3406
    %v3631 = vsel %vm2226, %v3605, %v3408
    %v3632 = vsel %vm2226, %v3606, %v3410
    %v3633 = vsel %vm2226, %v3607, %v3412
    %v3634 = vsel %vm2226, %v3608, %v3414
    %v3635 = vsel %vm2226, %v3609, %v3416
    %v3636 = vsel %vm2226, %v3610, %v3418
    %v3637 = vsel %vm2226, %v3611, %v3420
    %v3638 = vsel %vm2226, %v3612, %v3422
    %v3639 = vsel %vm613, %v2504, %v3452
    %v3640 = vsel %vm613, %v2535, %v3454
    %v3641 = vpack.c.bf16 %v3614, %v3613
    %v3642 = vpack.c.bf16 %v3459, %v3458
    %v3643 = vpack.c.bf16 %v3616, %v3615
    %v3644 = vpack.c.bf16 %v3461, %v3460
    %v3645 = vpack.c.bf16 %v3618, %v3617
    %v3646 = vpack.c.bf16 %v3463, %v3462
    %v3647 = vpack.c.bf16 %v3620, %v3619
    %v3648 = vpack.c.bf16 %v3465, %v3464
    %v3649 = vpack.c.bf16 %v3622, %v3621
    %v3650 = vpack.c.bf16 %v3467, %v3466
    %v3651 = vpack.c.bf16 %v3624, %v3623
    %v3652 = vpack.c.bf16 %v3469, %v3468
    %v3653 = vpack.c.bf16 %v3626, %v3625
    %v3654 = vpack.c.bf16 %v3471, %v3470
    %v3655 = vpack.c.bf16 %v3628, %v3627
    %v3656 = vpack.c.bf16 %v3473, %v3472
    %v3657 = vpack.c.bf16 %v3630, %v3629
    %v3658 = vpack.c.bf16 %v3475, %v3474
    %v3659 = vpack.c.bf16 %v3632, %v3631
    %v3660 = vpack.c.bf16 %v3477, %v3476
    %v3661 = vpack.c.bf16 %v3634, %v3633
    %v3662 = vpack.c.bf16 %v3479, %v3478
    %v3663 = vpack.c.bf16 %v3636, %v3635
    %v3664 = vpack.c.bf16 %v3481, %v3480
    %v3665 = vpack.c.bf16 %v3638, %v3637
    %v3666 = vpack.c.bf16 %v3640, %v3639
    %v3668 = vand.u32 %v3665, %v2340
    %v3671 = vand.u32 %v3666, %v2340
    %3673 = vmatprep.subr.bf16.mxu0 %v3642
    %3674 = vmatpush1.bf16.msra.mxu0 %v3641
    %3675 = vmatprep.subr.bf16.mxu0 %v3644
    %3676 = vmatpush1.bf16.msra.mxu0 %v3643
    %3677 = vmatprep.subr.bf16.mxu0 %v3646
    %3678 = vmatpush1.bf16.msra.mxu0 %v3645
    %3679 = vmatprep.subr.bf16.mxu0 %v3648
    %3680 = vmatpush1.bf16.msra.mxu0 %v3647
    %3681 = vmatprep.subr.bf16.mxu0 %v3650
    %3682 = vmatpush1.bf16.msra.mxu0 %v3649
    %3683 = vmatprep.subr.bf16.mxu0 %v3652
    %3684 = vmatpush1.bf16.msra.mxu0 %v3651
    %3685 = vmatprep.subr.bf16.mxu0 %v3654
    %3686 = vmatpush1.bf16.msra.mxu0 %v3653
    %3687 = vmatprep.subr.bf16.mxu0 %v3656
    %3688 = vmatpush1.bf16.msra.mxu0 %v3655
    %3689 = vmatprep.subr.bf16.mxu0 %v3658
    %3690 = vmatpush1.bf16.msra.mxu0 %v3657
    %3691 = vmatprep.subr.bf16.mxu0 %v3660
    %3692 = vmatpush1.bf16.msra.mxu0 %v3659
    %3693 = vmatprep.subr.bf16.mxu0 %v3662
    %3694 = vmatpush1.bf16.msra.mxu0 %v3661
    %3695 = vmatprep.subr.bf16.mxu0 %v3664
    %3696 = vmatpush1.bf16.msra.mxu0 %v3663
    %3697 = vmatprep.subr.bf16.mxu0 %v3671
    %3698 = vmatpush1.bf16.msra.mxu0 %v3668
    %3699 = vmatprep.subr.bf16.mxu0 0
    %3700 = vmatpush1.bf16.msra.mxu0 0
    %3701 = vmatprep.subr.bf16.mxu0 0
    %3702 = vmatpush1.bf16.msra.mxu0 0
    %3703 = vmatprep.subr.bf16.mxu0 0
    %3704 = vmatpush1.bf16.msra.mxu0 0
    %3705 = vmatprep.mubr.bf16.mxu0 %v2325
    %3706 = vmatmul.mubr.bf16.gmra.mrb[0].mxu0 %v2308
    %v3707 = vpop.f32.mrb[0].mxu0
    %v3708 = vadd.f32 0.0, %v3707
    %v3709 = vpop.f32.mrb[0].mxu0
    %v3710 = vadd.f32 0.0, %v3709
    %v3711 = vpop.f32.mrb[0].mxu0
    %v3712 = vadd.f32 0.0, %v3711
    %v3713 = vpop.f32.mrb[0].mxu0
    %v3714 = vadd.f32 0.0, %v3713
    %3715 = vmatprep.mubr.bf16.mxu0 %v2328
    %3716 = vmatmul.mubr.bf16.gmra.mrb[0].mxu0 %v2310
    %v3717 = vpop.f32.mrb[0].mxu0
    %v3718 = vadd.f32 0.0, %v3717
    %v3719 = vpop.f32.mrb[0].mxu0
    %v3720 = vadd.f32 0.0, %v3719
    %v3721 = vpop.f32.mrb[0].mxu0
    %v3722 = vadd.f32 0.0, %v3721
    %v3723 = vpop.f32.mrb[0].mxu0
    %v3724 = vadd.f32 0.0, %v3723
    %3725 = vmatprep.mubr.bf16.mxu0 %v2331
    %3726 = vmatmul.mubr.bf16.gmra.mrb[0].mxu0 %v2312
    %v3727 = vpop.f32.mrb[0].mxu0
    %v3728 = vadd.f32 0.0, %v3727
    %v3729 = vpop.f32.mrb[0].mxu0
    %v3730 = vadd.f32 0.0, %v3729
    %v3731 = vpop.f32.mrb[0].mxu0
    %v3732 = vadd.f32 0.0, %v3731
    %v3733 = vpop.f32.mrb[0].mxu0
    %v3734 = vadd.f32 0.0, %v3733
    %3735 = vmatprep.mubr.bf16.mxu0 %v2334
    %3736 = vmatmul.mubr.bf16.gmra.mrb[0].mxu0 %v2314
    %v3737 = vpop.f32.mrb[0].mxu0
    %v3738 = vadd.f32 0.0, %v3737
    %v3739 = vpop.f32.mrb[0].mxu0
    %v3740 = vadd.f32 0.0, %v3739
    %v3741 = vpop.f32.mrb[0].mxu0
    %v3742 = vadd.f32 0.0, %v3741
    %v3743 = vpop.f32.mrb[0].mxu0
    %v3744 = vadd.f32 0.0, %v3743
    %3745 = vmatprep.mubr.bf16.mxu0 %v2337
    %3746 = vmatmul.mubr.bf16.gmra.mrb[0].mxu0 %v2316
    %v3747 = vpop.f32.mrb[0].mxu0
    %v3748 = vadd.f32 0.0, %v3747
    %v3749 = vpop.f32.mrb[0].mxu0
    %v3750 = vadd.f32 0.0, %v3749
    %v3751 = vpop.f32.mrb[0].mxu0
    %v3752 = vpop.f32.mrb[0].mxu0
    %3753 = vdwg.mxu0
    %v3772 = vrot.slane %v3708, 3
    %v3773 = vrot.slane %v3710, 3
    %v3774 = vrot.slane %v3712, 3
    %v3775 = vsel %vm1401, %v3772, %v3774
    %v3776 = vrot.slane %v3714, 3
    %v3777 = vsel %vm1401, %v3773, %v3776
    %v3778 = vrot.slane %v3718, 3
    %v3779 = vsel %vm1401, %v3774, %v3778
    %v3780 = vrot.slane %v3720, 3
    %v3781 = vsel %vm1401, %v3776, %v3780
    %v3782 = vrot.slane %v3722, 3
    %v3783 = vsel %vm1401, %v3778, %v3782
    %v3784 = vrot.slane %v3724, 3
    %v3785 = vsel %vm1401, %v3780, %v3784
    %v3786 = vrot.slane %v3728, 3
    %v3787 = vsel %vm1401, %v3782, %v3786
    %v3788 = vrot.slane %v3730, 3
    %v3789 = vsel %vm1401, %v3784, %v3788
    %v3790 = vrot.slane %v3732, 3
    %v3791 = vsel %vm1401, %v3786, %v3790
    %v3792 = vrot.slane %v3734, 3
    %v3793 = vsel %vm1401, %v3788, %v3792
    %v3794 = vrot.slane %v3738, 3
    %v3795 = vsel %vm1401, %v3790, %v3794
    %v3796 = vrot.slane %v3740, 3
    %v3797 = vsel %vm1401, %v3792, %v3796
    %v3798 = vrot.slane %v3742, 3
    %v3799 = vsel %vm1401, %v3794, %v3798
    %v3800 = vrot.slane %v3744, 3
    %v3801 = vsel %vm1401, %v3796, %v3800
    %v3802 = vrot.slane %v3748, 3
    %v3803 = vsel %vm1401, %v3798, %v3802
    %v3804 = vrot.slane %v3750, 3
    %v3805 = vsel %vm1401, %v3800, %v3804
    %v3826 = vsel %vm1401, %v2422, %v3772
    %v3827 = vsel %vm1401, %v2424, %v3773
    %v3828 = vpack.c.bf16 %v2386, %v2382
    %v3829 = vpack.c.bf16 %v2388, %v2384
    %v3830 = vpack.c.bf16 %v2396, %v2392
    %v3831 = vpack.c.bf16 %v2398, %v2394
    %v3832 = vpack.c.bf16 %v2406, %v2402
    %v3833 = vpack.c.bf16 %v2408, %v2404
    %v3834 = vpack.c.bf16 %v2416, %v2412
    %v3835 = vpack.c.bf16 %v2418, %v2414
    %v3836 = vpack.c.bf16 %v3775, %v3826
    %v3837 = vpack.c.bf16 %v3777, %v3827
    %v3838 = vpack.c.bf16 %v3783, %v3779
    %v3839 = vpack.c.bf16 %v3785, %v3781
    %v3840 = vpack.c.bf16 %v3791, %v3787
    %v3841 = vpack.c.bf16 %v3793, %v3789
    %v3842 = vpack.c.bf16 %v3799, %v3795
    %v3843 = vpack.c.bf16 %v3801, %v3797
    %v3844 = vpack.c.bf16 %v3802, %v3803
    %v3845 = vpack.c.bf16 %v3804, %v3805
    %v3846 = vld [vmem:[%s5] sm:$0xf]
    %v3847 = vld [vmem:[%s5 + $0x4] sm:$0xf]
    %v3848 = vld [vmem:[%s5 + $0x8] sm:$0xf]
    %v3849 = vld [vmem:[%s5 + $0xc] sm:$0xf]
    %v3850 = vld [vmem:[%s5 + $0x10] sm:$0xf]
    %v3851 = vld [vmem:[%s5 + $0x14] sm:$0xf]
    %v3852 = vld [vmem:[%s5 + $0x18] sm:$0xf]
    %v3853 = vld [vmem:[%s5 + $0x1c] sm:$0xf]
    %v3854 = vld [vmem:[%s5 + $0x20] sm:$0xf]
    %v3855 = vld [vmem:[%s5 + $0x24] sm:$0xf]
    %v3856 = vld [vmem:[%s5 + $0x28] sm:$0xf]
    %v3857 = vld [vmem:[%s5 + $0x2c] sm:$0xf]
    %v3858 = vld [vmem:[%s5 + $0x30] sm:$0xf]
    %v3859 = vld [vmem:[%s5 + $0x34] sm:$0xf]
    %v3860 = vld [vmem:[%s5 + $0x38] sm:$0xf]
    %v3861 = vld [vmem:[%s5 + $0x3c] sm:$0xf]
    %v3862 = vld [vmem:[%s5 + $0x40] sm:$0xf]
    %v3863 = vld [vmem:[%s5 + $0x44] sm:$0xf]
    %v3864 = vld [vmem:[%s5 + $0x48] sm:$0xf]
    %v3865 = vld [vmem:[%s5 + $0x4c] sm:$0xf]
    %v3886 = vunpack.c.l.b16 %v3846
    %v3887 = vunpack.c.l.b16 %v3847
    %v3888 = vunpack.c.l.b16 %v3848
    %v3889 = vunpack.c.l.b16 %v3849
    %v3890 = vunpack.c.l.b16 %v3850
    %v3891 = vunpack.c.l.b16 %v3851
    %v3892 = vunpack.c.l.b16 %v3852
    %v3893 = vunpack.c.l.b16 %v3853
    %v3894 = vunpack.c.l.b16 %v3854
    %v3895 = vunpack.c.l.b16 %v3855
    %v3896 = vunpack.c.l.b16 %v3856
    %v3897 = vunpack.c.l.b16 %v3857
    %v3898 = vunpack.c.l.b16 %v3858
    %v3899 = vunpack.c.l.b16 %v3859
    %v3900 = vunpack.c.l.b16 %v3860
    %v3901 = vunpack.c.l.b16 %v3861
    %v3902 = vunpack.c.l.b16 %v3862
    %v3903 = vunpack.c.l.b16 %v3863
    %v3904 = vunpack.c.l.b16 %v3864
    %v3905 = vunpack.c.l.b16 %v3865
    %v3906 = vpack.c.b16 %v3887, %v3886
    %v3907 = vpack.c.b16 %v3889, %v3888
    %v3908 = vpack.c.b16 %v3891, %v3890
    %v3909 = vpack.c.b16 %v3893, %v3892
    %v3910 = vpack.c.b16 %v3895, %v3894
    %v3911 = vpack.c.b16 %v3897, %v3896
    %v3912 = vpack.c.b16 %v3899, %v3898
    %v3913 = vpack.c.b16 %v3901, %v3900
    %v3914 = vpack.c.b16 %v3903, %v3902
    %v3915 = vpack.c.b16 %v3905, %v3904
    %v3927 = vsel %vm2091, %v3829, 0
    %v3930 = vsel %vm2091, %v3831, 0
    %v3933 = vsel %vm2091, %v3833, 0
    %v3936 = vsel %vm2091, %v3835, 0
    %v3939 = vsel %vm2091, %v3837, 0
    %v3942 = vsel %vm2091, %v3839, 0
    %v3945 = vsel %vm2091, %v3841, 0
    %v3948 = vsel %vm2091, %v3843, 0
    %v3951 = vsel %vm2091, %v3845, 0
    %3953 = vmatprep.subr.bf16.mxu0 0
    %3954 = vmatpush1.bf16.msra.mxu0 %v3906
    %3955 = vmatprep.subr.bf16.mxu0 0
    %3956 = vmatpush1.bf16.msra.mxu0 %v3907
    %3957 = vmatprep.subr.bf16.mxu0 0
    %3958 = vmatpush1.bf16.msra.mxu0 %v3908
    %3959 = vmatprep.subr.bf16.mxu0 0
    %3960 = vmatpush1.bf16.msra.mxu0 %v3909
    %3961 = vmatprep.subr.bf16.mxu0 0
    %3962 = vmatpush1.bf16.msra.mxu0 %v3910
    %3963 = vmatprep.subr.bf16.mxu0 0
    %3964 = vmatpush1.bf16.msra.mxu0 %v3911
    %3965 = vmatprep.subr.bf16.mxu0 0
    %3966 = vmatpush1.bf16.msra.mxu0 %v3912
    %3967 = vmatprep.subr.bf16.mxu0 0
    %3968 = vmatpush1.bf16.msra.mxu0 %v3913
    %3969 = vmatprep.subr.bf16.mxu0 0
    %3970 = vmatpush1.bf16.msra.mxu0 %v3914
    %3971 = vmatprep.subr.bf16.mxu0 0
    %3972 = vmatpush1.bf16.msra.mxu0 %v3915
    %3973 = vmatprep.subr.bf16.mxu0 0
    %3974 = vmatpush1.bf16.msra.mxu0 0
    %3975 = vmatprep.subr.bf16.mxu0 0
    %3976 = vmatpush1.bf16.msra.mxu0 0
    %3977 = vmatprep.subr.bf16.mxu0 0
    %3978 = vmatpush1.bf16.msra.mxu0 0
    %3979 = vmatprep.subr.bf16.mxu0 0
    %3980 = vmatpush1.bf16.msra.mxu0 0
    %3981 = vmatprep.subr.bf16.mxu0 0
    %3982 = vmatpush1.bf16.msra.mxu0 0
    %3983 = vmatprep.subr.bf16.mxu0 0
    %3984 = vmatpush1.bf16.msra.mxu0 0
    %3985 = vmatprep.mubr.bf16.mxu0 %v3927
    %3986 = vmatmul.mubr.bf16.gmra.mrb[0].mxu0 %v3828
    %v3987 = vpop.f32.mrb[0].mxu0
    %v3988 = vadd.f32 0.0, %v3987
    %v3989 = vpop.f32.mrb[0].mxu0
    %v3990 = vpop.f32.mrb[0].mxu0
    %v3991 = vadd.f32 0.0, %v3990
    %v3992 = vpop.f32.mrb[0].mxu0
    %3993 = vmatprep.mubr.bf16.mxu0 %v3930
    %3994 = vmatmul.mubr.bf16.gmra.mrb[0].mxu0 %v3830
    %v3995 = vpop.f32.mrb[0].mxu0
    %v3996 = vadd.f32 0.0, %v3995
    %v3997 = vpop.f32.mrb[0].mxu0
    %v3998 = vpop.f32.mrb[0].mxu0
    %v3999 = vadd.f32 0.0, %v3998
    %v4000 = vpop.f32.mrb[0].mxu0
    %4001 = vmatprep.mubr.bf16.mxu0 %v3933
    %4002 = vmatmul.mubr.bf16.gmra.mrb[0].mxu0 %v3832
    %v4003 = vpop.f32.mrb[0].mxu0
    %v4004 = vadd.f32 0.0, %v4003
    %v4005 = vpop.f32.mrb[0].mxu0
    %v4006 = vpop.f32.mrb[0].mxu0
    %v4007 = vadd.f32 0.0, %v4006
    %v4008 = vpop.f32.mrb[0].mxu0
    %4009 = vmatprep.mubr.bf16.mxu0 %v3936
    %4010 = vmatmul.mubr.bf16.gmra.mrb[0].mxu0 %v3834
    %v4011 = vpop.f32.mrb[0].mxu0
    %v4012 = vadd.f32 0.0, %v4011
    %v4013 = vpop.f32.mrb[0].mxu0
    %v4014 = vpop.f32.mrb[0].mxu0
    %v4015 = vadd.f32 0.0, %v4014
    %v4016 = vpop.f32.mrb[0].mxu0
    %4017 = vmatprep.mubr.bf16.mxu0 %v3939
    %4018 = vmatmul.mubr.bf16.gmra.mrb[0].mxu0 %v3836
    %v4019 = vpop.f32.mrb[0].mxu0
    %v4020 = vadd.f32 0.0, %v4019
    %v4021 = vpop.f32.mrb[0].mxu0
    %v4022 = vpop.f32.mrb[0].mxu0
    %v4023 = vadd.f32 0.0, %v4022
    %v4024 = vpop.f32.mrb[0].mxu0
    %4025 = vmatprep.mubr.bf16.mxu0 %v3942
    %4026 = vmatmul.mubr.bf16.gmra.mrb[0].mxu0 %v3838
    %v4027 = vpop.f32.mrb[0].mxu0
    %v4028 = vadd.f32 0.0, %v4027
    %v4029 = vpop.f32.mrb[0].mxu0
    %v4030 = vpop.f32.mrb[0].mxu0
    %v4031 = vadd.f32 0.0, %v4030
    %v4032 = vpop.f32.mrb[0].mxu0
    %4033 = vmatprep.mubr.bf16.mxu0 %v3945
    %4034 = vmatmul.mubr.bf16.gmra.mrb[0].mxu0 %v3840
    %v4035 = vpop.f32.mrb[0].mxu0
    %v4036 = vadd.f32 0.0, %v4035
    %v4037 = vpop.f32.mrb[0].mxu0
    %v4038 = vpop.f32.mrb[0].mxu0
    %v4039 = vadd.f32 0.0, %v4038
    %v4040 = vpop.f32.mrb[0].mxu0
    %4041 = vmatprep.mubr.bf16.mxu0 %v3948
    %4042 = vmatmul.mubr.bf16.gmra.mrb[0].mxu0 %v3842
    %v4043 = vpop.f32.mrb[0].mxu0
    %v4044 = vadd.f32 0.0, %v4043
    %v4045 = vpop.f32.mrb[0].mxu0
    %v4046 = vpop.f32.mrb[0].mxu0
    %v4047 = vadd.f32 0.0, %v4046
    %v4048 = vpop.f32.mrb[0].mxu0
    %4049 = vmatprep.mubr.bf16.mxu0 %v3951
    %4050 = vmatmul.mubr.bf16.gmra.mrb[0].mxu0 %v3844
    %v4051 = vpop.f32.mrb[0].mxu0
    %v4052 = vadd.f32 0.0, %v4051
    %v4053 = vpop.f32.mrb[0].mxu0
    %v4054 = vpop.f32.mrb[0].mxu0
    %v4055 = vadd.f32 0.0, %v4054
    %v4056 = vpop.f32.mrb[0].mxu0
    %4057 = vdwg.mxu0
    %v4058 = vsel %vm2091, %v3988, 0.0
    %v4059 = vsel %vm2091, %v3991, 0.0
    %v4060 = vadd.f32 %v4058, %v4059
    %v4061 = vsel %vm2091, %v3996, 0.0
    %v4062 = vadd.f32 %v4060, %v4061
    %v4063 = vsel %vm2091, %v3999, 0.0
    %v4064 = vadd.f32 %v4062, %v4063
    %v4065 = vsel %vm2091, %v4004, 0.0
    %v4066 = vadd.f32 %v4064, %v4065
    %v4067 = vsel %vm2091, %v4007, 0.0
    %v4068 = vadd.f32 %v4066, %v4067
    %v4069 = vsel %vm2091, %v4012, 0.0
    %v4070 = vadd.f32 %v4068, %v4069
    %v4071 = vsel %vm2091, %v4015, 0.0
    %v4072 = vadd.f32 %v4070, %v4071
    %v4073 = vsel %vm2091, %v4020, 0.0
    %v4074 = vadd.f32 %v4072, %v4073
    %v4075 = vsel %vm2091, %v4023, 0.0
    %v4076 = vadd.f32 %v4074, %v4075
    %v4077 = vsel %vm2091, %v4028, 0.0
    %v4078 = vadd.f32 %v4076, %v4077
    %v4079 = vsel %vm2091, %v4031, 0.0
    %v4080 = vadd.f32 %v4078, %v4079
    %v4081 = vsel %vm2091, %v4036, 0.0
    %v4082 = vadd.f32 %v4080, %v4081
    %v4083 = vsel %vm2091, %v4039, 0.0
    %v4084 = vadd.f32 %v4082, %v4083
    %v4085 = vsel %vm2091, %v4044, 0.0
    %v4086 = vadd.f32 %v4084, %v4085
    %v4087 = vsel %vm2091, %v4047, 0.0
    %v4088 = vadd.f32 %v4086, %v4087
    %v4089 = vsel %vm2091, %v4052, 0.0
    %v4090 = vadd.f32 %v4088, %v4089
    %vm4091 = vcmask 254976
    %v4092 = vsel %vm4091, %v4055, 0.0
    %v4093 = vadd.f32 %v4090, %v4092
    %v4094 = vrot.slane %v4093, 4
    %v4095 = vadd.f32 %v4093, %v4094
    %v4096 = vrot.slane %v4095, 2
    %v4097 = vadd.f32 %v4095, %v4096
    %v4098 = vrot.slane %v4097, 1
    %v4099 = vadd.f32 %v4097, %v4098
    %v4100 = vmul.f32 %v4099, 0.007246377
    %v4101 = vmul.f32 %v3988, %v3988
    %v4102 = vmul.f32 %v3991, %v3991
    %v4103 = vmul.f32 %v3996, %v3996
    %v4104 = vmul.f32 %v3999, %v3999
    %v4105 = vmul.f32 %v4004, %v4004
    %v4106 = vmul.f32 %v4007, %v4007
    %v4107 = vmul.f32 %v4012, %v4012
    %v4108 = vmul.f32 %v4015, %v4015
    %v4109 = vmul.f32 %v4020, %v4020
    %v4110 = vmul.f32 %v4023, %v4023
    %v4111 = vmul.f32 %v4028, %v4028
    %v4112 = vmul.f32 %v4031, %v4031
    %v4113 = vmul.f32 %v4036, %v4036
    %v4114 = vmul.f32 %v4039, %v4039
    %v4115 = vmul.f32 %v4044, %v4044
    %v4116 = vmul.f32 %v4047, %v4047
    %v4117 = vmul.f32 %v4052, %v4052
    %v4118 = vmul.f32 %v4055, %v4055
    %v4119 = vsel %vm2091, %v4101, 0.0
    %v4120 = vsel %vm2091, %v4102, 0.0
    %v4121 = vadd.f32 %v4119, %v4120
    %v4122 = vsel %vm2091, %v4103, 0.0
    %v4123 = vadd.f32 %v4121, %v4122
    %v4124 = vsel %vm2091, %v4104, 0.0
    %v4125 = vadd.f32 %v4123, %v4124
    %v4126 = vsel %vm2091, %v4105, 0.0
    %v4127 = vadd.f32 %v4125, %v4126
    %v4128 = vsel %vm2091, %v4106, 0.0
    %v4129 = vadd.f32 %v4127, %v4128
    %v4130 = vsel %vm2091, %v4107, 0.0
    %v4131 = vadd.f32 %v4129, %v4130
    %v4132 = vsel %vm2091, %v4108, 0.0
    %v4133 = vadd.f32 %v4131, %v4132
    %v4134 = vsel %vm2091, %v4109, 0.0
    %v4135 = vadd.f32 %v4133, %v4134
    %v4136 = vsel %vm2091, %v4110, 0.0
    %v4137 = vadd.f32 %v4135, %v4136
    %v4138 = vsel %vm2091, %v4111, 0.0
    %v4139 = vadd.f32 %v4137, %v4138
    %v4140 = vsel %vm2091, %v4112, 0.0
    %v4141 = vadd.f32 %v4139, %v4140
    %v4142 = vsel %vm2091, %v4113, 0.0
    %v4143 = vadd.f32 %v4141, %v4142
    %v4144 = vsel %vm2091, %v4114, 0.0
    %v4145 = vadd.f32 %v4143, %v4144
    %v4146 = vsel %vm2091, %v4115, 0.0
    %v4147 = vadd.f32 %v4145, %v4146
    %v4148 = vsel %vm2091, %v4116, 0.0
    %v4149 = vadd.f32 %v4147, %v4148
    %v4150 = vsel %vm2091, %v4117, 0.0
    %v4151 = vadd.f32 %v4149, %v4150
    %v4152 = vsel %vm4091, %v4118, 0.0
    %v4153 = vadd.f32 %v4151, %v4152
    %v4154 = vrot.slane %v4153, 4
    %v4155 = vadd.f32 %v4153, %v4154
    %v4156 = vrot.slane %v4155, 2
    %v4157 = vadd.f32 %v4155, %v4156
    %v4158 = vrot.slane %v4157, 1
    %v4159 = vadd.f32 %v4157, %v4158
    %v4160 = vmul.f32 %v4159, 0.007246377
    %v4161 = vmul.f32 %v4100, %v4100
    %v4162 = vsub.f32 %v4160, %v4161
    %v4163 = vmax.f32 %v4162, 0.0
    %v4164 = vld [vmem:[%s6] sm:$0x1]
    %v4165 = vadd.f32 %v4163, 1e-05
    %v4166 = vrsqrt.pop %v4165
    %v4167 = vmul.f32 %v4164, %v4166
    %v4168 = vld [vmem:[%s7] sm:$0x1]
    %v4169 = vmul.f32 %v4100, %v4167
    %v4170 = vsub.f32 %v4168, %v4169
    %v4172 = vlaneseq
    %v4173 = vshrl.u32 %v4172, 7
    %v4174 = vsub.s32 0, %v4173
    %v4175 = vrot.slane %v4167, %v4174
    %v4177 = vmul.f32 %v3988, %v4175
    %v4178 = vmul.f32 %v3991, %v4175
    %v4179 = vmul.f32 %v3996, %v4175
    %v4180 = vmul.f32 %v3999, %v4175
    %v4181 = vmul.f32 %v4004, %v4175
    %v4182 = vmul.f32 %v4007, %v4175
    %v4183 = vmul.f32 %v4012, %v4175
    %v4184 = vmul.f32 %v4015, %v4175
    %v4185 = vmul.f32 %v4020, %v4175
    %v4186 = vmul.f32 %v4023, %v4175
    %v4187 = vmul.f32 %v4028, %v4175
    %v4188 = vmul.f32 %v4031, %v4175
    %v4189 = vmul.f32 %v4036, %v4175
    %v4190 = vmul.f32 %v4039, %v4175
    %v4191 = vmul.f32 %v4044, %v4175
    %v4192 = vmul.f32 %v4047, %v4175
    %v4193 = vmul.f32 %v4052, %v4175
    %v4194 = vmul.f32 %v4055, %v4175
    %v4196 = vlaneseq
    %v4197 = vshrl.u32 %v4196, 7
    %v4198 = vsub.s32 0, %v4197
    %v4199 = vrot.slane %v4170, %v4198
    %v4201 = vadd.f32 %v4177, %v4199
    %v4202 = vadd.f32 %v4178, %v4199
    %v4203 = vadd.f32 %v4179, %v4199
    %v4204 = vadd.f32 %v4180, %v4199
    %v4205 = vadd.f32 %v4181, %v4199
    %v4206 = vadd.f32 %v4182, %v4199
    %v4207 = vadd.f32 %v4183, %v4199
    %v4208 = vadd.f32 %v4184, %v4199
    %v4209 = vadd.f32 %v4185, %v4199
    %v4210 = vadd.f32 %v4186, %v4199
    %v4211 = vadd.f32 %v4187, %v4199
    %v4212 = vadd.f32 %v4188, %v4199
    %v4213 = vadd.f32 %v4189, %v4199
    %v4214 = vadd.f32 %v4190, %v4199
    %v4215 = vadd.f32 %v4191, %v4199
    %v4216 = vadd.f32 %v4192, %v4199
    %v4217 = vadd.f32 %v4193, %v4199
    %v4218 = vadd.f32 %v4194, %v4199
    %v4219 = vld [vmem:[%s8] sm:$0xf]
    %v4220 = vld [vmem:[%s8 + $0x4] sm:$0xf]
    %v4221 = vld [vmem:[%s8 + $0x8] sm:$0x7]
    %v4231 = vrot.slane %v4201, 5
    %v4232 = vrot.slane %v4202, 5
    %v4233 = vsel %vm1056, %v4231, %v4232
    %v4234 = vrot.slane %v4203, 5
    %v4235 = vsel %vm1056, %v4232, %v4234
    %v4236 = vrot.slane %v4204, 5
    %v4237 = vsel %vm1056, %v4234, %v4236
    %v4238 = vrot.slane %v4205, 5
    %v4239 = vsel %vm1056, %v4236, %v4238
    %v4240 = vrot.slane %v4206, 5
    %v4241 = vsel %vm1056, %v4238, %v4240
    %v4242 = vrot.slane %v4207, 5
    %v4243 = vsel %vm1056, %v4240, %v4242
    %v4244 = vrot.slane %v4208, 5
    %v4245 = vsel %vm1056, %v4242, %v4244
    %v4246 = vrot.slane %v4209, 5
    %v4247 = vsel %vm1056, %v4244, %v4246
    %v4257 = vsel %vm1056, 0.0, %v4231
    %v4259 = vrot.slane %v4257, 1
    %v4260 = vrot.slane %v4233, 1
    %v4261 = vsel %vm1141, %v4259, %v4260
    %v4262 = vrot.slane %v4235, 1
    %v4263 = vsel %vm1141, %v4260, %v4262
    %v4264 = vrot.slane %v4237, 1
    %v4265 = vsel %vm1141, %v4262, %v4264
    %v4266 = vrot.slane %v4239, 1
    %v4267 = vsel %vm1141, %v4264, %v4266
    %v4268 = vrot.slane %v4241, 1
    %v4269 = vsel %vm1141, %v4266, %v4268
    %v4270 = vrot.slane %v4243, 1
    %v4271 = vsel %vm1141, %v4268, %v4270
    %v4272 = vrot.slane %v4245, 1
    %v4273 = vsel %vm1141, %v4270, %v4272
    %v4274 = vrot.slane %v4247, 1
    %v4275 = vsel %vm1141, %v4272, %v4274
    %4276 = vrot.lane.b32.xlu0 %v4261, 32
    %v4277 = vpop.permute.xlu0 %4276
    %4278 = vrot.lane.b32.xlu0 %v4263, 32
    %v4279 = vpop.permute.xlu0 %4278
    %4280 = vrot.lane.b32.xlu0 %v4265, 32
    %v4281 = vpop.permute.xlu0 %4280
    %4282 = vrot.lane.b32.xlu0 %v4267, 32
    %v4283 = vpop.permute.xlu0 %4282
    %4284 = vrot.lane.b32.xlu0 %v4269, 32
    %v4285 = vpop.permute.xlu0 %4284
    %4286 = vrot.lane.b32.xlu0 %v4271, 32
    %v4287 = vpop.permute.xlu0 %4286
    %4288 = vrot.lane.b32.xlu0 %v4273, 32
    %v4289 = vpop.permute.xlu0 %4288
    %4290 = vrot.lane.b32.xlu0 %v4275, 32
    %v4291 = vpop.permute.xlu0 %4290
    %v4300 = vrot.slane %v4257, 2
    %v4301 = vrot.slane %v4233, 2
    %v4302 = vsel %vm1271, %v4300, %v4301
    %v4303 = vrot.slane %v4235, 2
    %v4304 = vsel %vm1271, %v4301, %v4303
    %v4305 = vrot.slane %v4237, 2
    %v4306 = vsel %vm1271, %v4303, %v4305
    %v4307 = vrot.slane %v4239, 2
    %v4308 = vsel %vm1271, %v4305, %v4307
    %v4309 = vrot.slane %v4241, 2
    %v4310 = vsel %vm1271, %v4307, %v4309
    %v4311 = vrot.slane %v4243, 2
    %v4312 = vsel %vm1271, %v4309, %v4311
    %v4313 = vrot.slane %v4245, 2
    %v4314 = vsel %vm1271, %v4311, %v4313
    %v4315 = vrot.slane %v4247, 2
    %v4316 = vsel %vm1271, %v4313, %v4315
    %4317 = vrot.lane.b32.xlu0 %v4302, 64
    %v4318 = vpop.permute.xlu0 %4317
    %4319 = vrot.lane.b32.xlu0 %v4304, 64
    %v4320 = vpop.permute.xlu0 %4319
    %4321 = vrot.lane.b32.xlu0 %v4306, 64
    %v4322 = vpop.permute.xlu0 %4321
    %4323 = vrot.lane.b32.xlu0 %v4308, 64
    %v4324 = vpop.permute.xlu0 %4323
    %4325 = vrot.lane.b32.xlu0 %v4310, 64
    %v4326 = vpop.permute.xlu0 %4325
    %4327 = vrot.lane.b32.xlu0 %v4312, 64
    %v4328 = vpop.permute.xlu0 %4327
    %4329 = vrot.lane.b32.xlu0 %v4314, 64
    %v4330 = vpop.permute.xlu0 %4329
    %4331 = vrot.lane.b32.xlu0 %v4316, 64
    %v4332 = vpop.permute.xlu0 %4331
    %v4341 = vrot.slane %v4257, 3
    %v4342 = vrot.slane %v4233, 3
    %v4343 = vsel %vm1401, %v4341, %v4342
    %v4344 = vrot.slane %v4235, 3
    %v4345 = vsel %vm1401, %v4342, %v4344
    %v4346 = vrot.slane %v4237, 3
    %v4347 = vsel %vm1401, %v4344, %v4346
    %v4348 = vrot.slane %v4239, 3
    %v4349 = vsel %vm1401, %v4346, %v4348
    %v4350 = vrot.slane %v4241, 3
    %v4351 = vsel %vm1401, %v4348, %v4350
    %v4352 = vrot.slane %v4243, 3
    %v4353 = vsel %vm1401, %v4350, %v4352
    %v4354 = vrot.slane %v4245, 3
    %v4355 = vsel %vm1401, %v4352, %v4354
    %v4356 = vrot.slane %v4247, 3
    %v4357 = vsel %vm1401, %v4354, %v4356
    %4358 = vrot.lane.b32.xlu0 %v4343, 96
    %v4359 = vpop.permute.xlu0 %4358
    %4360 = vrot.lane.b32.xlu0 %v4345, 96
    %v4361 = vpop.permute.xlu0 %4360
    %4362 = vrot.lane.b32.xlu0 %v4347, 96
    %v4363 = vpop.permute.xlu0 %4362
    %4364 = vrot.lane.b32.xlu0 %v4349, 96
    %v4365 = vpop.permute.xlu0 %4364
    %4366 = vrot.lane.b32.xlu0 %v4351, 96
    %v4367 = vpop.permute.xlu0 %4366
    %4368 = vrot.lane.b32.xlu0 %v4353, 96
    %v4369 = vpop.permute.xlu0 %4368
    %4370 = vrot.lane.b32.xlu0 %v4355, 96
    %v4371 = vpop.permute.xlu0 %4370
    %4372 = vrot.lane.b32.xlu0 %v4357, 96
    %v4373 = vpop.permute.xlu0 %4372
    %v4382 = vrot.slane %v4257, 4
    %v4383 = vrot.slane %v4233, 4
    %v4384 = vsel %vm1138, %v4382, %v4383
    %v4385 = vrot.slane %v4235, 4
    %v4386 = vsel %vm1138, %v4383, %v4385
    %v4387 = vrot.slane %v4237, 4
    %v4388 = vsel %vm1138, %v4385, %v4387
    %v4389 = vrot.slane %v4239, 4
    %v4390 = vsel %vm1138, %v4387, %v4389
    %v4391 = vrot.slane %v4241, 4
    %v4392 = vsel %vm1138, %v4389, %v4391
    %v4393 = vrot.slane %v4243, 4
    %v4394 = vsel %vm1138, %v4391, %v4393
    %v4395 = vrot.slane %v4245, 4
    %v4396 = vsel %vm1138, %v4393, %v4395
    %v4397 = vrot.slane %v4247, 4
    %v4398 = vsel %vm1138, %v4395, %v4397
    %v4407 = vrot.slane %v4257, 5
    %v4408 = vrot.slane %v4233, 5
    %v4409 = vsel %vm1056, %v4407, %v4408
    %v4410 = vrot.slane %v4235, 5
    %v4411 = vsel %vm1056, %v4408, %v4410
    %v4412 = vrot.slane %v4237, 5
    %v4413 = vsel %vm1056, %v4410, %v4412
    %v4414 = vrot.slane %v4239, 5
    %v4415 = vsel %vm1056, %v4412, %v4414
    %v4416 = vrot.slane %v4241, 5
    %v4417 = vsel %vm1056, %v4414, %v4416
    %v4418 = vrot.slane %v4243, 5
    %v4419 = vsel %vm1056, %v4416, %v4418
    %v4420 = vrot.slane %v4245, 5
    %v4421 = vsel %vm1056, %v4418, %v4420
    %v4422 = vrot.slane %v4247, 5
    %v4423 = vsel %vm1056, %v4420, %v4422
    %4424 = vrot.lane.b32.xlu0 %v4409, 32
    %v4425 = vpop.permute.xlu0 %4424
    %4426 = vrot.lane.b32.xlu0 %v4411, 32
    %v4427 = vpop.permute.xlu0 %4426
    %4428 = vrot.lane.b32.xlu0 %v4413, 32
    %v4429 = vpop.permute.xlu0 %4428
    %4430 = vrot.lane.b32.xlu0 %v4415, 32
    %v4431 = vpop.permute.xlu0 %4430
    %4432 = vrot.lane.b32.xlu0 %v4417, 32
    %v4433 = vpop.permute.xlu0 %4432
    %4434 = vrot.lane.b32.xlu0 %v4419, 32
    %v4435 = vpop.permute.xlu0 %4434
    %4436 = vrot.lane.b32.xlu0 %v4421, 32
    %v4437 = vpop.permute.xlu0 %4436
    %4438 = vrot.lane.b32.xlu0 %v4423, 32
    %v4439 = vpop.permute.xlu0 %4438
    %v4448 = vrot.slane %v4257, 6
    %v4449 = vrot.slane %v4233, 6
    %v4450 = vsel %vm361, %v4448, %v4449
    %v4451 = vrot.slane %v4235, 6
    %v4452 = vsel %vm361, %v4449, %v4451
    %v4453 = vrot.slane %v4237, 6
    %v4454 = vsel %vm361, %v4451, %v4453
    %v4455 = vrot.slane %v4239, 6
    %v4456 = vsel %vm361, %v4453, %v4455
    %v4457 = vrot.slane %v4241, 6
    %v4458 = vsel %vm361, %v4455, %v4457
    %v4459 = vrot.slane %v4243, 6
    %v4460 = vsel %vm361, %v4457, %v4459
    %v4461 = vrot.slane %v4245, 6
    %v4462 = vsel %vm361, %v4459, %v4461
    %v4463 = vrot.slane %v4247, 6
    %v4464 = vsel %vm361, %v4461, %v4463
    %4465 = vrot.lane.b32.xlu0 %v4450, 64
    %v4466 = vpop.permute.xlu0 %4465
    %4467 = vrot.lane.b32.xlu0 %v4452, 64
    %v4468 = vpop.permute.xlu0 %4467
    %4469 = vrot.lane.b32.xlu0 %v4454, 64
    %v4470 = vpop.permute.xlu0 %4469
    %4471 = vrot.lane.b32.xlu0 %v4456, 64
    %v4472 = vpop.permute.xlu0 %4471
    %4473 = vrot.lane.b32.xlu0 %v4458, 64
    %v4474 = vpop.permute.xlu0 %4473
    %4475 = vrot.lane.b32.xlu0 %v4460, 64
    %v4476 = vpop.permute.xlu0 %4475
    %4477 = vrot.lane.b32.xlu0 %v4462, 64
    %v4478 = vpop.permute.xlu0 %4477
    %4479 = vrot.lane.b32.xlu0 %v4464, 64
    %v4480 = vpop.permute.xlu0 %4479
    %v4489 = vrot.slane %v4257, 7
    %v4490 = vrot.slane %v4233, 7
    %v4491 = vsel %vm1925, %v4489, %v4490
    %v4492 = vrot.slane %v4235, 7
    %v4493 = vsel %vm1925, %v4490, %v4492
    %v4494 = vrot.slane %v4237, 7
    %v4495 = vsel %vm1925, %v4492, %v4494
    %v4496 = vrot.slane %v4239, 7
    %v4497 = vsel %vm1925, %v4494, %v4496
    %v4498 = vrot.slane %v4241, 7
    %v4499 = vsel %vm1925, %v4496, %v4498
    %v4500 = vrot.slane %v4243, 7
    %v4501 = vsel %vm1925, %v4498, %v4500
    %v4502 = vrot.slane %v4245, 7
    %v4503 = vsel %vm1925, %v4500, %v4502
    %v4504 = vrot.slane %v4247, 7
    %v4505 = vsel %vm1925, %v4502, %v4504
    %4506 = vrot.lane.b32.xlu0 %v4491, 96
    %v4507 = vpop.permute.xlu0 %4506
    %4508 = vrot.lane.b32.xlu0 %v4493, 96
    %v4509 = vpop.permute.xlu0 %4508
    %4510 = vrot.lane.b32.xlu0 %v4495, 96
    %v4511 = vpop.permute.xlu0 %4510
    %4512 = vrot.lane.b32.xlu0 %v4497, 96
    %v4513 = vpop.permute.xlu0 %4512
    %4514 = vrot.lane.b32.xlu0 %v4499, 96
    %v4515 = vpop.permute.xlu0 %4514
    %4516 = vrot.lane.b32.xlu0 %v4501, 96
    %v4517 = vpop.permute.xlu0 %4516
    %4518 = vrot.lane.b32.xlu0 %v4503, 96
    %v4519 = vpop.permute.xlu0 %4518
    %4520 = vrot.lane.b32.xlu0 %v4505, 96
    %v4521 = vpop.permute.xlu0 %4520
    %v4531 = vrot.slane 0.0, 1
    %v4532 = vsel %vm1141, %v4274, %v4531
    %4533 = vrot.lane.b32.xlu0 %v4532, 32
    %v4534 = vpop.permute.xlu0 %4533
    %v4536 = vsel %vm2091, %v4257, %v4277
    %v4537 = vsel %vm2091, %v4233, %v4279
    %v4538 = vsel %vm2091, %v4235, %v4281
    %v4539 = vsel %vm2091, %v4237, %v4283
    %v4540 = vsel %vm2091, %v4239, %v4285
    %v4541 = vsel %vm2091, %v4241, %v4287
    %v4542 = vsel %vm2091, %v4243, %v4289
    %v4543 = vsel %vm2091, %v4245, %v4291
    %v4544 = vsel %vm2145, %v4536, %v4318
    %v4545 = vsel %vm2145, %v4537, %v4320
    %v4546 = vsel %vm2145, %v4538, %v4322
    %v4547 = vsel %vm2145, %v4539, %v4324
    %v4548 = vsel %vm2145, %v4540, %v4326
    %v4549 = vsel %vm2145, %v4541, %v4328
    %v4550 = vsel %vm2145, %v4542, %v4330
    %v4551 = vsel %vm2145, %v4543, %v4332
    %v4552 = vsel %vm2199, %v4544, %v4359
    %v4553 = vsel %vm2199, %v4545, %v4361
    %v4554 = vsel %vm2199, %v4546, %v4363
    %v4555 = vsel %vm2199, %v4547, %v4365
    %v4556 = vsel %vm2199, %v4548, %v4367
    %v4557 = vsel %vm2199, %v4549, %v4369
    %v4558 = vsel %vm2199, %v4550, %v4371
    %v4559 = vsel %vm2199, %v4551, %v4373
    %v4560 = vsel %vm2091, %v4384, %v4425
    %v4561 = vsel %vm2091, %v4386, %v4427
    %v4562 = vsel %vm2091, %v4388, %v4429
    %v4563 = vsel %vm2091, %v4390, %v4431
    %v4564 = vsel %vm2091, %v4392, %v4433
    %v4565 = vsel %vm2091, %v4394, %v4435
    %v4566 = vsel %vm2091, %v4396, %v4437
    %v4567 = vsel %vm2091, %v4398, %v4439
    %v4568 = vsel %vm2145, %v4560, %v4466
    %v4569 = vsel %vm2145, %v4561, %v4468
    %v4570 = vsel %vm2145, %v4562, %v4470
    %v4571 = vsel %vm2145, %v4563, %v4472
    %v4572 = vsel %vm2145, %v4564, %v4474
    %v4573 = vsel %vm2145, %v4565, %v4476
    %v4574 = vsel %vm2145, %v4566, %v4478
    %v4575 = vsel %vm2145, %v4567, %v4480
    %v4576 = vsel %vm2199, %v4568, %v4507
    %v4577 = vsel %vm2199, %v4569, %v4509
    %v4578 = vsel %vm2199, %v4570, %v4511
    %v4579 = vsel %vm2199, %v4571, %v4513
    %v4580 = vsel %vm2199, %v4572, %v4515
    %v4581 = vsel %vm2199, %v4573, %v4517
    %v4582 = vsel %vm2199, %v4574, %v4519
    %v4583 = vsel %vm2199, %v4575, %v4521
    %v4584 = vsel %vm2091, %v4247, %v4534
    %v4585 = vpack.c.bf16 %v4553, %v4552
    %v4586 = vpack.c.bf16 %v4577, %v4576
    %v4587 = vpack.c.bf16 %v4538, %v4537
    %v4588 = vpack.c.bf16 %v4555, %v4554
    %v4589 = vpack.c.bf16 %v4579, %v4578
    %v4590 = vpack.c.bf16 %v4540, %v4539
    %v4591 = vpack.c.bf16 %v4557, %v4556
    %v4592 = vpack.c.bf16 %v4581, %v4580
    %v4593 = vpack.c.bf16 %v4542, %v4541
    %v4594 = vpack.c.bf16 %v4559, %v4558
    %v4595 = vpack.c.bf16 %v4583, %v4582
    %v4596 = vpack.c.bf16 %v4584, %v4543
    %v4600 = vunpack.c.l.b16 %v4219
    %v4601 = vunpack.c.l.b16 %v4220
    %v4602 = vunpack.c.l.b16 %v4221
    %v4603 = vpack.c.b16 %v4601, %v4600
    %v4604 = vpack.c.b16 %v4602, %v4602
    %v4606 = vsel %vm2145, %v4603, 0
    %v4609 = vsel %vm2145, %v4604, 0
    %4611 = vmatprep.subr.bf16.mxu0 %v4586
    %4612 = vmatpush1.bf16.msra.mxu0 %v4585
    %4613 = vmatprep.subr.bf16.mxu0 %v4589
    %4614 = vmatpush1.bf16.msra.mxu0 %v4588
    %4615 = vmatprep.subr.bf16.mxu0 %v4592
    %4616 = vmatpush1.bf16.msra.mxu0 %v4591
    %4617 = vmatprep.subr.bf16.mxu0 %v4595
    %4618 = vmatpush1.bf16.msra.mxu0 %v4594
    %4619 = vmatprep.subr.bf16.mxu0 0
    %4620 = vmatpush1.bf16.msra.mxu0 0
    %4621 = vmatprep.subr.bf16.mxu0 0
    %4622 = vmatpush1.bf16.msra.mxu0 0
    %4623 = vmatprep.subr.bf16.mxu0 0
    %4624 = vmatpush1.bf16.msra.mxu0 0
    %4625 = vmatprep.subr.bf16.mxu0 0
    %4626 = vmatpush1.bf16.msra.mxu0 0
    %4627 = vmatprep.subr.bf16.mxu0 0
    %4628 = vmatpush1.bf16.msra.mxu0 0
    %4629 = vmatprep.subr.bf16.mxu0 0
    %4630 = vmatpush1.bf16.msra.mxu0 0
    %4631 = vmatprep.subr.bf16.mxu0 0
    %4632 = vmatpush1.bf16.msra.mxu0 0
    %4633 = vmatprep.subr.bf16.mxu0 0
    %4634 = vmatpush1.bf16.msra.mxu0 0
    %4635 = vmatprep.subr.bf16.mxu0 0
    %4636 = vmatpush1.bf16.msra.mxu0 0
    %4637 = vmatprep.subr.bf16.mxu0 0
    %4638 = vmatpush1.bf16.msra.mxu0 0
    %4639 = vmatprep.subr.bf16.mxu0 0
    %4640 = vmatpush1.bf16.msra.mxu0 0
    %4641 = vmatprep.subr.bf16.mxu0 0
    %4642 = vmatpush1.bf16.msra.mxu0 0
    %4643 = vmatprep.mubr.bf16.mxu0 0
    %4644 = vmatmul.mubr.bf16.gmra.mrb[0].mxu0 %v4606
    %v4645 = vpop.f32.mrb[0].mxu0
    %v4646 = vadd.f32 0.0, %v4645
    %v4647 = vpop.f32.mrb[0].mxu0
    %v4648 = vadd.f32 0.0, %v4647
    %v4649 = vpop.f32.mrb[0].mxu0
    %v4650 = vadd.f32 0.0, %v4649
    %v4651 = vpop.f32.mrb[0].mxu0
    %v4652 = vadd.f32 0.0, %v4651
    %4653 = vmatprep.mubr.bf16.mxu0 0
    %4654 = vmatmul.mubr.bf16.gmra.mrb[0].mxu0 %v4609
    %v4655 = vpop.f32.mrb[0].mxu0
    %v4656 = vadd.f32 0.0, %v4655
    %v4657 = vpop.f32.mrb[0].mxu0
    %v4658 = vadd.f32 0.0, %v4657
    %v4659 = vpop.f32.mrb[0].mxu0
    %v4660 = vpop.f32.mrb[0].mxu0
    %4661 = vdwg.mxu0
    %4662 = vmatprep.subr.bf16.mxu0 0
    %4663 = vmatpush1.bf16.msra.mxu0 %v4587
    %4664 = vmatprep.subr.bf16.mxu0 0
    %4665 = vmatpush1.bf16.msra.mxu0 %v4590
    %4666 = vmatprep.subr.bf16.mxu0 0
    %4667 = vmatpush1.bf16.msra.mxu0 %v4593
    %4668 = vmatprep.subr.bf16.mxu0 0
    %4669 = vmatpush1.bf16.msra.mxu0 %v4596
    %4670 = vmatprep.subr.bf16.mxu0 0
    %4671 = vmatpush1.bf16.msra.mxu0 0
    %4672 = vmatprep.subr.bf16.mxu0 0
    %4673 = vmatpush1.bf16.msra.mxu0 0
    %4674 = vmatprep.subr.bf16.mxu0 0
    %4675 = vmatpush1.bf16.msra.mxu0 0
    %4676 = vmatprep.subr.bf16.mxu0 0
    %4677 = vmatpush1.bf16.msra.mxu0 0
    %4678 = vmatprep.subr.bf16.mxu0 0
    %4679 = vmatpush1.bf16.msra.mxu0 0
    %4680 = vmatprep.subr.bf16.mxu0 0
    %4681 = vmatpush1.bf16.msra.mxu0 0
    %4682 = vmatprep.subr.bf16.mxu0 0
    %4683 = vmatpush1.bf16.msra.mxu0 0
    %4684 = vmatprep.subr.bf16.mxu0 0
    %4685 = vmatpush1.bf16.msra.mxu0 0
    %4686 = vmatprep.subr.bf16.mxu0 0
    %4687 = vmatpush1.bf16.msra.mxu0 0
    %4688 = vmatprep.subr.bf16.mxu0 0
    %4689 = vmatpush1.bf16.msra.mxu0 0
    %4690 = vmatprep.subr.bf16.mxu0 0
    %4691 = vmatpush1.bf16.msra.mxu0 0
    %4692 = vmatprep.subr.bf16.mxu0 0
    %4693 = vmatpush1.bf16.msra.mxu0 0
    %4694 = vmatprep.mubr.bf16.mxu0 0
    %4695 = vmatmul.mubr.bf16.gmra.mrb[0].mxu0 %v4606
    %v4696 = vpop.f32.mrb[0].mxu0
    %v4697 = vadd.f32 0.0, %v4696
    %v4698 = vpop.f32.mrb[0].mxu0
    %v4699 = vpop.f32.mrb[0].mxu0
    %v4700 = vadd.f32 0.0, %v4699
    %v4701 = vpop.f32.mrb[0].mxu0
    %4702 = vmatprep.mubr.bf16.mxu0 0
    %4703 = vmatmul.mubr.bf16.gmra.mrb[0].mxu0 %v4609
    %v4704 = vpop.f32.mrb[0].mxu0
    %v4705 = vadd.f32 0.0, %v4704
    %v4706 = vpop.f32.mrb[0].mxu0
    %v4707 = vpop.f32.mrb[0].mxu0
    %v4708 = vpop.f32.mrb[0].mxu0
    %4709 = vdwg.mxu0
    %v4719 = vrot.slane %v4209, 2
    %v4720 = vrot.slane %v4210, 2
    %v4721 = vsel %vm1271, %v4719, %v4720
    %v4722 = vrot.slane %v4211, 2
    %v4723 = vsel %vm1271, %v4720, %v4722
    %v4724 = vrot.slane %v4212, 2
    %v4725 = vsel %vm1271, %v4722, %v4724
    %v4726 = vrot.slane %v4213, 2
    %v4727 = vsel %vm1271, %v4724, %v4726
    %v4728 = vrot.slane %v4214, 2
    %v4729 = vsel %vm1271, %v4726, %v4728
    %v4730 = vrot.slane %v4215, 2
    %v4731 = vsel %vm1271, %v4728, %v4730
    %v4732 = vrot.slane %v4216, 2
    %v4733 = vsel %vm1271, %v4730, %v4732
    %v4734 = vrot.slane %v4217, 2
    %v4735 = vsel %vm1271, %v4732, %v4734
    %v4736 = vrot.slane %v4218, 2
    %v4737 = vsel %vm1271, %v4734, %v4736
    %v4747 = vsel %vm1056, 0.0, %v4721
    %v4749 = vrot.slane %v4747, 1
    %v4750 = vrot.slane %v4723, 1
    %v4751 = vsel %vm1141, %v4749, %v4750
    %v4752 = vrot.slane %v4725, 1
    %v4753 = vsel %vm1141, %v4750, %v4752
    %v4754 = vrot.slane %v4727, 1
    %v4755 = vsel %vm1141, %v4752, %v4754
    %v4756 = vrot.slane %v4729, 1
    %v4757 = vsel %vm1141, %v4754, %v4756
    %v4758 = vrot.slane %v4731, 1
    %v4759 = vsel %vm1141, %v4756, %v4758
    %v4760 = vrot.slane %v4733, 1
    %v4761 = vsel %vm1141, %v4758, %v4760
    %v4762 = vrot.slane %v4735, 1
    %v4763 = vsel %vm1141, %v4760, %v4762
    %v4764 = vrot.slane %v4737, 1
    %v4765 = vsel %vm1141, %v4762, %v4764
    %4766 = vrot.lane.b32.xlu0 %v4751, 32
    %v4767 = vpop.permute.xlu0 %4766
    %4768 = vrot.lane.b32.xlu0 %v4753, 32
    %v4769 = vpop.permute.xlu0 %4768
    %4770 = vrot.lane.b32.xlu0 %v4755, 32
    %v4771 = vpop.permute.xlu0 %4770
    %4772 = vrot.lane.b32.xlu0 %v4757, 32
    %v4773 = vpop.permute.xlu0 %4772
    %4774 = vrot.lane.b32.xlu0 %v4759, 32
    %v4775 = vpop.permute.xlu0 %4774
    %4776 = vrot.lane.b32.xlu0 %v4761, 32
    %v4777 = vpop.permute.xlu0 %4776
    %4778 = vrot.lane.b32.xlu0 %v4763, 32
    %v4779 = vpop.permute.xlu0 %4778
    %4780 = vrot.lane.b32.xlu0 %v4765, 32
    %v4781 = vpop.permute.xlu0 %4780
    %v4790 = vrot.slane %v4747, 2
    %v4791 = vrot.slane %v4723, 2
    %v4792 = vsel %vm1271, %v4790, %v4791
    %v4793 = vrot.slane %v4725, 2
    %v4794 = vsel %vm1271, %v4791, %v4793
    %v4795 = vrot.slane %v4727, 2
    %v4796 = vsel %vm1271, %v4793, %v4795
    %v4797 = vrot.slane %v4729, 2
    %v4798 = vsel %vm1271, %v4795, %v4797
    %v4799 = vrot.slane %v4731, 2
    %v4800 = vsel %vm1271, %v4797, %v4799
    %v4801 = vrot.slane %v4733, 2
    %v4802 = vsel %vm1271, %v4799, %v4801
    %v4803 = vrot.slane %v4735, 2
    %v4804 = vsel %vm1271, %v4801, %v4803
    %v4805 = vrot.slane %v4737, 2
    %v4806 = vsel %vm1271, %v4803, %v4805
    %4807 = vrot.lane.b32.xlu0 %v4792, 64
    %v4808 = vpop.permute.xlu0 %4807
    %4809 = vrot.lane.b32.xlu0 %v4794, 64
    %v4810 = vpop.permute.xlu0 %4809
    %4811 = vrot.lane.b32.xlu0 %v4796, 64
    %v4812 = vpop.permute.xlu0 %4811
    %4813 = vrot.lane.b32.xlu0 %v4798, 64
    %v4814 = vpop.permute.xlu0 %4813
    %4815 = vrot.lane.b32.xlu0 %v4800, 64
    %v4816 = vpop.permute.xlu0 %4815
    %4817 = vrot.lane.b32.xlu0 %v4802, 64
    %v4818 = vpop.permute.xlu0 %4817
    %4819 = vrot.lane.b32.xlu0 %v4804, 64
    %v4820 = vpop.permute.xlu0 %4819
    %4821 = vrot.lane.b32.xlu0 %v4806, 64
    %v4822 = vpop.permute.xlu0 %4821
    %v4831 = vrot.slane %v4747, 3
    %v4832 = vrot.slane %v4723, 3
    %v4833 = vsel %vm1401, %v4831, %v4832
    %v4834 = vrot.slane %v4725, 3
    %v4835 = vsel %vm1401, %v4832, %v4834
    %v4836 = vrot.slane %v4727, 3
    %v4837 = vsel %vm1401, %v4834, %v4836
    %v4838 = vrot.slane %v4729, 3
    %v4839 = vsel %vm1401, %v4836, %v4838
    %v4840 = vrot.slane %v4731, 3
    %v4841 = vsel %vm1401, %v4838, %v4840
    %v4842 = vrot.slane %v4733, 3
    %v4843 = vsel %vm1401, %v4840, %v4842
    %v4844 = vrot.slane %v4735, 3
    %v4845 = vsel %vm1401, %v4842, %v4844
    %v4846 = vrot.slane %v4737, 3
    %v4847 = vsel %vm1401, %v4844, %v4846
    %4848 = vrot.lane.b32.xlu0 %v4833, 96
    %v4849 = vpop.permute.xlu0 %4848
    %4850 = vrot.lane.b32.xlu0 %v4835, 96
    %v4851 = vpop.permute.xlu0 %4850
    %4852 = vrot.lane.b32.xlu0 %v4837, 96
    %v4853 = vpop.permute.xlu0 %4852
    %4854 = vrot.lane.b32.xlu0 %v4839, 96
    %v4855 = vpop.permute.xlu0 %4854
    %4856 = vrot.lane.b32.xlu0 %v4841, 96
    %v4857 = vpop.permute.xlu0 %4856
    %4858 = vrot.lane.b32.xlu0 %v4843, 96
    %v4859 = vpop.permute.xlu0 %4858
    %4860 = vrot.lane.b32.xlu0 %v4845, 96
    %v4861 = vpop.permute.xlu0 %4860
    %4862 = vrot.lane.b32.xlu0 %v4847, 96
    %v4863 = vpop.permute.xlu0 %4862
    %v4872 = vrot.slane %v4747, 4
    %v4873 = vrot.slane %v4723, 4
    %v4874 = vsel %vm1138, %v4872, %v4873
    %v4875 = vrot.slane %v4725, 4
    %v4876 = vsel %vm1138, %v4873, %v4875
    %v4877 = vrot.slane %v4727, 4
    %v4878 = vsel %vm1138, %v4875, %v4877
    %v4879 = vrot.slane %v4729, 4
    %v4880 = vsel %vm1138, %v4877, %v4879
    %v4881 = vrot.slane %v4731, 4
    %v4882 = vsel %vm1138, %v4879, %v4881
    %v4883 = vrot.slane %v4733, 4
    %v4884 = vsel %vm1138, %v4881, %v4883
    %v4885 = vrot.slane %v4735, 4
    %v4886 = vsel %vm1138, %v4883, %v4885
    %v4887 = vrot.slane %v4737, 4
    %v4888 = vsel %vm1138, %v4885, %v4887
    %v4897 = vrot.slane %v4747, 5
    %v4898 = vrot.slane %v4723, 5
    %v4899 = vsel %vm1056, %v4897, %v4898
    %v4900 = vrot.slane %v4725, 5
    %v4901 = vsel %vm1056, %v4898, %v4900
    %v4902 = vrot.slane %v4727, 5
    %v4903 = vsel %vm1056, %v4900, %v4902
    %v4904 = vrot.slane %v4729, 5
    %v4905 = vsel %vm1056, %v4902, %v4904
    %v4906 = vrot.slane %v4731, 5
    %v4907 = vsel %vm1056, %v4904, %v4906
    %v4908 = vrot.slane %v4733, 5
    %v4909 = vsel %vm1056, %v4906, %v4908
    %v4910 = vrot.slane %v4735, 5
    %v4911 = vsel %vm1056, %v4908, %v4910
    %v4912 = vrot.slane %v4737, 5
    %v4913 = vsel %vm1056, %v4910, %v4912
    %4914 = vrot.lane.b32.xlu0 %v4899, 32
    %v4915 = vpop.permute.xlu0 %4914
    %4916 = vrot.lane.b32.xlu0 %v4901, 32
    %v4917 = vpop.permute.xlu0 %4916
    %4918 = vrot.lane.b32.xlu0 %v4903, 32
    %v4919 = vpop.permute.xlu0 %4918
    %4920 = vrot.lane.b32.xlu0 %v4905, 32
    %v4921 = vpop.permute.xlu0 %4920
    %4922 = vrot.lane.b32.xlu0 %v4907, 32
    %v4923 = vpop.permute.xlu0 %4922
    %4924 = vrot.lane.b32.xlu0 %v4909, 32
    %v4925 = vpop.permute.xlu0 %4924
    %4926 = vrot.lane.b32.xlu0 %v4911, 32
    %v4927 = vpop.permute.xlu0 %4926
    %4928 = vrot.lane.b32.xlu0 %v4913, 32
    %v4929 = vpop.permute.xlu0 %4928
    %v4938 = vrot.slane %v4747, 6
    %v4939 = vrot.slane %v4723, 6
    %v4940 = vsel %vm361, %v4938, %v4939
    %v4941 = vrot.slane %v4725, 6
    %v4942 = vsel %vm361, %v4939, %v4941
    %v4943 = vrot.slane %v4727, 6
    %v4944 = vsel %vm361, %v4941, %v4943
    %v4945 = vrot.slane %v4729, 6
    %v4946 = vsel %vm361, %v4943, %v4945
    %v4947 = vrot.slane %v4731, 6
    %v4948 = vsel %vm361, %v4945, %v4947
    %v4949 = vrot.slane %v4733, 6
    %v4950 = vsel %vm361, %v4947, %v4949
    %v4951 = vrot.slane %v4735, 6
    %v4952 = vsel %vm361, %v4949, %v4951
    %v4953 = vrot.slane %v4737, 6
    %v4954 = vsel %vm361, %v4951, %v4953
    %4955 = vrot.lane.b32.xlu0 %v4940, 64
    %v4956 = vpop.permute.xlu0 %4955
    %4957 = vrot.lane.b32.xlu0 %v4942, 64
    %v4958 = vpop.permute.xlu0 %4957
    %4959 = vrot.lane.b32.xlu0 %v4944, 64
    %v4960 = vpop.permute.xlu0 %4959
    %4961 = vrot.lane.b32.xlu0 %v4946, 64
    %v4962 = vpop.permute.xlu0 %4961
    %4963 = vrot.lane.b32.xlu0 %v4948, 64
    %v4964 = vpop.permute.xlu0 %4963
    %4965 = vrot.lane.b32.xlu0 %v4950, 64
    %v4966 = vpop.permute.xlu0 %4965
    %4967 = vrot.lane.b32.xlu0 %v4952, 64
    %v4968 = vpop.permute.xlu0 %4967
    %4969 = vrot.lane.b32.xlu0 %v4954, 64
    %v4970 = vpop.permute.xlu0 %4969
    %v4979 = vrot.slane %v4747, 7
    %v4980 = vrot.slane %v4723, 7
    %v4981 = vsel %vm1925, %v4979, %v4980
    %v4982 = vrot.slane %v4725, 7
    %v4983 = vsel %vm1925, %v4980, %v4982
    %v4984 = vrot.slane %v4727, 7
    %v4985 = vsel %vm1925, %v4982, %v4984
    %v4986 = vrot.slane %v4729, 7
    %v4987 = vsel %vm1925, %v4984, %v4986
    %v4988 = vrot.slane %v4731, 7
    %v4989 = vsel %vm1925, %v4986, %v4988
    %v4990 = vrot.slane %v4733, 7
    %v4991 = vsel %vm1925, %v4988, %v4990
    %v4992 = vrot.slane %v4735, 7
    %v4993 = vsel %vm1925, %v4990, %v4992
    %v4994 = vrot.slane %v4737, 7
    %v4995 = vsel %vm1925, %v4992, %v4994
    %4996 = vrot.lane.b32.xlu0 %v4981, 96
    %v4997 = vpop.permute.xlu0 %4996
    %4998 = vrot.lane.b32.xlu0 %v4983, 96
    %v4999 = vpop.permute.xlu0 %4998
    %5000 = vrot.lane.b32.xlu0 %v4985, 96
    %v5001 = vpop.permute.xlu0 %5000
    %5002 = vrot.lane.b32.xlu0 %v4987, 96
    %v5003 = vpop.permute.xlu0 %5002
    %5004 = vrot.lane.b32.xlu0 %v4989, 96
    %v5005 = vpop.permute.xlu0 %5004
    %5006 = vrot.lane.b32.xlu0 %v4991, 96
    %v5007 = vpop.permute.xlu0 %5006
    %5008 = vrot.lane.b32.xlu0 %v4993, 96
    %v5009 = vpop.permute.xlu0 %5008
    %5010 = vrot.lane.b32.xlu0 %v4995, 96
    %v5011 = vpop.permute.xlu0 %5010
    %v5020 = vsel %vm1141, %v4764, %v4531
    %5021 = vrot.lane.b32.xlu0 %v5020, 32
    %v5022 = vpop.permute.xlu0 %5021
    %v5024 = vsel %vm2091, %v4747, %v4767
    %v5025 = vsel %vm2091, %v4723, %v4769
    %v5026 = vsel %vm2091, %v4725, %v4771
    %v5027 = vsel %vm2091, %v4727, %v4773
    %v5028 = vsel %vm2091, %v4729, %v4775
    %v5029 = vsel %vm2091, %v4731, %v4777
    %v5030 = vsel %vm2091, %v4733, %v4779
    %v5031 = vsel %vm2091, %v4735, %v4781
    %v5032 = vsel %vm2145, %v5024, %v4808
    %v5033 = vsel %vm2145, %v5025, %v4810
    %v5034 = vsel %vm2145, %v5026, %v4812
    %v5035 = vsel %vm2145, %v5027, %v4814
    %v5036 = vsel %vm2145, %v5028, %v4816
    %v5037 = vsel %vm2145, %v5029, %v4818
    %v5038 = vsel %vm2145, %v5030, %v4820
    %v5039 = vsel %vm2145, %v5031, %v4822
    %v5040 = vsel %vm2199, %v5032, %v4849
    %v5041 = vsel %vm2199, %v5033, %v4851
    %v5042 = vsel %vm2199, %v5034, %v4853
    %v5043 = vsel %vm2199, %v5035, %v4855
    %v5044 = vsel %vm2199, %v5036, %v4857
    %v5045 = vsel %vm2199, %v5037, %v4859
    %v5046 = vsel %vm2199, %v5038, %v4861
    %v5047 = vsel %vm2199, %v5039, %v4863
    %v5048 = vsel %vm2091, %v4874, %v4915
    %v5049 = vsel %vm2091, %v4876, %v4917
    %v5050 = vsel %vm2091, %v4878, %v4919
    %v5051 = vsel %vm2091, %v4880, %v4921
    %v5052 = vsel %vm2091, %v4882, %v4923
    %v5053 = vsel %vm2091, %v4884, %v4925
    %v5054 = vsel %vm2091, %v4886, %v4927
    %v5055 = vsel %vm2091, %v4888, %v4929
    %v5056 = vsel %vm2145, %v5048, %v4956
    %v5057 = vsel %vm2145, %v5049, %v4958
    %v5058 = vsel %vm2145, %v5050, %v4960
    %v5059 = vsel %vm2145, %v5051, %v4962
    %v5060 = vsel %vm2145, %v5052, %v4964
    %v5061 = vsel %vm2145, %v5053, %v4966
    %v5062 = vsel %vm2145, %v5054, %v4968
    %v5063 = vsel %vm2145, %v5055, %v4970
    %v5064 = vsel %vm2199, %v5056, %v4997
    %v5065 = vsel %vm2199, %v5057, %v4999
    %v5066 = vsel %vm2199, %v5058, %v5001
    %v5067 = vsel %vm2199, %v5059, %v5003
    %v5068 = vsel %vm2199, %v5060, %v5005
    %v5069 = vsel %vm2199, %v5061, %v5007
    %v5070 = vsel %vm2199, %v5062, %v5009
    %v5071 = vsel %vm2199, %v5063, %v5011
    %v5072 = vsel %vm2091, %v4737, %v5022
    %v5073 = vpack.c.bf16 %v5041, %v5040
    %v5074 = vpack.c.bf16 %v5065, %v5064
    %v5075 = vpack.c.bf16 %v5026, %v5025
    %v5076 = vpack.c.bf16 %v5043, %v5042
    %v5077 = vpack.c.bf16 %v5067, %v5066
    %v5078 = vpack.c.bf16 %v5028, %v5027
    %v5079 = vpack.c.bf16 %v5045, %v5044
    %v5080 = vpack.c.bf16 %v5069, %v5068
    %v5081 = vpack.c.bf16 %v5030, %v5029
    %v5082 = vpack.c.bf16 %v5047, %v5046
    %v5083 = vpack.c.bf16 %v5071, %v5070
    %v5084 = vpack.c.bf16 %v5072, %v5031
    %5085 = vmatprep.subr.bf16.mxu0 %v5074
    %5086 = vmatpush1.bf16.msra.mxu0 %v5073
    %5087 = vmatprep.subr.bf16.mxu0 %v5077
    %5088 = vmatpush1.bf16.msra.mxu0 %v5076
    %5089 = vmatprep.subr.bf16.mxu0 %v5080
    %5090 = vmatpush1.bf16.msra.mxu0 %v5079
    %5091 = vmatprep.subr.bf16.mxu0 %v5083
    %5092 = vmatpush1.bf16.msra.mxu0 %v5082
    %5093 = vmatprep.subr.bf16.mxu0 0
    %5094 = vmatpush1.bf16.msra.mxu0 0
    %5095 = vmatprep.subr.bf16.mxu0 0
    %5096 = vmatpush1.bf16.msra.mxu0 0
    %5097 = vmatprep.subr.bf16.mxu0 0
    %5098 = vmatpush1.bf16.msra.mxu0 0
    %5099 = vmatprep.subr.bf16.mxu0 0
    %5100 = vmatpush1.bf16.msra.mxu0 0
    %5101 = vmatprep.subr.bf16.mxu0 0
    %5102 = vmatpush1.bf16.msra.mxu0 0
    %5103 = vmatprep.subr.bf16.mxu0 0
    %5104 = vmatpush1.bf16.msra.mxu0 0
    %5105 = vmatprep.subr.bf16.mxu0 0
    %5106 = vmatpush1.bf16.msra.mxu0 0
    %5107 = vmatprep.subr.bf16.mxu0 0
    %5108 = vmatpush1.bf16.msra.mxu0 0
    %5109 = vmatprep.subr.bf16.mxu0 0
    %5110 = vmatpush1.bf16.msra.mxu0 0
    %5111 = vmatprep.subr.bf16.mxu0 0
    %5112 = vmatpush1.bf16.msra.mxu0 0
    %5113 = vmatprep.subr.bf16.mxu0 0
    %5114 = vmatpush1.bf16.msra.mxu0 0
    %5115 = vmatprep.subr.bf16.mxu0 0
    %5116 = vmatpush1.bf16.msra.mxu0 0
    %5117 = vmatprep.mubr.bf16.mxu0 0
    %5118 = vmatmul.mubr.bf16.gmra.mrb[0].mxu0 %v4606
    %v5119 = vpop.f32.mrb[0].mxu0
    %v5120 = vadd.f32 0.0, %v5119
    %v5121 = vpop.f32.mrb[0].mxu0
    %v5122 = vadd.f32 0.0, %v5121
    %v5123 = vpop.f32.mrb[0].mxu0
    %v5124 = vadd.f32 0.0, %v5123
    %v5125 = vpop.f32.mrb[0].mxu0
    %v5126 = vadd.f32 0.0, %v5125
    %5127 = vmatprep.mubr.bf16.mxu0 0
    %5128 = vmatmul.mubr.bf16.gmra.mrb[0].mxu0 %v4609
    %v5129 = vpop.f32.mrb[0].mxu0
    %v5130 = vadd.f32 0.0, %v5129
    %v5131 = vpop.f32.mrb[0].mxu0
    %v5132 = vadd.f32 0.0, %v5131
    %v5133 = vpop.f32.mrb[0].mxu0
    %v5134 = vpop.f32.mrb[0].mxu0
    %5135 = vdwg.mxu0
    %5136 = vmatprep.subr.bf16.mxu0 0
    %5137 = vmatpush1.bf16.msra.mxu0 %v5075
    %5138 = vmatprep.subr.bf16.mxu0 0
    %5139 = vmatpush1.bf16.msra.mxu0 %v5078
    %5140 = vmatprep.subr.bf16.mxu0 0
    %5141 = vmatpush1.bf16.msra.mxu0 %v5081
    %5142 = vmatprep.subr.bf16.mxu0 0
    %5143 = vmatpush1.bf16.msra.mxu0 %v5084
    %5144 = vmatprep.subr.bf16.mxu0 0
    %5145 = vmatpush1.bf16.msra.mxu0 0
    %5146 = vmatprep.subr.bf16.mxu0 0
    %5147 = vmatpush1.bf16.msra.mxu0 0
    %5148 = vmatprep.subr.bf16.mxu0 0
    %5149 = vmatpush1.bf16.msra.mxu0 0
    %5150 = vmatprep.subr.bf16.mxu0 0
    %5151 = vmatpush1.bf16.msra.mxu0 0
    %5152 = vmatprep.subr.bf16.mxu0 0
    %5153 = vmatpush1.bf16.msra.mxu0 0
    %5154 = vmatprep.subr.bf16.mxu0 0
    %5155 = vmatpush1.bf16.msra.mxu0 0
    %5156 = vmatprep.subr.bf16.mxu0 0
    %5157 = vmatpush1.bf16.msra.mxu0 0
    %5158 = vmatprep.subr.bf16.mxu0 0
    %5159 = vmatpush1.bf16.msra.mxu0 0
    %5160 = vmatprep.subr.bf16.mxu0 0
    %5161 = vmatpush1.bf16.msra.mxu0 0
    %5162 = vmatprep.subr.bf16.mxu0 0
    %5163 = vmatpush1.bf16.msra.mxu0 0
    %5164 = vmatprep.subr.bf16.mxu0 0
    %5165 = vmatpush1.bf16.msra.mxu0 0
    %5166 = vmatprep.subr.bf16.mxu0 0
    %5167 = vmatpush1.bf16.msra.mxu0 0
    %5168 = vmatprep.mubr.bf16.mxu0 0
    %5169 = vmatmul.mubr.bf16.gmra.mrb[0].mxu0 %v4606
    %v5170 = vpop.f32.mrb[0].mxu0
    %v5171 = vadd.f32 0.0, %v5170
    %v5172 = vpop.f32.mrb[0].mxu0
    %v5173 = vpop.f32.mrb[0].mxu0
    %v5174 = vadd.f32 0.0, %v5173
    %v5175 = vpop.f32.mrb[0].mxu0
    %5176 = vmatprep.mubr.bf16.mxu0 0
    %5177 = vmatmul.mubr.bf16.gmra.mrb[0].mxu0 %v4609
    %v5178 = vpop.f32.mrb[0].mxu0
    %v5179 = vadd.f32 0.0, %v5178
    %v5180 = vpop.f32.mrb[0].mxu0
    %v5181 = vpop.f32.mrb[0].mxu0
    %v5182 = vpop.f32.mrb[0].mxu0
    %5183 = vdwg.mxu0
    %v5193 = vrot.slane %v5120, 2
    %v5194 = vrot.slane %v5122, 2
    %v5195 = vrot.slane %v5171, 2
    %v5196 = vrot.slane %v5124, 2
    %v5197 = vsel %vm1271, %v5193, %v5196
    %v5198 = vrot.slane %v5126, 2
    %v5199 = vsel %vm1271, %v5194, %v5198
    %v5200 = vrot.slane %v5174, 2
    %v5201 = vsel %vm1271, %v5195, %v5200
    %v5202 = vrot.slane %v5130, 2
    %v5203 = vsel %vm1271, %v5196, %v5202
    %v5204 = vrot.slane %v5132, 2
    %v5205 = vsel %vm1271, %v5198, %v5204
    %v5206 = vrot.slane %v5179, 2
    %v5207 = vsel %vm1271, %v5200, %v5206
    %v5220 = vsel %vm1271, %v4656, %v5193
    %v5221 = vsel %vm1271, %v4658, %v5194
    %v5222 = vsel %vm1271, %v4705, %v5195
    %v5223 = vpack.c.bf16 %v4650, %v4646
    %v5224 = vpack.c.bf16 %v4652, %v4648
    %v5225 = vpack.c.bf16 %v4700, %v4697
    %v5226 = vpack.c.bf16 %v5197, %v5220
    %v5227 = vpack.c.bf16 %v5199, %v5221
    %v5228 = vpack.c.bf16 %v5201, %v5222
    %v5229 = vpack.c.bf16 %v5202, %v5203
    %v5230 = vpack.c.bf16 %v5204, %v5205
    %v5231 = vpack.c.bf16 %v5206, %v5207
    %v5232 = vld [vmem:[%s9] sm:$0xf]
    %v5233 = vld [vmem:[%s9 + $0x4] sm:$0xf]
    %v5234 = vld [vmem:[%s9 + $0x8] sm:$0xf]
    %v5235 = vld [vmem:[%s9 + $0xc] sm:$0xf]
    %v5236 = vld [vmem:[%s9 + $0x10] sm:$0xf]
    %v5237 = vld [vmem:[%s9 + $0x14] sm:$0xf]
    %v5238 = vld [vmem:[%s9 + $0x18] sm:$0xf]
    %v5239 = vld [vmem:[%s9 + $0x1c] sm:$0xf]
    %v5240 = vld [vmem:[%s9 + $0x20] sm:$0xf]
    %v5241 = vld [vmem:[%s9 + $0x24] sm:$0xf]
    %v5242 = vld [vmem:[%s9 + $0x28] sm:$0xf]
    %v5243 = vld [vmem:[%s9 + $0x2c] sm:$0xf]
    %v5244 = vld [vmem:[%s9 + $0x30] sm:$0xf]
    %v5245 = vld [vmem:[%s9 + $0x34] sm:$0xf]
    %v5246 = vld [vmem:[%s9 + $0x38] sm:$0xf]
    %v5247 = vld [vmem:[%s9 + $0x3c] sm:$0xf]
    %v5248 = vld [vmem:[%s9 + $0x40] sm:$0xf]
    %v5249 = vld [vmem:[%s9 + $0x44] sm:$0xf]
    %v5250 = vld [vmem:[%s9 + $0x48] sm:$0xf]
    %v5251 = vld [vmem:[%s9 + $0x4c] sm:$0xf]
    %v5252 = vld [vmem:[%s9 + $0x50] sm:$0xf]
    %v5253 = vld [vmem:[%s9 + $0x54] sm:$0xf]
    %v5254 = vld [vmem:[%s9 + $0x58] sm:$0xf]
    %v5255 = vld [vmem:[%s9 + $0x5c] sm:$0xf]
    %v5256 = vld [vmem:[%s9 + $0x60] sm:$0xf]
    %v5257 = vld [vmem:[%s9 + $0x64] sm:$0xf]
    %v5258 = vld [vmem:[%s9 + $0x68] sm:$0xf]
    %v5259 = vld [vmem:[%s9 + $0x6c] sm:$0xf]
    %v5260 = vld [vmem:[%s9 + $0x70] sm:$0xf]
    %v5261 = vld [vmem:[%s9 + $0x74] sm:$0xf]
    %v5262 = vld [vmem:[%s9 + $0x78] sm:$0xf]
    %v5263 = vld [vmem:[%s9 + $0x7c] sm:$0xf]
    %v5264 = vld [vmem:[%s9 + $0x80] sm:$0xf]
    %v5265 = vld [vmem:[%s9 + $0x84] sm:$0xf]
    %v5266 = vld [vmem:[%s9 + $0x88] sm:$0xf]
    %v5267 = vld [vmem:[%s9 + $0x8c] sm:$0xf]
    %v5268 = vld [vmem:[%s9 + $0x90] sm:$0xf]
    %v5269 = vld [vmem:[%s9 + $0x94] sm:$0xf]
    %v5270 = vld [vmem:[%s9 + $0x98] sm:$0xf]
    %v5271 = vld [vmem:[%s9 + $0x9c] sm:$0xf]
    %v5312 = vunpack.c.l.b16 %v5232
    %v5313 = vunpack.c.l.b16 %v5233
    %v5314 = vunpack.c.l.b16 %v5234
    %v5315 = vunpack.c.l.b16 %v5235
    %v5316 = vunpack.c.l.b16 %v5236
    %v5317 = vunpack.c.l.b16 %v5237
    %v5318 = vunpack.c.l.b16 %v5238
    %v5319 = vunpack.c.l.b16 %v5239
    %v5320 = vunpack.c.l.b16 %v5240
    %v5321 = vunpack.c.l.b16 %v5241
    %v5322 = vunpack.c.l.b16 %v5242
    %v5323 = vunpack.c.l.b16 %v5243
    %v5324 = vunpack.c.l.b16 %v5244
    %v5325 = vunpack.c.l.b16 %v5245
    %v5326 = vunpack.c.l.b16 %v5246
    %v5327 = vunpack.c.l.b16 %v5247
    %v5328 = vunpack.c.l.b16 %v5248
    %v5329 = vunpack.c.l.b16 %v5249
    %v5330 = vunpack.c.l.b16 %v5250
    %v5331 = vunpack.c.l.b16 %v5251
    %v5332 = vunpack.c.l.b16 %v5252
    %v5333 = vunpack.c.l.b16 %v5253
    %v5334 = vunpack.c.l.b16 %v5254
    %v5335 = vunpack.c.l.b16 %v5255
    %v5336 = vunpack.c.l.b16 %v5256
    %v5337 = vunpack.c.l.b16 %v5257
    %v5338 = vunpack.c.l.b16 %v5258
    %v5339 = vunpack.c.l.b16 %v5259
    %v5340 = vunpack.c.l.b16 %v5260
    %v5341 = vunpack.c.l.b16 %v5261
    %v5342 = vunpack.c.l.b16 %v5262
    %v5343 = vunpack.c.l.b16 %v5263
    %v5344 = vunpack.c.l.b16 %v5264
    %v5345 = vunpack.c.l.b16 %v5265
    %v5346 = vunpack.c.l.b16 %v5266
    %v5347 = vunpack.c.l.b16 %v5267
    %v5348 = vunpack.c.l.b16 %v5268
    %v5349 = vunpack.c.l.b16 %v5269
    %v5350 = vunpack.c.l.b16 %v5270
    %v5351 = vunpack.c.l.b16 %v5271
    %v5352 = vpack.c.b16 %v5313, %v5312
    %v5353 = vpack.c.b16 %v5315, %v5314
    %v5354 = vpack.c.b16 %v5317, %v5316
    %v5355 = vpack.c.b16 %v5319, %v5318
    %v5356 = vpack.c.b16 %v5321, %v5320
    %v5357 = vpack.c.b16 %v5323, %v5322
    %v5358 = vpack.c.b16 %v5325, %v5324
    %v5359 = vpack.c.b16 %v5327, %v5326
    %v5360 = vpack.c.b16 %v5329, %v5328
    %v5361 = vpack.c.b16 %v5331, %v5330
    %v5362 = vpack.c.b16 %v5333, %v5332
    %v5363 = vpack.c.b16 %v5335, %v5334
    %v5364 = vpack.c.b16 %v5337, %v5336
    %v5365 = vpack.c.b16 %v5339, %v5338
    %v5366 = vpack.c.b16 %v5341, %v5340
    %v5367 = vpack.c.b16 %v5343, %v5342
    %v5368 = vpack.c.b16 %v5345, %v5344
    %v5369 = vpack.c.b16 %v5347, %v5346
    %v5370 = vpack.c.b16 %v5349, %v5348
    %v5371 = vpack.c.b16 %v5351, %v5350
    %v5393 = vsel %vm2145, %v5225, 0
    %v5396 = vsel %vm2145, %v5228, 0
    %v5399 = vsel %vm2145, %v5231, 0
    %5401 = vmatprep.subr.bf16.mxu0 0
    %5402 = vmatpush1.bf16.msra.mxu0 %v5352
    %5403 = vmatprep.subr.bf16.mxu0 0
    %5404 = vmatpush1.bf16.msra.mxu0 %v5353
    %5405 = vmatprep.subr.bf16.mxu0 0
    %5406 = vmatpush1.bf16.msra.mxu0 %v5354
    %5407 = vmatprep.subr.bf16.mxu0 0
    %5408 = vmatpush1.bf16.msra.mxu0 %v5355
    %5409 = vmatprep.subr.bf16.mxu0 0
    %5410 = vmatpush1.bf16.msra.mxu0 %v5356
    %5411 = vmatprep.subr.bf16.mxu0 0
    %5412 = vmatpush1.bf16.msra.mxu0 %v5357
    %5413 = vmatprep.subr.bf16.mxu0 0
    %5414 = vmatpush1.bf16.msra.mxu0 %v5358
    %5415 = vmatprep.subr.bf16.mxu0 0
    %5416 = vmatpush1.bf16.msra.mxu0 %v5359
    %5417 = vmatprep.subr.bf16.mxu0 0
    %5418 = vmatpush1.bf16.msra.mxu0 %v5360
    %5419 = vmatprep.subr.bf16.mxu0 0
    %5420 = vmatpush1.bf16.msra.mxu0 %v5361
    %5421 = vmatprep.subr.bf16.mxu0 0
    %5422 = vmatpush1.bf16.msra.mxu0 %v5362
    %5423 = vmatprep.subr.bf16.mxu0 0
    %5424 = vmatpush1.bf16.msra.mxu0 %v5363
    %5425 = vmatprep.subr.bf16.mxu0 0
    %5426 = vmatpush1.bf16.msra.mxu0 %v5364
    %5427 = vmatprep.subr.bf16.mxu0 0
    %5428 = vmatpush1.bf16.msra.mxu0 %v5365
    %5429 = vmatprep.subr.bf16.mxu0 0
    %5430 = vmatpush1.bf16.msra.mxu0 %v5366
    %5431 = vmatprep.subr.bf16.mxu0 0
    %5432 = vmatpush1.bf16.msra.mxu0 %v5367
    %5433 = vmatprep.mubr.bf16.mxu0 %v5224
    %5434 = vmatmul.mubr.bf16.gmra.mrb[0].mxu0 %v5223
    %v5435 = vpop.f32.mrb[0].mxu0
    %v5436 = vadd.f32 0.0, %v5435
    %v5437 = vpop.f32.mrb[0].mxu0
    %v5438 = vpop.f32.mrb[0].mxu0
    %v5439 = vadd.f32 0.0, %v5438
    %v5440 = vpop.f32.mrb[0].mxu0
    %5441 = vmatprep.mubr.bf16.mxu0 %v5227
    %5442 = vmatmul.mubr.bf16.gmra.mrb[0].mxu0 %v5226
    %v5443 = vpop.f32.mrb[0].mxu0
    %v5444 = vadd.f32 0.0, %v5443
    %v5445 = vpop.f32.mrb[0].mxu0
    %v5446 = vpop.f32.mrb[0].mxu0
    %v5447 = vadd.f32 0.0, %v5446
    %v5448 = vpop.f32.mrb[0].mxu0
    %5449 = vmatprep.mubr.bf16.mxu0 %v5230
    %5450 = vmatmul.mubr.bf16.gmra.mrb[0].mxu0 %v5229
    %v5451 = vpop.f32.mrb[0].mxu0
    %v5452 = vadd.f32 0.0, %v5451
    %v5453 = vpop.f32.mrb[0].mxu0
    %v5454 = vpop.f32.mrb[0].mxu0
    %v5455 = vadd.f32 0.0, %v5454
    %v5456 = vpop.f32.mrb[0].mxu0
    %5457 = vdwg.mxu0
    %5458 = vmatprep.subr.bf16.mxu0 0
    %5459 = vmatpush1.bf16.msra.mxu0 %v5368
    %5460 = vmatprep.subr.bf16.mxu0 0
    %5461 = vmatpush1.bf16.msra.mxu0 %v5369
    %5462 = vmatprep.subr.bf16.mxu0 0
    %5463 = vmatpush1.bf16.msra.mxu0 %v5370
    %5464 = vmatprep.subr.bf16.mxu0 0
    %5465 = vmatpush1.bf16.msra.mxu0 %v5371
    %5466 = vmatprep.subr.bf16.mxu0 0
    %5467 = vmatpush1.bf16.msra.mxu0 0
    %5468 = vmatprep.subr.bf16.mxu0 0
    %5469 = vmatpush1.bf16.msra.mxu0 0
    %5470 = vmatprep.subr.bf16.mxu0 0
    %5471 = vmatpush1.bf16.msra.mxu0 0
    %5472 = vmatprep.subr.bf16.mxu0 0
    %5473 = vmatpush1.bf16.msra.mxu0 0
    %5474 = vmatprep.subr.bf16.mxu0 0
    %5475 = vmatpush1.bf16.msra.mxu0 0
    %5476 = vmatprep.subr.bf16.mxu0 0
    %5477 = vmatpush1.bf16.msra.mxu0 0
    %5478 = vmatprep.subr.bf16.mxu0 0
    %5479 = vmatpush1.bf16.msra.mxu0 0
    %5480 = vmatprep.subr.bf16.mxu0 0
    %5481 = vmatpush1.bf16.msra.mxu0 0
    %5482 = vmatprep.subr.bf16.mxu0 0
    %5483 = vmatpush1.bf16.msra.mxu0 0
    %5484 = vmatprep.subr.bf16.mxu0 0
    %5485 = vmatpush1.bf16.msra.mxu0 0
    %5486 = vmatprep.subr.bf16.mxu0 0
    %5487 = vmatpush1.bf16.msra.mxu0 0
    %5488 = vmatprep.subr.bf16.mxu0 0
    %5489 = vmatpush1.bf16.msra.mxu0 0
    %5490 = vmatprep.mubr.bf16.mxu0 0
    %5491 = vmatmul.mubr.bf16.gmra.mrb[0].mxu0 %v5393
    %v5492 = vpop.f32.mrb[0].mxu0
    %v5493 = vadd.f32 %v5436, %v5492
    %v5494 = vpop.f32.mrb[0].mxu0
    %v5495 = vpop.f32.mrb[0].mxu0
    %v5496 = vadd.f32 %v5439, %v5495
    %v5497 = vpop.f32.mrb[0].mxu0
    %5498 = vmatprep.mubr.bf16.mxu0 0
    %5499 = vmatmul.mubr.bf16.gmra.mrb[0].mxu0 %v5396
    %v5500 = vpop.f32.mrb[0].mxu0
    %v5501 = vadd.f32 %v5444, %v5500
    %v5502 = vpop.f32.mrb[0].mxu0
    %v5503 = vpop.f32.mrb[0].mxu0
    %v5504 = vadd.f32 %v5447, %v5503
    %v5505 = vpop.f32.mrb[0].mxu0
    %5506 = vmatprep.mubr.bf16.mxu0 0
    %5507 = vmatmul.mubr.bf16.gmra.mrb[0].mxu0 %v5399
    %v5508 = vpop.f32.mrb[0].mxu0
    %v5509 = vadd.f32 %v5452, %v5508
    %v5510 = vpop.f32.mrb[0].mxu0
    %v5511 = vpop.f32.mrb[0].mxu0
    %v5512 = vadd.f32 %v5455, %v5511
    %v5513 = vpop.f32.mrb[0].mxu0
    %5514 = vdwg.mxu0
    %v5515 = vsel %vm2145, %v5493, 0.0
    %v5516 = vsel %vm2145, %v5496, 0.0
    %v5517 = vadd.f32 %v5515, %v5516
    %v5518 = vsel %vm2145, %v5501, 0.0
    %v5519 = vadd.f32 %v5517, %v5518
    %v5520 = vsel %vm2145, %v5504, 0.0
    %v5521 = vadd.f32 %v5519, %v5520
    %v5522 = vsel %vm2145, %v5509, 0.0
    %v5523 = vadd.f32 %v5521, %v5522
    %vm5524 = vcmask 519168
    %v5525 = vsel %vm5524, %v5512, 0.0
    %v5526 = vadd.f32 %v5523, %v5525
    %v5527 = vrot.slane %v5526, 4
    %v5528 = vadd.f32 %v5526, %v5527
    %v5529 = vrot.slane %v5528, 2
    %v5530 = vadd.f32 %v5528, %v5529
    %v5531 = vrot.slane %v5530, 1
    %v5532 = vadd.f32 %v5530, %v5531
    %v5533 = vmul.f32 %v5532, 0.022727273
    %v5534 = vmul.f32 %v5493, %v5493
    %v5535 = vmul.f32 %v5496, %v5496
    %v5536 = vmul.f32 %v5501, %v5501
    %v5537 = vmul.f32 %v5504, %v5504
    %v5538 = vmul.f32 %v5509, %v5509
    %v5539 = vmul.f32 %v5512, %v5512
    %v5540 = vsel %vm2145, %v5534, 0.0
    %v5541 = vsel %vm2145, %v5535, 0.0
    %v5542 = vadd.f32 %v5540, %v5541
    %v5543 = vsel %vm2145, %v5536, 0.0
    %v5544 = vadd.f32 %v5542, %v5543
    %v5545 = vsel %vm2145, %v5537, 0.0
    %v5546 = vadd.f32 %v5544, %v5545
    %v5547 = vsel %vm2145, %v5538, 0.0
    %v5548 = vadd.f32 %v5546, %v5547
    %v5549 = vsel %vm5524, %v5539, 0.0
    %v5550 = vadd.f32 %v5548, %v5549
    %v5551 = vrot.slane %v5550, 4
    %v5552 = vadd.f32 %v5550, %v5551
    %v5553 = vrot.slane %v5552, 2
    %v5554 = vadd.f32 %v5552, %v5553
    %v5555 = vrot.slane %v5554, 1
    %v5556 = vadd.f32 %v5554, %v5555
    %v5557 = vmul.f32 %v5556, 0.022727273
    %v5558 = vmul.f32 %v5533, %v5533
    %v5559 = vsub.f32 %v5557, %v5558
    %v5560 = vmax.f32 %v5559, 0.0
    %v5561 = vld [vmem:[%s10] sm:$0x1]
    %v5562 = vadd.f32 %v5560, 1e-05
    %v5563 = vrsqrt.pop %v5562
    %v5564 = vmul.f32 %v5561, %v5563
    %v5565 = vld [vmem:[%s11] sm:$0x1]
    %v5566 = vmul.f32 %v5533, %v5564
    %v5567 = vsub.f32 %v5565, %v5566
    %v5569 = vlaneseq
    %v5570 = vshrl.u32 %v5569, 7
    %v5571 = vsub.s32 0, %v5570
    %v5572 = vrot.slane %v5564, %v5571
    %v5574 = vmul.f32 %v5493, %v5572
    %v5575 = vmul.f32 %v5496, %v5572
    %v5576 = vmul.f32 %v5501, %v5572
    %v5577 = vmul.f32 %v5504, %v5572
    %v5578 = vmul.f32 %v5509, %v5572
    %v5579 = vmul.f32 %v5512, %v5572
    %v5581 = vlaneseq
    %v5582 = vshrl.u32 %v5581, 7
    %v5583 = vsub.s32 0, %v5582
    %v5584 = vrot.slane %v5567, %v5583
    %v5586 = vadd.f32 %v5574, %v5584
    %v5587 = vadd.f32 %v5575, %v5584
    %v5588 = vadd.f32 %v5576, %v5584
    %v5589 = vadd.f32 %v5577, %v5584
    %v5590 = vadd.f32 %v5578, %v5584
    %v5591 = vadd.f32 %v5579, %v5584
    %v5592 = vld [vmem:[%s12] sm:$0xf]
    %v5596 = vrot.slane %v5586, 5
    %v5597 = vrot.slane %v5587, 5
    %v5598 = vsel %vm1056, %v5596, %v5597
    %v5599 = vrot.slane %v5588, 5
    %v5600 = vsel %vm1056, %v5597, %v5599
    %v5605 = vsel %vm1056, 0.0, %v5596
    %v5606 = vsel %vm1925, %v5599, 0.0
    %v5608 = vrot.slane %v5605, 1
    %v5609 = vrot.slane %v5598, 1
    %v5610 = vsel %vm1141, %v5608, %v5609
    %v5611 = vrot.slane %v5600, 1
    %v5612 = vsel %vm1141, %v5609, %v5611
    %5613 = vrot.lane.b32.xlu0 %v5610, 64
    %v5614 = vpop.permute.xlu0 %5613
    %5615 = vrot.lane.b32.xlu0 %v5612, 64
    %v5616 = vpop.permute.xlu0 %5615
    %5617 = vrot.lane.b32.xlu0 %v5611, 64
    %v5618 = vpop.permute.xlu0 %5617
    %v5622 = vrot.slane %v5605, 2
    %v5623 = vrot.slane %v5598, 2
    %v5624 = vsel %vm1271, %v5622, %v5623
    %v5625 = vrot.slane %v5600, 2
    %v5626 = vsel %vm1271, %v5623, %v5625
    %v5630 = vrot.slane %v5605, 3
    %v5631 = vrot.slane %v5598, 3
    %v5632 = vsel %vm1401, %v5630, %v5631
    %v5633 = vrot.slane %v5600, 3
    %v5634 = vsel %vm1401, %v5631, %v5633
    %5635 = vrot.lane.b32.xlu0 %v5632, 64
    %v5636 = vpop.permute.xlu0 %5635
    %5637 = vrot.lane.b32.xlu0 %v5634, 64
    %v5638 = vpop.permute.xlu0 %5637
    %5639 = vrot.lane.b32.xlu0 %v5633, 64
    %v5640 = vpop.permute.xlu0 %5639
    %v5644 = vrot.slane %v5605, 4
    %v5645 = vrot.slane %v5598, 4
    %v5646 = vsel %vm1138, %v5644, %v5645
    %v5647 = vrot.slane %v5600, 4
    %v5648 = vsel %vm1138, %v5645, %v5647
    %v5652 = vrot.slane %v5605, 5
    %v5653 = vrot.slane %v5598, 5
    %v5654 = vsel %vm1056, %v5652, %v5653
    %v5655 = vrot.slane %v5600, 5
    %v5656 = vsel %vm1056, %v5653, %v5655
    %5657 = vrot.lane.b32.xlu0 %v5654, 64
    %v5658 = vpop.permute.xlu0 %5657
    %5659 = vrot.lane.b32.xlu0 %v5656, 64
    %v5660 = vpop.permute.xlu0 %5659
    %5661 = vrot.lane.b32.xlu0 %v5655, 64
    %v5662 = vpop.permute.xlu0 %5661
    %v5667 = vrot.slane %v5605, 6
    %v5668 = vrot.slane %v5598, 6
    %v5669 = vsel %vm361, %v5667, %v5668
    %v5670 = vrot.slane %v5600, 6
    %v5671 = vsel %vm361, %v5668, %v5670
    %v5672 = vrot.slane %v5606, 6
    %v5673 = vsel %vm361, %v5670, %v5672
    %v5677 = vrot.slane %v5605, 7
    %v5678 = vrot.slane %v5598, 7
    %v5679 = vsel %vm1925, %v5677, %v5678
    %v5680 = vrot.slane %v5600, 7
    %v5681 = vsel %vm1925, %v5678, %v5680
    %v5682 = vrot.slane %v5606, 7
    %v5683 = vsel %vm1925, %v5680, %v5682
    %5684 = vrot.lane.b32.xlu0 %v5679, 64
    %v5685 = vpop.permute.xlu0 %5684
    %5686 = vrot.lane.b32.xlu0 %v5681, 64
    %v5687 = vpop.permute.xlu0 %5686
    %5688 = vrot.lane.b32.xlu0 %v5683, 64
    %v5689 = vpop.permute.xlu0 %5688
    %v5693 = vrot.slane %v5606, 1
    %v5694 = vsel %vm1141, %v5611, %v5693
    %5695 = vrot.lane.b32.xlu0 %v5694, 64
    %v5696 = vpop.permute.xlu0 %5695
    %5697 = vrot.lane.b32.xlu0 %v5693, 64
    %v5698 = vpop.permute.xlu0 %5697
    %v5701 = vsel %vm2145, %v5605, %v5614
    %v5702 = vsel %vm2145, %v5598, %v5616
    %v5703 = vsel %vm2145, %v5600, %v5618
    %v5704 = vsel %vm2145, %v5624, %v5636
    %v5705 = vsel %vm2145, %v5626, %v5638
    %v5706 = vsel %vm2145, %v5625, %v5640
    %v5707 = vsel %vm2145, %v5646, %v5658
    %v5708 = vsel %vm2145, %v5648, %v5660
    %v5709 = vsel %vm2145, %v5647, %v5662
    %v5710 = vsel %vm2145, %v5669, %v5685
    %v5711 = vsel %vm2145, %v5671, %v5687
    %v5712 = vsel %vm2145, %v5673, %v5689
    %v5713 = vsel %vm2145, %v5600, %v5696
    %v5714 = vsel %vm2145, %v5606, %v5698
    %v5715 = vpack.c.bf16 %v5702, %v5701
    %v5716 = vpack.c.bf16 %v5705, %v5704
    %v5717 = vpack.c.bf16 %v5708, %v5707
    %v5718 = vpack.c.bf16 %v5711, %v5710
    %v5719 = vpack.c.bf16 %v5713, %v5702
    %v5720 = vpack.c.bf16 %v5703, %v5703
    %v5721 = vpack.c.bf16 %v5706, %v5706
    %v5722 = vpack.c.bf16 %v5709, %v5709
    %v5723 = vpack.c.bf16 %v5712, %v5712
    %v5724 = vpack.c.bf16 %v5714, %v5714
    %vm5725 = vcmask 154624
    %v5727 = vsel %vm5725, %v5592, 0
    %v5729 = vsel %vm1925, 4294967295, 65535
    %v5730 = vsel %vm361, %v5729, 0
    %v5732 = vand.u32 %v5720, %v5730
    %v5735 = vand.u32 %v5721, %v5730
    %v5738 = vand.u32 %v5722, %v5730
    %v5741 = vand.u32 %v5723, %v5730
    %v5744 = vand.u32 %v5724, %v5730
    %5746 = vmatprep.subr.bf16.mxu0 %v5716
    %5747 = vmatpush1.bf16.msra.mxu0 %v5715
    %5748 = vmatprep.subr.bf16.mxu0 %v5735
    %5749 = vmatpush1.bf16.msra.mxu0 %v5732
    %5750 = vmatprep.subr.bf16.mxu0 0
    %5751 = vmatpush1.bf16.msra.mxu0 0
    %5752 = vmatprep.subr.bf16.mxu0 0
    %5753 = vmatpush1.bf16.msra.mxu0 0
    %5754 = vmatprep.subr.bf16.mxu0 0
    %5755 = vmatpush1.bf16.msra.mxu0 0
    %5756 = vmatprep.subr.bf16.mxu0 0
    %5757 = vmatpush1.bf16.msra.mxu0 0
    %5758 = vmatprep.subr.bf16.mxu0 0
    %5759 = vmatpush1.bf16.msra.mxu0 0
    %5760 = vmatprep.subr.bf16.mxu0 0
    %5761 = vmatpush1.bf16.msra.mxu0 0
    %5762 = vmatprep.subr.bf16.mxu0 0
    %5763 = vmatpush1.bf16.msra.mxu0 0
    %5764 = vmatprep.subr.bf16.mxu0 0
    %5765 = vmatpush1.bf16.msra.mxu0 0
    %5766 = vmatprep.subr.bf16.mxu0 0
    %5767 = vmatpush1.bf16.msra.mxu0 0
    %5768 = vmatprep.subr.bf16.mxu0 0
    %5769 = vmatpush1.bf16.msra.mxu0 0
    %5770 = vmatprep.subr.bf16.mxu0 0
    %5771 = vmatpush1.bf16.msra.mxu0 0
    %5772 = vmatprep.subr.bf16.mxu0 0
    %5773 = vmatpush1.bf16.msra.mxu0 0
    %5774 = vmatprep.subr.bf16.mxu0 0
    %5775 = vmatpush1.bf16.msra.mxu0 0
    %5776 = vmatprep.subr.bf16.mxu0 0
    %5777 = vmatpush1.bf16.msra.mxu0 0
    %5778 = vmatprep.mubr.bf16.mxu0 0
    %5779 = vmatmul.mubr.bf16.gmra.mrb[0].mxu0 %v5727
    %v5780 = vpop.f32.mrb[0].mxu0
    %v5781 = vadd.f32 0.0, %v5780
    %v5782 = vpop.f32.mrb[0].mxu0
    %v5783 = vadd.f32 0.0, %v5782
    %v5784 = vpop.f32.mrb[0].mxu0
    %v5785 = vpop.f32.mrb[0].mxu0
    %5786 = vdwg.mxu0
    %5787 = vmatprep.subr.bf16.mxu0 %v5718
    %5788 = vmatpush1.bf16.msra.mxu0 %v5717
    %5789 = vmatprep.subr.bf16.mxu0 %v5741
    %5790 = vmatpush1.bf16.msra.mxu0 %v5738
    %5791 = vmatprep.subr.bf16.mxu0 0
    %5792 = vmatpush1.bf16.msra.mxu0 0
    %5793 = vmatprep.subr.bf16.mxu0 0
    %5794 = vmatpush1.bf16.msra.mxu0 0
    %5795 = vmatprep.subr.bf16.mxu0 0
    %5796 = vmatpush1.bf16.msra.mxu0 0
    %5797 = vmatprep.subr.bf16.mxu0 0
    %5798 = vmatpush1.bf16.msra.mxu0 0
    %5799 = vmatprep.subr.bf16.mxu0 0
    %5800 = vmatpush1.bf16.msra.mxu0 0
    %5801 = vmatprep.subr.bf16.mxu0 0
    %5802 = vmatpush1.bf16.msra.mxu0 0
    %5803 = vmatprep.subr.bf16.mxu0 0
    %5804 = vmatpush1.bf16.msra.mxu0 0
    %5805 = vmatprep.subr.bf16.mxu0 0
    %5806 = vmatpush1.bf16.msra.mxu0 0
    %5807 = vmatprep.subr.bf16.mxu0 0
    %5808 = vmatpush1.bf16.msra.mxu0 0
    %5809 = vmatprep.subr.bf16.mxu0 0
    %5810 = vmatpush1.bf16.msra.mxu0 0
    %5811 = vmatprep.subr.bf16.mxu0 0
    %5812 = vmatpush1.bf16.msra.mxu0 0
    %5813 = vmatprep.subr.bf16.mxu0 0
    %5814 = vmatpush1.bf16.msra.mxu0 0
    %5815 = vmatprep.subr.bf16.mxu0 0
    %5816 = vmatpush1.bf16.msra.mxu0 0
    %5817 = vmatprep.subr.bf16.mxu0 0
    %5818 = vmatpush1.bf16.msra.mxu0 0
    %5819 = vmatprep.mubr.bf16.mxu0 0
    %5820 = vmatmul.mubr.bf16.gmra.mrb[0].mxu0 %v5727
    %v5821 = vpop.f32.mrb[0].mxu0
    %v5822 = vadd.f32 0.0, %v5821
    %v5823 = vpop.f32.mrb[0].mxu0
    %v5824 = vadd.f32 0.0, %v5823
    %v5825 = vpop.f32.mrb[0].mxu0
    %v5826 = vpop.f32.mrb[0].mxu0
    %5827 = vdwg.mxu0
    %5828 = vmatprep.subr.bf16.mxu0 0
    %5829 = vmatpush1.bf16.msra.mxu0 %v5719
    %5830 = vmatprep.subr.bf16.mxu0 0
    %5831 = vmatpush1.bf16.msra.mxu0 %v5744
    %5832 = vmatprep.subr.bf16.mxu0 0
    %5833 = vmatpush1.bf16.msra.mxu0 0
    %5834 = vmatprep.subr.bf16.mxu0 0
    %5835 = vmatpush1.bf16.msra.mxu0 0
    %5836 = vmatprep.subr.bf16.mxu0 0
    %5837 = vmatpush1.bf16.msra.mxu0 0
    %5838 = vmatprep.subr.bf16.mxu0 0
    %5839 = vmatpush1.bf16.msra.mxu0 0
    %5840 = vmatprep.subr.bf16.mxu0 0
    %5841 = vmatpush1.bf16.msra.mxu0 0
    %5842 = vmatprep.subr.bf16.mxu0 0
    %5843 = vmatpush1.bf16.msra.mxu0 0
    %5844 = vmatprep.subr.bf16.mxu0 0
    %5845 = vmatpush1.bf16.msra.mxu0 0
    %5846 = vmatprep.subr.bf16.mxu0 0
    %5847 = vmatpush1.bf16.msra.mxu0 0
    %5848 = vmatprep.subr.bf16.mxu0 0
    %5849 = vmatpush1.bf16.msra.mxu0 0
    %5850 = vmatprep.subr.bf16.mxu0 0
    %5851 = vmatpush1.bf16.msra.mxu0 0
    %5852 = vmatprep.subr.bf16.mxu0 0
    %5853 = vmatpush1.bf16.msra.mxu0 0
    %5854 = vmatprep.subr.bf16.mxu0 0
    %5855 = vmatpush1.bf16.msra.mxu0 0
    %5856 = vmatprep.subr.bf16.mxu0 0
    %5857 = vmatpush1.bf16.msra.mxu0 0
    %5858 = vmatprep.subr.bf16.mxu0 0
    %5859 = vmatpush1.bf16.msra.mxu0 0
    %5860 = vmatprep.mubr.bf16.mxu0 0
    %5861 = vmatmul.mubr.bf16.gmra.mrb[0].mxu0 %v5727
    %v5862 = vpop.f32.mrb[0].mxu0
    %v5863 = vadd.f32 0.0, %v5862
    %v5864 = vpop.f32.mrb[0].mxu0
    %v5865 = vpop.f32.mrb[0].mxu0
    %v5866 = vpop.f32.mrb[0].mxu0
    %5867 = vdwg.mxu0
    %v5871 = vrot.slane %v5588, 3
    %v5872 = vrot.slane %v5589, 3
    %v5873 = vsel %vm1401, %v5871, %v5872
    %v5874 = vrot.slane %v5590, 3
    %v5875 = vsel %vm1401, %v5872, %v5874
    %v5876 = vrot.slane %v5591, 3
    %v5877 = vsel %vm1401, %v5874, %v5876
    %v5882 = vsel %vm1056, 0.0, %v5873
    %v5883 = vsel %vm1925, %v5876, 0.0
    %v5885 = vrot.slane %v5882, 1
    %v5886 = vrot.slane %v5875, 1
    %v5887 = vsel %vm1141, %v5885, %v5886
    %v5888 = vrot.slane %v5877, 1
    %v5889 = vsel %vm1141, %v5886, %v5888
    %5890 = vrot.lane.b32.xlu0 %v5887, 64
    %v5891 = vpop.permute.xlu0 %5890
    %5892 = vrot.lane.b32.xlu0 %v5889, 64
    %v5893 = vpop.permute.xlu0 %5892
    %5894 = vrot.lane.b32.xlu0 %v5888, 64
    %v5895 = vpop.permute.xlu0 %5894
    %v5899 = vrot.slane %v5882, 2
    %v5900 = vrot.slane %v5875, 2
    %v5901 = vsel %vm1271, %v5899, %v5900
    %v5902 = vrot.slane %v5877, 2
    %v5903 = vsel %vm1271, %v5900, %v5902
    %v5907 = vrot.slane %v5882, 3
    %v5908 = vrot.slane %v5875, 3
    %v5909 = vsel %vm1401, %v5907, %v5908
    %v5910 = vrot.slane %v5877, 3
    %v5911 = vsel %vm1401, %v5908, %v5910
    %5912 = vrot.lane.b32.xlu0 %v5909, 64
    %v5913 = vpop.permute.xlu0 %5912
    %5914 = vrot.lane.b32.xlu0 %v5911, 64
    %v5915 = vpop.permute.xlu0 %5914
    %5916 = vrot.lane.b32.xlu0 %v5910, 64
    %v5917 = vpop.permute.xlu0 %5916
    %v5921 = vrot.slane %v5882, 4
    %v5922 = vrot.slane %v5875, 4
    %v5923 = vsel %vm1138, %v5921, %v5922
    %v5924 = vrot.slane %v5877, 4
    %v5925 = vsel %vm1138, %v5922, %v5924
    %v5929 = vrot.slane %v5882, 5
    %v5930 = vrot.slane %v5875, 5
    %v5931 = vsel %vm1056, %v5929, %v5930
    %v5932 = vrot.slane %v5877, 5
    %v5933 = vsel %vm1056, %v5930, %v5932
    %5934 = vrot.lane.b32.xlu0 %v5931, 64
    %v5935 = vpop.permute.xlu0 %5934
    %5936 = vrot.lane.b32.xlu0 %v5933, 64
    %v5937 = vpop.permute.xlu0 %5936
    %5938 = vrot.lane.b32.xlu0 %v5932, 64
    %v5939 = vpop.permute.xlu0 %5938
    %v5944 = vrot.slane %v5882, 6
    %v5945 = vrot.slane %v5875, 6
    %v5946 = vsel %vm361, %v5944, %v5945
    %v5947 = vrot.slane %v5877, 6
    %v5948 = vsel %vm361, %v5945, %v5947
    %v5949 = vrot.slane %v5883, 6
    %v5950 = vsel %vm361, %v5947, %v5949
    %v5954 = vrot.slane %v5882, 7
    %v5955 = vrot.slane %v5875, 7
    %v5956 = vsel %vm1925, %v5954, %v5955
    %v5957 = vrot.slane %v5877, 7
    %v5958 = vsel %vm1925, %v5955, %v5957
    %v5959 = vrot.slane %v5883, 7
    %v5960 = vsel %vm1925, %v5957, %v5959
    %5961 = vrot.lane.b32.xlu0 %v5956, 64
    %v5962 = vpop.permute.xlu0 %5961
    %5963 = vrot.lane.b32.xlu0 %v5958, 64
    %v5964 = vpop.permute.xlu0 %5963
    %5965 = vrot.lane.b32.xlu0 %v5960, 64
    %v5966 = vpop.permute.xlu0 %5965
    %v5970 = vrot.slane %v5883, 1
    %v5971 = vsel %vm1141, %v5888, %v5970
    %5972 = vrot.lane.b32.xlu0 %v5971, 64
    %v5973 = vpop.permute.xlu0 %5972
    %5974 = vrot.lane.b32.xlu0 %v5970, 64
    %v5975 = vpop.permute.xlu0 %5974
    %v5978 = vsel %vm2145, %v5882, %v5891
    %v5979 = vsel %vm2145, %v5875, %v5893
    %v5980 = vsel %vm2145, %v5877, %v5895
    %v5981 = vsel %vm2145, %v5901, %v5913
    %v5982 = vsel %vm2145, %v5903, %v5915
    %v5983 = vsel %vm2145, %v5902, %v5917
    %v5984 = vsel %vm2145, %v5923, %v5935
    %v5985 = vsel %vm2145, %v5925, %v5937
    %v5986 = vsel %vm2145, %v5924, %v5939
    %v5987 = vsel %vm2145, %v5946, %v5962
    %v5988 = vsel %vm2145, %v5948, %v5964
    %v5989 = vsel %vm2145, %v5950, %v5966
    %v5990 = vsel %vm2145, %v5877, %v5973
    %v5991 = vsel %vm2145, %v5883, %v5975
    %v5992 = vpack.c.bf16 %v5979, %v5978
    %v5993 = vpack.c.bf16 %v5982, %v5981
    %v5994 = vpack.c.bf16 %v5985, %v5984
    %v5995 = vpack.c.bf16 %v5988, %v5987
    %v5996 = vpack.c.bf16 %v5990, %v5979
    %v5997 = vpack.c.bf16 %v5980, %v5980
    %v5998 = vpack.c.bf16 %v5983, %v5983
    %v5999 = vpack.c.bf16 %v5986, %v5986
    %v6000 = vpack.c.bf16 %v5989, %v5989
    %v6001 = vpack.c.bf16 %v5991, %v5991
    %v6003 = vand.u32 %v5997, %v5730
    %v6006 = vand.u32 %v5998, %v5730
    %v6009 = vand.u32 %v5999, %v5730
    %v6012 = vand.u32 %v6000, %v5730
    %v6015 = vand.u32 %v6001, %v5730
    %6017 = vmatprep.subr.bf16.mxu0 %v5993
    %6018 = vmatpush1.bf16.msra.mxu0 %v5992
    %6019 = vmatprep.subr.bf16.mxu0 %v6006
    %6020 = vmatpush1.bf16.msra.mxu0 %v6003
    %6021 = vmatprep.subr.bf16.mxu0 0
    %6022 = vmatpush1.bf16.msra.mxu0 0
    %6023 = vmatprep.subr.bf16.mxu0 0
    %6024 = vmatpush1.bf16.msra.mxu0 0
    %6025 = vmatprep.subr.bf16.mxu0 0
    %6026 = vmatpush1.bf16.msra.mxu0 0
    %6027 = vmatprep.subr.bf16.mxu0 0
    %6028 = vmatpush1.bf16.msra.mxu0 0
    %6029 = vmatprep.subr.bf16.mxu0 0
    %6030 = vmatpush1.bf16.msra.mxu0 0
    %6031 = vmatprep.subr.bf16.mxu0 0
    %6032 = vmatpush1.bf16.msra.mxu0 0
    %6033 = vmatprep.subr.bf16.mxu0 0
    %6034 = vmatpush1.bf16.msra.mxu0 0
    %6035 = vmatprep.subr.bf16.mxu0 0
    %6036 = vmatpush1.bf16.msra.mxu0 0
    %6037 = vmatprep.subr.bf16.mxu0 0
    %6038 = vmatpush1.bf16.msra.mxu0 0
    %6039 = vmatprep.subr.bf16.mxu0 0
    %6040 = vmatpush1.bf16.msra.mxu0 0
    %6041 = vmatprep.subr.bf16.mxu0 0
    %6042 = vmatpush1.bf16.msra.mxu0 0
    %6043 = vmatprep.subr.bf16.mxu0 0
    %6044 = vmatpush1.bf16.msra.mxu0 0
    %6045 = vmatprep.subr.bf16.mxu0 0
    %6046 = vmatpush1.bf16.msra.mxu0 0
    %6047 = vmatprep.subr.bf16.mxu0 0
    %6048 = vmatpush1.bf16.msra.mxu0 0
    %6049 = vmatprep.mubr.bf16.mxu0 0
    %6050 = vmatmul.mubr.bf16.gmra.mrb[0].mxu0 %v5727
    %v6051 = vpop.f32.mrb[0].mxu0
    %v6052 = vadd.f32 0.0, %v6051
    %v6053 = vpop.f32.mrb[0].mxu0
    %v6054 = vadd.f32 0.0, %v6053
    %v6055 = vpop.f32.mrb[0].mxu0
    %v6056 = vpop.f32.mrb[0].mxu0
    %6057 = vdwg.mxu0
    %6058 = vmatprep.subr.bf16.mxu0 %v5995
    %6059 = vmatpush1.bf16.msra.mxu0 %v5994
    %6060 = vmatprep.subr.bf16.mxu0 %v6012
    %6061 = vmatpush1.bf16.msra.mxu0 %v6009
    %6062 = vmatprep.subr.bf16.mxu0 0
    %6063 = vmatpush1.bf16.msra.mxu0 0
    %6064 = vmatprep.subr.bf16.mxu0 0
    %6065 = vmatpush1.bf16.msra.mxu0 0
    %6066 = vmatprep.subr.bf16.mxu0 0
    %6067 = vmatpush1.bf16.msra.mxu0 0
    %6068 = vmatprep.subr.bf16.mxu0 0
    %6069 = vmatpush1.bf16.msra.mxu0 0
    %6070 = vmatprep.subr.bf16.mxu0 0
    %6071 = vmatpush1.bf16.msra.mxu0 0
    %6072 = vmatprep.subr.bf16.mxu0 0
    %6073 = vmatpush1.bf16.msra.mxu0 0
    %6074 = vmatprep.subr.bf16.mxu0 0
    %6075 = vmatpush1.bf16.msra.mxu0 0
    %6076 = vmatprep.subr.bf16.mxu0 0
    %6077 = vmatpush1.bf16.msra.mxu0 0
    %6078 = vmatprep.subr.bf16.mxu0 0
    %6079 = vmatpush1.bf16.msra.mxu0 0
    %6080 = vmatprep.subr.bf16.mxu0 0
    %6081 = vmatpush1.bf16.msra.mxu0 0
    %6082 = vmatprep.subr.bf16.mxu0 0
    %6083 = vmatpush1.bf16.msra.mxu0 0
    %6084 = vmatprep.subr.bf16.mxu0 0
    %6085 = vmatpush1.bf16.msra.mxu0 0
    %6086 = vmatprep.subr.bf16.mxu0 0
    %6087 = vmatpush1.bf16.msra.mxu0 0
    %6088 = vmatprep.subr.bf16.mxu0 0
    %6089 = vmatpush1.bf16.msra.mxu0 0
    %6090 = vmatprep.mubr.bf16.mxu0 0
    %6091 = vmatmul.mubr.bf16.gmra.mrb[0].mxu0 %v5727
    %v6092 = vpop.f32.mrb[0].mxu0
    %v6093 = vadd.f32 0.0, %v6092
    %v6094 = vpop.f32.mrb[0].mxu0
    %v6095 = vadd.f32 0.0, %v6094
    %v6096 = vpop.f32.mrb[0].mxu0
    %v6097 = vpop.f32.mrb[0].mxu0
    %6098 = vdwg.mxu0
    %6099 = vmatprep.subr.bf16.mxu0 0
    %6100 = vmatpush1.bf16.msra.mxu0 %v5996
    %6101 = vmatprep.subr.bf16.mxu0 0
    %6102 = vmatpush1.bf16.msra.mxu0 %v6015
    %6103 = vmatprep.subr.bf16.mxu0 0
    %6104 = vmatpush1.bf16.msra.mxu0 0
    %6105 = vmatprep.subr.bf16.mxu0 0
    %6106 = vmatpush1.bf16.msra.mxu0 0
    %6107 = vmatprep.subr.bf16.mxu0 0
    %6108 = vmatpush1.bf16.msra.mxu0 0
    %6109 = vmatprep.subr.bf16.mxu0 0
    %6110 = vmatpush1.bf16.msra.mxu0 0
    %6111 = vmatprep.subr.bf16.mxu0 0
    %6112 = vmatpush1.bf16.msra.mxu0 0
    %6113 = vmatprep.subr.bf16.mxu0 0
    %6114 = vmatpush1.bf16.msra.mxu0 0
    %6115 = vmatprep.subr.bf16.mxu0 0
    %6116 = vmatpush1.bf16.msra.mxu0 0
    %6117 = vmatprep.subr.bf16.mxu0 0
    %6118 = vmatpush1.bf16.msra.mxu0 0
    %6119 = vmatprep.subr.bf16.mxu0 0
    %6120 = vmatpush1.bf16.msra.mxu0 0
    %6121 = vmatprep.subr.bf16.mxu0 0
    %6122 = vmatpush1.bf16.msra.mxu0 0
    %6123 = vmatprep.subr.bf16.mxu0 0
    %6124 = vmatpush1.bf16.msra.mxu0 0
    %6125 = vmatprep.subr.bf16.mxu0 0
    %6126 = vmatpush1.bf16.msra.mxu0 0
    %6127 = vmatprep.subr.bf16.mxu0 0
    %6128 = vmatpush1.bf16.msra.mxu0 0
    %6129 = vmatprep.subr.bf16.mxu0 0
    %6130 = vmatpush1.bf16.msra.mxu0 0
    %6131 = vmatprep.mubr.bf16.mxu0 0
    %6132 = vmatmul.mubr.bf16.gmra.mrb[0].mxu0 %v5727
    %v6133 = vpop.f32.mrb[0].mxu0
    %v6134 = vadd.f32 0.0, %v6133
    %v6135 = vpop.f32.mrb[0].mxu0
    %v6136 = vpop.f32.mrb[0].mxu0
    %v6137 = vpop.f32.mrb[0].mxu0
    %6138 = vdwg.mxu0
    %v6144 = vrot.slane %v6052, 1
    %v6145 = vrot.slane %v6054, 1
    %v6146 = vrot.slane %v6093, 1
    %v6147 = vrot.slane %v6095, 1
    %v6148 = vrot.slane %v6134, 1
    %v6154 = vsel %vm1141, %v5781, %v6144
    %v6155 = vsel %vm1141, %v5783, %v6145
    %v6156 = vsel %vm1141, %v5822, %v6146
    %v6157 = vsel %vm1141, %v5824, %v6147
    %v6158 = vsel %vm1141, %v5863, %v6148
    %v6159 = vpack.c.bf16 %v6144, %v6154
    %v6160 = vpack.c.bf16 %v6145, %v6155
    %v6161 = vpack.c.bf16 %v6146, %v6156
    %v6162 = vpack.c.bf16 %v6147, %v6157
    %v6163 = vpack.c.bf16 %v6148, %v6158
    %v6164 = vld [vmem:[%s13] sm:$0xf]
    %v6165 = vld [vmem:[%s13 + $0x4] sm:$0xf]
    %v6166 = vld [vmem:[%s13 + $0x8] sm:$0xf]
    %v6167 = vld [vmem:[%s13 + $0xc] sm:$0xf]
    %v6168 = vld [vmem:[%s13 + $0x10] sm:$0xf]
    %v6169 = vld [vmem:[%s13 + $0x14] sm:$0xf]
    %v6170 = vld [vmem:[%s13 + $0x18] sm:$0xf]
    %v6171 = vld [vmem:[%s13 + $0x1c] sm:$0xf]
    %v6172 = vld [vmem:[%s13 + $0x20] sm:$0xf]
    %v6173 = vld [vmem:[%s13 + $0x24] sm:$0xf]
    %v6174 = vld [vmem:[%s13 + $0x28] sm:$0xf]
    %v6175 = vld [vmem:[%s13 + $0x2c] sm:$0xf]
    %v6176 = vld [vmem:[%s13 + $0x30] sm:$0xf]
    %v6177 = vld [vmem:[%s13 + $0x34] sm:$0xf]
    %v6178 = vld [vmem:[%s13 + $0x38] sm:$0xf]
    %v6179 = vld [vmem:[%s13 + $0x3c] sm:$0xf]
    %v6180 = vld [vmem:[%s13 + $0x40] sm:$0xf]
    %v6181 = vld [vmem:[%s13 + $0x44] sm:$0xf]
    %v6182 = vld [vmem:[%s13 + $0x48] sm:$0xf]
    %v6183 = vld [vmem:[%s13 + $0x4c] sm:$0xf]
    %v6184 = vld [vmem:[%s13 + $0x50] sm:$0xf]
    %v6185 = vld [vmem:[%s13 + $0x54] sm:$0xf]
    %v6186 = vld [vmem:[%s13 + $0x58] sm:$0xf]
    %v6187 = vld [vmem:[%s13 + $0x5c] sm:$0xf]
    %v6188 = vld [vmem:[%s13 + $0x60] sm:$0xf]
    %v6189 = vld [vmem:[%s13 + $0x64] sm:$0xf]
    %v6190 = vld [vmem:[%s13 + $0x68] sm:$0xf]
    %v6191 = vld [vmem:[%s13 + $0x6c] sm:$0xf]
    %v6192 = vld [vmem:[%s13 + $0x70] sm:$0xf]
    %v6193 = vld [vmem:[%s13 + $0x74] sm:$0xf]
    %v6194 = vld [vmem:[%s13 + $0x78] sm:$0xf]
    %v6195 = vld [vmem:[%s13 + $0x7c] sm:$0xf]
    %v6196 = vld [vmem:[%s13 + $0x80] sm:$0xf]
    %v6197 = vld [vmem:[%s13 + $0x84] sm:$0xf]
    %v6198 = vld [vmem:[%s13 + $0x88] sm:$0xf]
    %v6199 = vld [vmem:[%s13 + $0x8c] sm:$0xf]
    %v6200 = vld [vmem:[%s13 + $0x90] sm:$0xf]
    %v6201 = vld [vmem:[%s13 + $0x94] sm:$0xf]
    %v6202 = vld [vmem:[%s13 + $0x98] sm:$0xf]
    %v6203 = vld [vmem:[%s13 + $0x9c] sm:$0xf]
    %v6204 = vld [vmem:[%s13 + $0xa0] sm:$0xf]
    %v6205 = vld [vmem:[%s13 + $0xa4] sm:$0xf]
    %v6206 = vld [vmem:[%s13 + $0xa8] sm:$0xf]
    %v6207 = vld [vmem:[%s13 + $0xac] sm:$0xf]
    %v6208 = vld [vmem:[%s13 + $0xb0] sm:$0xf]
    %v6209 = vld [vmem:[%s13 + $0xb4] sm:$0xf]
    %v6210 = vld [vmem:[%s13 + $0xb8] sm:$0xf]
    %v6211 = vld [vmem:[%s13 + $0xbc] sm:$0xf]
    %v6212 = vld [vmem:[%s13 + $0xc0] sm:$0xf]
    %v6213 = vld [vmem:[%s13 + $0xc4] sm:$0xf]
    %v6214 = vld [vmem:[%s13 + $0xc8] sm:$0xf]
    %v6215 = vld [vmem:[%s13 + $0xcc] sm:$0xf]
    %v6216 = vld [vmem:[%s13 + $0xd0] sm:$0xf]
    %v6217 = vld [vmem:[%s13 + $0xd4] sm:$0xf]
    %v6218 = vld [vmem:[%s13 + $0xd8] sm:$0xf]
    %v6219 = vld [vmem:[%s13 + $0xdc] sm:$0xf]
    %v6220 = vld [vmem:[%s13 + $0xe0] sm:$0xf]
    %v6221 = vld [vmem:[%s13 + $0xe4] sm:$0xf]
    %v6222 = vld [vmem:[%s13 + $0xe8] sm:$0xf]
    %v6223 = vld [vmem:[%s13 + $0xec] sm:$0xf]
    %v6224 = vld [vmem:[%s13 + $0xf0] sm:$0xf]
    %v6225 = vld [vmem:[%s13 + $0xf4] sm:$0xf]
    %v6226 = vld [vmem:[%s13 + $0xf8] sm:$0xf]
    %v6227 = vld [vmem:[%s13 + $0xfc] sm:$0xf]
    %v6228 = vld [vmem:[%s13 + $0x100] sm:$0xf]
    %v6229 = vld [vmem:[%s13 + $0x104] sm:$0xf]
    %v6230 = vld [vmem:[%s13 + $0x108] sm:$0xf]
    %v6231 = vld [vmem:[%s13 + $0x10c] sm:$0xf]
    %v6232 = vld [vmem:[%s13 + $0x110] sm:$0xf]
    %v6233 = vld [vmem:[%s13 + $0x114] sm:$0xf]
    %v6234 = vld [vmem:[%s13 + $0x118] sm:$0xf]
    %v6235 = vld [vmem:[%s13 + $0x11c] sm:$0xf]
    %v6236 = vld [vmem:[%s13 + $0x120] sm:$0xf]
    %v6237 = vld [vmem:[%s13 + $0x124] sm:$0xf]
    %v6238 = vld [vmem:[%s13 + $0x128] sm:$0xf]
    %v6239 = vld [vmem:[%s13 + $0x12c] sm:$0xf]
    %v6240 = vld [vmem:[%s13 + $0x130] sm:$0xf]
    %v6241 = vld [vmem:[%s13 + $0x134] sm:$0xf]
    %v6242 = vld [vmem:[%s13 + $0x138] sm:$0xf]
    %v6243 = vld [vmem:[%s13 + $0x13c] sm:$0xf]
    %v6324 = vunpack.c.l.b16 %v6164
    %v6325 = vunpack.c.l.b16 %v6165
    %v6326 = vunpack.c.l.b16 %v6166
    %v6327 = vunpack.c.l.b16 %v6167
    %v6328 = vunpack.c.l.b16 %v6168
    %v6329 = vunpack.c.l.b16 %v6169
    %v6330 = vunpack.c.l.b16 %v6170
    %v6331 = vunpack.c.l.b16 %v6171
    %v6332 = vunpack.c.l.b16 %v6172
    %v6333 = vunpack.c.l.b16 %v6173
    %v6334 = vunpack.c.l.b16 %v6174
    %v6335 = vunpack.c.l.b16 %v6175
    %v6336 = vunpack.c.l.b16 %v6176
    %v6337 = vunpack.c.l.b16 %v6177
    %v6338 = vunpack.c.l.b16 %v6178
    %v6339 = vunpack.c.l.b16 %v6179
    %v6340 = vunpack.c.l.b16 %v6180
    %v6341 = vunpack.c.l.b16 %v6181
    %v6342 = vunpack.c.l.b16 %v6182
    %v6343 = vunpack.c.l.b16 %v6183
    %v6344 = vunpack.c.l.b16 %v6184
    %v6345 = vunpack.c.l.b16 %v6185
    %v6346 = vunpack.c.l.b16 %v6186
    %v6347 = vunpack.c.l.b16 %v6187
    %v6348 = vunpack.c.l.b16 %v6188
    %v6349 = vunpack.c.l.b16 %v6189
    %v6350 = vunpack.c.l.b16 %v6190
    %v6351 = vunpack.c.l.b16 %v6191
    %v6352 = vunpack.c.l.b16 %v6192
    %v6353 = vunpack.c.l.b16 %v6193
    %v6354 = vunpack.c.l.b16 %v6194
    %v6355 = vunpack.c.l.b16 %v6195
    %v6356 = vunpack.c.l.b16 %v6196
    %v6357 = vunpack.c.l.b16 %v6197
    %v6358 = vunpack.c.l.b16 %v6198
    %v6359 = vunpack.c.l.b16 %v6199
    %v6360 = vunpack.c.l.b16 %v6200
    %v6361 = vunpack.c.l.b16 %v6201
    %v6362 = vunpack.c.l.b16 %v6202
    %v6363 = vunpack.c.l.b16 %v6203
    %v6364 = vunpack.c.l.b16 %v6204
    %v6365 = vunpack.c.l.b16 %v6205
    %v6366 = vunpack.c.l.b16 %v6206
    %v6367 = vunpack.c.l.b16 %v6207
    %v6368 = vunpack.c.l.b16 %v6208
    %v6369 = vunpack.c.l.b16 %v6209
    %v6370 = vunpack.c.l.b16 %v6210
    %v6371 = vunpack.c.l.b16 %v6211
    %v6372 = vunpack.c.l.b16 %v6212
    %v6373 = vunpack.c.l.b16 %v6213
    %v6374 = vunpack.c.l.b16 %v6214
    %v6375 = vunpack.c.l.b16 %v6215
    %v6376 = vunpack.c.l.b16 %v6216
    %v6377 = vunpack.c.l.b16 %v6217
    %v6378 = vunpack.c.l.b16 %v6218
    %v6379 = vunpack.c.l.b16 %v6219
    %v6380 = vunpack.c.l.b16 %v6220
    %v6381 = vunpack.c.l.b16 %v6221
    %v6382 = vunpack.c.l.b16 %v6222
    %v6383 = vunpack.c.l.b16 %v6223
    %v6384 = vunpack.c.l.b16 %v6224
    %v6385 = vunpack.c.l.b16 %v6225
    %v6386 = vunpack.c.l.b16 %v6226
    %v6387 = vunpack.c.l.b16 %v6227
    %v6388 = vunpack.c.l.b16 %v6228
    %v6389 = vunpack.c.l.b16 %v6229
    %v6390 = vunpack.c.l.b16 %v6230
    %v6391 = vunpack.c.l.b16 %v6231
    %v6392 = vunpack.c.l.b16 %v6232
    %v6393 = vunpack.c.l.b16 %v6233
    %v6394 = vunpack.c.l.b16 %v6234
    %v6395 = vunpack.c.l.b16 %v6235
    %v6396 = vunpack.c.l.b16 %v6236
    %v6397 = vunpack.c.l.b16 %v6237
    %v6398 = vunpack.c.l.b16 %v6238
    %v6399 = vunpack.c.l.b16 %v6239
    %v6400 = vunpack.c.l.b16 %v6240
    %v6401 = vunpack.c.l.b16 %v6241
    %v6402 = vunpack.c.l.b16 %v6242
    %v6403 = vunpack.c.l.b16 %v6243
    %v6404 = vpack.c.b16 %v6325, %v6324
    %v6405 = vpack.c.b16 %v6327, %v6326
    %v6406 = vpack.c.b16 %v6329, %v6328
    %v6407 = vpack.c.b16 %v6331, %v6330
    %v6408 = vpack.c.b16 %v6333, %v6332
    %v6409 = vpack.c.b16 %v6335, %v6334
    %v6410 = vpack.c.b16 %v6337, %v6336
    %v6411 = vpack.c.b16 %v6339, %v6338
    %v6412 = vpack.c.b16 %v6341, %v6340
    %v6413 = vpack.c.b16 %v6343, %v6342
    %v6414 = vpack.c.b16 %v6345, %v6344
    %v6415 = vpack.c.b16 %v6347, %v6346
    %v6416 = vpack.c.b16 %v6349, %v6348
    %v6417 = vpack.c.b16 %v6351, %v6350
    %v6418 = vpack.c.b16 %v6353, %v6352
    %v6419 = vpack.c.b16 %v6355, %v6354
    %v6420 = vpack.c.b16 %v6357, %v6356
    %v6421 = vpack.c.b16 %v6359, %v6358
    %v6422 = vpack.c.b16 %v6361, %v6360
    %v6423 = vpack.c.b16 %v6363, %v6362
    %v6424 = vpack.c.b16 %v6365, %v6364
    %v6425 = vpack.c.b16 %v6367, %v6366
    %v6426 = vpack.c.b16 %v6369, %v6368
    %v6427 = vpack.c.b16 %v6371, %v6370
    %v6428 = vpack.c.b16 %v6373, %v6372
    %v6429 = vpack.c.b16 %v6375, %v6374
    %v6430 = vpack.c.b16 %v6377, %v6376
    %v6431 = vpack.c.b16 %v6379, %v6378
    %v6432 = vpack.c.b16 %v6381, %v6380
    %v6433 = vpack.c.b16 %v6383, %v6382
    %v6434 = vpack.c.b16 %v6385, %v6384
    %v6435 = vpack.c.b16 %v6387, %v6386
    %v6436 = vpack.c.b16 %v6389, %v6388
    %v6437 = vpack.c.b16 %v6391, %v6390
    %v6438 = vpack.c.b16 %v6393, %v6392
    %v6439 = vpack.c.b16 %v6395, %v6394
    %v6440 = vpack.c.b16 %v6397, %v6396
    %v6441 = vpack.c.b16 %v6399, %v6398
    %v6442 = vpack.c.b16 %v6401, %v6400
    %v6443 = vpack.c.b16 %v6403, %v6402
    %6484 = vmatprep.subr.bf16.mxu0 0
    %6485 = vmatpush1.bf16.msra.mxu0 %v6404
    %6486 = vmatprep.subr.bf16.mxu0 0
    %6487 = vmatpush1.bf16.msra.mxu0 %v6405
    %6488 = vmatprep.subr.bf16.mxu0 0
    %6489 = vmatpush1.bf16.msra.mxu0 %v6406
    %6490 = vmatprep.subr.bf16.mxu0 0
    %6491 = vmatpush1.bf16.msra.mxu0 %v6407
    %6492 = vmatprep.subr.bf16.mxu0 0
    %6493 = vmatpush1.bf16.msra.mxu0 %v6408
    %6494 = vmatprep.subr.bf16.mxu0 0
    %6495 = vmatpush1.bf16.msra.mxu0 %v6409
    %6496 = vmatprep.subr.bf16.mxu0 0
    %6497 = vmatpush1.bf16.msra.mxu0 %v6410
    %6498 = vmatprep.subr.bf16.mxu0 0
    %6499 = vmatpush1.bf16.msra.mxu0 %v6411
    %6500 = vmatprep.subr.bf16.mxu0 0
    %6501 = vmatpush1.bf16.msra.mxu0 %v6412
    %6502 = vmatprep.subr.bf16.mxu0 0
    %6503 = vmatpush1.bf16.msra.mxu0 %v6413
    %6504 = vmatprep.subr.bf16.mxu0 0
    %6505 = vmatpush1.bf16.msra.mxu0 %v6414
    %6506 = vmatprep.subr.bf16.mxu0 0
    %6507 = vmatpush1.bf16.msra.mxu0 %v6415
    %6508 = vmatprep.subr.bf16.mxu0 0
    %6509 = vmatpush1.bf16.msra.mxu0 %v6416
    %6510 = vmatprep.subr.bf16.mxu0 0
    %6511 = vmatpush1.bf16.msra.mxu0 %v6417
    %6512 = vmatprep.subr.bf16.mxu0 0
    %6513 = vmatpush1.bf16.msra.mxu0 %v6418
    %6514 = vmatprep.subr.bf16.mxu0 0
    %6515 = vmatpush1.bf16.msra.mxu0 %v6419
    %6516 = vmatprep.mubr.bf16.mxu0 %v6160
    %6517 = vmatmul.mubr.bf16.gmra.mrb[0].mxu0 %v6159
    %v6518 = vpop.f32.mrb[0].mxu0
    %v6519 = vadd.f32 0.0, %v6518
    %v6520 = vpop.f32.mrb[0].mxu0
    %v6521 = vpop.f32.mrb[0].mxu0
    %v6522 = vadd.f32 0.0, %v6521
    %v6523 = vpop.f32.mrb[0].mxu0
    %6524 = vdwg.mxu0
    %6525 = vmatprep.subr.bf16.mxu0 0
    %6526 = vmatpush1.bf16.msra.mxu0 %v6420
    %6527 = vmatprep.subr.bf16.mxu0 0
    %6528 = vmatpush1.bf16.msra.mxu0 %v6421
    %6529 = vmatprep.subr.bf16.mxu0 0
    %6530 = vmatpush1.bf16.msra.mxu0 %v6422
    %6531 = vmatprep.subr.bf16.mxu0 0
    %6532 = vmatpush1.bf16.msra.mxu0 %v6423
    %6533 = vmatprep.subr.bf16.mxu0 0
    %6534 = vmatpush1.bf16.msra.mxu0 %v6424
    %6535 = vmatprep.subr.bf16.mxu0 0
    %6536 = vmatpush1.bf16.msra.mxu0 %v6425
    %6537 = vmatprep.subr.bf16.mxu0 0
    %6538 = vmatpush1.bf16.msra.mxu0 %v6426
    %6539 = vmatprep.subr.bf16.mxu0 0
    %6540 = vmatpush1.bf16.msra.mxu0 %v6427
    %6541 = vmatprep.subr.bf16.mxu0 0
    %6542 = vmatpush1.bf16.msra.mxu0 %v6428
    %6543 = vmatprep.subr.bf16.mxu0 0
    %6544 = vmatpush1.bf16.msra.mxu0 %v6429
    %6545 = vmatprep.subr.bf16.mxu0 0
    %6546 = vmatpush1.bf16.msra.mxu0 %v6430
    %6547 = vmatprep.subr.bf16.mxu0 0
    %6548 = vmatpush1.bf16.msra.mxu0 %v6431
    %6549 = vmatprep.subr.bf16.mxu0 0
    %6550 = vmatpush1.bf16.msra.mxu0 %v6432
    %6551 = vmatprep.subr.bf16.mxu0 0
    %6552 = vmatpush1.bf16.msra.mxu0 %v6433
    %6553 = vmatprep.subr.bf16.mxu0 0
    %6554 = vmatpush1.bf16.msra.mxu0 %v6434
    %6555 = vmatprep.subr.bf16.mxu0 0
    %6556 = vmatpush1.bf16.msra.mxu0 %v6435
    %6557 = vmatprep.mubr.bf16.mxu0 %v6162
    %6558 = vmatmul.mubr.bf16.gmra.mrb[0].mxu0 %v6161
    %v6559 = vpop.f32.mrb[0].mxu0
    %v6560 = vadd.f32 %v6519, %v6559
    %v6561 = vpop.f32.mrb[0].mxu0
    %v6562 = vpop.f32.mrb[0].mxu0
    %v6563 = vadd.f32 %v6522, %v6562
    %v6564 = vpop.f32.mrb[0].mxu0
    %6565 = vdwg.mxu0
    %6566 = vmatprep.subr.bf16.mxu0 0
    %6567 = vmatpush1.bf16.msra.mxu0 %v6436
    %6568 = vmatprep.subr.bf16.mxu0 0
    %6569 = vmatpush1.bf16.msra.mxu0 %v6437
    %6570 = vmatprep.subr.bf16.mxu0 0
    %6571 = vmatpush1.bf16.msra.mxu0 %v6438
    %6572 = vmatprep.subr.bf16.mxu0 0
    %6573 = vmatpush1.bf16.msra.mxu0 %v6439
    %6574 = vmatprep.subr.bf16.mxu0 0
    %6575 = vmatpush1.bf16.msra.mxu0 %v6440
    %6576 = vmatprep.subr.bf16.mxu0 0
    %6577 = vmatpush1.bf16.msra.mxu0 %v6441
    %6578 = vmatprep.subr.bf16.mxu0 0
    %6579 = vmatpush1.bf16.msra.mxu0 %v6442
    %6580 = vmatprep.subr.bf16.mxu0 0
    %6581 = vmatpush1.bf16.msra.mxu0 %v6443
    %6582 = vmatprep.subr.bf16.mxu0 0
    %6583 = vmatpush1.bf16.msra.mxu0 0
    %6584 = vmatprep.subr.bf16.mxu0 0
    %6585 = vmatpush1.bf16.msra.mxu0 0
    %6586 = vmatprep.subr.bf16.mxu0 0
    %6587 = vmatpush1.bf16.msra.mxu0 0
    %6588 = vmatprep.subr.bf16.mxu0 0
    %6589 = vmatpush1.bf16.msra.mxu0 0
    %6590 = vmatprep.subr.bf16.mxu0 0
    %6591 = vmatpush1.bf16.msra.mxu0 0
    %6592 = vmatprep.subr.bf16.mxu0 0
    %6593 = vmatpush1.bf16.msra.mxu0 0
    %6594 = vmatprep.subr.bf16.mxu0 0
    %6595 = vmatpush1.bf16.msra.mxu0 0
    %6596 = vmatprep.subr.bf16.mxu0 0
    %6597 = vmatpush1.bf16.msra.mxu0 0
    %6598 = vmatprep.mubr.bf16.mxu0 0
    %6599 = vmatmul.mubr.bf16.gmra.mrb[0].mxu0 %v6163
    %v6600 = vpop.f32.mrb[0].mxu0
    %v6601 = vadd.f32 %v6560, %v6600
    %v6602 = vpop.f32.mrb[0].mxu0
    %v6603 = vpop.f32.mrb[0].mxu0
    %v6604 = vadd.f32 %v6563, %v6603
    %v6605 = vpop.f32.mrb[0].mxu0
    %6606 = vdwg.mxu0
    %v6607 = vsel %vm1271, %v6604, 0.0
    %v6608 = vadd.f32 %v6601, %v6607
    %v6609 = vrot.slane %v6608, 4
    %v6610 = vadd.f32 %v6608, %v6609
    %v6611 = vrot.slane %v6610, 2
    %v6612 = vadd.f32 %v6610, %v6611
    %v6613 = vrot.slane %v6612, 1
    %v6614 = vadd.f32 %v6612, %v6613
    %v6615 = vmul.f32 %v6614, 0.071428575
    %v6616 = vmul.f32 %v6601, %v6601
    %v6617 = vmul.f32 %v6604, %v6604
    %v6618 = vsel %vm1271, %v6617, 0.0
    %v6619 = vadd.f32 %v6616, %v6618
    %v6620 = vrot.slane %v6619, 4
    %v6621 = vadd.f32 %v6619, %v6620
    %v6622 = vrot.slane %v6621, 2
    %v6623 = vadd.f32 %v6621, %v6622
    %v6624 = vrot.slane %v6623, 1
    %v6625 = vadd.f32 %v6623, %v6624
    %v6626 = vmul.f32 %v6625, 0.071428575
    %v6627 = vmul.f32 %v6615, %v6615
    %v6628 = vsub.f32 %v6626, %v6627
    %v6629 = vmax.f32 %v6628, 0.0
    %v6630 = vld [vmem:[%s14] sm:$0x1]
    %v6631 = vadd.f32 %v6629, 1e-05
    %v6632 = vrsqrt.pop %v6631
    %v6633 = vmul.f32 %v6630, %v6632
    %v6634 = vld [vmem:[%s15] sm:$0x1]
    %v6635 = vmul.f32 %v6615, %v6633
    %v6636 = vsub.f32 %v6634, %v6635
    %v6638 = vlaneseq
    %v6639 = vshrl.u32 %v6638, 7
    %v6640 = vsub.s32 0, %v6639
    %v6641 = vrot.slane %v6633, %v6640
    %v6643 = vmul.f32 %v6601, %v6641
    %v6644 = vmul.f32 %v6604, %v6641
    %v6646 = vlaneseq
    %v6647 = vshrl.u32 %v6646, 7
    %v6648 = vsub.s32 0, %v6647
    %v6649 = vrot.slane %v6636, %v6648
    %v6651 = vadd.f32 %v6643, %v6649
    %v6652 = vadd.f32 %v6644, %v6649
    %v6653 = vld [vmem:[%s16] sm:$0x1]
    %v6655 = vrot.slane %v6651, 5
    %v6657 = vsel %vm1056, 0.0, %v6655
    %v6658 = vsel %vm361, %v6655, 0.0
    %v6660 = vrot.slane %v6657, 1
    %v6662 = vrot.slane %v6657, 2
    %v6664 = vrot.slane %v6657, 3
    %v6666 = vrot.slane %v6657, 4
    %v6669 = vrot.slane %v6657, 5
    %v6670 = vrot.slane %v6658, 5
    %v6671 = vsel %vm1056, %v6669, %v6670
    %v6673 = vrot.slane %v6657, 6
    %v6674 = vrot.slane %v6658, 6
    %v6675 = vsel %vm361, %v6673, %v6674
    %v6677 = vrot.slane %v6657, 7
    %v6678 = vrot.slane %v6658, 7
    %v6679 = vsel %vm1925, %v6677, %v6678
    %v6681 = vrot.slane %v6658, 1
    %v6683 = vpack.c.bf16 %v6657, %v6657
    %v6684 = vpack.c.bf16 %v6660, %v6660
    %v6685 = vpack.c.bf16 %v6662, %v6662
    %v6686 = vpack.c.bf16 %v6664, %v6664
    %v6687 = vpack.c.bf16 %v6666, %v6666
    %v6688 = vpack.c.bf16 %v6671, %v6671
    %v6689 = vpack.c.bf16 %v6675, %v6675
    %v6690 = vpack.c.bf16 %v6679, %v6679
    %v6691 = vpack.c.bf16 %v6658, %v6658
    %v6692 = vpack.c.bf16 %v6681, %v6681
    %vm6693 = vcmask 31744
    %v6695 = vsel %vm6693, %v6653, 0
    %v6698 = vsel %vm361, %v6683, 0
    %v6701 = vsel %vm361, %v6684, 0
    %v6704 = vsel %vm361, %v6685, 0
    %v6707 = vsel %vm361, %v6686, 0
    %v6710 = vsel %vm361, %v6687, 0
    %v6713 = vsel %vm361, %v6688, 0
    %v6716 = vsel %vm361, %v6689, 0
    %v6719 = vsel %vm361, %v6690, 0
    %v6722 = vsel %vm361, %v6691, 0
    %v6725 = vsel %vm361, %v6692, 0
    %6727 = vmatprep.subr.bf16.mxu0 %v6701
    %6728 = vmatpush1.bf16.msra.mxu0 %v6698
    %6729 = vmatprep.subr.bf16.mxu0 0
    %6730 = vmatpush1.bf16.msra.mxu0 0
    %6731 = vmatprep.subr.bf16.mxu0 0
    %6732 = vmatpush1.bf16.msra.mxu0 0
    %6733 = vmatprep.subr.bf16.mxu0 0
    %6734 = vmatpush1.bf16.msra.mxu0 0
    %6735 = vmatprep.subr.bf16.mxu0 0
    %6736 = vmatpush1.bf16.msra.mxu0 0
    %6737 = vmatprep.subr.bf16.mxu0 0
    %6738 = vmatpush1.bf16.msra.mxu0 0
    %6739 = vmatprep.subr.bf16.mxu0 0
    %6740 = vmatpush1.bf16.msra.mxu0 0
    %6741 = vmatprep.subr.bf16.mxu0 0
    %6742 = vmatpush1.bf16.msra.mxu0 0
    %6743 = vmatprep.subr.bf16.mxu0 0
    %6744 = vmatpush1.bf16.msra.mxu0 0
    %6745 = vmatprep.subr.bf16.mxu0 0
    %6746 = vmatpush1.bf16.msra.mxu0 0
    %6747 = vmatprep.subr.bf16.mxu0 0
    %6748 = vmatpush1.bf16.msra.mxu0 0
    %6749 = vmatprep.subr.bf16.mxu0 0
    %6750 = vmatpush1.bf16.msra.mxu0 0
    %6751 = vmatprep.subr.bf16.mxu0 0
    %6752 = vmatpush1.bf16.msra.mxu0 0
    %6753 = vmatprep.subr.bf16.mxu0 0
    %6754 = vmatpush1.bf16.msra.mxu0 0
    %6755 = vmatprep.subr.bf16.mxu0 0
    %6756 = vmatpush1.bf16.msra.mxu0 0
    %6757 = vmatprep.subr.bf16.mxu0 0
    %6758 = vmatpush1.bf16.msra.mxu0 0
    %6759 = vmatprep.mubr.bf16.mxu0 0
    %6760 = vmatmul.mubr.bf16.gmra.mrb[0].mxu0 %v6695
    %v6761 = vpop.f32.mrb[0].mxu0
    %v6762 = vadd.f32 0.0, %v6761
    %v6763 = vpop.f32.mrb[0].mxu0
    %v6764 = vadd.f32 0.0, %v6763
    %v6765 = vpop.f32.mrb[0].mxu0
    %v6766 = vpop.f32.mrb[0].mxu0
    %6767 = vdwg.mxu0
    %6768 = vmatprep.subr.bf16.mxu0 %v6707
    %6769 = vmatpush1.bf16.msra.mxu0 %v6704
    %6770 = vmatprep.subr.bf16.mxu0 0
    %6771 = vmatpush1.bf16.msra.mxu0 0
    %6772 = vmatprep.subr.bf16.mxu0 0
    %6773 = vmatpush1.bf16.msra.mxu0 0
    %6774 = vmatprep.subr.bf16.mxu0 0
    %6775 = vmatpush1.bf16.msra.mxu0 0
    %6776 = vmatprep.subr.bf16.mxu0 0
    %6777 = vmatpush1.bf16.msra.mxu0 0
    %6778 = vmatprep.subr.bf16.mxu0 0
    %6779 = vmatpush1.bf16.msra.mxu0 0
    %6780 = vmatprep.subr.bf16.mxu0 0
    %6781 = vmatpush1.bf16.msra.mxu0 0
    %6782 = vmatprep.subr.bf16.mxu0 0
    %6783 = vmatpush1.bf16.msra.mxu0 0
    %6784 = vmatprep.subr.bf16.mxu0 0
    %6785 = vmatpush1.bf16.msra.mxu0 0
    %6786 = vmatprep.subr.bf16.mxu0 0
    %6787 = vmatpush1.bf16.msra.mxu0 0
    %6788 = vmatprep.subr.bf16.mxu0 0
    %6789 = vmatpush1.bf16.msra.mxu0 0
    %6790 = vmatprep.subr.bf16.mxu0 0
    %6791 = vmatpush1.bf16.msra.mxu0 0
    %6792 = vmatprep.subr.bf16.mxu0 0
    %6793 = vmatpush1.bf16.msra.mxu0 0
    %6794 = vmatprep.subr.bf16.mxu0 0
    %6795 = vmatpush1.bf16.msra.mxu0 0
    %6796 = vmatprep.subr.bf16.mxu0 0
    %6797 = vmatpush1.bf16.msra.mxu0 0
    %6798 = vmatprep.subr.bf16.mxu0 0
    %6799 = vmatpush1.bf16.msra.mxu0 0
    %6800 = vmatprep.mubr.bf16.mxu0 0
    %6801 = vmatmul.mubr.bf16.gmra.mrb[0].mxu0 %v6695
    %v6802 = vpop.f32.mrb[0].mxu0
    %v6803 = vadd.f32 0.0, %v6802
    %v6804 = vpop.f32.mrb[0].mxu0
    %v6805 = vadd.f32 0.0, %v6804
    %v6806 = vpop.f32.mrb[0].mxu0
    %v6807 = vpop.f32.mrb[0].mxu0
    %6808 = vdwg.mxu0
    %6809 = vmatprep.subr.bf16.mxu0 %v6713
    %6810 = vmatpush1.bf16.msra.mxu0 %v6710
    %6811 = vmatprep.subr.bf16.mxu0 0
    %6812 = vmatpush1.bf16.msra.mxu0 0
    %6813 = vmatprep.subr.bf16.mxu0 0
    %6814 = vmatpush1.bf16.msra.mxu0 0
    %6815 = vmatprep.subr.bf16.mxu0 0
    %6816 = vmatpush1.bf16.msra.mxu0 0
    %6817 = vmatprep.subr.bf16.mxu0 0
    %6818 = vmatpush1.bf16.msra.mxu0 0
    %6819 = vmatprep.subr.bf16.mxu0 0
    %6820 = vmatpush1.bf16.msra.mxu0 0
    %6821 = vmatprep.subr.bf16.mxu0 0
    %6822 = vmatpush1.bf16.msra.mxu0 0
    %6823 = vmatprep.subr.bf16.mxu0 0
    %6824 = vmatpush1.bf16.msra.mxu0 0
    %6825 = vmatprep.subr.bf16.mxu0 0
    %6826 = vmatpush1.bf16.msra.mxu0 0
    %6827 = vmatprep.subr.bf16.mxu0 0
    %6828 = vmatpush1.bf16.msra.mxu0 0
    %6829 = vmatprep.subr.bf16.mxu0 0
    %6830 = vmatpush1.bf16.msra.mxu0 0
    %6831 = vmatprep.subr.bf16.mxu0 0
    %6832 = vmatpush1.bf16.msra.mxu0 0
    %6833 = vmatprep.subr.bf16.mxu0 0
    %6834 = vmatpush1.bf16.msra.mxu0 0
    %6835 = vmatprep.subr.bf16.mxu0 0
    %6836 = vmatpush1.bf16.msra.mxu0 0
    %6837 = vmatprep.subr.bf16.mxu0 0
    %6838 = vmatpush1.bf16.msra.mxu0 0
    %6839 = vmatprep.subr.bf16.mxu0 0
    %6840 = vmatpush1.bf16.msra.mxu0 0
    %6841 = vmatprep.mubr.bf16.mxu0 0
    %6842 = vmatmul.mubr.bf16.gmra.mrb[0].mxu0 %v6695
    %v6843 = vpop.f32.mrb[0].mxu0
    %v6844 = vadd.f32 0.0, %v6843
    %v6845 = vpop.f32.mrb[0].mxu0
    %v6846 = vadd.f32 0.0, %v6845
    %v6847 = vpop.f32.mrb[0].mxu0
    %v6848 = vpop.f32.mrb[0].mxu0
    %6849 = vdwg.mxu0
    %6850 = vmatprep.subr.bf16.mxu0 %v6719
    %6851 = vmatpush1.bf16.msra.mxu0 %v6716
    %6852 = vmatprep.subr.bf16.mxu0 0
    %6853 = vmatpush1.bf16.msra.mxu0 0
    %6854 = vmatprep.subr.bf16.mxu0 0
    %6855 = vmatpush1.bf16.msra.mxu0 0
    %6856 = vmatprep.subr.bf16.mxu0 0
    %6857 = vmatpush1.bf16.msra.mxu0 0
    %6858 = vmatprep.subr.bf16.mxu0 0
    %6859 = vmatpush1.bf16.msra.mxu0 0
    %6860 = vmatprep.subr.bf16.mxu0 0
    %6861 = vmatpush1.bf16.msra.mxu0 0
    %6862 = vmatprep.subr.bf16.mxu0 0
    %6863 = vmatpush1.bf16.msra.mxu0 0
    %6864 = vmatprep.subr.bf16.mxu0 0
    %6865 = vmatpush1.bf16.msra.mxu0 0
    %6866 = vmatprep.subr.bf16.mxu0 0
    %6867 = vmatpush1.bf16.msra.mxu0 0
    %6868 = vmatprep.subr.bf16.mxu0 0
    %6869 = vmatpush1.bf16.msra.mxu0 0
    %6870 = vmatprep.subr.bf16.mxu0 0
    %6871 = vmatpush1.bf16.msra.mxu0 0
    %6872 = vmatprep.subr.bf16.mxu0 0
    %6873 = vmatpush1.bf16.msra.mxu0 0
    %6874 = vmatprep.subr.bf16.mxu0 0
    %6875 = vmatpush1.bf16.msra.mxu0 0
    %6876 = vmatprep.subr.bf16.mxu0 0
    %6877 = vmatpush1.bf16.msra.mxu0 0
    %6878 = vmatprep.subr.bf16.mxu0 0
    %6879 = vmatpush1.bf16.msra.mxu0 0
    %6880 = vmatprep.subr.bf16.mxu0 0
    %6881 = vmatpush1.bf16.msra.mxu0 0
    %6882 = vmatprep.mubr.bf16.mxu0 0
    %6883 = vmatmul.mubr.bf16.gmra.mrb[0].mxu0 %v6695
    %v6884 = vpop.f32.mrb[0].mxu0
    %v6885 = vadd.f32 0.0, %v6884
    %v6886 = vpop.f32.mrb[0].mxu0
    %v6887 = vadd.f32 0.0, %v6886
    %v6888 = vpop.f32.mrb[0].mxu0
    %v6889 = vpop.f32.mrb[0].mxu0
    %6890 = vdwg.mxu0
    %6891 = vmatprep.subr.bf16.mxu0 %v6725
    %6892 = vmatpush1.bf16.msra.mxu0 %v6722
    %6893 = vmatprep.subr.bf16.mxu0 0
    %6894 = vmatpush1.bf16.msra.mxu0 0
    %6895 = vmatprep.subr.bf16.mxu0 0
    %6896 = vmatpush1.bf16.msra.mxu0 0
    %6897 = vmatprep.subr.bf16.mxu0 0
    %6898 = vmatpush1.bf16.msra.mxu0 0
    %6899 = vmatprep.subr.bf16.mxu0 0
    %6900 = vmatpush1.bf16.msra.mxu0 0
    %6901 = vmatprep.subr.bf16.mxu0 0
    %6902 = vmatpush1.bf16.msra.mxu0 0
    %6903 = vmatprep.subr.bf16.mxu0 0
    %6904 = vmatpush1.bf16.msra.mxu0 0
    %6905 = vmatprep.subr.bf16.mxu0 0
    %6906 = vmatpush1.bf16.msra.mxu0 0
    %6907 = vmatprep.subr.bf16.mxu0 0
    %6908 = vmatpush1.bf16.msra.mxu0 0
    %6909 = vmatprep.subr.bf16.mxu0 0
    %6910 = vmatpush1.bf16.msra.mxu0 0
    %6911 = vmatprep.subr.bf16.mxu0 0
    %6912 = vmatpush1.bf16.msra.mxu0 0
    %6913 = vmatprep.subr.bf16.mxu0 0
    %6914 = vmatpush1.bf16.msra.mxu0 0
    %6915 = vmatprep.subr.bf16.mxu0 0
    %6916 = vmatpush1.bf16.msra.mxu0 0
    %6917 = vmatprep.subr.bf16.mxu0 0
    %6918 = vmatpush1.bf16.msra.mxu0 0
    %6919 = vmatprep.subr.bf16.mxu0 0
    %6920 = vmatpush1.bf16.msra.mxu0 0
    %6921 = vmatprep.subr.bf16.mxu0 0
    %6922 = vmatpush1.bf16.msra.mxu0 0
    %6923 = vmatprep.mubr.bf16.mxu0 0
    %6924 = vmatmul.mubr.bf16.gmra.mrb[0].mxu0 %v6695
    %v6925 = vpop.f32.mrb[0].mxu0
    %v6926 = vadd.f32 0.0, %v6925
    %v6927 = vpop.f32.mrb[0].mxu0
    %v6928 = vadd.f32 0.0, %v6927
    %v6929 = vpop.f32.mrb[0].mxu0
    %v6930 = vpop.f32.mrb[0].mxu0
    %6931 = vdwg.mxu0
    %v6933 = vrot.slane %v6651, 4
    %v6934 = vrot.slane %v6652, 4
    %v6935 = vsel %vm1138, %v6933, %v6934
    %v6938 = vsel %vm1056, 0.0, %v6935
    %v6939 = vsel %vm361, %v6934, 0.0
    %v6941 = vrot.slane %v6938, 1
    %v6943 = vrot.slane %v6938, 2
    %v6945 = vrot.slane %v6938, 3
    %v6947 = vrot.slane %v6938, 4
    %v6950 = vrot.slane %v6938, 5
    %v6951 = vrot.slane %v6939, 5
    %v6952 = vsel %vm1056, %v6950, %v6951
    %v6954 = vrot.slane %v6938, 6
    %v6955 = vrot.slane %v6939, 6
    %v6956 = vsel %vm361, %v6954, %v6955
    %v6958 = vrot.slane %v6938, 7
    %v6959 = vrot.slane %v6939, 7
    %v6960 = vsel %vm1925, %v6958, %v6959
    %v6962 = vrot.slane %v6939, 1
    %v6964 = vpack.c.bf16 %v6938, %v6938
    %v6965 = vpack.c.bf16 %v6941, %v6941
    %v6966 = vpack.c.bf16 %v6943, %v6943
    %v6967 = vpack.c.bf16 %v6945, %v6945
    %v6968 = vpack.c.bf16 %v6947, %v6947
    %v6969 = vpack.c.bf16 %v6952, %v6952
    %v6970 = vpack.c.bf16 %v6956, %v6956
    %v6971 = vpack.c.bf16 %v6960, %v6960
    %v6972 = vpack.c.bf16 %v6939, %v6939
    %v6973 = vpack.c.bf16 %v6962, %v6962
    %v6975 = vsel %vm361, %v6964, 0
    %v6978 = vsel %vm361, %v6965, 0
    %v6981 = vsel %vm361, %v6966, 0
    %v6984 = vsel %vm361, %v6967, 0
    %v6987 = vsel %vm361, %v6968, 0
    %v6990 = vsel %vm361, %v6969, 0
    %v6993 = vsel %vm361, %v6970, 0
    %v6996 = vsel %vm361, %v6971, 0
    %v6999 = vsel %vm361, %v6972, 0
    %v7002 = vsel %vm361, %v6973, 0
    %7004 = vmatprep.subr.bf16.mxu0 %v6978
    %7005 = vmatpush1.bf16.msra.mxu0 %v6975
    %7006 = vmatprep.subr.bf16.mxu0 0
    %7007 = vmatpush1.bf16.msra.mxu0 0
    %7008 = vmatprep.subr.bf16.mxu0 0
    %7009 = vmatpush1.bf16.msra.mxu0 0
    %7010 = vmatprep.subr.bf16.mxu0 0
    %7011 = vmatpush1.bf16.msra.mxu0 0
    %7012 = vmatprep.subr.bf16.mxu0 0
    %7013 = vmatpush1.bf16.msra.mxu0 0
    %7014 = vmatprep.subr.bf16.mxu0 0
    %7015 = vmatpush1.bf16.msra.mxu0 0
    %7016 = vmatprep.subr.bf16.mxu0 0
    %7017 = vmatpush1.bf16.msra.mxu0 0
    %7018 = vmatprep.subr.bf16.mxu0 0
    %7019 = vmatpush1.bf16.msra.mxu0 0
    %7020 = vmatprep.subr.bf16.mxu0 0
    %7021 = vmatpush1.bf16.msra.mxu0 0
    %7022 = vmatprep.subr.bf16.mxu0 0
    %7023 = vmatpush1.bf16.msra.mxu0 0
    %7024 = vmatprep.subr.bf16.mxu0 0
    %7025 = vmatpush1.bf16.msra.mxu0 0
    %7026 = vmatprep.subr.bf16.mxu0 0
    %7027 = vmatpush1.bf16.msra.mxu0 0
    %7028 = vmatprep.subr.bf16.mxu0 0
    %7029 = vmatpush1.bf16.msra.mxu0 0
    %7030 = vmatprep.subr.bf16.mxu0 0
    %7031 = vmatpush1.bf16.msra.mxu0 0
    %7032 = vmatprep.subr.bf16.mxu0 0
    %7033 = vmatpush1.bf16.msra.mxu0 0
    %7034 = vmatprep.subr.bf16.mxu0 0
    %7035 = vmatpush1.bf16.msra.mxu0 0
    %7036 = vmatprep.mubr.bf16.mxu0 0
    %7037 = vmatmul.mubr.bf16.gmra.mrb[0].mxu0 %v6695
    %v7038 = vpop.f32.mrb[0].mxu0
    %v7039 = vadd.f32 0.0, %v7038
    %v7040 = vpop.f32.mrb[0].mxu0
    %v7041 = vadd.f32 0.0, %v7040
    %v7042 = vpop.f32.mrb[0].mxu0
    %v7043 = vpop.f32.mrb[0].mxu0
    %7044 = vdwg.mxu0
    %7045 = vmatprep.subr.bf16.mxu0 %v6984
    %7046 = vmatpush1.bf16.msra.mxu0 %v6981
    %7047 = vmatprep.subr.bf16.mxu0 0
    %7048 = vmatpush1.bf16.msra.mxu0 0
    %7049 = vmatprep.subr.bf16.mxu0 0
    %7050 = vmatpush1.bf16.msra.mxu0 0
    %7051 = vmatprep.subr.bf16.mxu0 0
    %7052 = vmatpush1.bf16.msra.mxu0 0
    %7053 = vmatprep.subr.bf16.mxu0 0
    %7054 = vmatpush1.bf16.msra.mxu0 0
    %7055 = vmatprep.subr.bf16.mxu0 0
    %7056 = vmatpush1.bf16.msra.mxu0 0
    %7057 = vmatprep.subr.bf16.mxu0 0
    %7058 = vmatpush1.bf16.msra.mxu0 0
    %7059 = vmatprep.subr.bf16.mxu0 0
    %7060 = vmatpush1.bf16.msra.mxu0 0
    %7061 = vmatprep.subr.bf16.mxu0 0
    %7062 = vmatpush1.bf16.msra.mxu0 0
    %7063 = vmatprep.subr.bf16.mxu0 0
    %7064 = vmatpush1.bf16.msra.mxu0 0
    %7065 = vmatprep.subr.bf16.mxu0 0
    %7066 = vmatpush1.bf16.msra.mxu0 0
    %7067 = vmatprep.subr.bf16.mxu0 0
    %7068 = vmatpush1.bf16.msra.mxu0 0
    %7069 = vmatprep.subr.bf16.mxu0 0
    %7070 = vmatpush1.bf16.msra.mxu0 0
    %7071 = vmatprep.subr.bf16.mxu0 0
    %7072 = vmatpush1.bf16.msra.mxu0 0
    %7073 = vmatprep.subr.bf16.mxu0 0
    %7074 = vmatpush1.bf16.msra.mxu0 0
    %7075 = vmatprep.subr.bf16.mxu0 0
    %7076 = vmatpush1.bf16.msra.mxu0 0
    %7077 = vmatprep.mubr.bf16.mxu0 0
    %7078 = vmatmul.mubr.bf16.gmra.mrb[0].mxu0 %v6695
    %v7079 = vpop.f32.mrb[0].mxu0
    %v7080 = vadd.f32 0.0, %v7079
    %v7081 = vpop.f32.mrb[0].mxu0
    %v7082 = vadd.f32 0.0, %v7081
    %v7083 = vpop.f32.mrb[0].mxu0
    %v7084 = vpop.f32.mrb[0].mxu0
    %7085 = vdwg.mxu0
    %7086 = vmatprep.subr.bf16.mxu0 %v6990
    %7087 = vmatpush1.bf16.msra.mxu0 %v6987
    %7088 = vmatprep.subr.bf16.mxu0 0
    %7089 = vmatpush1.bf16.msra.mxu0 0
    %7090 = vmatprep.subr.bf16.mxu0 0
    %7091 = vmatpush1.bf16.msra.mxu0 0
    %7092 = vmatprep.subr.bf16.mxu0 0
    %7093 = vmatpush1.bf16.msra.mxu0 0
    %7094 = vmatprep.subr.bf16.mxu0 0
    %7095 = vmatpush1.bf16.msra.mxu0 0
    %7096 = vmatprep.subr.bf16.mxu0 0
    %7097 = vmatpush1.bf16.msra.mxu0 0
    %7098 = vmatprep.subr.bf16.mxu0 0
    %7099 = vmatpush1.bf16.msra.mxu0 0
    %7100 = vmatprep.subr.bf16.mxu0 0
    %7101 = vmatpush1.bf16.msra.mxu0 0
    %7102 = vmatprep.subr.bf16.mxu0 0
    %7103 = vmatpush1.bf16.msra.mxu0 0
    %7104 = vmatprep.subr.bf16.mxu0 0
    %7105 = vmatpush1.bf16.msra.mxu0 0
    %7106 = vmatprep.subr.bf16.mxu0 0
    %7107 = vmatpush1.bf16.msra.mxu0 0
    %7108 = vmatprep.subr.bf16.mxu0 0
    %7109 = vmatpush1.bf16.msra.mxu0 0
    %7110 = vmatprep.subr.bf16.mxu0 0
    %7111 = vmatpush1.bf16.msra.mxu0 0
    %7112 = vmatprep.subr.bf16.mxu0 0
    %7113 = vmatpush1.bf16.msra.mxu0 0
    %7114 = vmatprep.subr.bf16.mxu0 0
    %7115 = vmatpush1.bf16.msra.mxu0 0
    %7116 = vmatprep.subr.bf16.mxu0 0
    %7117 = vmatpush1.bf16.msra.mxu0 0
    %7118 = vmatprep.mubr.bf16.mxu0 0
    %7119 = vmatmul.mubr.bf16.gmra.mrb[0].mxu0 %v6695
    %v7120 = vpop.f32.mrb[0].mxu0
    %v7121 = vadd.f32 0.0, %v7120
    %v7122 = vpop.f32.mrb[0].mxu0
    %v7123 = vadd.f32 0.0, %v7122
    %v7124 = vpop.f32.mrb[0].mxu0
    %v7125 = vpop.f32.mrb[0].mxu0
    %7126 = vdwg.mxu0
    %7127 = vmatprep.subr.bf16.mxu0 %v6996
    %7128 = vmatpush1.bf16.msra.mxu0 %v6993
    %7129 = vmatprep.subr.bf16.mxu0 0
    %7130 = vmatpush1.bf16.msra.mxu0 0
    %7131 = vmatprep.subr.bf16.mxu0 0
    %7132 = vmatpush1.bf16.msra.mxu0 0
    %7133 = vmatprep.subr.bf16.mxu0 0
    %7134 = vmatpush1.bf16.msra.mxu0 0
    %7135 = vmatprep.subr.bf16.mxu0 0
    %7136 = vmatpush1.bf16.msra.mxu0 0
    %7137 = vmatprep.subr.bf16.mxu0 0
    %7138 = vmatpush1.bf16.msra.mxu0 0
    %7139 = vmatprep.subr.bf16.mxu0 0
    %7140 = vmatpush1.bf16.msra.mxu0 0
    %7141 = vmatprep.subr.bf16.mxu0 0
    %7142 = vmatpush1.bf16.msra.mxu0 0
    %7143 = vmatprep.subr.bf16.mxu0 0
    %7144 = vmatpush1.bf16.msra.mxu0 0
    %7145 = vmatprep.subr.bf16.mxu0 0
    %7146 = vmatpush1.bf16.msra.mxu0 0
    %7147 = vmatprep.subr.bf16.mxu0 0
    %7148 = vmatpush1.bf16.msra.mxu0 0
    %7149 = vmatprep.subr.bf16.mxu0 0
    %7150 = vmatpush1.bf16.msra.mxu0 0
    %7151 = vmatprep.subr.bf16.mxu0 0
    %7152 = vmatpush1.bf16.msra.mxu0 0
    %7153 = vmatprep.subr.bf16.mxu0 0
    %7154 = vmatpush1.bf16.msra.mxu0 0
    %7155 = vmatprep.subr.bf16.mxu0 0
    %7156 = vmatpush1.bf16.msra.mxu0 0
    %7157 = vmatprep.subr.bf16.mxu0 0
    %7158 = vmatpush1.bf16.msra.mxu0 0
    %7159 = vmatprep.mubr.bf16.mxu0 0
    %7160 = vmatmul.mubr.bf16.gmra.mrb[0].mxu0 %v6695
    %v7161 = vpop.f32.mrb[0].mxu0
    %v7162 = vadd.f32 0.0, %v7161
    %v7163 = vpop.f32.mrb[0].mxu0
    %v7164 = vadd.f32 0.0, %v7163
    %v7165 = vpop.f32.mrb[0].mxu0
    %v7166 = vpop.f32.mrb[0].mxu0
    %7167 = vdwg.mxu0
    %7168 = vmatprep.subr.bf16.mxu0 %v7002
    %7169 = vmatpush1.bf16.msra.mxu0 %v6999
    %7170 = vmatprep.subr.bf16.mxu0 0
    %7171 = vmatpush1.bf16.msra.mxu0 0
    %7172 = vmatprep.subr.bf16.mxu0 0
    %7173 = vmatpush1.bf16.msra.mxu0 0
    %7174 = vmatprep.subr.bf16.mxu0 0
    %7175 = vmatpush1.bf16.msra.mxu0 0
    %7176 = vmatprep.subr.bf16.mxu0 0
    %7177 = vmatpush1.bf16.msra.mxu0 0
    %7178 = vmatprep.subr.bf16.mxu0 0
    %7179 = vmatpush1.bf16.msra.mxu0 0
    %7180 = vmatprep.subr.bf16.mxu0 0
    %7181 = vmatpush1.bf16.msra.mxu0 0
    %7182 = vmatprep.subr.bf16.mxu0 0
    %7183 = vmatpush1.bf16.msra.mxu0 0
    %7184 = vmatprep.subr.bf16.mxu0 0
    %7185 = vmatpush1.bf16.msra.mxu0 0
    %7186 = vmatprep.subr.bf16.mxu0 0
    %7187 = vmatpush1.bf16.msra.mxu0 0
    %7188 = vmatprep.subr.bf16.mxu0 0
    %7189 = vmatpush1.bf16.msra.mxu0 0
    %7190 = vmatprep.subr.bf16.mxu0 0
    %7191 = vmatpush1.bf16.msra.mxu0 0
    %7192 = vmatprep.subr.bf16.mxu0 0
    %7193 = vmatpush1.bf16.msra.mxu0 0
    %7194 = vmatprep.subr.bf16.mxu0 0
    %7195 = vmatpush1.bf16.msra.mxu0 0
    %7196 = vmatprep.subr.bf16.mxu0 0
    %7197 = vmatpush1.bf16.msra.mxu0 0
    %7198 = vmatprep.subr.bf16.mxu0 0
    %7199 = vmatpush1.bf16.msra.mxu0 0
    %7200 = vmatprep.mubr.bf16.mxu0 0
    %7201 = vmatmul.mubr.bf16.gmra.mrb[0].mxu0 %v6695
    %v7202 = vpop.f32.mrb[0].mxu0
    %v7203 = vadd.f32 0.0, %v7202
    %v7204 = vpop.f32.mrb[0].mxu0
    %v7205 = vadd.f32 0.0, %v7204
    %v7206 = vpop.f32.mrb[0].mxu0
    %v7207 = vpop.f32.mrb[0].mxu0
    %7208 = vdwg.mxu0
    %v7219 = vrot.slane %v7039, 6
    %v7220 = vrot.slane %v7041, 6
    %v7221 = vrot.slane %v7080, 6
    %v7222 = vrot.slane %v7082, 6
    %v7223 = vrot.slane %v7121, 6
    %v7224 = vrot.slane %v7123, 6
    %v7225 = vrot.slane %v7162, 6
    %v7226 = vrot.slane %v7164, 6
    %v7227 = vrot.slane %v7203, 6
    %v7228 = vrot.slane %v7205, 6
    %v7239 = vsel %vm361, %v6762, %v7219
    %v7240 = vsel %vm361, %v6764, %v7220
    %v7241 = vsel %vm361, %v6803, %v7221
    %v7242 = vsel %vm361, %v6805, %v7222
    %v7243 = vsel %vm361, %v6844, %v7223
    %v7244 = vsel %vm361, %v6846, %v7224
    %v7245 = vsel %vm361, %v6885, %v7225
    %v7246 = vsel %vm361, %v6887, %v7226
    %v7247 = vsel %vm361, %v6926, %v7227
    %v7248 = vsel %vm361, %v6928, %v7228
    %v7249 = vpack.c.bf16 %v7239, %v7239
    %v7250 = vpack.c.bf16 %v7240, %v7240
    %v7251 = vpack.c.bf16 %v7241, %v7241
    %v7252 = vpack.c.bf16 %v7242, %v7242
    %v7253 = vpack.c.bf16 %v7243, %v7243
    %v7254 = vpack.c.bf16 %v7244, %v7244
    %v7255 = vpack.c.bf16 %v7245, %v7245
    %v7256 = vpack.c.bf16 %v7246, %v7246
    %v7257 = vpack.c.bf16 %v7247, %v7247
    %v7258 = vpack.c.bf16 %v7248, %v7248
    %v7259 = vld [vmem:[#allocation2] sm:$0xff]
    %v7260 = vld [vmem:[#allocation2 + $0x8] sm:$0xff]
    %v7261 = vld [vmem:[#allocation2 + $0x10] sm:$0xff]
    %v7262 = vld [vmem:[#allocation2 + $0x18] sm:$0xff]
    %v7263 = vld [vmem:[#allocation2 + $0x20] sm:$0xff]
    %v7264 = vld [vmem:[#allocation2 + $0x28] sm:$0xff]
    %v7265 = vld [vmem:[#allocation2 + $0x30] sm:$0xff]
    %v7266 = vld [vmem:[#allocation2 + $0x38] sm:$0xff]
    %v7267 = vld [vmem:[#allocation2 + $0x40] sm:$0xff]
    %v7268 = vld [vmem:[#allocation2 + $0x48] sm:$0xff]
    %v7269 = vld [vmem:[#allocation2 + $0x50] sm:$0xff]
    %v7270 = vld [vmem:[#allocation2 + $0x58] sm:$0xff]
    %v7271 = vld [vmem:[#allocation2 + $0x60] sm:$0xff]
    %v7272 = vld [vmem:[#allocation2 + $0x68] sm:$0xff]
    %v7273 = vld [vmem:[#allocation2 + $0x70] sm:$0xff]
    %v7274 = vld [vmem:[#allocation2 + $0x78] sm:$0xff]
    %v7275 = vld [vmem:[#allocation2 + $0x80] sm:$0xff]
    %v7276 = vld [vmem:[#allocation2 + $0x88] sm:$0xff]
    %v7277 = vld [vmem:[#allocation2 + $0x90] sm:$0xff]
    %v7278 = vld [vmem:[#allocation2 + $0x98] sm:$0xff]
    %v7279 = vld [vmem:[#allocation2 + $0xa0] sm:$0xff]
    %v7280 = vld [vmem:[#allocation2 + $0xa8] sm:$0xff]
    %v7281 = vld [vmem:[#allocation2 + $0xb0] sm:$0xff]
    %v7282 = vld [vmem:[#allocation2 + $0xb8] sm:$0xff]
    %v7283 = vld [vmem:[#allocation2 + $0xc0] sm:$0xff]
    %v7284 = vld [vmem:[#allocation2 + $0xc8] sm:$0xff]
    %v7285 = vld [vmem:[#allocation2 + $0xd0] sm:$0xff]
    %v7286 = vld [vmem:[#allocation2 + $0xd8] sm:$0xff]
    %v7287 = vld [vmem:[#allocation2 + $0xe0] sm:$0xff]
    %v7288 = vld [vmem:[#allocation2 + $0xe8] sm:$0xff]
    %v7289 = vld [vmem:[#allocation2 + $0xf0] sm:$0xff]
    %v7290 = vld [vmem:[#allocation2 + $0xf8] sm:$0xff]
    %v7291 = vld [vmem:[#allocation2 + $0x100] sm:$0xff]
    %v7292 = vld [vmem:[#allocation2 + $0x108] sm:$0xff]
    %v7293 = vld [vmem:[#allocation2 + $0x110] sm:$0xff]
    %v7294 = vld [vmem:[#allocation2 + $0x118] sm:$0xff]
    %v7295 = vld [vmem:[#allocation2 + $0x120] sm:$0xff]
    %v7296 = vld [vmem:[#allocation2 + $0x128] sm:$0xff]
    %v7297 = vld [vmem:[#allocation2 + $0x130] sm:$0xff]
    %v7298 = vld [vmem:[#allocation2 + $0x138] sm:$0xff]
    %v7299 = vld [vmem:[#allocation2 + $0x140] sm:$0xff]
    %v7300 = vld [vmem:[#allocation2 + $0x148] sm:$0xff]
    %v7301 = vld [vmem:[#allocation2 + $0x150] sm:$0xff]
    %v7302 = vld [vmem:[#allocation2 + $0x158] sm:$0xff]
    %v7303 = vld [vmem:[#allocation2 + $0x160] sm:$0xff]
    %v7304 = vld [vmem:[#allocation2 + $0x168] sm:$0xff]
    %v7305 = vld [vmem:[#allocation2 + $0x170] sm:$0xff]
    %v7306 = vld [vmem:[#allocation2 + $0x178] sm:$0xff]
    %v7307 = vld [vmem:[#allocation2 + $0x180] sm:$0xff]
    %v7308 = vld [vmem:[#allocation2 + $0x188] sm:$0xff]
    %v7309 = vld [vmem:[#allocation2 + $0x190] sm:$0xff]
    %v7310 = vld [vmem:[#allocation2 + $0x198] sm:$0xff]
    %v7311 = vld [vmem:[#allocation2 + $0x1a0] sm:$0xff]
    %v7312 = vld [vmem:[#allocation2 + $0x1a8] sm:$0xff]
    %v7313 = vld [vmem:[#allocation2 + $0x1b0] sm:$0xff]
    %v7314 = vld [vmem:[#allocation2 + $0x1b8] sm:$0xff]
    %v7315 = vld [vmem:[#allocation2 + $0x1c0] sm:$0xff]
    %v7316 = vld [vmem:[#allocation2 + $0x1c8] sm:$0xff]
    %v7317 = vld [vmem:[#allocation2 + $0x1d0] sm:$0xff]
    %v7318 = vld [vmem:[#allocation2 + $0x1d8] sm:$0xff]
    %v7319 = vld [vmem:[#allocation2 + $0x1e0] sm:$0xff]
    %v7320 = vld [vmem:[#allocation2 + $0x1e8] sm:$0xff]
    %v7321 = vld [vmem:[#allocation2 + $0x1f0] sm:$0xff]
    %v7322 = vld [vmem:[#allocation2 + $0x1f8] sm:$0xff]
    %v7323 = vld [vmem:[#allocation2 + $0x200] sm:$0xff]
    %v7324 = vld [vmem:[#allocation2 + $0x208] sm:$0xff]
    %v7325 = vld [vmem:[#allocation2 + $0x210] sm:$0xff]
    %v7326 = vld [vmem:[#allocation2 + $0x218] sm:$0xff]
    %v7327 = vld [vmem:[#allocation2 + $0x220] sm:$0xff]
    %v7328 = vld [vmem:[#allocation2 + $0x228] sm:$0xff]
    %v7329 = vld [vmem:[#allocation2 + $0x230] sm:$0xff]
    %v7330 = vld [vmem:[#allocation2 + $0x238] sm:$0xff]
    %v7331 = vld [vmem:[#allocation2 + $0x240] sm:$0xff]
    %v7332 = vld [vmem:[#allocation2 + $0x248] sm:$0xff]
    %v7333 = vld [vmem:[#allocation2 + $0x250] sm:$0xff]
    %v7334 = vld [vmem:[#allocation2 + $0x258] sm:$0xff]
    %v7335 = vld [vmem:[#allocation2 + $0x260] sm:$0xff]
    %v7336 = vld [vmem:[#allocation2 + $0x268] sm:$0xff]
    %v7337 = vld [vmem:[#allocation2 + $0x270] sm:$0xff]
    %v7338 = vld [vmem:[#allocation2 + $0x278] sm:$0xff]
    %v7339 = vld [vmem:[#allocation2 + $0x280] sm:$0xff]
    %v7340 = vld [vmem:[#allocation2 + $0x288] sm:$0xff]
    %v7341 = vld [vmem:[#allocation2 + $0x290] sm:$0xff]
    %v7342 = vld [vmem:[#allocation2 + $0x298] sm:$0xff]
    %v7343 = vld [vmem:[#allocation2 + $0x2a0] sm:$0xff]
    %v7344 = vld [vmem:[#allocation2 + $0x2a8] sm:$0xff]
    %v7345 = vld [vmem:[#allocation2 + $0x2b0] sm:$0xff]
    %v7346 = vld [vmem:[#allocation2 + $0x2b8] sm:$0xff]
    %v7347 = vld [vmem:[#allocation2 + $0x2c0] sm:$0xff]
    %v7348 = vld [vmem:[#allocation2 + $0x2c8] sm:$0xff]
    %v7349 = vld [vmem:[#allocation2 + $0x2d0] sm:$0xff]
    %v7350 = vld [vmem:[#allocation2 + $0x2d8] sm:$0xff]
    %v7351 = vld [vmem:[#allocation2 + $0x2e0] sm:$0xff]
    %v7352 = vld [vmem:[#allocation2 + $0x2e8] sm:$0xff]
    %v7353 = vld [vmem:[#allocation2 + $0x2f0] sm:$0xff]
    %v7354 = vld [vmem:[#allocation2 + $0x2f8] sm:$0xff]
    %v7355 = vld [vmem:[#allocation2 + $0x300] sm:$0xff]
    %v7356 = vld [vmem:[#allocation2 + $0x308] sm:$0xff]
    %v7357 = vld [vmem:[#allocation2 + $0x310] sm:$0xff]
    %v7358 = vld [vmem:[#allocation2 + $0x318] sm:$0xff]
    %v7359 = vld [vmem:[#allocation2 + $0x320] sm:$0xff]
    %v7360 = vld [vmem:[#allocation2 + $0x328] sm:$0xff]
    %v7361 = vld [vmem:[#allocation2 + $0x330] sm:$0xff]
    %v7362 = vld [vmem:[#allocation2 + $0x338] sm:$0xff]
    %v7363 = vld [vmem:[#allocation2 + $0x340] sm:$0xff]
    %v7364 = vld [vmem:[#allocation2 + $0x348] sm:$0xff]
    %v7365 = vld [vmem:[#allocation2 + $0x350] sm:$0xff]
    %v7366 = vld [vmem:[#allocation2 + $0x358] sm:$0xff]
    %v7367 = vld [vmem:[#allocation2 + $0x360] sm:$0xff]
    %v7368 = vld [vmem:[#allocation2 + $0x368] sm:$0xff]
    %v7369 = vld [vmem:[#allocation2 + $0x370] sm:$0xff]
    %v7370 = vld [vmem:[#allocation2 + $0x378] sm:$0xff]
    %v7371 = vld [vmem:[#allocation2 + $0x380] sm:$0xff]
    %v7372 = vld [vmem:[#allocation2 + $0x388] sm:$0xff]
    %v7373 = vld [vmem:[#allocation2 + $0x390] sm:$0xff]
    %v7374 = vld [vmem:[#allocation2 + $0x398] sm:$0xff]
    %v7375 = vld [vmem:[#allocation2 + $0x3a0] sm:$0xff]
    %v7376 = vld [vmem:[#allocation2 + $0x3a8] sm:$0xff]
    %v7377 = vld [vmem:[#allocation2 + $0x3b0] sm:$0xff]
    %v7378 = vld [vmem:[#allocation2 + $0x3b8] sm:$0xff]
    %v7379 = vld [vmem:[#allocation2 + $0x3c0] sm:$0xff]
    %v7380 = vld [vmem:[#allocation2 + $0x3c8] sm:$0xff]
    %v7381 = vld [vmem:[#allocation2 + $0x3d0] sm:$0xff]
    %v7382 = vld [vmem:[#allocation2 + $0x3d8] sm:$0xff]
    %v7383 = vld [vmem:[#allocation2 + $0x3e0] sm:$0xff]
    %v7384 = vld [vmem:[#allocation2 + $0x3e8] sm:$0xff]
    %v7385 = vld [vmem:[#allocation2 + $0x3f0] sm:$0xff]
    %v7386 = vld [vmem:[#allocation2 + $0x3f8] sm:$0xff]
    %v7387 = vld [vmem:[#allocation2 + $0x400] sm:$0xff]
    %v7388 = vld [vmem:[#allocation2 + $0x408] sm:$0xff]
    %v7389 = vld [vmem:[#allocation2 + $0x410] sm:$0xff]
    %v7390 = vld [vmem:[#allocation2 + $0x418] sm:$0xff]
    %v7391 = vld [vmem:[#allocation2 + $0x420] sm:$0xff]
    %v7392 = vld [vmem:[#allocation2 + $0x428] sm:$0xff]
    %v7393 = vld [vmem:[#allocation2 + $0x430] sm:$0xff]
    %v7394 = vld [vmem:[#allocation2 + $0x438] sm:$0xff]
    %v7395 = vld [vmem:[#allocation2 + $0x440] sm:$0xff]
    %v7396 = vld [vmem:[#allocation2 + $0x448] sm:$0xff]
    %v7397 = vld [vmem:[#allocation2 + $0x450] sm:$0xff]
    %v7398 = vld [vmem:[#allocation2 + $0x458] sm:$0xff]
    %v7399 = vld [vmem:[#allocation2 + $0x460] sm:$0xff]
    %v7400 = vld [vmem:[#allocation2 + $0x468] sm:$0xff]
    %v7401 = vld [vmem:[#allocation2 + $0x470] sm:$0xff]
    %v7402 = vld [vmem:[#allocation2 + $0x478] sm:$0xff]
    %v7403 = vld [vmem:[#allocation2 + $0x480] sm:$0xff]
    %v7404 = vld [vmem:[#allocation2 + $0x488] sm:$0xff]
    %v7405 = vld [vmem:[#allocation2 + $0x490] sm:$0xff]
    %v7406 = vld [vmem:[#allocation2 + $0x498] sm:$0xff]
    %v7407 = vld [vmem:[#allocation2 + $0x4a0] sm:$0xff]
    %v7408 = vld [vmem:[#allocation2 + $0x4a8] sm:$0xff]
    %v7409 = vld [vmem:[#allocation2 + $0x4b0] sm:$0xff]
    %v7410 = vld [vmem:[#allocation2 + $0x4b8] sm:$0xff]
    %v7411 = vld [vmem:[#allocation2 + $0x4c0] sm:$0xff]
    %v7412 = vld [vmem:[#allocation2 + $0x4c8] sm:$0xff]
    %v7413 = vld [vmem:[#allocation2 + $0x4d0] sm:$0xff]
    %v7414 = vld [vmem:[#allocation2 + $0x4d8] sm:$0xff]
    %v7415 = vld [vmem:[#allocation2 + $0x4e0] sm:$0xff]
    %v7416 = vld [vmem:[#allocation2 + $0x4e8] sm:$0xff]
    %v7417 = vld [vmem:[#allocation2 + $0x4f0] sm:$0xff]
    %v7418 = vld [vmem:[#allocation2 + $0x4f8] sm:$0xff]
    %v7579 = vunpack.c.l.b16 %v7259
    %v7580 = vunpack.c.h.b16 %v7259
    %v7581 = vunpack.c.l.b16 %v7260
    %v7582 = vunpack.c.h.b16 %v7260
    %v7583 = vunpack.c.l.b16 %v7261
    %v7584 = vunpack.c.h.b16 %v7261
    %v7585 = vunpack.c.l.b16 %v7262
    %v7586 = vunpack.c.h.b16 %v7262
    %v7587 = vunpack.c.l.b16 %v7263
    %v7588 = vunpack.c.h.b16 %v7263
    %v7589 = vunpack.c.l.b16 %v7264
    %v7590 = vunpack.c.h.b16 %v7264
    %v7591 = vunpack.c.l.b16 %v7265
    %v7592 = vunpack.c.h.b16 %v7265
    %v7593 = vunpack.c.l.b16 %v7266
    %v7594 = vunpack.c.h.b16 %v7266
    %v7595 = vunpack.c.l.b16 %v7267
    %v7596 = vunpack.c.h.b16 %v7267
    %v7597 = vunpack.c.l.b16 %v7268
    %v7598 = vunpack.c.h.b16 %v7268
    %v7599 = vunpack.c.l.b16 %v7269
    %v7600 = vunpack.c.h.b16 %v7269
    %v7601 = vunpack.c.l.b16 %v7270
    %v7602 = vunpack.c.h.b16 %v7270
    %v7603 = vunpack.c.l.b16 %v7271
    %v7604 = vunpack.c.h.b16 %v7271
    %v7605 = vunpack.c.l.b16 %v7272
    %v7606 = vunpack.c.h.b16 %v7272
    %v7607 = vunpack.c.l.b16 %v7273
    %v7608 = vunpack.c.h.b16 %v7273
    %v7609 = vunpack.c.l.b16 %v7274
    %v7610 = vunpack.c.h.b16 %v7274
    %v7611 = vunpack.c.l.b16 %v7275
    %v7612 = vunpack.c.h.b16 %v7275
    %v7613 = vunpack.c.l.b16 %v7276
    %v7614 = vunpack.c.h.b16 %v7276
    %v7615 = vunpack.c.l.b16 %v7277
    %v7616 = vunpack.c.h.b16 %v7277
    %v7617 = vunpack.c.l.b16 %v7278
    %v7618 = vunpack.c.h.b16 %v7278
    %v7619 = vunpack.c.l.b16 %v7279
    %v7620 = vunpack.c.h.b16 %v7279
    %v7621 = vunpack.c.l.b16 %v7280
    %v7622 = vunpack.c.h.b16 %v7280
    %v7623 = vunpack.c.l.b16 %v7281
    %v7624 = vunpack.c.h.b16 %v7281
    %v7625 = vunpack.c.l.b16 %v7282
    %v7626 = vunpack.c.h.b16 %v7282
    %v7627 = vunpack.c.l.b16 %v7283
    %v7628 = vunpack.c.h.b16 %v7283
    %v7629 = vunpack.c.l.b16 %v7284
    %v7630 = vunpack.c.h.b16 %v7284
    %v7631 = vunpack.c.l.b16 %v7285
    %v7632 = vunpack.c.h.b16 %v7285
    %v7633 = vunpack.c.l.b16 %v7286
    %v7634 = vunpack.c.h.b16 %v7286
    %v7635 = vunpack.c.l.b16 %v7287
    %v7636 = vunpack.c.h.b16 %v7287
    %v7637 = vunpack.c.l.b16 %v7288
    %v7638 = vunpack.c.h.b16 %v7288
    %v7639 = vunpack.c.l.b16 %v7289
    %v7640 = vunpack.c.h.b16 %v7289
    %v7641 = vunpack.c.l.b16 %v7290
    %v7642 = vunpack.c.h.b16 %v7290
    %v7643 = vunpack.c.l.b16 %v7291
    %v7644 = vunpack.c.h.b16 %v7291
    %v7645 = vunpack.c.l.b16 %v7292
    %v7646 = vunpack.c.h.b16 %v7292
    %v7647 = vunpack.c.l.b16 %v7293
    %v7648 = vunpack.c.h.b16 %v7293
    %v7649 = vunpack.c.l.b16 %v7294
    %v7650 = vunpack.c.h.b16 %v7294
    %v7651 = vunpack.c.l.b16 %v7295
    %v7652 = vunpack.c.h.b16 %v7295
    %v7653 = vunpack.c.l.b16 %v7296
    %v7654 = vunpack.c.h.b16 %v7296
    %v7655 = vunpack.c.l.b16 %v7297
    %v7656 = vunpack.c.h.b16 %v7297
    %v7657 = vunpack.c.l.b16 %v7298
    %v7658 = vunpack.c.h.b16 %v7298
    %v7659 = vunpack.c.l.b16 %v7299
    %v7660 = vunpack.c.h.b16 %v7299
    %v7661 = vunpack.c.l.b16 %v7300
    %v7662 = vunpack.c.h.b16 %v7300
    %v7663 = vunpack.c.l.b16 %v7301
    %v7664 = vunpack.c.h.b16 %v7301
    %v7665 = vunpack.c.l.b16 %v7302
    %v7666 = vunpack.c.h.b16 %v7302
    %v7667 = vunpack.c.l.b16 %v7303
    %v7668 = vunpack.c.h.b16 %v7303
    %v7669 = vunpack.c.l.b16 %v7304
    %v7670 = vunpack.c.h.b16 %v7304
    %v7671 = vunpack.c.l.b16 %v7305
    %v7672 = vunpack.c.h.b16 %v7305
    %v7673 = vunpack.c.l.b16 %v7306
    %v7674 = vunpack.c.h.b16 %v7306
    %v7675 = vunpack.c.l.b16 %v7307
    %v7676 = vunpack.c.h.b16 %v7307
    %v7677 = vunpack.c.l.b16 %v7308
    %v7678 = vunpack.c.h.b16 %v7308
    %v7679 = vunpack.c.l.b16 %v7309
    %v7680 = vunpack.c.h.b16 %v7309
    %v7681 = vunpack.c.l.b16 %v7310
    %v7682 = vunpack.c.h.b16 %v7310
    %v7683 = vunpack.c.l.b16 %v7311
    %v7684 = vunpack.c.h.b16 %v7311
    %v7685 = vunpack.c.l.b16 %v7312
    %v7686 = vunpack.c.h.b16 %v7312
    %v7687 = vunpack.c.l.b16 %v7313
    %v7688 = vunpack.c.h.b16 %v7313
    %v7689 = vunpack.c.l.b16 %v7314
    %v7690 = vunpack.c.h.b16 %v7314
    %v7691 = vunpack.c.l.b16 %v7315
    %v7692 = vunpack.c.h.b16 %v7315
    %v7693 = vunpack.c.l.b16 %v7316
    %v7694 = vunpack.c.h.b16 %v7316
    %v7695 = vunpack.c.l.b16 %v7317
    %v7696 = vunpack.c.h.b16 %v7317
    %v7697 = vunpack.c.l.b16 %v7318
    %v7698 = vunpack.c.h.b16 %v7318
    %v7699 = vunpack.c.l.b16 %v7319
    %v7700 = vunpack.c.h.b16 %v7319
    %v7701 = vunpack.c.l.b16 %v7320
    %v7702 = vunpack.c.h.b16 %v7320
    %v7703 = vunpack.c.l.b16 %v7321
    %v7704 = vunpack.c.h.b16 %v7321
    %v7705 = vunpack.c.l.b16 %v7322
    %v7706 = vunpack.c.h.b16 %v7322
    %v7707 = vunpack.c.l.b16 %v7323
    %v7708 = vunpack.c.h.b16 %v7323
    %v7709 = vunpack.c.l.b16 %v7324
    %v7710 = vunpack.c.h.b16 %v7324
    %v7711 = vunpack.c.l.b16 %v7325
    %v7712 = vunpack.c.h.b16 %v7325
    %v7713 = vunpack.c.l.b16 %v7326
    %v7714 = vunpack.c.h.b16 %v7326
    %v7715 = vunpack.c.l.b16 %v7327
    %v7716 = vunpack.c.h.b16 %v7327
    %v7717 = vunpack.c.l.b16 %v7328
    %v7718 = vunpack.c.h.b16 %v7328
    %v7719 = vunpack.c.l.b16 %v7329
    %v7720 = vunpack.c.h.b16 %v7329
    %v7721 = vunpack.c.l.b16 %v7330
    %v7722 = vunpack.c.h.b16 %v7330
    %v7723 = vunpack.c.l.b16 %v7331
    %v7724 = vunpack.c.h.b16 %v7331
    %v7725 = vunpack.c.l.b16 %v7332
    %v7726 = vunpack.c.h.b16 %v7332
    %v7727 = vunpack.c.l.b16 %v7333
    %v7728 = vunpack.c.h.b16 %v7333
    %v7729 = vunpack.c.l.b16 %v7334
    %v7730 = vunpack.c.h.b16 %v7334
    %v7731 = vunpack.c.l.b16 %v7335
    %v7732 = vunpack.c.h.b16 %v7335
    %v7733 = vunpack.c.l.b16 %v7336
    %v7734 = vunpack.c.h.b16 %v7336
    %v7735 = vunpack.c.l.b16 %v7337
    %v7736 = vunpack.c.h.b16 %v7337
    %v7737 = vunpack.c.l.b16 %v7338
    %v7738 = vunpack.c.h.b16 %v7338
    %v7739 = vunpack.c.l.b16 %v7339
    %v7740 = vunpack.c.h.b16 %v7339
    %v7741 = vunpack.c.l.b16 %v7340
    %v7742 = vunpack.c.h.b16 %v7340
    %v7743 = vunpack.c.l.b16 %v7341
    %v7744 = vunpack.c.h.b16 %v7341
    %v7745 = vunpack.c.l.b16 %v7342
    %v7746 = vunpack.c.h.b16 %v7342
    %v7747 = vunpack.c.l.b16 %v7343
    %v7748 = vunpack.c.h.b16 %v7343
    %v7749 = vunpack.c.l.b16 %v7344
    %v7750 = vunpack.c.h.b16 %v7344
    %v7751 = vunpack.c.l.b16 %v7345
    %v7752 = vunpack.c.h.b16 %v7345
    %v7753 = vunpack.c.l.b16 %v7346
    %v7754 = vunpack.c.h.b16 %v7346
    %v7755 = vunpack.c.l.b16 %v7347
    %v7756 = vunpack.c.h.b16 %v7347
    %v7757 = vunpack.c.l.b16 %v7348
    %v7758 = vunpack.c.h.b16 %v7348
    %v7759 = vunpack.c.l.b16 %v7349
    %v7760 = vunpack.c.h.b16 %v7349
    %v7761 = vunpack.c.l.b16 %v7350
    %v7762 = vunpack.c.h.b16 %v7350
    %v7763 = vunpack.c.l.b16 %v7351
    %v7764 = vunpack.c.h.b16 %v7351
    %v7765 = vunpack.c.l.b16 %v7352
    %v7766 = vunpack.c.h.b16 %v7352
    %v7767 = vunpack.c.l.b16 %v7353
    %v7768 = vunpack.c.h.b16 %v7353
    %v7769 = vunpack.c.l.b16 %v7354
    %v7770 = vunpack.c.h.b16 %v7354
    %v7771 = vunpack.c.l.b16 %v7355
    %v7772 = vunpack.c.h.b16 %v7355
    %v7773 = vunpack.c.l.b16 %v7356
    %v7774 = vunpack.c.h.b16 %v7356
    %v7775 = vunpack.c.l.b16 %v7357
    %v7776 = vunpack.c.h.b16 %v7357
    %v7777 = vunpack.c.l.b16 %v7358
    %v7778 = vunpack.c.h.b16 %v7358
    %v7779 = vunpack.c.l.b16 %v7359
    %v7780 = vunpack.c.h.b16 %v7359
    %v7781 = vunpack.c.l.b16 %v7360
    %v7782 = vunpack.c.h.b16 %v7360
    %v7783 = vunpack.c.l.b16 %v7361
    %v7784 = vunpack.c.h.b16 %v7361
    %v7785 = vunpack.c.l.b16 %v7362
    %v7786 = vunpack.c.h.b16 %v7362
    %v7787 = vunpack.c.l.b16 %v7363
    %v7788 = vunpack.c.h.b16 %v7363
    %v7789 = vunpack.c.l.b16 %v7364
    %v7790 = vunpack.c.h.b16 %v7364
    %v7791 = vunpack.c.l.b16 %v7365
    %v7792 = vunpack.c.h.b16 %v7365
    %v7793 = vunpack.c.l.b16 %v7366
    %v7794 = vunpack.c.h.b16 %v7366
    %v7795 = vunpack.c.l.b16 %v7367
    %v7796 = vunpack.c.h.b16 %v7367
    %v7797 = vunpack.c.l.b16 %v7368
    %v7798 = vunpack.c.h.b16 %v7368
    %v7799 = vunpack.c.l.b16 %v7369
    %v7800 = vunpack.c.h.b16 %v7369
    %v7801 = vunpack.c.l.b16 %v7370
    %v7802 = vunpack.c.h.b16 %v7370
    %v7803 = vunpack.c.l.b16 %v7371
    %v7804 = vunpack.c.h.b16 %v7371
    %v7805 = vunpack.c.l.b16 %v7372
    %v7806 = vunpack.c.h.b16 %v7372
    %v7807 = vunpack.c.l.b16 %v7373
    %v7808 = vunpack.c.h.b16 %v7373
    %v7809 = vunpack.c.l.b16 %v7374
    %v7810 = vunpack.c.h.b16 %v7374
    %v7811 = vunpack.c.l.b16 %v7375
    %v7812 = vunpack.c.h.b16 %v7375
    %v7813 = vunpack.c.l.b16 %v7376
    %v7814 = vunpack.c.h.b16 %v7376
    %v7815 = vunpack.c.l.b16 %v7377
    %v7816 = vunpack.c.h.b16 %v7377
    %v7817 = vunpack.c.l.b16 %v7378
    %v7818 = vunpack.c.h.b16 %v7378
    %v7819 = vunpack.c.l.b16 %v7379
    %v7820 = vunpack.c.h.b16 %v7379
    %v7821 = vunpack.c.l.b16 %v7380
    %v7822 = vunpack.c.h.b16 %v7380
    %v7823 = vunpack.c.l.b16 %v7381
    %v7824 = vunpack.c.h.b16 %v7381
    %v7825 = vunpack.c.l.b16 %v7382
    %v7826 = vunpack.c.h.b16 %v7382
    %v7827 = vunpack.c.l.b16 %v7383
    %v7828 = vunpack.c.h.b16 %v7383
    %v7829 = vunpack.c.l.b16 %v7384
    %v7830 = vunpack.c.h.b16 %v7384
    %v7831 = vunpack.c.l.b16 %v7385
    %v7832 = vunpack.c.h.b16 %v7385
    %v7833 = vunpack.c.l.b16 %v7386
    %v7834 = vunpack.c.h.b16 %v7386
    %v7835 = vunpack.c.l.b16 %v7387
    %v7836 = vunpack.c.h.b16 %v7387
    %v7837 = vunpack.c.l.b16 %v7388
    %v7838 = vunpack.c.h.b16 %v7388
    %v7839 = vunpack.c.l.b16 %v7389
    %v7840 = vunpack.c.h.b16 %v7389
    %v7841 = vunpack.c.l.b16 %v7390
    %v7842 = vunpack.c.h.b16 %v7390
    %v7843 = vunpack.c.l.b16 %v7391
    %v7844 = vunpack.c.h.b16 %v7391
    %v7845 = vunpack.c.l.b16 %v7392
    %v7846 = vunpack.c.h.b16 %v7392
    %v7847 = vunpack.c.l.b16 %v7393
    %v7848 = vunpack.c.h.b16 %v7393
    %v7849 = vunpack.c.l.b16 %v7394
    %v7850 = vunpack.c.h.b16 %v7394
    %v7851 = vunpack.c.l.b16 %v7395
    %v7852 = vunpack.c.h.b16 %v7395
    %v7853 = vunpack.c.l.b16 %v7396
    %v7854 = vunpack.c.h.b16 %v7396
    %v7855 = vunpack.c.l.b16 %v7397
    %v7856 = vunpack.c.h.b16 %v7397
    %v7857 = vunpack.c.l.b16 %v7398
    %v7858 = vunpack.c.h.b16 %v7398
    %v7859 = vunpack.c.l.b16 %v7399
    %v7860 = vunpack.c.h.b16 %v7399
    %v7861 = vunpack.c.l.b16 %v7400
    %v7862 = vunpack.c.h.b16 %v7400
    %v7863 = vunpack.c.l.b16 %v7401
    %v7864 = vunpack.c.h.b16 %v7401
    %v7865 = vunpack.c.l.b16 %v7402
    %v7866 = vunpack.c.h.b16 %v7402
    %v7867 = vunpack.c.l.b16 %v7403
    %v7868 = vunpack.c.h.b16 %v7403
    %v7869 = vunpack.c.l.b16 %v7404
    %v7870 = vunpack.c.h.b16 %v7404
    %v7871 = vunpack.c.l.b16 %v7405
    %v7872 = vunpack.c.h.b16 %v7405
    %v7873 = vunpack.c.l.b16 %v7406
    %v7874 = vunpack.c.h.b16 %v7406
    %v7875 = vunpack.c.l.b16 %v7407
    %v7876 = vunpack.c.h.b16 %v7407
    %v7877 = vunpack.c.l.b16 %v7408
    %v7878 = vunpack.c.h.b16 %v7408
    %v7879 = vunpack.c.l.b16 %v7409
    %v7880 = vunpack.c.h.b16 %v7409
    %v7881 = vunpack.c.l.b16 %v7410
    %v7882 = vunpack.c.h.b16 %v7410
    %v7883 = vunpack.c.l.b16 %v7411
    %v7884 = vunpack.c.h.b16 %v7411
    %v7885 = vunpack.c.l.b16 %v7412
    %v7886 = vunpack.c.h.b16 %v7412
    %v7887 = vunpack.c.l.b16 %v7413
    %v7888 = vunpack.c.h.b16 %v7413
    %v7889 = vunpack.c.l.b16 %v7414
    %v7890 = vunpack.c.h.b16 %v7414
    %v7891 = vunpack.c.l.b16 %v7415
    %v7892 = vunpack.c.h.b16 %v7415
    %v7893 = vunpack.c.l.b16 %v7416
    %v7894 = vunpack.c.h.b16 %v7416
    %v7895 = vunpack.c.l.b16 %v7417
    %v7896 = vunpack.c.h.b16 %v7417
    %v7897 = vunpack.c.l.b16 %v7418
    %v7898 = vunpack.c.h.b16 %v7418
    %v7899 = vpack.c.b16 %v7581, %v7579
    %v7900 = vpack.c.b16 %v7582, %v7580
    %v7901 = vpack.c.b16 %v7585, %v7583
    %v7902 = vpack.c.b16 %v7586, %v7584
    %v7903 = vpack.c.b16 %v7589, %v7587
    %v7904 = vpack.c.b16 %v7590, %v7588
    %v7905 = vpack.c.b16 %v7593, %v7591
    %v7906 = vpack.c.b16 %v7594, %v7592
    %v7907 = vpack.c.b16 %v7597, %v7595
    %v7908 = vpack.c.b16 %v7598, %v7596
    %v7909 = vpack.c.b16 %v7601, %v7599
    %v7910 = vpack.c.b16 %v7602, %v7600
    %v7911 = vpack.c.b16 %v7605, %v7603
    %v7912 = vpack.c.b16 %v7606, %v7604
    %v7913 = vpack.c.b16 %v7609, %v7607
    %v7914 = vpack.c.b16 %v7610, %v7608
    %v7915 = vpack.c.b16 %v7613, %v7611
    %v7916 = vpack.c.b16 %v7614, %v7612
    %v7917 = vpack.c.b16 %v7617, %v7615
    %v7918 = vpack.c.b16 %v7618, %v7616
    %v7919 = vpack.c.b16 %v7621, %v7619
    %v7920 = vpack.c.b16 %v7622, %v7620
    %v7921 = vpack.c.b16 %v7625, %v7623
    %v7922 = vpack.c.b16 %v7626, %v7624
    %v7923 = vpack.c.b16 %v7629, %v7627
    %v7924 = vpack.c.b16 %v7630, %v7628
    %v7925 = vpack.c.b16 %v7633, %v7631
    %v7926 = vpack.c.b16 %v7634, %v7632
    %v7927 = vpack.c.b16 %v7637, %v7635
    %v7928 = vpack.c.b16 %v7638, %v7636
    %v7929 = vpack.c.b16 %v7641, %v7639
    %v7930 = vpack.c.b16 %v7642, %v7640
    %v7931 = vpack.c.b16 %v7645, %v7643
    %v7932 = vpack.c.b16 %v7646, %v7644
    %v7933 = vpack.c.b16 %v7649, %v7647
    %v7934 = vpack.c.b16 %v7650, %v7648
    %v7935 = vpack.c.b16 %v7653, %v7651
    %v7936 = vpack.c.b16 %v7654, %v7652
    %v7937 = vpack.c.b16 %v7657, %v7655
    %v7938 = vpack.c.b16 %v7658, %v7656
    %v7939 = vpack.c.b16 %v7661, %v7659
    %v7940 = vpack.c.b16 %v7662, %v7660
    %v7941 = vpack.c.b16 %v7665, %v7663
    %v7942 = vpack.c.b16 %v7666, %v7664
    %v7943 = vpack.c.b16 %v7669, %v7667
    %v7944 = vpack.c.b16 %v7670, %v7668
    %v7945 = vpack.c.b16 %v7673, %v7671
    %v7946 = vpack.c.b16 %v7674, %v7672
    %v7947 = vpack.c.b16 %v7677, %v7675
    %v7948 = vpack.c.b16 %v7678, %v7676
    %v7949 = vpack.c.b16 %v7681, %v7679
    %v7950 = vpack.c.b16 %v7682, %v7680
    %v7951 = vpack.c.b16 %v7685, %v7683
    %v7952 = vpack.c.b16 %v7686, %v7684
    %v7953 = vpack.c.b16 %v7689, %v7687
    %v7954 = vpack.c.b16 %v7690, %v7688
    %v7955 = vpack.c.b16 %v7693, %v7691
    %v7956 = vpack.c.b16 %v7694, %v7692
    %v7957 = vpack.c.b16 %v7697, %v7695
    %v7958 = vpack.c.b16 %v7698, %v7696
    %v7959 = vpack.c.b16 %v7701, %v7699
    %v7960 = vpack.c.b16 %v7702, %v7700
    %v7961 = vpack.c.b16 %v7705, %v7703
    %v7962 = vpack.c.b16 %v7706, %v7704
    %v7963 = vpack.c.b16 %v7709, %v7707
    %v7964 = vpack.c.b16 %v7710, %v7708
    %v7965 = vpack.c.b16 %v7713, %v7711
    %v7966 = vpack.c.b16 %v7714, %v7712
    %v7967 = vpack.c.b16 %v7717, %v7715
    %v7968 = vpack.c.b16 %v7718, %v7716
    %v7969 = vpack.c.b16 %v7721, %v7719
    %v7970 = vpack.c.b16 %v7722, %v7720
    %v7971 = vpack.c.b16 %v7725, %v7723
    %v7972 = vpack.c.b16 %v7726, %v7724
    %v7973 = vpack.c.b16 %v7729, %v7727
    %v7974 = vpack.c.b16 %v7730, %v7728
    %v7975 = vpack.c.b16 %v7733, %v7731
    %v7976 = vpack.c.b16 %v7734, %v7732
    %v7977 = vpack.c.b16 %v7737, %v7735
    %v7978 = vpack.c.b16 %v7738, %v7736
    %v7979 = vpack.c.b16 %v7741, %v7739
    %v7980 = vpack.c.b16 %v7742, %v7740
    %v7981 = vpack.c.b16 %v7745, %v7743
    %v7982 = vpack.c.b16 %v7746, %v7744
    %v7983 = vpack.c.b16 %v7749, %v7747
    %v7984 = vpack.c.b16 %v7750, %v7748
    %v7985 = vpack.c.b16 %v7753, %v7751
    %v7986 = vpack.c.b16 %v7754, %v7752
    %v7987 = vpack.c.b16 %v7757, %v7755
    %v7988 = vpack.c.b16 %v7758, %v7756
    %v7989 = vpack.c.b16 %v7761, %v7759
    %v7990 = vpack.c.b16 %v7762, %v7760
    %v7991 = vpack.c.b16 %v7765, %v7763
    %v7992 = vpack.c.b16 %v7766, %v7764
    %v7993 = vpack.c.b16 %v7769, %v7767
    %v7994 = vpack.c.b16 %v7770, %v7768
    %v7995 = vpack.c.b16 %v7773, %v7771
    %v7996 = vpack.c.b16 %v7774, %v7772
    %v7997 = vpack.c.b16 %v7777, %v7775
    %v7998 = vpack.c.b16 %v7778, %v7776
    %v7999 = vpack.c.b16 %v7781, %v7779
    %v8000 = vpack.c.b16 %v7782, %v7780
    %v8001 = vpack.c.b16 %v7785, %v7783
    %v8002 = vpack.c.b16 %v7786, %v7784
    %v8003 = vpack.c.b16 %v7789, %v7787
    %v8004 = vpack.c.b16 %v7790, %v7788
    %v8005 = vpack.c.b16 %v7793, %v7791
    %v8006 = vpack.c.b16 %v7794, %v7792
    %v8007 = vpack.c.b16 %v7797, %v7795
    %v8008 = vpack.c.b16 %v7798, %v7796
    %v8009 = vpack.c.b16 %v7801, %v7799
    %v8010 = vpack.c.b16 %v7802, %v7800
    %v8011 = vpack.c.b16 %v7805, %v7803
    %v8012 = vpack.c.b16 %v7806, %v7804
    %v8013 = vpack.c.b16 %v7809, %v7807
    %v8014 = vpack.c.b16 %v7810, %v7808
    %v8015 = vpack.c.b16 %v7813, %v7811
    %v8016 = vpack.c.b16 %v7814, %v7812
    %v8017 = vpack.c.b16 %v7817, %v7815
    %v8018 = vpack.c.b16 %v7818, %v7816
    %v8019 = vpack.c.b16 %v7821, %v7819
    %v8020 = vpack.c.b16 %v7822, %v7820
    %v8021 = vpack.c.b16 %v7825, %v7823
    %v8022 = vpack.c.b16 %v7826, %v7824
    %v8023 = vpack.c.b16 %v7829, %v7827
    %v8024 = vpack.c.b16 %v7830, %v7828
    %v8025 = vpack.c.b16 %v7833, %v7831
    %v8026 = vpack.c.b16 %v7834, %v7832
    %v8027 = vpack.c.b16 %v7837, %v7835
    %v8028 = vpack.c.b16 %v7838, %v7836
    %v8029 = vpack.c.b16 %v7841, %v7839
    %v8030 = vpack.c.b16 %v7842, %v7840
    %v8031 = vpack.c.b16 %v7845, %v7843
    %v8032 = vpack.c.b16 %v7846, %v7844
    %v8033 = vpack.c.b16 %v7849, %v7847
    %v8034 = vpack.c.b16 %v7850, %v7848
    %v8035 = vpack.c.b16 %v7853, %v7851
    %v8036 = vpack.c.b16 %v7854, %v7852
    %v8037 = vpack.c.b16 %v7857, %v7855
    %v8038 = vpack.c.b16 %v7858, %v7856
    %v8039 = vpack.c.b16 %v7861, %v7859
    %v8040 = vpack.c.b16 %v7862, %v7860
    %v8041 = vpack.c.b16 %v7865, %v7863
    %v8042 = vpack.c.b16 %v7866, %v7864
    %v8043 = vpack.c.b16 %v7869, %v7867
    %v8044 = vpack.c.b16 %v7870, %v7868
    %v8045 = vpack.c.b16 %v7873, %v7871
    %v8046 = vpack.c.b16 %v7874, %v7872
    %v8047 = vpack.c.b16 %v7877, %v7875
    %v8048 = vpack.c.b16 %v7878, %v7876
    %v8049 = vpack.c.b16 %v7881, %v7879
    %v8050 = vpack.c.b16 %v7882, %v7880
    %v8051 = vpack.c.b16 %v7885, %v7883
    %v8052 = vpack.c.b16 %v7886, %v7884
    %v8053 = vpack.c.b16 %v7889, %v7887
    %v8054 = vpack.c.b16 %v7890, %v7888
    %v8055 = vpack.c.b16 %v7893, %v7891
    %v8056 = vpack.c.b16 %v7894, %v7892
    %v8057 = vpack.c.b16 %v7897, %v7895
    %v8058 = vpack.c.b16 %v7898, %v7896
    %8219 = vmatprep.subr.bf16.mxu0 %v7900
    %8220 = vmatpush1.bf16.msra.mxu0 %v7899
    %8221 = vmatprep.subr.bf16.mxu0 %v7902
    %8222 = vmatpush1.bf16.msra.mxu0 %v7901
    %8223 = vmatprep.subr.bf16.mxu0 %v7904
    %8224 = vmatpush1.bf16.msra.mxu0 %v7903
    %8225 = vmatprep.subr.bf16.mxu0 %v7906
    %8226 = vmatpush1.bf16.msra.mxu0 %v7905
    %8227 = vmatprep.subr.bf16.mxu0 %v7908
    %8228 = vmatpush1.bf16.msra.mxu0 %v7907
    %8229 = vmatprep.subr.bf16.mxu0 %v7910
    %8230 = vmatpush1.bf16.msra.mxu0 %v7909
    %8231 = vmatprep.subr.bf16.mxu0 %v7912
    %8232 = vmatpush1.bf16.msra.mxu0 %v7911
    %8233 = vmatprep.subr.bf16.mxu0 %v7914
    %8234 = vmatpush1.bf16.msra.mxu0 %v7913
    %8235 = vmatprep.subr.bf16.mxu0 %v7916
    %8236 = vmatpush1.bf16.msra.mxu0 %v7915
    %8237 = vmatprep.subr.bf16.mxu0 %v7918
    %8238 = vmatpush1.bf16.msra.mxu0 %v7917
    %8239 = vmatprep.subr.bf16.mxu0 %v7920
    %8240 = vmatpush1.bf16.msra.mxu0 %v7919
    %8241 = vmatprep.subr.bf16.mxu0 %v7922
    %8242 = vmatpush1.bf16.msra.mxu0 %v7921
    %8243 = vmatprep.subr.bf16.mxu0 %v7924
    %8244 = vmatpush1.bf16.msra.mxu0 %v7923
    %8245 = vmatprep.subr.bf16.mxu0 %v7926
    %8246 = vmatpush1.bf16.msra.mxu0 %v7925
    %8247 = vmatprep.subr.bf16.mxu0 %v7928
    %8248 = vmatpush1.bf16.msra.mxu0 %v7927
    %8249 = vmatprep.subr.bf16.mxu0 %v7930
    %8250 = vmatpush1.bf16.msra.mxu0 %v7929
    %8251 = vmatprep.mubr.bf16.mxu0 %v7250
    %8252 = vmatmul.mubr.bf16.gmra.mrb[0].mxu0 %v7249
    %v8253 = vpop.f32.mrb[0].mxu0
    %v8254 = vadd.f32 0.0, %v8253
    %v8255 = vpop.f32.mrb[0].mxu0
    %v8256 = vadd.f32 0.0, %v8255
    %v8257 = vpop.f32.mrb[0].mxu0
    %v8258 = vpop.f32.mrb[0].mxu0
    %8259 = vdwg.mxu0
    %8260 = vmatprep.subr.bf16.mxu0 %v7932
    %8261 = vmatpush1.bf16.msra.mxu0 %v7931
    %8262 = vmatprep.subr.bf16.mxu0 %v7934
    %8263 = vmatpush1.bf16.msra.mxu0 %v7933
    %8264 = vmatprep.subr.bf16.mxu0 %v7936
    %8265 = vmatpush1.bf16.msra.mxu0 %v7935
    %8266 = vmatprep.subr.bf16.mxu0 %v7938
    %8267 = vmatpush1.bf16.msra.mxu0 %v7937
    %8268 = vmatprep.subr.bf16.mxu0 %v7940
    %8269 = vmatpush1.bf16.msra.mxu0 %v7939
    %8270 = vmatprep.subr.bf16.mxu0 %v7942
    %8271 = vmatpush1.bf16.msra.mxu0 %v7941
    %8272 = vmatprep.subr.bf16.mxu0 %v7944
    %8273 = vmatpush1.bf16.msra.mxu0 %v7943
    %8274 = vmatprep.subr.bf16.mxu0 %v7946
    %8275 = vmatpush1.bf16.msra.mxu0 %v7945
    %8276 = vmatprep.subr.bf16.mxu0 %v7948
    %8277 = vmatpush1.bf16.msra.mxu0 %v7947
    %8278 = vmatprep.subr.bf16.mxu0 %v7950
    %8279 = vmatpush1.bf16.msra.mxu0 %v7949
    %8280 = vmatprep.subr.bf16.mxu0 %v7952
    %8281 = vmatpush1.bf16.msra.mxu0 %v7951
    %8282 = vmatprep.subr.bf16.mxu0 %v7954
    %8283 = vmatpush1.bf16.msra.mxu0 %v7953
    %8284 = vmatprep.subr.bf16.mxu0 %v7956
    %8285 = vmatpush1.bf16.msra.mxu0 %v7955
    %8286 = vmatprep.subr.bf16.mxu0 %v7958
    %8287 = vmatpush1.bf16.msra.mxu0 %v7957
    %8288 = vmatprep.subr.bf16.mxu0 %v7960
    %8289 = vmatpush1.bf16.msra.mxu0 %v7959
    %8290 = vmatprep.subr.bf16.mxu0 %v7962
    %8291 = vmatpush1.bf16.msra.mxu0 %v7961
    %8292 = vmatprep.mubr.bf16.mxu0 %v7252
    %8293 = vmatmul.mubr.bf16.gmra.mrb[0].mxu0 %v7251
    %v8294 = vpop.f32.mrb[0].mxu0
    %v8295 = vadd.f32 %v8254, %v8294
    %v8296 = vpop.f32.mrb[0].mxu0
    %v8297 = vadd.f32 %v8256, %v8296
    %v8298 = vpop.f32.mrb[0].mxu0
    %v8299 = vpop.f32.mrb[0].mxu0
    %8300 = vdwg.mxu0
    %8301 = vmatprep.subr.bf16.mxu0 %v7964
    %8302 = vmatpush1.bf16.msra.mxu0 %v7963
    %8303 = vmatprep.subr.bf16.mxu0 %v7966
    %8304 = vmatpush1.bf16.msra.mxu0 %v7965
    %8305 = vmatprep.subr.bf16.mxu0 %v7968
    %8306 = vmatpush1.bf16.msra.mxu0 %v7967
    %8307 = vmatprep.subr.bf16.mxu0 %v7970
    %8308 = vmatpush1.bf16.msra.mxu0 %v7969
    %8309 = vmatprep.subr.bf16.mxu0 %v7972
    %8310 = vmatpush1.bf16.msra.mxu0 %v7971
    %8311 = vmatprep.subr.bf16.mxu0 %v7974
    %8312 = vmatpush1.bf16.msra.mxu0 %v7973
    %8313 = vmatprep.subr.bf16.mxu0 %v7976
    %8314 = vmatpush1.bf16.msra.mxu0 %v7975
    %8315 = vmatprep.subr.bf16.mxu0 %v7978
    %8316 = vmatpush1.bf16.msra.mxu0 %v7977
    %8317 = vmatprep.subr.bf16.mxu0 %v7980
    %8318 = vmatpush1.bf16.msra.mxu0 %v7979
    %8319 = vmatprep.subr.bf16.mxu0 %v7982
    %8320 = vmatpush1.bf16.msra.mxu0 %v7981
    %8321 = vmatprep.subr.bf16.mxu0 %v7984
    %8322 = vmatpush1.bf16.msra.mxu0 %v7983
    %8323 = vmatprep.subr.bf16.mxu0 %v7986
    %8324 = vmatpush1.bf16.msra.mxu0 %v7985
    %8325 = vmatprep.subr.bf16.mxu0 %v7988
    %8326 = vmatpush1.bf16.msra.mxu0 %v7987
    %8327 = vmatprep.subr.bf16.mxu0 %v7990
    %8328 = vmatpush1.bf16.msra.mxu0 %v7989
    %8329 = vmatprep.subr.bf16.mxu0 %v7992
    %8330 = vmatpush1.bf16.msra.mxu0 %v7991
    %8331 = vmatprep.subr.bf16.mxu0 %v7994
    %8332 = vmatpush1.bf16.msra.mxu0 %v7993
    %8333 = vmatprep.mubr.bf16.mxu0 %v7254
    %8334 = vmatmul.mubr.bf16.gmra.mrb[0].mxu0 %v7253
    %v8335 = vpop.f32.mrb[0].mxu0
    %v8336 = vadd.f32 %v8295, %v8335
    %v8337 = vpop.f32.mrb[0].mxu0
    %v8338 = vadd.f32 %v8297, %v8337
    %v8339 = vpop.f32.mrb[0].mxu0
    %v8340 = vpop.f32.mrb[0].mxu0
    %8341 = vdwg.mxu0
    %8342 = vmatprep.subr.bf16.mxu0 %v7996
    %8343 = vmatpush1.bf16.msra.mxu0 %v7995
    %8344 = vmatprep.subr.bf16.mxu0 %v7998
    %8345 = vmatpush1.bf16.msra.mxu0 %v7997
    %8346 = vmatprep.subr.bf16.mxu0 %v8000
    %8347 = vmatpush1.bf16.msra.mxu0 %v7999
    %8348 = vmatprep.subr.bf16.mxu0 %v8002
    %8349 = vmatpush1.bf16.msra.mxu0 %v8001
    %8350 = vmatprep.subr.bf16.mxu0 %v8004
    %8351 = vmatpush1.bf16.msra.mxu0 %v8003
    %8352 = vmatprep.subr.bf16.mxu0 %v8006
    %8353 = vmatpush1.bf16.msra.mxu0 %v8005
    %8354 = vmatprep.subr.bf16.mxu0 %v8008
    %8355 = vmatpush1.bf16.msra.mxu0 %v8007
    %8356 = vmatprep.subr.bf16.mxu0 %v8010
    %8357 = vmatpush1.bf16.msra.mxu0 %v8009
    %8358 = vmatprep.subr.bf16.mxu0 %v8012
    %8359 = vmatpush1.bf16.msra.mxu0 %v8011
    %8360 = vmatprep.subr.bf16.mxu0 %v8014
    %8361 = vmatpush1.bf16.msra.mxu0 %v8013
    %8362 = vmatprep.subr.bf16.mxu0 %v8016
    %8363 = vmatpush1.bf16.msra.mxu0 %v8015
    %8364 = vmatprep.subr.bf16.mxu0 %v8018
    %8365 = vmatpush1.bf16.msra.mxu0 %v8017
    %8366 = vmatprep.subr.bf16.mxu0 %v8020
    %8367 = vmatpush1.bf16.msra.mxu0 %v8019
    %8368 = vmatprep.subr.bf16.mxu0 %v8022
    %8369 = vmatpush1.bf16.msra.mxu0 %v8021
    %8370 = vmatprep.subr.bf16.mxu0 %v8024
    %8371 = vmatpush1.bf16.msra.mxu0 %v8023
    %8372 = vmatprep.subr.bf16.mxu0 %v8026
    %8373 = vmatpush1.bf16.msra.mxu0 %v8025
    %8374 = vmatprep.mubr.bf16.mxu0 %v7256
    %8375 = vmatmul.mubr.bf16.gmra.mrb[0].mxu0 %v7255
    %v8376 = vpop.f32.mrb[0].mxu0
    %v8377 = vadd.f32 %v8336, %v8376
    %v8378 = vpop.f32.mrb[0].mxu0
    %v8379 = vadd.f32 %v8338, %v8378
    %v8380 = vpop.f32.mrb[0].mxu0
    %v8381 = vpop.f32.mrb[0].mxu0
    %8382 = vdwg.mxu0
    %8383 = vmatprep.subr.bf16.mxu0 %v8028
    %8384 = vmatpush1.bf16.msra.mxu0 %v8027
    %8385 = vmatprep.subr.bf16.mxu0 %v8030
    %8386 = vmatpush1.bf16.msra.mxu0 %v8029
    %8387 = vmatprep.subr.bf16.mxu0 %v8032
    %8388 = vmatpush1.bf16.msra.mxu0 %v8031
    %8389 = vmatprep.subr.bf16.mxu0 %v8034
    %8390 = vmatpush1.bf16.msra.mxu0 %v8033
    %8391 = vmatprep.subr.bf16.mxu0 %v8036
    %8392 = vmatpush1.bf16.msra.mxu0 %v8035
    %8393 = vmatprep.subr.bf16.mxu0 %v8038
    %8394 = vmatpush1.bf16.msra.mxu0 %v8037
    %8395 = vmatprep.subr.bf16.mxu0 %v8040
    %8396 = vmatpush1.bf16.msra.mxu0 %v8039
    %8397 = vmatprep.subr.bf16.mxu0 %v8042
    %8398 = vmatpush1.bf16.msra.mxu0 %v8041
    %8399 = vmatprep.subr.bf16.mxu0 %v8044
    %8400 = vmatpush1.bf16.msra.mxu0 %v8043
    %8401 = vmatprep.subr.bf16.mxu0 %v8046
    %8402 = vmatpush1.bf16.msra.mxu0 %v8045
    %8403 = vmatprep.subr.bf16.mxu0 %v8048
    %8404 = vmatpush1.bf16.msra.mxu0 %v8047
    %8405 = vmatprep.subr.bf16.mxu0 %v8050
    %8406 = vmatpush1.bf16.msra.mxu0 %v8049
    %8407 = vmatprep.subr.bf16.mxu0 %v8052
    %8408 = vmatpush1.bf16.msra.mxu0 %v8051
    %8409 = vmatprep.subr.bf16.mxu0 %v8054
    %8410 = vmatpush1.bf16.msra.mxu0 %v8053
    %8411 = vmatprep.subr.bf16.mxu0 %v8056
    %8412 = vmatpush1.bf16.msra.mxu0 %v8055
    %8413 = vmatprep.subr.bf16.mxu0 %v8058
    %8414 = vmatpush1.bf16.msra.mxu0 %v8057
    %8415 = vmatprep.mubr.bf16.mxu0 %v7258
    %8416 = vmatmul.mubr.bf16.gmra.mrb[0].mxu0 %v7257
    %v8417 = vpop.f32.mrb[0].mxu0
    %v8418 = vadd.f32 %v8377, %v8417
    %v8419 = vpop.f32.mrb[0].mxu0
    %v8420 = vadd.f32 %v8379, %v8419
    %v8421 = vpop.f32.mrb[0].mxu0
    %v8422 = vpop.f32.mrb[0].mxu0
    %8423 = vdwg.mxu0
    %v8424 = vsel %vm1138, %v8418, 0.0
    %v8425 = vrot.slane %v8424, 4
    %v8426 = vadd.f32 %v8424, %v8425
    %v8427 = vrot.slane %v8426, 2
    %v8428 = vadd.f32 %v8426, %v8427
    %v8429 = vrot.slane %v8428, 1
    %v8430 = vadd.f32 %v8428, %v8429
    %v8431 = vsel %vm1138, %v8420, 0.0
    %v8432 = vrot.slane %v8431, 4
    %v8433 = vadd.f32 %v8431, %v8432
    %v8434 = vrot.slane %v8433, 2
    %v8435 = vadd.f32 %v8433, %v8434
    %v8436 = vrot.slane %v8435, 1
    %v8437 = vadd.f32 %v8435, %v8436
    %v8438 = vmul.f32 %v8430, 0.25
    %v8439 = vmul.f32 %v8437, 0.25
    %v8440 = vmul.f32 %v8418, %v8418
    %v8441 = vmul.f32 %v8420, %v8420
    %v8442 = vsel %vm1138, %v8440, 0.0
    %v8443 = vrot.slane %v8442, 4
    %v8444 = vadd.f32 %v8442, %v8443
    %v8445 = vrot.slane %v8444, 2
    %v8446 = vadd.f32 %v8444, %v8445
    %v8447 = vrot.slane %v8446, 1
    %v8448 = vadd.f32 %v8446, %v8447
    %v8449 = vsel %vm1138, %v8441, 0.0
    %v8450 = vrot.slane %v8449, 4
    %v8451 = vadd.f32 %v8449, %v8450
    %v8452 = vrot.slane %v8451, 2
    %v8453 = vadd.f32 %v8451, %v8452
    %v8454 = vrot.slane %v8453, 1
    %v8455 = vadd.f32 %v8453, %v8454
    %v8456 = vmul.f32 %v8448, 0.25
    %v8457 = vmul.f32 %v8455, 0.25
    %v8458 = vmul.f32 %v8438, %v8438
    %v8459 = vmul.f32 %v8439, %v8439
    %v8460 = vsub.f32 %v8456, %v8458
    %v8461 = vsub.f32 %v8457, %v8459
    %v8462 = vmax.f32 %v8460, 0.0
    %v8463 = vmax.f32 %v8461, 0.0
    %v8464 = vld [vmem:[%s18] sm:$0x3]
    %v8465 = vadd.f32 %v8462, 1e-05
    %v8466 = vadd.f32 %v8463, 1e-05
    %v8467 = vrsqrt.pop %v8465
    %v8468 = vrsqrt.pop %v8466
    %v8471 = vcombine.low %v8467, %v8468
    %v8473 = vunpack.c.l.s4 1966171168
    %v8474 = vunpack.c.0.s8 %v8473
    %v8475 = vlaneseq
    %v8476 = vshrl.u32 %v8475, 7
    %v8477 = vsub.s32 %v8474, %v8476
    %v8478 = vrot.slane %v8471, %v8477
    %v8480 = vunpack.c.l.s4 1966171168
    %v8481 = vunpack.c.0.s8 %v8480
    %v8482 = vlaneseq
    %v8483 = vshrl.u32 %v8482, 7
    %v8484 = vsub.s32 %v8481, %v8483
    %v8485 = vrot.slane %v8478, %v8484
    %v8487 = vmul.f32 %v8464, %v8485
    %v8488 = vld [vmem:[%s19] sm:$0x3]
    %v8490 = vlaneseq
    %v8491 = vshrl.u32 %v8490, 7
    %v8492 = vsub.s32 0, %v8491
    %v8493 = vrot.slane %v8487, %v8492
    %v8494 = vlaneseq
    %v8495 = vshrl.u32 %v8494, 7
    %v8496 = vsub.s32 1, %v8495
    %v8497 = vrot.slane %v8487, %v8496
    %v8500 = vmul.f32 %v8438, %v8493
    %v8501 = vmul.f32 %v8439, %v8497
    %v8504 = vcombine.low %v8500, %v8501
    %v8506 = vunpack.c.l.s4 1966171168
    %v8507 = vunpack.c.0.s8 %v8506
    %v8508 = vlaneseq
    %v8509 = vshrl.u32 %v8508, 7
    %v8510 = vsub.s32 %v8507, %v8509
    %v8511 = vrot.slane %v8504, %v8510
    %v8513 = vunpack.c.l.s4 1966171168
    %v8514 = vunpack.c.0.s8 %v8513
    %v8515 = vlaneseq
    %v8516 = vshrl.u32 %v8515, 7
    %v8517 = vsub.s32 %v8514, %v8516
    %v8518 = vrot.slane %v8511, %v8517
    %v8520 = vsub.f32 %v8488, %v8518
    %v8521 = vmul.f32 %v8418, %v8493
    %v8522 = vmul.f32 %v8420, %v8497
    %v8524 = vlaneseq
    %v8525 = vshrl.u32 %v8524, 7
    %v8526 = vsub.s32 0, %v8525
    %v8527 = vrot.slane %v8520, %v8526
    %v8528 = vlaneseq
    %v8529 = vshrl.u32 %v8528, 7
    %v8530 = vsub.s32 1, %v8529
    %v8531 = vrot.slane %v8520, %v8530
    %v8534 = vadd.f32 %v8521, %v8527
    %v8535 = vadd.f32 %v8522, %v8531
    %v8538 = vrot.slane %v8534, 1
    %v8539 = vrot.slane %v8535, 1
    %v8542 = vadd.f32 %v8534, %v8538
    %v8543 = vadd.f32 %v8535, %v8539
    %v8544 = vmul.f32 %v8542, 0.5
    %v8545 = vmul.f32 %v8543, 0.5
    %v8548 = vrot.slane %v8544, 1
    %v8549 = vrot.slane %v8545, 1
    %v8552 = vsel %vm1925, %v8544, %v8548
    %v8553 = vsel %vm1925, %v8545, %v8549
    %v8556 = vcombine.low %v8552, %v8553
    %v8558 = vunpack.c.l.s4 1983009808
    %v8559 = vunpack.c.0.s8 %v8558
    %v8560 = vlaneseq
    %v8561 = vshrl.u32 %v8560, 7
    %v8562 = vsub.s32 %v8559, %v8561
    %v8563 = vrot.slane %v8556, %v8562
    %8565 = vst [vmem:[#allocation5] sm:$0xf] %v8563
    // Predicated region
    $region86: #{acnn_forward.1} parent=1 // pred_check
      _
    $region87: #{acnn_forward.1} parent=1 // pred_check_branch
      %8567 = sbr.rel (0) target = $region89
    $region88: #{acnn_forward.1} parent=1 // pred_region
      %s8569 = ssub.s32 64, 64
      %8570 = vsyncadd [#allocation4], %s8569
      %s8572 = sshll.u32 [#allocation5], 4
      %s8573 = int_to_ptr.vmem [resolvable:$true] %s8572
      %8575 = dma.vmem_to_hbm [thread:$0]  %s8573, 64, %s20, [#allocation4]
    $region89: #{acnn_forward.1} parent=1 // pred_fallthru
      _
    // Predicated region
    $region90: #{acnn_forward.1} parent=1 // pred_check
      _
    $region91: #{acnn_forward.1} parent=1 // pred_check_branch
      %8577 = sbr.rel (0) target = $region93
    $region92: #{acnn_forward.1} parent=1 // pred_region
      %8578 = dma.done [#allocation4], 64
    $region93: #{acnn_forward.1} parent=1 // pred_fallthru
      _
    %8579 = vsyncpa [#allocation3], 1
    %8580 = vsyncpa [#allocation4], 1

</llo_original>
